<compile_context>
chip_gen: v6e
topology: v6e:2x2x1
jax: 0.10.0
libtpu: 0.0.40
codegen_flags: <defaults>
</compile_context>

<pallas_src>
import functools
import math

import numpy as np
import jax
import jax.numpy as jnp
from jax.experimental import pallas as pl
from jax.experimental.pallas import tpu as pltpu


def _round_up(a, b):
    return -(-a // b) * b


# ----------------------------------------------------------------------------
# Pallas kernel: 3x3 same-padding conv, slab-free (9 tap-dots from shifted lane
# views), split-K over the cached sobel "a-group" and the per-layer "b-group",
# lane-dense 128-multiple output, fused bias + optional ReLU (+ residual).
# ----------------------------------------------------------------------------
def _conv3x3_kernel(*refs, has_b, has_res, relu, Wp, LO):
    it = iter(refs)
    a_ref = next(it)                        # (ca_pad, LI)   bf16 padded-origin
    b_ref = next(it) if has_b else None     # (cb_pad, LI)   bf16 padded-origin
    wa_ref = next(it)                       # (9, cout_pad, ca_pad) bf16
    wb_ref = next(it) if has_b else None    # (9, cout_pad, cb_pad) bf16
    bias_ref = next(it)                     # (cout_pad, 1)  f32
    res_ref = next(it) if has_res else None  # (1, LO)       f32
    o_ref = next(it)                        # (cout_pad, LO)

    acc = None
    for dy in range(3):
        for dx in range(3):
            t = dy * 3 + dx
            off = dy * Wp + dx
            d = jnp.dot(wa_ref[t], a_ref[:, off:off + LO],
                        preferred_element_type=jnp.float32)
            if has_b:
                d = d + jnp.dot(wb_ref[t], b_ref[:, off:off + LO],
                                preferred_element_type=jnp.float32)
            acc = d if acc is None else acc + d
    acc = acc + bias_ref[...]
    if relu:
        acc = jnp.maximum(acc, 0.0)
    if has_res:
        acc = acc + res_ref[...]
    o_ref[...] = acc.astype(o_ref.dtype)


def _to_b_wide(b_nchw, cb_pad, Wp, LI):
    """NCHW -> padded-origin wide-flat bf16 (N, cb_pad, LI) conv input."""
    N, Cb, H, W = b_nchw.shape
    rows = -(-LI // Wp)
    bottom = rows - 1 - H                    # >= 2 by construction of LI
    p = jnp.pad(b_nchw, ((0, 0), (0, cb_pad - Cb), (1, bottom), (1, 1)))
    return p.reshape(N, cb_pad, rows * Wp)[..., :LI].astype(jnp.bfloat16)


def _to_res_wide(x_n1hw, Wp, LO):
    """NCHW single channel -> unpadded-origin wide-flat f32 (N, 1, LO)."""
    N, _, H, W = x_n1hw.shape
    rows = -(-LO // Wp)
    p = jnp.pad(x_n1hw, ((0, 0), (0, 0), (0, rows - H), (0, 2)))
    return p.reshape(N, 1, rows * Wp)[..., :LO].astype(jnp.float32)


def conv3x3(slab, geom, b_nchw, w_oihw, bias, *, relu, a_scale=1.0,
            residual=None, out_dtype=jnp.bfloat16):
    """3x3 conv, stride 1, padding 1, over channels = [a-group | b-group].

    a-group: cached sobel slab (already padded wide-flat bf16, zero halo).
    b-group: NCHW tensor (or None); converted to the same layout here.
    """
    N, ca_pad, LI = slab.shape
    H, W, Wp = geom['H'], geom['W'], geom['Wp']
    Lw, LO, ca = geom['Lw'], geom['LO'], geom['ca']
    Cout, Cin = w_oihw.shape[0], w_oihw.shape[1]
    has_b = b_nchw is not None
    has_res = residual is not None
    cout_pad = _round_up(Cout, 8)

    # a-group weights, tap-major (dy,dx), zero padded, bf16 (a_scale folds the
    # sqrt(2) of the decoder residual add for the shared sobel channels).
    wa = jnp.transpose(w_oihw[:, :ca], (2, 3, 0, 1)).reshape(9, Cout, ca)
    wa = (wa * a_scale)
    wa = jnp.pad(wa, ((0, 0), (0, cout_pad - Cout), (0, ca_pad - ca)))
    wa = wa.astype(jnp.bfloat16)
    bias2 = jnp.pad(bias, (0, cout_pad - Cout)).reshape(cout_pad, 1)
    bias2 = bias2.astype(jnp.float32)

    inputs = [slab]
    in_specs = [pl.BlockSpec((None, ca_pad, LI), lambda n: (n, 0, 0))]

    if has_b:
        Cb = b_nchw.shape[1]
        assert Cin == ca + Cb
        cb_pad = _round_up(Cb, 16)
        b_wide = _to_b_wide(b_nchw, cb_pad, Wp, LI)
        wb = jnp.transpose(w_oihw[:, ca:], (2, 3, 0, 1)).reshape(9, Cout, Cb)
        wb = jnp.pad(wb, ((0, 0), (0, cout_pad - Cout), (0, cb_pad - Cb)))
        wb = wb.astype(jnp.bfloat16)
        inputs.append(b_wide)
        in_specs.append(pl.BlockSpec((None, cb_pad, LI), lambda n: (n, 0, 0)))
    else:
        assert Cin == ca
        cb_pad = 0

    inputs.append(wa)
    in_specs.append(pl.BlockSpec((9, cout_pad, ca_pad), lambda n: (0, 0, 0)))
    if has_b:
        inputs.append(wb)
        in_specs.append(pl.BlockSpec((9, cout_pad, cb_pad), lambda n: (0, 0, 0)))
    inputs.append(bias2)
    in_specs.append(pl.BlockSpec((cout_pad, 1), lambda n: (0, 0)))
    if has_res:
        inputs.append(_to_res_wide(residual, Wp, LO))
        in_specs.append(pl.BlockSpec((None, 1, LO), lambda n: (n, 0, 0)))

    kern = functools.partial(_conv3x3_kernel, has_b=has_b, has_res=has_res,
                             relu=relu, Wp=Wp, LO=LO)
    K = 9 * (ca_pad + cb_pad)
    out_bytes = N * cout_pad * LO * jnp.dtype(out_dtype).itemsize
    cost = pl.CostEstimate(
        flops=2 * N * LO * K * cout_pad,
        transcendentals=0,
        bytes_accessed=int(N * (ca_pad + cb_pad) * LI * 2 + out_bytes))

    out = pl.pallas_call(
        kern,
        out_shape=jax.ShapeDtypeStruct((N, cout_pad, LO), out_dtype),
        grid_spec=pltpu.PrefetchScalarGridSpec(
            num_scalar_prefetch=0,
            grid=(N,),
            in_specs=in_specs,
            out_specs=pl.BlockSpec((None, cout_pad, LO), lambda n: (n, 0, 0)),
        ),
        compiler_params=pltpu.CompilerParams(
            dimension_semantics=("parallel",)),
        cost_estimate=cost,
    )(*inputs)

    # Trim channel pad, lane pad and the 2 junk wide columns -> (N, Cout, H, W).
    return out[:, :Cout, :Lw].reshape(N, Cout, H, Wp)[:, :, :, :W]


# ----------------------------------------------------------------------------
# Pallas kernel: fused [x, SobelConv2d(1, cout)(x)] emitted DIRECTLY in the
# padded-origin wide-flat bf16 layout used as the conv a-group input.
# ----------------------------------------------------------------------------
_GX = ((-1., 0., 1.), (-2., 0., 2.), (-1., 0., 1.))
_GY = ((-1., -2., -1.), (0., 0., 0.), (1., 2., 1.))


def _sobel_slab_kernel(b_ref, m_ref, o_ref, *, Wp, LI, cout, ca_pad):
    # b_ref: (1, LB) f32 image padded (top=2,left=2), width Wp, flattened.
    # m_ref: (1, LI) f32 interior mask (1 inside the image, 0 on the halo).
    # o_ref: (ca_pad, LI) bf16: row 0 = padded image, rows 1.. = Gx/Gy alternating.
    img = b_ref[:, Wp + 1:Wp + 1 + LI]          # image with zero halo (row 0)
    gx = None
    gy = None
    for dy in range(3):
        for dx in range(3):
            cx, cy = _GX[dy][dx], _GY[dy][dx]
            if cx == 0.0 and cy == 0.0:
                continue
            p = b_ref[:, dy * Wp + dx:dy * Wp + dx + LI]
            if cx != 0.0:
                gx = cx * p if gx is None else gx + cx * p
            if cy != 0.0:
                gy = cy * p if gy is None else gy + cy * p
    m = m_ref[...]
    gx = gx * m
    gy = gy * m
    parts = [img] + [gx, gy] * (cout // 2)
    pad_rows = ca_pad - 1 - cout
    if pad_rows:
        parts.append(jnp.zeros((pad_rows, LI), jnp.float32))
    o_ref[...] = jnp.concatenate(parts, axis=0).astype(o_ref.dtype)


def sobel_slab(x_n1hw, cout):
    """torch.cat([x, SobelConv2d(1,cout)(x)], dim=1) as a ready-to-use conv
    a-group slab: (N, ca_pad, LI) bf16, padded-origin wide-flat, zero halo."""
    assert cout % 2 == 0
    N, _, H, W = x_n1hw.shape
    Wp = W + 2
    Lw = H * Wp
    LO = _round_up(Lw, 128)                 # conv output cols per image
    EXTRA = _round_up(2 * Wp + 2, 128)      # tap-read overhang
    LI = LO + EXTRA                         # conv input (slab) cols per image
    LB = LI + EXTRA                         # sobel-kernel input cols per image
    ca = 1 + cout
    ca_pad = _round_up(ca, 16)

    rows_b = -(-LB // Wp)
    B = jnp.pad(x_n1hw, ((0, 0), (0, 0), (2, rows_b - 2 - H), (2, 0)))
    B = B.reshape(N, 1, rows_b * Wp)[..., :LB].astype(jnp.float32)

    j = np.arange(LI)
    py, px = j // Wp, j % Wp
    mask = (((py >= 1) & (py <= H) & (px >= 1) & (px <= W))
            .astype(np.float32).reshape(1, LI))
    mask = jnp.asarray(mask)

    kern = functools.partial(_sobel_slab_kernel, Wp=Wp, LI=LI, cout=cout,
                             ca_pad=ca_pad)
    cost = pl.CostEstimate(
        flops=2 * N * LI * 12, transcendentals=0,
        bytes_accessed=int(N * LB * 4 + N * ca_pad * LI * 2))

    slab = pl.pallas_call(
        kern,
        out_shape=jax.ShapeDtypeStruct((N, ca_pad, LI), jnp.bfloat16),
        grid_spec=pltpu.PrefetchScalarGridSpec(
            num_scalar_prefetch=0,
            grid=(N,),
            in_specs=[
                pl.BlockSpec((None, 1, LB), lambda n: (n, 0, 0)),
                pl.BlockSpec((1, LI), lambda n: (0, 0)),
            ],
            out_specs=pl.BlockSpec((None, ca_pad, LI), lambda n: (n, 0, 0)),
        ),
        compiler_params=pltpu.CompilerParams(
            dimension_semantics=("parallel",)),
        cost_estimate=cost,
    )(B, mask)

    geom = dict(H=H, W=W, Wp=Wp, Lw=Lw, LO=LO, LI=LI, ca=ca)
    return slab, geom


# ----------------------------------------------------------------------------
# Pool / unpool glue (PyTorch-compatible flat indices per (n, c) plane).
# TODO(synk): kept in plain JAX (dynamic index scatter, no clean Pallas TPU path).
# ----------------------------------------------------------------------------
def max_pool2x2_with_indices(x):
    N, C, H, W = x.shape
    xw = x.reshape(N, C, H // 2, 2, W // 2, 2)
    xw = jnp.transpose(xw, (0, 1, 2, 4, 3, 5)).reshape(N, C, H // 2, W // 2, 4)
    vals = jnp.max(xw, axis=-1)
    am = jnp.argmax(xw, axis=-1)
    dh, dw = am // 2, am % 2
    base_h = (jnp.arange(H // 2) * 2)[None, None, :, None]
    base_w = (jnp.arange(W // 2) * 2)[None, None, None, :]
    idx = (base_h + dh) * W + (base_w + dw)
    return vals, idx


def max_unpool2x2(vals, idx, out_h, out_w):
    N, C, h, w = vals.shape
    flat_vals = vals.reshape(N, C, h * w)
    flat_idx = idx.reshape(N, C, h * w)
    out = jnp.zeros((N, C, out_h * out_w), vals.dtype)
    n_i = jnp.arange(N)[:, None, None]
    c_i = jnp.arange(C)[None, :, None]
    out = out.at[n_i, c_i, flat_idx].set(flat_vals)
    return out.reshape(N, C, out_h, out_w)


# ----------------------------------------------------------------------------
# Parameter construction (deterministic, in-script).  Sobel filters are fixed
# constants baked into the sobel kernel; BN folded into the learned convs.
# ----------------------------------------------------------------------------
def make_params(key, D, C):
    params = {}
    cin_mid = 2 * C + 1
    fan_in = cin_mid * 9
    # Eval-mode BN fold: running_mean=0, running_var=1, eps=C, gamma=1.25*sqrt(C).
    bn_scale = (1.25 * math.sqrt(C)) / math.sqrt(1.0 + C)

    ws, bs = [], []
    for _ in range(D):
        key, kw, kb = jax.random.split(key, 3)
        w = jax.random.normal(kw, (C, cin_mid, 3, 3), jnp.float32) * math.sqrt(2.0 / fan_in)
        b = jax.random.uniform(kb, (C,), jnp.float32,
                               -1.0 / math.sqrt(fan_in), 1.0 / math.sqrt(fan_in))
        ws.append(w * bn_scale)
        bs.append(b * bn_scale)
    params['w'] = ws
    params['b'] = bs

    key, kw, kb = jax.random.split(key, 3)
    bound = 1.0 / math.sqrt(fan_in)
    params['w_last'] = jax.random.uniform(kw, (1, cin_mid, 3, 3), jnp.float32, -bound, bound)
    params['b_last'] = jax.random.uniform(kb, (1,), jnp.float32, -bound, bound)
    return params


# ----------------------------------------------------------------------------
# EUDnCNN forward (mirrors the PyTorch module's forward).
# ----------------------------------------------------------------------------
def eudncnn_forward(x, params, D, C):
    N = x.shape[0]
    H0, W0 = x.shape[2], x.shape[3]
    x_flat = x.reshape(-1)
    slab_cache = {}   # memoize the sobel branch per resolution / channel count

    def slab_for(h, w, cout):
        key = (h, w, cout)
        if key not in slab_cache:
            numel = N * h * w
            # torch `resize_` semantics: keep leading storage, reinterpret shape.
            input_im = x_flat[:numel].reshape(N, 1, h, w)
            slab_cache[key] = sobel_slab(input_im, cout)
        return slab_cache[key]

    inv_sqrt2 = 1.0 / math.sqrt(2.0)
    Hc, Wc = H0, W0
    a_cout = 2 * C        # conv[0] = SobelConv2d(1, 2C); later layers use C
    cur_b = None          # NCHW half of the conv input (pool/unpool/conv output)

    h_buff, idx_buff, shape_buff = [], [], []
    for i in range(D // 2 - 1):
        shape_buff.append((Hc, Wc))
        slab, geom = slab_for(Hc, Wc, a_cout)
        hc = conv3x3(slab, geom, cur_b, params['w'][i], params['b'][i], relu=True)
        hp, idx = max_pool2x2_with_indices(hc)
        Hc, Wc = Hc // 2, Wc // 2
        a_cout = C
        cur_b = hp
        h_buff.append(hp)
        idx_buff.append(idx)

    for i in range(D // 2 - 1, D // 2 + 1):
        slab, geom = slab_for(Hc, Wc, a_cout)
        hc = conv3x3(slab, geom, cur_b, params['w'][i], params['b'][i], relu=True)
        a_cout = C
        cur_b = hc

    for i in range(D // 2 + 1, D):
        j = i - (D // 2 + 1) + 1
        # (h + h_buff[-j]) / sqrt(2): the shared sobel channels double -> the
        # sqrt(2) factor is folded into the a-group weights (a_scale); only the
        # conv-output halves need an explicit add here.
        b_in = (cur_b.astype(jnp.float32) + h_buff[-j].astype(jnp.float32)) * inv_sqrt2
        slab, geom = slab_for(Hc, Wc, C)
        hc = conv3x3(slab, geom, b_in, params['w'][i], params['b'][i],
                     relu=True, a_scale=math.sqrt(2.0))
        out_h, out_w = shape_buff[-j]
        hu = max_unpool2x2(hc, idx_buff[-j], out_h, out_w)
        Hc, Wc = out_h, out_w
        a_cout = C
        cur_b = hu

    slab, geom = slab_for(Hc, Wc, C)
    y = conv3x3(slab, geom, cur_b, params['w_last'], params['b_last'],
                relu=False, residual=x, out_dtype=jnp.float32)
    return y


if __name__ == "__main__":
    D, C = 4, 8           # small, D even so pool/unpool levels match
    N, H, W = 2, 16, 16

    key = jax.random.PRNGKey(0)
    key, kx = jax.random.split(key)
    x = jax.random.normal(kx, (N, 1, H, W), jnp.float32)

    params = make_params(key, D, C)

    fwd = jax.jit(functools.partial(eudncnn_forward, D=D, C=C))
    y = fwd(x, params)
    jax.block_until_ready(y)
    assert y.shape == (N, 1, H, W), y.shape
    assert bool(jnp.all(jnp.isfinite(y)))
    print("KERNEL_OK")
</pallas_src>

<mosaic_0001>
module attributes {stable_mosaic.version = 11 : i64} {
  func.func @_sobel_slab_kernel(%arg0: i32, %arg1: memref<1x1x640xf32, #tpu.memory_space<vmem>>, %arg2: memref<1x512xf32, #tpu.memory_space<vmem>>, %arg3: memref<1x16x512xbf16, #tpu.memory_space<vmem>>) attributes {dimension_semantics = [#tpu.dimension_semantics<parallel>], iteration_bounds = array<i64: 2>, scalar_prefetch = 0 : i64, scratch_operands = 0 : i64, tpu.core_type = #tpu.core_type<tc>, window_params = [{transform_indices = @transform_0, window_bounds = array<i64: 1, 1, 640>}, {pipeline_mode = #tpu.pipeline_mode<synchronous>, transform_indices = @transform_1, window_bounds = array<i64: 1, 512>}, {transform_indices = @transform_2, window_bounds = array<i64: 1, 16, 512>}]} {
    %c0 = arith.constant 0 : index
    %c0_0 = arith.constant 0 : index
    %c19 = arith.constant 19 : index
    %0 = vector.load %arg1[%c0, %c0_0, %c19] : memref<1x1x640xf32, #tpu.memory_space<vmem>>, vector<1x1x512xf32>
    %1 = vector.shape_cast %0 : vector<1x1x512xf32> to vector<1x512xf32>
    %c0_1 = arith.constant 0 : index
    %c0_2 = arith.constant 0 : index
    %c0_3 = arith.constant 0 : index
    %2 = vector.load %arg1[%c0_1, %c0_2, %c0_3] : memref<1x1x640xf32, #tpu.memory_space<vmem>>, vector<1x1x512xf32>
    %3 = vector.shape_cast %2 : vector<1x1x512xf32> to vector<1x512xf32>
    %cst = arith.constant -1.000000e+00 : f32
    %4 = vector.broadcast %cst : f32 to vector<1x512xf32>
    %5 = arith.mulf %4, %3 : vector<1x512xf32>
    %cst_4 = arith.constant -1.000000e+00 : f32
    %6 = vector.broadcast %cst_4 : f32 to vector<1x512xf32>
    %7 = arith.mulf %6, %3 : vector<1x512xf32>
    %c0_5 = arith.constant 0 : index
    %c0_6 = arith.constant 0 : index
    %c1 = arith.constant 1 : index
    %8 = vector.load %arg1[%c0_5, %c0_6, %c1] : memref<1x1x640xf32, #tpu.memory_space<vmem>>, vector<1x1x512xf32>
    %9 = vector.shape_cast %8 : vector<1x1x512xf32> to vector<1x512xf32>
    %cst_7 = arith.constant -2.000000e+00 : f32
    %10 = vector.broadcast %cst_7 : f32 to vector<1x512xf32>
    %11 = arith.mulf %10, %9 : vector<1x512xf32>
    %12 = arith.addf %7, %11 : vector<1x512xf32>
    %c0_8 = arith.constant 0 : index
    %c0_9 = arith.constant 0 : index
    %c2 = arith.constant 2 : index
    %13 = vector.load %arg1[%c0_8, %c0_9, %c2] : memref<1x1x640xf32, #tpu.memory_space<vmem>>, vector<1x1x512xf32>
    %14 = vector.shape_cast %13 : vector<1x1x512xf32> to vector<1x512xf32>
    %cst_10 = arith.constant 1.000000e+00 : f32
    %15 = vector.broadcast %cst_10 : f32 to vector<1x512xf32>
    %16 = arith.mulf %15, %14 : vector<1x512xf32>
    %17 = arith.addf %5, %16 : vector<1x512xf32>
    %cst_11 = arith.constant -1.000000e+00 : f32
    %18 = vector.broadcast %cst_11 : f32 to vector<1x512xf32>
    %19 = arith.mulf %18, %14 : vector<1x512xf32>
    %20 = arith.addf %12, %19 : vector<1x512xf32>
    %c0_12 = arith.constant 0 : index
    %c0_13 = arith.constant 0 : index
    %c18 = arith.constant 18 : index
    %21 = vector.load %arg1[%c0_12, %c0_13, %c18] : memref<1x1x640xf32, #tpu.memory_space<vmem>>, vector<1x1x512xf32>
    %22 = vector.shape_cast %21 : vector<1x1x512xf32> to vector<1x512xf32>
    %cst_14 = arith.constant -2.000000e+00 : f32
    %23 = vector.broadcast %cst_14 : f32 to vector<1x512xf32>
    %24 = arith.mulf %23, %22 : vector<1x512xf32>
    %25 = arith.addf %17, %24 : vector<1x512xf32>
    %c0_15 = arith.constant 0 : index
    %c0_16 = arith.constant 0 : index
    %c20 = arith.constant 20 : index
    %26 = vector.load %arg1[%c0_15, %c0_16, %c20] : memref<1x1x640xf32, #tpu.memory_space<vmem>>, vector<1x1x512xf32>
    %27 = vector.shape_cast %26 : vector<1x1x512xf32> to vector<1x512xf32>
    %cst_17 = arith.constant 2.000000e+00 : f32
    %28 = vector.broadcast %cst_17 : f32 to vector<1x512xf32>
    %29 = arith.mulf %28, %27 : vector<1x512xf32>
    %30 = arith.addf %25, %29 : vector<1x512xf32>
    %c0_18 = arith.constant 0 : index
    %c0_19 = arith.constant 0 : index
    %c36 = arith.constant 36 : index
    %31 = vector.load %arg1[%c0_18, %c0_19, %c36] : memref<1x1x640xf32, #tpu.memory_space<vmem>>, vector<1x1x512xf32>
    %32 = vector.shape_cast %31 : vector<1x1x512xf32> to vector<1x512xf32>
    %cst_20 = arith.constant -1.000000e+00 : f32
    %33 = vector.broadcast %cst_20 : f32 to vector<1x512xf32>
    %34 = arith.mulf %33, %32 : vector<1x512xf32>
    %35 = arith.addf %30, %34 : vector<1x512xf32>
    %cst_21 = arith.constant 1.000000e+00 : f32
    %36 = vector.broadcast %cst_21 : f32 to vector<1x512xf32>
    %37 = arith.mulf %36, %32 : vector<1x512xf32>
    %38 = arith.addf %20, %37 : vector<1x512xf32>
    %c0_22 = arith.constant 0 : index
    %c0_23 = arith.constant 0 : index
    %c37 = arith.constant 37 : index
    %39 = vector.load %arg1[%c0_22, %c0_23, %c37] : memref<1x1x640xf32, #tpu.memory_space<vmem>>, vector<1x1x512xf32>
    %40 = vector.shape_cast %39 : vector<1x1x512xf32> to vector<1x512xf32>
    %cst_24 = arith.constant 2.000000e+00 : f32
    %41 = vector.broadcast %cst_24 : f32 to vector<1x512xf32>
    %42 = arith.mulf %41, %40 : vector<1x512xf32>
    %43 = arith.addf %38, %42 : vector<1x512xf32>
    %c0_25 = arith.constant 0 : index
    %c0_26 = arith.constant 0 : index
    %c38 = arith.constant 38 : index
    %44 = vector.load %arg1[%c0_25, %c0_26, %c38] : memref<1x1x640xf32, #tpu.memory_space<vmem>>, vector<1x1x512xf32>
    %45 = vector.shape_cast %44 : vector<1x1x512xf32> to vector<1x512xf32>
    %cst_27 = arith.constant 1.000000e+00 : f32
    %46 = vector.broadcast %cst_27 : f32 to vector<1x512xf32>
    %47 = arith.mulf %46, %45 : vector<1x512xf32>
    %48 = arith.addf %35, %47 : vector<1x512xf32>
    %cst_28 = arith.constant 1.000000e+00 : f32
    %49 = vector.broadcast %cst_28 : f32 to vector<1x512xf32>
    %50 = arith.mulf %49, %45 : vector<1x512xf32>
    %51 = arith.addf %43, %50 : vector<1x512xf32>
    %c0_29 = arith.constant 0 : index
    %c0_30 = arith.constant 0 : index
    %52 = vector.load %arg2[%c0_29, %c0_30] : memref<1x512xf32, #tpu.memory_space<vmem>>, vector<1x512xf32>
    %53 = arith.mulf %48, %52 : vector<1x512xf32>
    %54 = arith.mulf %51, %52 : vector<1x512xf32>
    %cst_31 = arith.constant 0.000000e+00 : f32
    %55 = vector.broadcast %cst_31 : f32 to vector<7x512xf32>
    %56 = tpu.concatenate %1, %53, %54, %53, %54, %53, %54, %53, %54, %55 in 0 : vector<1x512xf32>, vector<1x512xf32>, vector<1x512xf32>, vector<1x512xf32>, vector<1x512xf32>, vector<1x512xf32>, vector<1x512xf32>, vector<1x512xf32>, vector<1x512xf32>, vector<7x512xf32> -> vector<16x512xf32>
    %57 = arith.truncf %56 : vector<16x512xf32> to vector<16x512xbf16>
    %c0_32 = arith.constant 0 : index
    %c0_33 = arith.constant 0 : index
    %c0_34 = arith.constant 0 : index
    %58 = vector.load %arg3[%c0_32, %c0_33, %c0_34] : memref<1x16x512xbf16, #tpu.memory_space<vmem>>, vector<1x16x512xbf16>
    %59 = vector.shape_cast %58 : vector<1x16x512xbf16> to vector<16x512xbf16>
    %60 = vector.shape_cast %57 : vector<16x512xbf16> to vector<1x16x512xbf16>
    tpu.vector_store %arg3[%c0_32, %c0_33, %c0_34], %60 {strides = array<i32>} : memref<1x16x512xbf16, #tpu.memory_space<vmem>>, vector<1x16x512xbf16>,
    return
  }
  func.func @transform_0(%arg0: i32) -> (i32, i32, i32) {
    %c0_i32 = arith.constant 0 : i32
    %c0_i32_0 = arith.constant 0 : i32
    %c0_i32_1 = arith.constant 0 : i32
    return %arg0, %c0_i32, %c0_i32_0 : i32, i32, i32
  }
  func.func @transform_1(%arg0: i32) -> (i32, i32) {
    %c0_i32 = arith.constant 0 : i32
    %c0_i32_0 = arith.constant 0 : i32
    %c0_i32_1 = arith.constant 0 : i32
    return %c0_i32, %c0_i32_0 : i32, i32
  }
  func.func @transform_2(%arg0: i32) -> (i32, i32, i32) {
    %c0_i32 = arith.constant 0 : i32
    %c0_i32_0 = arith.constant 0 : i32
    %c0_i32_1 = arith.constant 0 : i32
    return %arg0, %c0_i32, %c0_i32_0 : i32, i32, i32
  }
}

module attributes {stable_mosaic.version = 11 : i64} {
  func.func @_sobel_slab_kernel(%arg0: i32, %arg1: memref<1x1x640xf32, #tpu.memory_space<vmem>>, %arg2: memref<1x512xf32, #tpu.memory_space<vmem>>, %arg3: memref<1x32x512xbf16, #tpu.memory_space<vmem>>) attributes {dimension_semantics = [#tpu.dimension_semantics<parallel>], iteration_bounds = array<i64: 2>, scalar_prefetch = 0 : i64, scratch_operands = 0 : i64, tpu.core_type = #tpu.core_type<tc>, window_params = [{transform_indices = @transform_0, window_bounds = array<i64: 1, 1, 640>}, {pipeline_mode = #tpu.pipeline_mode<synchronous>, transform_indices = @transform_1, window_bounds = array<i64: 1, 512>}, {transform_indices = @transform_2, window_bounds = array<i64: 1, 32, 512>}]} {
    %c0 = arith.constant 0 : index
    %c0_0 = arith.constant 0 : index
    %c19 = arith.constant 19 : index
    %0 = vector.load %arg1[%c0, %c0_0, %c19] : memref<1x1x640xf32, #tpu.memory_space<vmem>>, vector<1x1x512xf32>
    %1 = vector.shape_cast %0 : vector<1x1x512xf32> to vector<1x512xf32>
    %c0_1 = arith.constant 0 : index
    %c0_2 = arith.constant 0 : index
    %c0_3 = arith.constant 0 : index
    %2 = vector.load %arg1[%c0_1, %c0_2, %c0_3] : memref<1x1x640xf32, #tpu.memory_space<vmem>>, vector<1x1x512xf32>
    %3 = vector.shape_cast %2 : vector<1x1x512xf32> to vector<1x512xf32>
    %cst = arith.constant -1.000000e+00 : f32
    %4 = vector.broadcast %cst : f32 to vector<1x512xf32>
    %5 = arith.mulf %4, %3 : vector<1x512xf32>
    %cst_4 = arith.constant -1.000000e+00 : f32
    %6 = vector.broadcast %cst_4 : f32 to vector<1x512xf32>
    %7 = arith.mulf %6, %3 : vector<1x512xf32>
    %c0_5 = arith.constant 0 : index
    %c0_6 = arith.constant 0 : index
    %c1 = arith.constant 1 : index
    %8 = vector.load %arg1[%c0_5, %c0_6, %c1] : memref<1x1x640xf32, #tpu.memory_space<vmem>>, vector<1x1x512xf32>
    %9 = vector.shape_cast %8 : vector<1x1x512xf32> to vector<1x512xf32>
    %cst_7 = arith.constant -2.000000e+00 : f32
    %10 = vector.broadcast %cst_7 : f32 to vector<1x512xf32>
    %11 = arith.mulf %10, %9 : vector<1x512xf32>
    %12 = arith.addf %7, %11 : vector<1x512xf32>
    %c0_8 = arith.constant 0 : index
    %c0_9 = arith.constant 0 : index
    %c2 = arith.constant 2 : index
    %13 = vector.load %arg1[%c0_8, %c0_9, %c2] : memref<1x1x640xf32, #tpu.memory_space<vmem>>, vector<1x1x512xf32>
    %14 = vector.shape_cast %13 : vector<1x1x512xf32> to vector<1x512xf32>
    %cst_10 = arith.constant 1.000000e+00 : f32
    %15 = vector.broadcast %cst_10 : f32 to vector<1x512xf32>
    %16 = arith.mulf %15, %14 : vector<1x512xf32>
    %17 = arith.addf %5, %16 : vector<1x512xf32>
    %cst_11 = arith.constant -1.000000e+00 : f32
    %18 = vector.broadcast %cst_11 : f32 to vector<1x512xf32>
    %19 = arith.mulf %18, %14 : vector<1x512xf32>
    %20 = arith.addf %12, %19 : vector<1x512xf32>
    %c0_12 = arith.constant 0 : index
    %c0_13 = arith.constant 0 : index
    %c18 = arith.constant 18 : index
    %21 = vector.load %arg1[%c0_12, %c0_13, %c18] : memref<1x1x640xf32, #tpu.memory_space<vmem>>, vector<1x1x512xf32>
    %22 = vector.shape_cast %21 : vector<1x1x512xf32> to vector<1x512xf32>
    %cst_14 = arith.constant -2.000000e+00 : f32
    %23 = vector.broadcast %cst_14 : f32 to vector<1x512xf32>
    %24 = arith.mulf %23, %22 : vector<1x512xf32>
    %25 = arith.addf %17, %24 : vector<1x512xf32>
    %c0_15 = arith.constant 0 : index
    %c0_16 = arith.constant 0 : index
    %c20 = arith.constant 20 : index
    %26 = vector.load %arg1[%c0_15, %c0_16, %c20] : memref<1x1x640xf32, #tpu.memory_space<vmem>>, vector<1x1x512xf32>
    %27 = vector.shape_cast %26 : vector<1x1x512xf32> to vector<1x512xf32>
    %cst_17 = arith.constant 2.000000e+00 : f32
    %28 = vector.broadcast %cst_17 : f32 to vector<1x512xf32>
    %29 = arith.mulf %28, %27 : vector<1x512xf32>
    %30 = arith.addf %25, %29 : vector<1x512xf32>
    %c0_18 = arith.constant 0 : index
    %c0_19 = arith.constant 0 : index
    %c36 = arith.constant 36 : index
    %31 = vector.load %arg1[%c0_18, %c0_19, %c36] : memref<1x1x640xf32, #tpu.memory_space<vmem>>, vector<1x1x512xf32>
    %32 = vector.shape_cast %31 : vector<1x1x512xf32> to vector<1x512xf32>
    %cst_20 = arith.constant -1.000000e+00 : f32
    %33 = vector.broadcast %cst_20 : f32 to vector<1x512xf32>
    %34 = arith.mulf %33, %32 : vector<1x512xf32>
    %35 = arith.addf %30, %34 : vector<1x512xf32>
    %cst_21 = arith.constant 1.000000e+00 : f32
    %36 = vector.broadcast %cst_21 : f32 to vector<1x512xf32>
    %37 = arith.mulf %36, %32 : vector<1x512xf32>
    %38 = arith.addf %20, %37 : vector<1x512xf32>
    %c0_22 = arith.constant 0 : index
    %c0_23 = arith.constant 0 : index
    %c37 = arith.constant 37 : index
    %39 = vector.load %arg1[%c0_22, %c0_23, %c37] : memref<1x1x640xf32, #tpu.memory_space<vmem>>, vector<1x1x512xf32>
    %40 = vector.shape_cast %39 : vector<1x1x512xf32> to vector<1x512xf32>
    %cst_24 = arith.constant 2.000000e+00 : f32
    %41 = vector.broadcast %cst_24 : f32 to vector<1x512xf32>
    %42 = arith.mulf %41, %40 : vector<1x512xf32>
    %43 = arith.addf %38, %42 : vector<1x512xf32>
    %c0_25 = arith.constant 0 : index
    %c0_26 = arith.constant 0 : index
    %c38 = arith.constant 38 : index
    %44 = vector.load %arg1[%c0_25, %c0_26, %c38] : memref<1x1x640xf32, #tpu.memory_space<vmem>>, vector<1x1x512xf32>
    %45 = vector.shape_cast %44 : vector<1x1x512xf32> to vector<1x512xf32>
    %cst_27 = arith.constant 1.000000e+00 : f32
    %46 = vector.broadcast %cst_27 : f32 to vector<1x512xf32>
    %47 = arith.mulf %46, %45 : vector<1x512xf32>
    %48 = arith.addf %35, %47 : vector<1x512xf32>
    %cst_28 = arith.constant 1.000000e+00 : f32
    %49 = vector.broadcast %cst_28 : f32 to vector<1x512xf32>
    %50 = arith.mulf %49, %45 : vector<1x512xf32>
    %51 = arith.addf %43, %50 : vector<1x512xf32>
    %c0_29 = arith.constant 0 : index
    %c0_30 = arith.constant 0 : index
    %52 = vector.load %arg2[%c0_29, %c0_30] : memref<1x512xf32, #tpu.memory_space<vmem>>, vector<1x512xf32>
    %53 = arith.mulf %48, %52 : vector<1x512xf32>
    %54 = arith.mulf %51, %52 : vector<1x512xf32>
    %cst_31 = arith.constant 0.000000e+00 : f32
    %55 = vector.broadcast %cst_31 : f32 to vector<15x512xf32>
    %56 = tpu.concatenate %1, %53, %54, %53, %54, %53, %54, %53, %54, %53, %54, %53, %54, %53, %54, %53 in 0 : vector<1x512xf32>, vector<1x512xf32>, vector<1x512xf32>, vector<1x512xf32>, vector<1x512xf32>, vector<1x512xf32>, vector<1x512xf32>, vector<1x512xf32>, vector<1x512xf32>, vector<1x512xf32>, vector<1x512xf32>, vector<1x512xf32>, vector<1x512xf32>, vector<1x512xf32>, vector<1x512xf32>, vector<1x512xf32> -> vector<16x512xf32>
    %57 = tpu.concatenate %54, %55 in 0 : vector<1x512xf32>, vector<15x512xf32> -> vector<16x512xf32>
    %58 = tpu.concatenate %56, %57 in 0 : vector<16x512xf32>, vector<16x512xf32> -> vector<32x512xf32>
    %59 = arith.truncf %58 : vector<32x512xf32> to vector<32x512xbf16>
    %c0_32 = arith.constant 0 : index
    %c0_33 = arith.constant 0 : index
    %c0_34 = arith.constant 0 : index
    %60 = vector.load %arg3[%c0_32, %c0_33, %c0_34] : memref<1x32x512xbf16, #tpu.memory_space<vmem>>, vector<1x32x512xbf16>
    %61 = vector.shape_cast %60 : vector<1x32x512xbf16> to vector<32x512xbf16>
    %62 = vector.shape_cast %59 : vector<32x512xbf16> to vector<1x32x512xbf16>
    tpu.vector_store %arg3[%c0_32, %c0_33, %c0_34], %62 {strides = array<i32>} : memref<1x32x512xbf16, #tpu.memory_space<vmem>>, vector<1x32x512xbf16>,
    return
  }
  func.func @transform_0(%arg0: i32) -> (i32, i32, i32) {
    %c0_i32 = arith.constant 0 : i32
    %c0_i32_0 = arith.constant 0 : i32
    %c0_i32_1 = arith.constant 0 : i32
    return %arg0, %c0_i32, %c0_i32_0 : i32, i32, i32
  }
  func.func @transform_1(%arg0: i32) -> (i32, i32) {
    %c0_i32 = arith.constant 0 : i32
    %c0_i32_0 = arith.constant 0 : i32
    %c0_i32_1 = arith.constant 0 : i32
    return %c0_i32, %c0_i32_0 : i32, i32
  }
  func.func @transform_2(%arg0: i32) -> (i32, i32, i32) {
    %c0_i32 = arith.constant 0 : i32
    %c0_i32_0 = arith.constant 0 : i32
    %c0_i32_1 = arith.constant 0 : i32
    return %arg0, %c0_i32, %c0_i32_0 : i32, i32, i32
  }
}

module attributes {stable_mosaic.version = 11 : i64} {
  func.func @_conv3x3_kernel(%arg0: i32, %arg1: memref<1x32x512xbf16, #tpu.memory_space<vmem>>, %arg2: memref<9x8x32xbf16, #tpu.memory_space<vmem>>, %arg3: memref<8x1xf32, #tpu.memory_space<vmem>>, %arg4: memref<1x8x384xbf16, #tpu.memory_space<vmem>>) attributes {dimension_semantics = [#tpu.dimension_semantics<parallel>], iteration_bounds = array<i64: 2>, scalar_prefetch = 0 : i64, scratch_operands = 0 : i64, tpu.core_type = #tpu.core_type<tc>, window_params = [{transform_indices = @transform_0, window_bounds = array<i64: 1, 32, 512>}, {pipeline_mode = #tpu.pipeline_mode<synchronous>, transform_indices = @transform_1, window_bounds = array<i64: 9, 8, 32>}, {pipeline_mode = #tpu.pipeline_mode<synchronous>, transform_indices = @transform_2, window_bounds = array<i64: 8, 1>}, {transform_indices = @transform_3, window_bounds = array<i64: 1, 8, 384>}]} {
    %c0 = arith.constant 0 : index
    %c0_0 = arith.constant 0 : index
    %c0_1 = arith.constant 0 : index
    %0 = vector.load %arg2[%c0, %c0_0, %c0_1] : memref<9x8x32xbf16, #tpu.memory_space<vmem>>, vector<1x8x32xbf16>
    %1 = vector.shape_cast %0 : vector<1x8x32xbf16> to vector<8x32xbf16>
    %c0_2 = arith.constant 0 : index
    %c0_3 = arith.constant 0 : index
    %c0_4 = arith.constant 0 : index
    %2 = vector.load %arg1[%c0_2, %c0_3, %c0_4] : memref<1x32x512xbf16, #tpu.memory_space<vmem>>, vector<1x32x384xbf16>
    %3 = vector.shape_cast %2 : vector<1x32x384xbf16> to vector<32x384xbf16>
    %cst = arith.constant dense<0.000000e+00> : vector<8x384xf32>
    %4 = tpu.matmul %1, %3, %cst {dimension_numbers = #tpu.dot_dimension_numbers<[1], [0], [0], [1], [0, 0, 1, 1], [], []>} : vector<8x32xbf16>, vector<32x384xbf16>, vector<8x384xf32> -> vector<8x384xf32>
    %c1 = arith.constant 1 : index
    %c0_5 = arith.constant 0 : index
    %c0_6 = arith.constant 0 : index
    %5 = vector.load %arg2[%c1, %c0_5, %c0_6] : memref<9x8x32xbf16, #tpu.memory_space<vmem>>, vector<1x8x32xbf16>
    %6 = vector.shape_cast %5 : vector<1x8x32xbf16> to vector<8x32xbf16>
    %c0_7 = arith.constant 0 : index
    %c0_8 = arith.constant 0 : index
    %c1_9 = arith.constant 1 : index
    %7 = vector.load %arg1[%c0_7, %c0_8, %c1_9] : memref<1x32x512xbf16, #tpu.memory_space<vmem>>, vector<1x32x384xbf16>
    %8 = vector.shape_cast %7 : vector<1x32x384xbf16> to vector<32x384xbf16>
    %cst_10 = arith.constant dense<0.000000e+00> : vector<8x384xf32>
    %9 = tpu.matmul %6, %8, %cst_10 {dimension_numbers = #tpu.dot_dimension_numbers<[1], [0], [0], [1], [0, 0, 1, 1], [], []>} : vector<8x32xbf16>, vector<32x384xbf16>, vector<8x384xf32> -> vector<8x384xf32>
    %10 = arith.addf %4, %9 : vector<8x384xf32>
    %c2 = arith.constant 2 : index
    %c0_11 = arith.constant 0 : index
    %c0_12 = arith.constant 0 : index
    %11 = vector.load %arg2[%c2, %c0_11, %c0_12] : memref<9x8x32xbf16, #tpu.memory_space<vmem>>, vector<1x8x32xbf16>
    %12 = vector.shape_cast %11 : vector<1x8x32xbf16> to vector<8x32xbf16>
    %c0_13 = arith.constant 0 : index
    %c0_14 = arith.constant 0 : index
    %c2_15 = arith.constant 2 : index
    %13 = vector.load %arg1[%c0_13, %c0_14, %c2_15] : memref<1x32x512xbf16, #tpu.memory_space<vmem>>, vector<1x32x384xbf16>
    %14 = vector.shape_cast %13 : vector<1x32x384xbf16> to vector<32x384xbf16>
    %cst_16 = arith.constant dense<0.000000e+00> : vector<8x384xf32>
    %15 = tpu.matmul %12, %14, %cst_16 {dimension_numbers = #tpu.dot_dimension_numbers<[1], [0], [0], [1], [0, 0, 1, 1], [], []>} : vector<8x32xbf16>, vector<32x384xbf16>, vector<8x384xf32> -> vector<8x384xf32>
    %16 = arith.addf %10, %15 : vector<8x384xf32>
    %c3 = arith.constant 3 : index
    %c0_17 = arith.constant 0 : index
    %c0_18 = arith.constant 0 : index
    %17 = vector.load %arg2[%c3, %c0_17, %c0_18] : memref<9x8x32xbf16, #tpu.memory_space<vmem>>, vector<1x8x32xbf16>
    %18 = vector.shape_cast %17 : vector<1x8x32xbf16> to vector<8x32xbf16>
    %c0_19 = arith.constant 0 : index
    %c0_20 = arith.constant 0 : index
    %c18 = arith.constant 18 : index
    %19 = vector.load %arg1[%c0_19, %c0_20, %c18] : memref<1x32x512xbf16, #tpu.memory_space<vmem>>, vector<1x32x384xbf16>
    %20 = vector.shape_cast %19 : vector<1x32x384xbf16> to vector<32x384xbf16>
    %cst_21 = arith.constant dense<0.000000e+00> : vector<8x384xf32>
    %21 = tpu.matmul %18, %20, %cst_21 {dimension_numbers = #tpu.dot_dimension_numbers<[1], [0], [0], [1], [0, 0, 1, 1], [], []>} : vector<8x32xbf16>, vector<32x384xbf16>, vector<8x384xf32> -> vector<8x384xf32>
    %22 = arith.addf %16, %21 : vector<8x384xf32>
    %c4 = arith.constant 4 : index
    %c0_22 = arith.constant 0 : index
    %c0_23 = arith.constant 0 : index
    %23 = vector.load %arg2[%c4, %c0_22, %c0_23] : memref<9x8x32xbf16, #tpu.memory_space<vmem>>, vector<1x8x32xbf16>
    %24 = vector.shape_cast %23 : vector<1x8x32xbf16> to vector<8x32xbf16>
    %c0_24 = arith.constant 0 : index
    %c0_25 = arith.constant 0 : index
    %c19 = arith.constant 19 : index
    %25 = vector.load %arg1[%c0_24, %c0_25, %c19] : memref<1x32x512xbf16, #tpu.memory_space<vmem>>, vector<1x32x384xbf16>
    %26 = vector.shape_cast %25 : vector<1x32x384xbf16> to vector<32x384xbf16>
    %cst_26 = arith.constant dense<0.000000e+00> : vector<8x384xf32>
    %27 = tpu.matmul %24, %26, %cst_26 {dimension_numbers = #tpu.dot_dimension_numbers<[1], [0], [0], [1], [0, 0, 1, 1], [], []>} : vector<8x32xbf16>, vector<32x384xbf16>, vector<8x384xf32> -> vector<8x384xf32>
    %28 = arith.addf %22, %27 : vector<8x384xf32>
    %c5 = arith.constant 5 : index
    %c0_27 = arith.constant 0 : index
    %c0_28 = arith.constant 0 : index
    %29 = vector.load %arg2[%c5, %c0_27, %c0_28] : memref<9x8x32xbf16, #tpu.memory_space<vmem>>, vector<1x8x32xbf16>
    %30 = vector.shape_cast %29 : vector<1x8x32xbf16> to vector<8x32xbf16>
    %c0_29 = arith.constant 0 : index
    %c0_30 = arith.constant 0 : index
    %c20 = arith.constant 20 : index
    %31 = vector.load %arg1[%c0_29, %c0_30, %c20] : memref<1x32x512xbf16, #tpu.memory_space<vmem>>, vector<1x32x384xbf16>
    %32 = vector.shape_cast %31 : vector<1x32x384xbf16> to vector<32x384xbf16>
    %cst_31 = arith.constant dense<0.000000e+00> : vector<8x384xf32>
    %33 = tpu.matmul %30, %32, %cst_31 {dimension_numbers = #tpu.dot_dimension_numbers<[1], [0], [0], [1], [0, 0, 1, 1], [], []>} : vector<8x32xbf16>, vector<32x384xbf16>, vector<8x384xf32> -> vector<8x384xf32>
    %34 = arith.addf %28, %33 : vector<8x384xf32>
    %c6 = arith.constant 6 : index
    %c0_32 = arith.constant 0 : index
    %c0_33 = arith.constant 0 : index
    %35 = vector.load %arg2[%c6, %c0_32, %c0_33] : memref<9x8x32xbf16, #tpu.memory_space<vmem>>, vector<1x8x32xbf16>
    %36 = vector.shape_cast %35 : vector<1x8x32xbf16> to vector<8x32xbf16>
    %c0_34 = arith.constant 0 : index
    %c0_35 = arith.constant 0 : index
    %c36 = arith.constant 36 : index
    %37 = vector.load %arg1[%c0_34, %c0_35, %c36] : memref<1x32x512xbf16, #tpu.memory_space<vmem>>, vector<1x32x384xbf16>
    %38 = vector.shape_cast %37 : vector<1x32x384xbf16> to vector<32x384xbf16>
    %cst_36 = arith.constant dense<0.000000e+00> : vector<8x384xf32>
    %39 = tpu.matmul %36, %38, %cst_36 {dimension_numbers = #tpu.dot_dimension_numbers<[1], [0], [0], [1], [0, 0, 1, 1], [], []>} : vector<8x32xbf16>, vector<32x384xbf16>, vector<8x384xf32> -> vector<8x384xf32>
    %40 = arith.addf %34, %39 : vector<8x384xf32>
    %c7 = arith.constant 7 : index
    %c0_37 = arith.constant 0 : index
    %c0_38 = arith.constant 0 : index
    %41 = vector.load %arg2[%c7, %c0_37, %c0_38] : memref<9x8x32xbf16, #tpu.memory_space<vmem>>, vector<1x8x32xbf16>
    %42 = vector.shape_cast %41 : vector<1x8x32xbf16> to vector<8x32xbf16>
    %c0_39 = arith.constant 0 : index
    %c0_40 = arith.constant 0 : index
    %c37 = arith.constant 37 : index
    %43 = vector.load %arg1[%c0_39, %c0_40, %c37] : memref<1x32x512xbf16, #tpu.memory_space<vmem>>, vector<1x32x384xbf16>
    %44 = vector.shape_cast %43 : vector<1x32x384xbf16> to vector<32x384xbf16>
    %cst_41 = arith.constant dense<0.000000e+00> : vector<8x384xf32>
    %45 = tpu.matmul %42, %44, %cst_41 {dimension_numbers = #tpu.dot_dimension_numbers<[1], [0], [0], [1], [0, 0, 1, 1], [], []>} : vector<8x32xbf16>, vector<32x384xbf16>, vector<8x384xf32> -> vector<8x384xf32>
    %46 = arith.addf %40, %45 : vector<8x384xf32>
    %c8 = arith.constant 8 : index
    %c0_42 = arith.constant 0 : index
    %c0_43 = arith.constant 0 : index
    %47 = vector.load %arg2[%c8, %c0_42, %c0_43] : memref<9x8x32xbf16, #tpu.memory_space<vmem>>, vector<1x8x32xbf16>
    %48 = vector.shape_cast %47 : vector<1x8x32xbf16> to vector<8x32xbf16>
    %c0_44 = arith.constant 0 : index
    %c0_45 = arith.constant 0 : index
    %c38 = arith.constant 38 : index
    %49 = vector.load %arg1[%c0_44, %c0_45, %c38] : memref<1x32x512xbf16, #tpu.memory_space<vmem>>, vector<1x32x384xbf16>
    %50 = vector.shape_cast %49 : vector<1x32x384xbf16> to vector<32x384xbf16>
    %cst_46 = arith.constant dense<0.000000e+00> : vector<8x384xf32>
    %51 = tpu.matmul %48, %50, %cst_46 {dimension_numbers = #tpu.dot_dimension_numbers<[1], [0], [0], [1], [0, 0, 1, 1], [], []>} : vector<8x32xbf16>, vector<32x384xbf16>, vector<8x384xf32> -> vector<8x384xf32>
    %52 = arith.addf %46, %51 : vector<8x384xf32>
    %c0_47 = arith.constant 0 : index
    %c0_48 = arith.constant 0 : index
    %53 = vector.load %arg3[%c0_47, %c0_48] : memref<8x1xf32, #tpu.memory_space<vmem>>, vector<8x1xf32>
    %54 = vector.broadcast %53 : vector<8x1xf32> to vector<8x384xf32>
    %55 = arith.addf %52, %54 : vector<8x384xf32>
    %cst_49 = arith.constant 0.000000e+00 : f32
    %56 = vector.broadcast %cst_49 : f32 to vector<8x384xf32>
    %57 = arith.maximumf %55, %56 : vector<8x384xf32>
    %58 = arith.truncf %57 : vector<8x384xf32> to vector<8x384xbf16>
    %c0_50 = arith.constant 0 : index
    %c0_51 = arith.constant 0 : index
    %c0_52 = arith.constant 0 : index
    %59 = vector.load %arg4[%c0_50, %c0_51, %c0_52] : memref<1x8x384xbf16, #tpu.memory_space<vmem>>, vector<1x8x384xbf16>
    %60 = vector.shape_cast %59 : vector<1x8x384xbf16> to vector<8x384xbf16>
    %61 = vector.shape_cast %58 : vector<8x384xbf16> to vector<1x8x384xbf16>
    tpu.vector_store %arg4[%c0_50, %c0_51, %c0_52], %61 {strides = array<i32>} : memref<1x8x384xbf16, #tpu.memory_space<vmem>>, vector<1x8x384xbf16>,
    return
  }
  func.func @transform_0(%arg0: i32) -> (i32, i32, i32) {
    %c0_i32 = arith.constant 0 : i32
    %c0_i32_0 = arith.constant 0 : i32
    %c0_i32_1 = arith.constant 0 : i32
    return %arg0, %c0_i32, %c0_i32_0 : i32, i32, i32
  }
  func.func @transform_1(%arg0: i32) -> (i32, i32, i32) {
    %c0_i32 = arith.constant 0 : i32
    %c0_i32_0 = arith.constant 0 : i32
    %c0_i32_1 = arith.constant 0 : i32
    %c0_i32_2 = arith.constant 0 : i32
    return %c0_i32, %c0_i32_0, %c0_i32_1 : i32, i32, i32
  }
  func.func @transform_2(%arg0: i32) -> (i32, i32) {
    %c0_i32 = arith.constant 0 : i32
    %c0_i32_0 = arith.constant 0 : i32
    %c0_i32_1 = arith.constant 0 : i32
    return %c0_i32, %c0_i32_0 : i32, i32
  }
  func.func @transform_3(%arg0: i32) -> (i32, i32, i32) {
    %c0_i32 = arith.constant 0 : i32
    %c0_i32_0 = arith.constant 0 : i32
    %c0_i32_1 = arith.constant 0 : i32
    return %arg0, %c0_i32, %c0_i32_0 : i32, i32, i32
  }
}

module attributes {stable_mosaic.version = 11 : i64} {
  func.func @_sobel_slab_kernel(%arg0: i32, %arg1: memref<1x1x384xf32, #tpu.memory_space<vmem>>, %arg2: memref<1x256xf32, #tpu.memory_space<vmem>>, %arg3: memref<1x16x256xbf16, #tpu.memory_space<vmem>>) attributes {dimension_semantics = [#tpu.dimension_semantics<parallel>], iteration_bounds = array<i64: 2>, scalar_prefetch = 0 : i64, scratch_operands = 0 : i64, tpu.core_type = #tpu.core_type<tc>, window_params = [{transform_indices = @transform_0, window_bounds = array<i64: 1, 1, 384>}, {pipeline_mode = #tpu.pipeline_mode<synchronous>, transform_indices = @transform_1, window_bounds = array<i64: 1, 256>}, {transform_indices = @transform_2, window_bounds = array<i64: 1, 16, 256>}]} {
    %c0 = arith.constant 0 : index
    %c0_0 = arith.constant 0 : index
    %c11 = arith.constant 11 : index
    %0 = vector.load %arg1[%c0, %c0_0, %c11] : memref<1x1x384xf32, #tpu.memory_space<vmem>>, vector<1x1x256xf32>
    %1 = vector.shape_cast %0 : vector<1x1x256xf32> to vector<1x256xf32>
    %c0_1 = arith.constant 0 : index
    %c0_2 = arith.constant 0 : index
    %c0_3 = arith.constant 0 : index
    %2 = vector.load %arg1[%c0_1, %c0_2, %c0_3] : memref<1x1x384xf32, #tpu.memory_space<vmem>>, vector<1x1x256xf32>
    %3 = vector.shape_cast %2 : vector<1x1x256xf32> to vector<1x256xf32>
    %cst = arith.constant -1.000000e+00 : f32
    %4 = vector.broadcast %cst : f32 to vector<1x256xf32>
    %5 = arith.mulf %4, %3 : vector<1x256xf32>
    %cst_4 = arith.constant -1.000000e+00 : f32
    %6 = vector.broadcast %cst_4 : f32 to vector<1x256xf32>
    %7 = arith.mulf %6, %3 : vector<1x256xf32>
    %c0_5 = arith.constant 0 : index
    %c0_6 = arith.constant 0 : index
    %c1 = arith.constant 1 : index
    %8 = vector.load %arg1[%c0_5, %c0_6, %c1] : memref<1x1x384xf32, #tpu.memory_space<vmem>>, vector<1x1x256xf32>
    %9 = vector.shape_cast %8 : vector<1x1x256xf32> to vector<1x256xf32>
    %cst_7 = arith.constant -2.000000e+00 : f32
    %10 = vector.broadcast %cst_7 : f32 to vector<1x256xf32>
    %11 = arith.mulf %10, %9 : vector<1x256xf32>
    %12 = arith.addf %7, %11 : vector<1x256xf32>
    %c0_8 = arith.constant 0 : index
    %c0_9 = arith.constant 0 : index
    %c2 = arith.constant 2 : index
    %13 = vector.load %arg1[%c0_8, %c0_9, %c2] : memref<1x1x384xf32, #tpu.memory_space<vmem>>, vector<1x1x256xf32>
    %14 = vector.shape_cast %13 : vector<1x1x256xf32> to vector<1x256xf32>
    %cst_10 = arith.constant 1.000000e+00 : f32
    %15 = vector.broadcast %cst_10 : f32 to vector<1x256xf32>
    %16 = arith.mulf %15, %14 : vector<1x256xf32>
    %17 = arith.addf %5, %16 : vector<1x256xf32>
    %cst_11 = arith.constant -1.000000e+00 : f32
    %18 = vector.broadcast %cst_11 : f32 to vector<1x256xf32>
    %19 = arith.mulf %18, %14 : vector<1x256xf32>
    %20 = arith.addf %12, %19 : vector<1x256xf32>
    %c0_12 = arith.constant 0 : index
    %c0_13 = arith.constant 0 : index
    %c10 = arith.constant 10 : index
    %21 = vector.load %arg1[%c0_12, %c0_13, %c10] : memref<1x1x384xf32, #tpu.memory_space<vmem>>, vector<1x1x256xf32>
    %22 = vector.shape_cast %21 : vector<1x1x256xf32> to vector<1x256xf32>
    %cst_14 = arith.constant -2.000000e+00 : f32
    %23 = vector.broadcast %cst_14 : f32 to vector<1x256xf32>
    %24 = arith.mulf %23, %22 : vector<1x256xf32>
    %25 = arith.addf %17, %24 : vector<1x256xf32>
    %c0_15 = arith.constant 0 : index
    %c0_16 = arith.constant 0 : index
    %c12 = arith.constant 12 : index
    %26 = vector.load %arg1[%c0_15, %c0_16, %c12] : memref<1x1x384xf32, #tpu.memory_space<vmem>>, vector<1x1x256xf32>
    %27 = vector.shape_cast %26 : vector<1x1x256xf32> to vector<1x256xf32>
    %cst_17 = arith.constant 2.000000e+00 : f32
    %28 = vector.broadcast %cst_17 : f32 to vector<1x256xf32>
    %29 = arith.mulf %28, %27 : vector<1x256xf32>
    %30 = arith.addf %25, %29 : vector<1x256xf32>
    %c0_18 = arith.constant 0 : index
    %c0_19 = arith.constant 0 : index
    %c20 = arith.constant 20 : index
    %31 = vector.load %arg1[%c0_18, %c0_19, %c20] : memref<1x1x384xf32, #tpu.memory_space<vmem>>, vector<1x1x256xf32>
    %32 = vector.shape_cast %31 : vector<1x1x256xf32> to vector<1x256xf32>
    %cst_20 = arith.constant -1.000000e+00 : f32
    %33 = vector.broadcast %cst_20 : f32 to vector<1x256xf32>
    %34 = arith.mulf %33, %32 : vector<1x256xf32>
    %35 = arith.addf %30, %34 : vector<1x256xf32>
    %cst_21 = arith.constant 1.000000e+00 : f32
    %36 = vector.broadcast %cst_21 : f32 to vector<1x256xf32>
    %37 = arith.mulf %36, %32 : vector<1x256xf32>
    %38 = arith.addf %20, %37 : vector<1x256xf32>
    %c0_22 = arith.constant 0 : index
    %c0_23 = arith.constant 0 : index
    %c21 = arith.constant 21 : index
    %39 = vector.load %arg1[%c0_22, %c0_23, %c21] : memref<1x1x384xf32, #tpu.memory_space<vmem>>, vector<1x1x256xf32>
    %40 = vector.shape_cast %39 : vector<1x1x256xf32> to vector<1x256xf32>
    %cst_24 = arith.constant 2.000000e+00 : f32
    %41 = vector.broadcast %cst_24 : f32 to vector<1x256xf32>
    %42 = arith.mulf %41, %40 : vector<1x256xf32>
    %43 = arith.addf %38, %42 : vector<1x256xf32>
    %c0_25 = arith.constant 0 : index
    %c0_26 = arith.constant 0 : index
    %c22 = arith.constant 22 : index
    %44 = vector.load %arg1[%c0_25, %c0_26, %c22] : memref<1x1x384xf32, #tpu.memory_space<vmem>>, vector<1x1x256xf32>
    %45 = vector.shape_cast %44 : vector<1x1x256xf32> to vector<1x256xf32>
    %cst_27 = arith.constant 1.000000e+00 : f32
    %46 = vector.broadcast %cst_27 : f32 to vector<1x256xf32>
    %47 = arith.mulf %46, %45 : vector<1x256xf32>
    %48 = arith.addf %35, %47 : vector<1x256xf32>
    %cst_28 = arith.constant 1.000000e+00 : f32
    %49 = vector.broadcast %cst_28 : f32 to vector<1x256xf32>
    %50 = arith.mulf %49, %45 : vector<1x256xf32>
    %51 = arith.addf %43, %50 : vector<1x256xf32>
    %c0_29 = arith.constant 0 : index
    %c0_30 = arith.constant 0 : index
    %52 = vector.load %arg2[%c0_29, %c0_30] : memref<1x256xf32, #tpu.memory_space<vmem>>, vector<1x256xf32>
    %53 = arith.mulf %48, %52 : vector<1x256xf32>
    %54 = arith.mulf %51, %52 : vector<1x256xf32>
    %cst_31 = arith.constant 0.000000e+00 : f32
    %55 = vector.broadcast %cst_31 : f32 to vector<7x256xf32>
    %56 = tpu.concatenate %1, %53, %54, %53, %54, %53, %54, %53, %54, %55 in 0 : vector<1x256xf32>, vector<1x256xf32>, vector<1x256xf32>, vector<1x256xf32>, vector<1x256xf32>, vector<1x256xf32>, vector<1x256xf32>, vector<1x256xf32>, vector<1x256xf32>, vector<7x256xf32> -> vector<16x256xf32>
    %57 = arith.truncf %56 : vector<16x256xf32> to vector<16x256xbf16>
    %c0_32 = arith.constant 0 : index
    %c0_33 = arith.constant 0 : index
    %c0_34 = arith.constant 0 : index
    %58 = vector.load %arg3[%c0_32, %c0_33, %c0_34] : memref<1x16x256xbf16, #tpu.memory_space<vmem>>, vector<1x16x256xbf16>
    %59 = vector.shape_cast %58 : vector<1x16x256xbf16> to vector<16x256xbf16>
    %60 = vector.shape_cast %57 : vector<16x256xbf16> to vector<1x16x256xbf16>
    tpu.vector_store %arg3[%c0_32, %c0_33, %c0_34], %60 {strides = array<i32>} : memref<1x16x256xbf16, #tpu.memory_space<vmem>>, vector<1x16x256xbf16>,
    return
  }
  func.func @transform_0(%arg0: i32) -> (i32, i32, i32) {
    %c0_i32 = arith.constant 0 : i32
    %c0_i32_0 = arith.constant 0 : i32
    %c0_i32_1 = arith.constant 0 : i32
    return %arg0, %c0_i32, %c0_i32_0 : i32, i32, i32
  }
  func.func @transform_1(%arg0: i32) -> (i32, i32) {
    %c0_i32 = arith.constant 0 : i32
    %c0_i32_0 = arith.constant 0 : i32
    %c0_i32_1 = arith.constant 0 : i32
    return %c0_i32, %c0_i32_0 : i32, i32
  }
  func.func @transform_2(%arg0: i32) -> (i32, i32, i32) {
    %c0_i32 = arith.constant 0 : i32
    %c0_i32_0 = arith.constant 0 : i32
    %c0_i32_1 = arith.constant 0 : i32
    return %arg0, %c0_i32, %c0_i32_0 : i32, i32, i32
  }
}

module attributes {stable_mosaic.version = 11 : i64} {
  func.func @_conv3x3_kernel(%arg0: i32, %arg1: memref<1x16x256xbf16, #tpu.memory_space<vmem>>, %arg2: memref<1x16x256xbf16, #tpu.memory_space<vmem>>, %arg3: memref<9x8x16xbf16, #tpu.memory_space<vmem>>, %arg4: memref<9x8x16xbf16, #tpu.memory_space<vmem>>, %arg5: memref<8x1xf32, #tpu.memory_space<vmem>>, %arg6: memref<1x8x128xbf16, #tpu.memory_space<vmem>>) attributes {dimension_semantics = [#tpu.dimension_semantics<parallel>], iteration_bounds = array<i64: 2>, scalar_prefetch = 0 : i64, scratch_operands = 0 : i64, tpu.core_type = #tpu.core_type<tc>, window_params = [{transform_indices = @transform_0, window_bounds = array<i64: 1, 16, 256>}, {transform_indices = @transform_1, window_bounds = array<i64: 1, 16, 256>}, {pipeline_mode = #tpu.pipeline_mode<synchronous>, transform_indices = @transform_2, window_bounds = array<i64: 9, 8, 16>}, {pipeline_mode = #tpu.pipeline_mode<synchronous>, transform_indices = @transform_3, window_bounds = array<i64: 9, 8, 16>}, {pipeline_mode = #tpu.pipeline_mode<synchronous>, transform_indices = @transform_4, window_bounds = array<i64: 8, 1>}, {transform_indices = @transform_5, window_bounds = array<i64: 1, 8, 128>}]} {
    %c0 = arith.constant 0 : index
    %c0_0 = arith.constant 0 : index
    %c0_1 = arith.constant 0 : index
    %0 = vector.load %arg3[%c0, %c0_0, %c0_1] : memref<9x8x16xbf16, #tpu.memory_space<vmem>>, vector<1x8x16xbf16>
    %1 = vector.shape_cast %0 : vector<1x8x16xbf16> to vector<8x16xbf16>
    %c0_2 = arith.constant 0 : index
    %c0_3 = arith.constant 0 : index
    %c0_4 = arith.constant 0 : index
    %2 = vector.load %arg1[%c0_2, %c0_3, %c0_4] : memref<1x16x256xbf16, #tpu.memory_space<vmem>>, vector<1x16x128xbf16>
    %3 = vector.shape_cast %2 : vector<1x16x128xbf16> to vector<16x128xbf16>
    %cst = arith.constant dense<0.000000e+00> : vector<8x128xf32>
    %4 = tpu.matmul %1, %3, %cst {dimension_numbers = #tpu.dot_dimension_numbers<[1], [0], [0], [1], [0, 0, 1, 1], [], []>} : vector<8x16xbf16>, vector<16x128xbf16>, vector<8x128xf32> -> vector<8x128xf32>
    %c0_5 = arith.constant 0 : index
    %c0_6 = arith.constant 0 : index
    %c0_7 = arith.constant 0 : index
    %5 = vector.load %arg4[%c0_5, %c0_6, %c0_7] : memref<9x8x16xbf16, #tpu.memory_space<vmem>>, vector<1x8x16xbf16>
    %6 = vector.shape_cast %5 : vector<1x8x16xbf16> to vector<8x16xbf16>
    %c0_8 = arith.constant 0 : index
    %c0_9 = arith.constant 0 : index
    %c0_10 = arith.constant 0 : index
    %7 = vector.load %arg2[%c0_8, %c0_9, %c0_10] : memref<1x16x256xbf16, #tpu.memory_space<vmem>>, vector<1x16x128xbf16>
    %8 = vector.shape_cast %7 : vector<1x16x128xbf16> to vector<16x128xbf16>
    %cst_11 = arith.constant dense<0.000000e+00> : vector<8x128xf32>
    %9 = tpu.matmul %6, %8, %cst_11 {dimension_numbers = #tpu.dot_dimension_numbers<[1], [0], [0], [1], [0, 0, 1, 1], [], []>} : vector<8x16xbf16>, vector<16x128xbf16>, vector<8x128xf32> -> vector<8x128xf32>
    %10 = arith.addf %4, %9 : vector<8x128xf32>
    %c1 = arith.constant 1 : index
    %c0_12 = arith.constant 0 : index
    %c0_13 = arith.constant 0 : index
    %11 = vector.load %arg3[%c1, %c0_12, %c0_13] : memref<9x8x16xbf16, #tpu.memory_space<vmem>>, vector<1x8x16xbf16>
    %12 = vector.shape_cast %11 : vector<1x8x16xbf16> to vector<8x16xbf16>
    %c0_14 = arith.constant 0 : index
    %c0_15 = arith.constant 0 : index
    %c1_16 = arith.constant 1 : index
    %13 = vector.load %arg1[%c0_14, %c0_15, %c1_16] : memref<1x16x256xbf16, #tpu.memory_space<vmem>>, vector<1x16x128xbf16>
    %14 = vector.shape_cast %13 : vector<1x16x128xbf16> to vector<16x128xbf16>
    %cst_17 = arith.constant dense<0.000000e+00> : vector<8x128xf32>
    %15 = tpu.matmul %12, %14, %cst_17 {dimension_numbers = #tpu.dot_dimension_numbers<[1], [0], [0], [1], [0, 0, 1, 1], [], []>} : vector<8x16xbf16>, vector<16x128xbf16>, vector<8x128xf32> -> vector<8x128xf32>
    %c1_18 = arith.constant 1 : index
    %c0_19 = arith.constant 0 : index
    %c0_20 = arith.constant 0 : index
    %16 = vector.load %arg4[%c1_18, %c0_19, %c0_20] : memref<9x8x16xbf16, #tpu.memory_space<vmem>>, vector<1x8x16xbf16>
    %17 = vector.shape_cast %16 : vector<1x8x16xbf16> to vector<8x16xbf16>
    %c0_21 = arith.constant 0 : index
    %c0_22 = arith.constant 0 : index
    %c1_23 = arith.constant 1 : index
    %18 = vector.load %arg2[%c0_21, %c0_22, %c1_23] : memref<1x16x256xbf16, #tpu.memory_space<vmem>>, vector<1x16x128xbf16>
    %19 = vector.shape_cast %18 : vector<1x16x128xbf16> to vector<16x128xbf16>
    %cst_24 = arith.constant dense<0.000000e+00> : vector<8x128xf32>
    %20 = tpu.matmul %17, %19, %cst_24 {dimension_numbers = #tpu.dot_dimension_numbers<[1], [0], [0], [1], [0, 0, 1, 1], [], []>} : vector<8x16xbf16>, vector<16x128xbf16>, vector<8x128xf32> -> vector<8x128xf32>
    %21 = arith.addf %15, %20 : vector<8x128xf32>
    %22 = arith.addf %10, %21 : vector<8x128xf32>
    %c2 = arith.constant 2 : index
    %c0_25 = arith.constant 0 : index
    %c0_26 = arith.constant 0 : index
    %23 = vector.load %arg3[%c2, %c0_25, %c0_26] : memref<9x8x16xbf16, #tpu.memory_space<vmem>>, vector<1x8x16xbf16>
    %24 = vector.shape_cast %23 : vector<1x8x16xbf16> to vector<8x16xbf16>
    %c0_27 = arith.constant 0 : index
    %c0_28 = arith.constant 0 : index
    %c2_29 = arith.constant 2 : index
    %25 = vector.load %arg1[%c0_27, %c0_28, %c2_29] : memref<1x16x256xbf16, #tpu.memory_space<vmem>>, vector<1x16x128xbf16>
    %26 = vector.shape_cast %25 : vector<1x16x128xbf16> to vector<16x128xbf16>
    %cst_30 = arith.constant dense<0.000000e+00> : vector<8x128xf32>
    %27 = tpu.matmul %24, %26, %cst_30 {dimension_numbers = #tpu.dot_dimension_numbers<[1], [0], [0], [1], [0, 0, 1, 1], [], []>} : vector<8x16xbf16>, vector<16x128xbf16>, vector<8x128xf32> -> vector<8x128xf32>
    %c2_31 = arith.constant 2 : index
    %c0_32 = arith.constant 0 : index
    %c0_33 = arith.constant 0 : index
    %28 = vector.load %arg4[%c2_31, %c0_32, %c0_33] : memref<9x8x16xbf16, #tpu.memory_space<vmem>>, vector<1x8x16xbf16>
    %29 = vector.shape_cast %28 : vector<1x8x16xbf16> to vector<8x16xbf16>
    %c0_34 = arith.constant 0 : index
    %c0_35 = arith.constant 0 : index
    %c2_36 = arith.constant 2 : index
    %30 = vector.load %arg2[%c0_34, %c0_35, %c2_36] : memref<1x16x256xbf16, #tpu.memory_space<vmem>>, vector<1x16x128xbf16>
    %31 = vector.shape_cast %30 : vector<1x16x128xbf16> to vector<16x128xbf16>
    %cst_37 = arith.constant dense<0.000000e+00> : vector<8x128xf32>
    %32 = tpu.matmul %29, %31, %cst_37 {dimension_numbers = #tpu.dot_dimension_numbers<[1], [0], [0], [1], [0, 0, 1, 1], [], []>} : vector<8x16xbf16>, vector<16x128xbf16>, vector<8x128xf32> -> vector<8x128xf32>
    %33 = arith.addf %27, %32 : vector<8x128xf32>
    %34 = arith.addf %22, %33 : vector<8x128xf32>
    %c3 = arith.constant 3 : index
    %c0_38 = arith.constant 0 : index
    %c0_39 = arith.constant 0 : index
    %35 = vector.load %arg3[%c3, %c0_38, %c0_39] : memref<9x8x16xbf16, #tpu.memory_space<vmem>>, vector<1x8x16xbf16>
    %36 = vector.shape_cast %35 : vector<1x8x16xbf16> to vector<8x16xbf16>
    %c0_40 = arith.constant 0 : index
    %c0_41 = arith.constant 0 : index
    %c10 = arith.constant 10 : index
    %37 = vector.load %arg1[%c0_40, %c0_41, %c10] : memref<1x16x256xbf16, #tpu.memory_space<vmem>>, vector<1x16x128xbf16>
    %38 = vector.shape_cast %37 : vector<1x16x128xbf16> to vector<16x128xbf16>
    %cst_42 = arith.constant dense<0.000000e+00> : vector<8x128xf32>
    %39 = tpu.matmul %36, %38, %cst_42 {dimension_numbers = #tpu.dot_dimension_numbers<[1], [0], [0], [1], [0, 0, 1, 1], [], []>} : vector<8x16xbf16>, vector<16x128xbf16>, vector<8x128xf32> -> vector<8x128xf32>
    %c3_43 = arith.constant 3 : index
    %c0_44 = arith.constant 0 : index
    %c0_45 = arith.constant 0 : index
    %40 = vector.load %arg4[%c3_43, %c0_44, %c0_45] : memref<9x8x16xbf16, #tpu.memory_space<vmem>>, vector<1x8x16xbf16>
    %41 = vector.shape_cast %40 : vector<1x8x16xbf16> to vector<8x16xbf16>
    %c0_46 = arith.constant 0 : index
    %c0_47 = arith.constant 0 : index
    %c10_48 = arith.constant 10 : index
    %42 = vector.load %arg2[%c0_46, %c0_47, %c10_48] : memref<1x16x256xbf16, #tpu.memory_space<vmem>>, vector<1x16x128xbf16>
    %43 = vector.shape_cast %42 : vector<1x16x128xbf16> to vector<16x128xbf16>
    %cst_49 = arith.constant dense<0.000000e+00> : vector<8x128xf32>
    %44 = tpu.matmul %41, %43, %cst_49 {dimension_numbers = #tpu.dot_dimension_numbers<[1], [0], [0], [1], [0, 0, 1, 1], [], []>} : vector<8x16xbf16>, vector<16x128xbf16>, vector<8x128xf32> -> vector<8x128xf32>
    %45 = arith.addf %39, %44 : vector<8x128xf32>
    %46 = arith.addf %34, %45 : vector<8x128xf32>
    %c4 = arith.constant 4 : index
    %c0_50 = arith.constant 0 : index
    %c0_51 = arith.constant 0 : index
    %47 = vector.load %arg3[%c4, %c0_50, %c0_51] : memref<9x8x16xbf16, #tpu.memory_space<vmem>>, vector<1x8x16xbf16>
    %48 = vector.shape_cast %47 : vector<1x8x16xbf16> to vector<8x16xbf16>
    %c0_52 = arith.constant 0 : index
    %c0_53 = arith.constant 0 : index
    %c11 = arith.constant 11 : index
    %49 = vector.load %arg1[%c0_52, %c0_53, %c11] : memref<1x16x256xbf16, #tpu.memory_space<vmem>>, vector<1x16x128xbf16>
    %50 = vector.shape_cast %49 : vector<1x16x128xbf16> to vector<16x128xbf16>
    %cst_54 = arith.constant dense<0.000000e+00> : vector<8x128xf32>
    %51 = tpu.matmul %48, %50, %cst_54 {dimension_numbers = #tpu.dot_dimension_numbers<[1], [0], [0], [1], [0, 0, 1, 1], [], []>} : vector<8x16xbf16>, vector<16x128xbf16>, vector<8x128xf32> -> vector<8x128xf32>
    %c4_55 = arith.constant 4 : index
    %c0_56 = arith.constant 0 : index
    %c0_57 = arith.constant 0 : index
    %52 = vector.load %arg4[%c4_55, %c0_56, %c0_57] : memref<9x8x16xbf16, #tpu.memory_space<vmem>>, vector<1x8x16xbf16>
    %53 = vector.shape_cast %52 : vector<1x8x16xbf16> to vector<8x16xbf16>
    %c0_58 = arith.constant 0 : index
    %c0_59 = arith.constant 0 : index
    %c11_60 = arith.constant 11 : index
    %54 = vector.load %arg2[%c0_58, %c0_59, %c11_60] : memref<1x16x256xbf16, #tpu.memory_space<vmem>>, vector<1x16x128xbf16>
    %55 = vector.shape_cast %54 : vector<1x16x128xbf16> to vector<16x128xbf16>
    %cst_61 = arith.constant dense<0.000000e+00> : vector<8x128xf32>
    %56 = tpu.matmul %53, %55, %cst_61 {dimension_numbers = #tpu.dot_dimension_numbers<[1], [0], [0], [1], [0, 0, 1, 1], [], []>} : vector<8x16xbf16>, vector<16x128xbf16>, vector<8x128xf32> -> vector<8x128xf32>
    %57 = arith.addf %51, %56 : vector<8x128xf32>
    %58 = arith.addf %46, %57 : vector<8x128xf32>
    %c5 = arith.constant 5 : index
    %c0_62 = arith.constant 0 : index
    %c0_63 = arith.constant 0 : index
    %59 = vector.load %arg3[%c5, %c0_62, %c0_63] : memref<9x8x16xbf16, #tpu.memory_space<vmem>>, vector<1x8x16xbf16>
    %60 = vector.shape_cast %59 : vector<1x8x16xbf16> to vector<8x16xbf16>
    %c0_64 = arith.constant 0 : index
    %c0_65 = arith.constant 0 : index
    %c12 = arith.constant 12 : index
    %61 = vector.load %arg1[%c0_64, %c0_65, %c12] : memref<1x16x256xbf16, #tpu.memory_space<vmem>>, vector<1x16x128xbf16>
    %62 = vector.shape_cast %61 : vector<1x16x128xbf16> to vector<16x128xbf16>
    %cst_66 = arith.constant dense<0.000000e+00> : vector<8x128xf32>
    %63 = tpu.matmul %60, %62, %cst_66 {dimension_numbers = #tpu.dot_dimension_numbers<[1], [0], [0], [1], [0, 0, 1, 1], [], []>} : vector<8x16xbf16>, vector<16x128xbf16>, vector<8x128xf32> -> vector<8x128xf32>
    %c5_67 = arith.constant 5 : index
    %c0_68 = arith.constant 0 : index
    %c0_69 = arith.constant 0 : index
    %64 = vector.load %arg4[%c5_67, %c0_68, %c0_69] : memref<9x8x16xbf16, #tpu.memory_space<vmem>>, vector<1x8x16xbf16>
    %65 = vector.shape_cast %64 : vector<1x8x16xbf16> to vector<8x16xbf16>
    %c0_70 = arith.constant 0 : index
    %c0_71 = arith.constant 0 : index
    %c12_72 = arith.constant 12 : index
    %66 = vector.load %arg2[%c0_70, %c0_71, %c12_72] : memref<1x16x256xbf16, #tpu.memory_space<vmem>>, vector<1x16x128xbf16>
    %67 = vector.shape_cast %66 : vector<1x16x128xbf16> to vector<16x128xbf16>
    %cst_73 = arith.constant dense<0.000000e+00> : vector<8x128xf32>
    %68 = tpu.matmul %65, %67, %cst_73 {dimension_numbers = #tpu.dot_dimension_numbers<[1], [0], [0], [1], [0, 0, 1, 1], [], []>} : vector<8x16xbf16>, vector<16x128xbf16>, vector<8x128xf32> -> vector<8x128xf32>
    %69 = arith.addf %63, %68 : vector<8x128xf32>
    %70 = arith.addf %58, %69 : vector<8x128xf32>
    %c6 = arith.constant 6 : index
    %c0_74 = arith.constant 0 : index
    %c0_75 = arith.constant 0 : index
    %71 = vector.load %arg3[%c6, %c0_74, %c0_75] : memref<9x8x16xbf16, #tpu.memory_space<vmem>>, vector<1x8x16xbf16>
    %72 = vector.shape_cast %71 : vector<1x8x16xbf16> to vector<8x16xbf16>
    %c0_76 = arith.constant 0 : index
    %c0_77 = arith.constant 0 : index
    %c20 = arith.constant 20 : index
    %73 = vector.load %arg1[%c0_76, %c0_77, %c20] : memref<1x16x256xbf16, #tpu.memory_space<vmem>>, vector<1x16x128xbf16>
    %74 = vector.shape_cast %73 : vector<1x16x128xbf16> to vector<16x128xbf16>
    %cst_78 = arith.constant dense<0.000000e+00> : vector<8x128xf32>
    %75 = tpu.matmul %72, %74, %cst_78 {dimension_numbers = #tpu.dot_dimension_numbers<[1], [0], [0], [1], [0, 0, 1, 1], [], []>} : vector<8x16xbf16>, vector<16x128xbf16>, vector<8x128xf32> -> vector<8x128xf32>
    %c6_79 = arith.constant 6 : index
    %c0_80 = arith.constant 0 : index
    %c0_81 = arith.constant 0 : index
    %76 = vector.load %arg4[%c6_79, %c0_80, %c0_81] : memref<9x8x16xbf16, #tpu.memory_space<vmem>>, vector<1x8x16xbf16>
    %77 = vector.shape_cast %76 : vector<1x8x16xbf16> to vector<8x16xbf16>
    %c0_82 = arith.constant 0 : index
    %c0_83 = arith.constant 0 : index
    %c20_84 = arith.constant 20 : index
    %78 = vector.load %arg2[%c0_82, %c0_83, %c20_84] : memref<1x16x256xbf16, #tpu.memory_space<vmem>>, vector<1x16x128xbf16>
    %79 = vector.shape_cast %78 : vector<1x16x128xbf16> to vector<16x128xbf16>
    %cst_85 = arith.constant dense<0.000000e+00> : vector<8x128xf32>
    %80 = tpu.matmul %77, %79, %cst_85 {dimension_numbers = #tpu.dot_dimension_numbers<[1], [0], [0], [1], [0, 0, 1, 1], [], []>} : vector<8x16xbf16>, vector<16x128xbf16>, vector<8x128xf32> -> vector<8x128xf32>
    %81 = arith.addf %75, %80 : vector<8x128xf32>
    %82 = arith.addf %70, %81 : vector<8x128xf32>
    %c7 = arith.constant 7 : index
    %c0_86 = arith.constant 0 : index
    %c0_87 = arith.constant 0 : index
    %83 = vector.load %arg3[%c7, %c0_86, %c0_87] : memref<9x8x16xbf16, #tpu.memory_space<vmem>>, vector<1x8x16xbf16>
    %84 = vector.shape_cast %83 : vector<1x8x16xbf16> to vector<8x16xbf16>
    %c0_88 = arith.constant 0 : index
    %c0_89 = arith.constant 0 : index
    %c21 = arith.constant 21 : index
    %85 = vector.load %arg1[%c0_88, %c0_89, %c21] : memref<1x16x256xbf16, #tpu.memory_space<vmem>>, vector<1x16x128xbf16>
    %86 = vector.shape_cast %85 : vector<1x16x128xbf16> to vector<16x128xbf16>
    %cst_90 = arith.constant dense<0.000000e+00> : vector<8x128xf32>
    %87 = tpu.matmul %84, %86, %cst_90 {dimension_numbers = #tpu.dot_dimension_numbers<[1], [0], [0], [1], [0, 0, 1, 1], [], []>} : vector<8x16xbf16>, vector<16x128xbf16>, vector<8x128xf32> -> vector<8x128xf32>
    %c7_91 = arith.constant 7 : index
    %c0_92 = arith.constant 0 : index
    %c0_93 = arith.constant 0 : index
    %88 = vector.load %arg4[%c7_91, %c0_92, %c0_93] : memref<9x8x16xbf16, #tpu.memory_space<vmem>>, vector<1x8x16xbf16>
    %89 = vector.shape_cast %88 : vector<1x8x16xbf16> to vector<8x16xbf16>
    %c0_94 = arith.constant 0 : index
    %c0_95 = arith.constant 0 : index
    %c21_96 = arith.constant 21 : index
    %90 = vector.load %arg2[%c0_94, %c0_95, %c21_96] : memref<1x16x256xbf16, #tpu.memory_space<vmem>>, vector<1x16x128xbf16>
    %91 = vector.shape_cast %90 : vector<1x16x128xbf16> to vector<16x128xbf16>
    %cst_97 = arith.constant dense<0.000000e+00> : vector<8x128xf32>
    %92 = tpu.matmul %89, %91, %cst_97 {dimension_numbers = #tpu.dot_dimension_numbers<[1], [0], [0], [1], [0, 0, 1, 1], [], []>} : vector<8x16xbf16>, vector<16x128xbf16>, vector<8x128xf32> -> vector<8x128xf32>
    %93 = arith.addf %87, %92 : vector<8x128xf32>
    %94 = arith.addf %82, %93 : vector<8x128xf32>
    %c8 = arith.constant 8 : index
    %c0_98 = arith.constant 0 : index
    %c0_99 = arith.constant 0 : index
    %95 = vector.load %arg3[%c8, %c0_98, %c0_99] : memref<9x8x16xbf16, #tpu.memory_space<vmem>>, vector<1x8x16xbf16>
    %96 = vector.shape_cast %95 : vector<1x8x16xbf16> to vector<8x16xbf16>
    %c0_100 = arith.constant 0 : index
    %c0_101 = arith.constant 0 : index
    %c22 = arith.constant 22 : index
    %97 = vector.load %arg1[%c0_100, %c0_101, %c22] : memref<1x16x256xbf16, #tpu.memory_space<vmem>>, vector<1x16x128xbf16>
    %98 = vector.shape_cast %97 : vector<1x16x128xbf16> to vector<16x128xbf16>
    %cst_102 = arith.constant dense<0.000000e+00> : vector<8x128xf32>
    %99 = tpu.matmul %96, %98, %cst_102 {dimension_numbers = #tpu.dot_dimension_numbers<[1], [0], [0], [1], [0, 0, 1, 1], [], []>} : vector<8x16xbf16>, vector<16x128xbf16>, vector<8x128xf32> -> vector<8x128xf32>
    %c8_103 = arith.constant 8 : index
    %c0_104 = arith.constant 0 : index
    %c0_105 = arith.constant 0 : index
    %100 = vector.load %arg4[%c8_103, %c0_104, %c0_105] : memref<9x8x16xbf16, #tpu.memory_space<vmem>>, vector<1x8x16xbf16>
    %101 = vector.shape_cast %100 : vector<1x8x16xbf16> to vector<8x16xbf16>
    %c0_106 = arith.constant 0 : index
    %c0_107 = arith.constant 0 : index
    %c22_108 = arith.constant 22 : index
    %102 = vector.load %arg2[%c0_106, %c0_107, %c22_108] : memref<1x16x256xbf16, #tpu.memory_space<vmem>>, vector<1x16x128xbf16>
    %103 = vector.shape_cast %102 : vector<1x16x128xbf16> to vector<16x128xbf16>
    %cst_109 = arith.constant dense<0.000000e+00> : vector<8x128xf32>
    %104 = tpu.matmul %101, %103, %cst_109 {dimension_numbers = #tpu.dot_dimension_numbers<[1], [0], [0], [1], [0, 0, 1, 1], [], []>} : vector<8x16xbf16>, vector<16x128xbf16>, vector<8x128xf32> -> vector<8x128xf32>
    %105 = arith.addf %99, %104 : vector<8x128xf32>
    %106 = arith.addf %94, %105 : vector<8x128xf32>
    %c0_110 = arith.constant 0 : index
    %c0_111 = arith.constant 0 : index
    %107 = vector.load %arg5[%c0_110, %c0_111] : memref<8x1xf32, #tpu.memory_space<vmem>>, vector<8x1xf32>
    %108 = vector.broadcast %107 : vector<8x1xf32> to vector<8x128xf32>
    %109 = arith.addf %106, %108 : vector<8x128xf32>
    %cst_112 = arith.constant 0.000000e+00 : f32
    %110 = vector.broadcast %cst_112 : f32 to vector<8x128xf32>
    %111 = arith.maximumf %109, %110 : vector<8x128xf32>
    %112 = arith.truncf %111 : vector<8x128xf32> to vector<8x128xbf16>
    %c0_113 = arith.constant 0 : index
    %c0_114 = arith.constant 0 : index
    %c0_115 = arith.constant 0 : index
    %113 = vector.load %arg6[%c0_113, %c0_114, %c0_115] : memref<1x8x128xbf16, #tpu.memory_space<vmem>>, vector<1x8x128xbf16>
    %114 = vector.shape_cast %113 : vector<1x8x128xbf16> to vector<8x128xbf16>
    %115 = vector.shape_cast %112 : vector<8x128xbf16> to vector<1x8x128xbf16>
    tpu.vector_store %arg6[%c0_113, %c0_114, %c0_115], %115 {strides = array<i32>} : memref<1x8x128xbf16, #tpu.memory_space<vmem>>, vector<1x8x128xbf16>,
    return
  }
  func.func @transform_0(%arg0: i32) -> (i32, i32, i32) {
    %c0_i32 = arith.constant 0 : i32
    %c0_i32_0 = arith.constant 0 : i32
    %c0_i32_1 = arith.constant 0 : i32
    return %arg0, %c0_i32, %c0_i32_0 : i32, i32, i32
  }
  func.func @transform_1(%arg0: i32) -> (i32, i32, i32) {
    %c0_i32 = arith.constant 0 : i32
    %c0_i32_0 = arith.constant 0 : i32
    %c0_i32_1 = arith.constant 0 : i32
    return %arg0, %c0_i32, %c0_i32_0 : i32, i32, i32
  }
  func.func @transform_2(%arg0: i32) -> (i32, i32, i32) {
    %c0_i32 = arith.constant 0 : i32
    %c0_i32_0 = arith.constant 0 : i32
    %c0_i32_1 = arith.constant 0 : i32
    %c0_i32_2 = arith.constant 0 : i32
    return %c0_i32, %c0_i32_0, %c0_i32_1 : i32, i32, i32
  }
  func.func @transform_3(%arg0: i32) -> (i32, i32, i32) {
    %c0_i32 = arith.constant 0 : i32
    %c0_i32_0 = arith.constant 0 : i32
    %c0_i32_1 = arith.constant 0 : i32
    %c0_i32_2 = arith.constant 0 : i32
    return %c0_i32, %c0_i32_0, %c0_i32_1 : i32, i32, i32
  }
  func.func @transform_4(%arg0: i32) -> (i32, i32) {
    %c0_i32 = arith.constant 0 : i32
    %c0_i32_0 = arith.constant 0 : i32
    %c0_i32_1 = arith.constant 0 : i32
    return %c0_i32, %c0_i32_0 : i32, i32
  }
  func.func @transform_5(%arg0: i32) -> (i32, i32, i32) {
    %c0_i32 = arith.constant 0 : i32
    %c0_i32_0 = arith.constant 0 : i32
    %c0_i32_1 = arith.constant 0 : i32
    return %arg0, %c0_i32, %c0_i32_0 : i32, i32, i32
  }
}

module attributes {stable_mosaic.version = 11 : i64} {
  func.func @_conv3x3_kernel(%arg0: i32, %arg1: memref<1x16x512xbf16, #tpu.memory_space<vmem>>, %arg2: memref<1x16x512xbf16, #tpu.memory_space<vmem>>, %arg3: memref<9x8x16xbf16, #tpu.memory_space<vmem>>, %arg4: memref<9x8x16xbf16, #tpu.memory_space<vmem>>, %arg5: memref<8x1xf32, #tpu.memory_space<vmem>>, %arg6: memref<1x1x384xf32, #tpu.memory_space<vmem>>, %arg7: memref<1x8x384xf32, #tpu.memory_space<vmem>>) attributes {dimension_semantics = [#tpu.dimension_semantics<parallel>], iteration_bounds = array<i64: 2>, scalar_prefetch = 0 : i64, scratch_operands = 0 : i64, tpu.core_type = #tpu.core_type<tc>, window_params = [{transform_indices = @transform_0, window_bounds = array<i64: 1, 16, 512>}, {transform_indices = @transform_1, window_bounds = array<i64: 1, 16, 512>}, {pipeline_mode = #tpu.pipeline_mode<synchronous>, transform_indices = @transform_2, window_bounds = array<i64: 9, 8, 16>}, {pipeline_mode = #tpu.pipeline_mode<synchronous>, transform_indices = @transform_3, window_bounds = array<i64: 9, 8, 16>}, {pipeline_mode = #tpu.pipeline_mode<synchronous>, transform_indices = @transform_4, window_bounds = array<i64: 8, 1>}, {transform_indices = @transform_5, window_bounds = array<i64: 1, 1, 384>}, {transform_indices = @transform_6, window_bounds = array<i64: 1, 8, 384>}]} {
    %c0 = arith.constant 0 : index
    %c0_0 = arith.constant 0 : index
    %c0_1 = arith.constant 0 : index
    %0 = vector.load %arg3[%c0, %c0_0, %c0_1] : memref<9x8x16xbf16, #tpu.memory_space<vmem>>, vector<1x8x16xbf16>
    %1 = vector.shape_cast %0 : vector<1x8x16xbf16> to vector<8x16xbf16>
    %c0_2 = arith.constant 0 : index
    %c0_3 = arith.constant 0 : index
    %c0_4 = arith.constant 0 : index
    %2 = vector.load %arg1[%c0_2, %c0_3, %c0_4] : memref<1x16x512xbf16, #tpu.memory_space<vmem>>, vector<1x16x384xbf16>
    %3 = vector.shape_cast %2 : vector<1x16x384xbf16> to vector<16x384xbf16>
    %cst = arith.constant dense<0.000000e+00> : vector<8x384xf32>
    %4 = tpu.matmul %1, %3, %cst {dimension_numbers = #tpu.dot_dimension_numbers<[1], [0], [0], [1], [0, 0, 1, 1], [], []>} : vector<8x16xbf16>, vector<16x384xbf16>, vector<8x384xf32> -> vector<8x384xf32>
    %c0_5 = arith.constant 0 : index
    %c0_6 = arith.constant 0 : index
    %c0_7 = arith.constant 0 : index
    %5 = vector.load %arg4[%c0_5, %c0_6, %c0_7] : memref<9x8x16xbf16, #tpu.memory_space<vmem>>, vector<1x8x16xbf16>
    %6 = vector.shape_cast %5 : vector<1x8x16xbf16> to vector<8x16xbf16>
    %c0_8 = arith.constant 0 : index
    %c0_9 = arith.constant 0 : index
    %c0_10 = arith.constant 0 : index
    %7 = vector.load %arg2[%c0_8, %c0_9, %c0_10] : memref<1x16x512xbf16, #tpu.memory_space<vmem>>, vector<1x16x384xbf16>
    %8 = vector.shape_cast %7 : vector<1x16x384xbf16> to vector<16x384xbf16>
    %cst_11 = arith.constant dense<0.000000e+00> : vector<8x384xf32>
    %9 = tpu.matmul %6, %8, %cst_11 {dimension_numbers = #tpu.dot_dimension_numbers<[1], [0], [0], [1], [0, 0, 1, 1], [], []>} : vector<8x16xbf16>, vector<16x384xbf16>, vector<8x384xf32> -> vector<8x384xf32>
    %10 = arith.addf %4, %9 : vector<8x384xf32>
    %c1 = arith.constant 1 : index
    %c0_12 = arith.constant 0 : index
    %c0_13 = arith.constant 0 : index
    %11 = vector.load %arg3[%c1, %c0_12, %c0_13] : memref<9x8x16xbf16, #tpu.memory_space<vmem>>, vector<1x8x16xbf16>
    %12 = vector.shape_cast %11 : vector<1x8x16xbf16> to vector<8x16xbf16>
    %c0_14 = arith.constant 0 : index
    %c0_15 = arith.constant 0 : index
    %c1_16 = arith.constant 1 : index
    %13 = vector.load %arg1[%c0_14, %c0_15, %c1_16] : memref<1x16x512xbf16, #tpu.memory_space<vmem>>, vector<1x16x384xbf16>
    %14 = vector.shape_cast %13 : vector<1x16x384xbf16> to vector<16x384xbf16>
    %cst_17 = arith.constant dense<0.000000e+00> : vector<8x384xf32>
    %15 = tpu.matmul %12, %14, %cst_17 {dimension_numbers = #tpu.dot_dimension_numbers<[1], [0], [0], [1], [0, 0, 1, 1], [], []>} : vector<8x16xbf16>, vector<16x384xbf16>, vector<8x384xf32> -> vector<8x384xf32>
    %c1_18 = arith.constant 1 : index
    %c0_19 = arith.constant 0 : index
    %c0_20 = arith.constant 0 : index
    %16 = vector.load %arg4[%c1_18, %c0_19, %c0_20] : memref<9x8x16xbf16, #tpu.memory_space<vmem>>, vector<1x8x16xbf16>
    %17 = vector.shape_cast %16 : vector<1x8x16xbf16> to vector<8x16xbf16>
    %c0_21 = arith.constant 0 : index
    %c0_22 = arith.constant 0 : index
    %c1_23 = arith.constant 1 : index
    %18 = vector.load %arg2[%c0_21, %c0_22, %c1_23] : memref<1x16x512xbf16, #tpu.memory_space<vmem>>, vector<1x16x384xbf16>
    %19 = vector.shape_cast %18 : vector<1x16x384xbf16> to vector<16x384xbf16>
    %cst_24 = arith.constant dense<0.000000e+00> : vector<8x384xf32>
    %20 = tpu.matmul %17, %19, %cst_24 {dimension_numbers = #tpu.dot_dimension_numbers<[1], [0], [0], [1], [0, 0, 1, 1], [], []>} : vector<8x16xbf16>, vector<16x384xbf16>, vector<8x384xf32> -> vector<8x384xf32>
    %21 = arith.addf %15, %20 : vector<8x384xf32>
    %22 = arith.addf %10, %21 : vector<8x384xf32>
    %c2 = arith.constant 2 : index
    %c0_25 = arith.constant 0 : index
    %c0_26 = arith.constant 0 : index
    %23 = vector.load %arg3[%c2, %c0_25, %c0_26] : memref<9x8x16xbf16, #tpu.memory_space<vmem>>, vector<1x8x16xbf16>
    %24 = vector.shape_cast %23 : vector<1x8x16xbf16> to vector<8x16xbf16>
    %c0_27 = arith.constant 0 : index
    %c0_28 = arith.constant 0 : index
    %c2_29 = arith.constant 2 : index
    %25 = vector.load %arg1[%c0_27, %c0_28, %c2_29] : memref<1x16x512xbf16, #tpu.memory_space<vmem>>, vector<1x16x384xbf16>
    %26 = vector.shape_cast %25 : vector<1x16x384xbf16> to vector<16x384xbf16>
    %cst_30 = arith.constant dense<0.000000e+00> : vector<8x384xf32>
    %27 = tpu.matmul %24, %26, %cst_30 {dimension_numbers = #tpu.dot_dimension_numbers<[1], [0], [0], [1], [0, 0, 1, 1], [], []>} : vector<8x16xbf16>, vector<16x384xbf16>, vector<8x384xf32> -> vector<8x384xf32>
    %c2_31 = arith.constant 2 : index
    %c0_32 = arith.constant 0 : index
    %c0_33 = arith.constant 0 : index
    %28 = vector.load %arg4[%c2_31, %c0_32, %c0_33] : memref<9x8x16xbf16, #tpu.memory_space<vmem>>, vector<1x8x16xbf16>
    %29 = vector.shape_cast %28 : vector<1x8x16xbf16> to vector<8x16xbf16>
    %c0_34 = arith.constant 0 : index
    %c0_35 = arith.constant 0 : index
    %c2_36 = arith.constant 2 : index
    %30 = vector.load %arg2[%c0_34, %c0_35, %c2_36] : memref<1x16x512xbf16, #tpu.memory_space<vmem>>, vector<1x16x384xbf16>
    %31 = vector.shape_cast %30 : vector<1x16x384xbf16> to vector<16x384xbf16>
    %cst_37 = arith.constant dense<0.000000e+00> : vector<8x384xf32>
    %32 = tpu.matmul %29, %31, %cst_37 {dimension_numbers = #tpu.dot_dimension_numbers<[1], [0], [0], [1], [0, 0, 1, 1], [], []>} : vector<8x16xbf16>, vector<16x384xbf16>, vector<8x384xf32> -> vector<8x384xf32>
    %33 = arith.addf %27, %32 : vector<8x384xf32>
    %34 = arith.addf %22, %33 : vector<8x384xf32>
    %c3 = arith.constant 3 : index
    %c0_38 = arith.constant 0 : index
    %c0_39 = arith.constant 0 : index
    %35 = vector.load %arg3[%c3, %c0_38, %c0_39] : memref<9x8x16xbf16, #tpu.memory_space<vmem>>, vector<1x8x16xbf16>
    %36 = vector.shape_cast %35 : vector<1x8x16xbf16> to vector<8x16xbf16>
    %c0_40 = arith.constant 0 : index
    %c0_41 = arith.constant 0 : index
    %c18 = arith.constant 18 : index
    %37 = vector.load %arg1[%c0_40, %c0_41, %c18] : memref<1x16x512xbf16, #tpu.memory_space<vmem>>, vector<1x16x384xbf16>
    %38 = vector.shape_cast %37 : vector<1x16x384xbf16> to vector<16x384xbf16>
    %cst_42 = arith.constant dense<0.000000e+00> : vector<8x384xf32>
    %39 = tpu.matmul %36, %38, %cst_42 {dimension_numbers = #tpu.dot_dimension_numbers<[1], [0], [0], [1], [0, 0, 1, 1], [], []>} : vector<8x16xbf16>, vector<16x384xbf16>, vector<8x384xf32> -> vector<8x384xf32>
    %c3_43 = arith.constant 3 : index
    %c0_44 = arith.constant 0 : index
    %c0_45 = arith.constant 0 : index
    %40 = vector.load %arg4[%c3_43, %c0_44, %c0_45] : memref<9x8x16xbf16, #tpu.memory_space<vmem>>, vector<1x8x16xbf16>
    %41 = vector.shape_cast %40 : vector<1x8x16xbf16> to vector<8x16xbf16>
    %c0_46 = arith.constant 0 : index
    %c0_47 = arith.constant 0 : index
    %c18_48 = arith.constant 18 : index
    %42 = vector.load %arg2[%c0_46, %c0_47, %c18_48] : memref<1x16x512xbf16, #tpu.memory_space<vmem>>, vector<1x16x384xbf16>
    %43 = vector.shape_cast %42 : vector<1x16x384xbf16> to vector<16x384xbf16>
    %cst_49 = arith.constant dense<0.000000e+00> : vector<8x384xf32>
    %44 = tpu.matmul %41, %43, %cst_49 {dimension_numbers = #tpu.dot_dimension_numbers<[1], [0], [0], [1], [0, 0, 1, 1], [], []>} : vector<8x16xbf16>, vector<16x384xbf16>, vector<8x384xf32> -> vector<8x384xf32>
    %45 = arith.addf %39, %44 : vector<8x384xf32>
    %46 = arith.addf %34, %45 : vector<8x384xf32>
    %c4 = arith.constant 4 : index
    %c0_50 = arith.constant 0 : index
    %c0_51 = arith.constant 0 : index
    %47 = vector.load %arg3[%c4, %c0_50, %c0_51] : memref<9x8x16xbf16, #tpu.memory_space<vmem>>, vector<1x8x16xbf16>
    %48 = vector.shape_cast %47 : vector<1x8x16xbf16> to vector<8x16xbf16>
    %c0_52 = arith.constant 0 : index
    %c0_53 = arith.constant 0 : index
    %c19 = arith.constant 19 : index
    %49 = vector.load %arg1[%c0_52, %c0_53, %c19] : memref<1x16x512xbf16, #tpu.memory_space<vmem>>, vector<1x16x384xbf16>
    %50 = vector.shape_cast %49 : vector<1x16x384xbf16> to vector<16x384xbf16>
    %cst_54 = arith.constant dense<0.000000e+00> : vector<8x384xf32>
    %51 = tpu.matmul %48, %50, %cst_54 {dimension_numbers = #tpu.dot_dimension_numbers<[1], [0], [0], [1], [0, 0, 1, 1], [], []>} : vector<8x16xbf16>, vector<16x384xbf16>, vector<8x384xf32> -> vector<8x384xf32>
    %c4_55 = arith.constant 4 : index
    %c0_56 = arith.constant 0 : index
    %c0_57 = arith.constant 0 : index
    %52 = vector.load %arg4[%c4_55, %c0_56, %c0_57] : memref<9x8x16xbf16, #tpu.memory_space<vmem>>, vector<1x8x16xbf16>
    %53 = vector.shape_cast %52 : vector<1x8x16xbf16> to vector<8x16xbf16>
    %c0_58 = arith.constant 0 : index
    %c0_59 = arith.constant 0 : index
    %c19_60 = arith.constant 19 : index
    %54 = vector.load %arg2[%c0_58, %c0_59, %c19_60] : memref<1x16x512xbf16, #tpu.memory_space<vmem>>, vector<1x16x384xbf16>
    %55 = vector.shape_cast %54 : vector<1x16x384xbf16> to vector<16x384xbf16>
    %cst_61 = arith.constant dense<0.000000e+00> : vector<8x384xf32>
    %56 = tpu.matmul %53, %55, %cst_61 {dimension_numbers = #tpu.dot_dimension_numbers<[1], [0], [0], [1], [0, 0, 1, 1], [], []>} : vector<8x16xbf16>, vector<16x384xbf16>, vector<8x384xf32> -> vector<8x384xf32>
    %57 = arith.addf %51, %56 : vector<8x384xf32>
    %58 = arith.addf %46, %57 : vector<8x384xf32>
    %c5 = arith.constant 5 : index
    %c0_62 = arith.constant 0 : index
    %c0_63 = arith.constant 0 : index
    %59 = vector.load %arg3[%c5, %c0_62, %c0_63] : memref<9x8x16xbf16, #tpu.memory_space<vmem>>, vector<1x8x16xbf16>
    %60 = vector.shape_cast %59 : vector<1x8x16xbf16> to vector<8x16xbf16>
    %c0_64 = arith.constant 0 : index
    %c0_65 = arith.constant 0 : index
    %c20 = arith.constant 20 : index
    %61 = vector.load %arg1[%c0_64, %c0_65, %c20] : memref<1x16x512xbf16, #tpu.memory_space<vmem>>, vector<1x16x384xbf16>
    %62 = vector.shape_cast %61 : vector<1x16x384xbf16> to vector<16x384xbf16>
    %cst_66 = arith.constant dense<0.000000e+00> : vector<8x384xf32>
    %63 = tpu.matmul %60, %62, %cst_66 {dimension_numbers = #tpu.dot_dimension_numbers<[1], [0], [0], [1], [0, 0, 1, 1], [], []>} : vector<8x16xbf16>, vector<16x384xbf16>, vector<8x384xf32> -> vector<8x384xf32>
    %c5_67 = arith.constant 5 : index
    %c0_68 = arith.constant 0 : index
    %c0_69 = arith.constant 0 : index
    %64 = vector.load %arg4[%c5_67, %c0_68, %c0_69] : memref<9x8x16xbf16, #tpu.memory_space<vmem>>, vector<1x8x16xbf16>
    %65 = vector.shape_cast %64 : vector<1x8x16xbf16> to vector<8x16xbf16>
    %c0_70 = arith.constant 0 : index
    %c0_71 = arith.constant 0 : index
    %c20_72 = arith.constant 20 : index
    %66 = vector.load %arg2[%c0_70, %c0_71, %c20_72] : memref<1x16x512xbf16, #tpu.memory_space<vmem>>, vector<1x16x384xbf16>
    %67 = vector.shape_cast %66 : vector<1x16x384xbf16> to vector<16x384xbf16>
    %cst_73 = arith.constant dense<0.000000e+00> : vector<8x384xf32>
    %68 = tpu.matmul %65, %67, %cst_73 {dimension_numbers = #tpu.dot_dimension_numbers<[1], [0], [0], [1], [0, 0, 1, 1], [], []>} : vector<8x16xbf16>, vector<16x384xbf16>, vector<8x384xf32> -> vector<8x384xf32>
    %69 = arith.addf %63, %68 : vector<8x384xf32>
    %70 = arith.addf %58, %69 : vector<8x384xf32>
    %c6 = arith.constant 6 : index
    %c0_74 = arith.constant 0 : index
    %c0_75 = arith.constant 0 : index
    %71 = vector.load %arg3[%c6, %c0_74, %c0_75] : memref<9x8x16xbf16, #tpu.memory_space<vmem>>, vector<1x8x16xbf16>
    %72 = vector.shape_cast %71 : vector<1x8x16xbf16> to vector<8x16xbf16>
    %c0_76 = arith.constant 0 : index
    %c0_77 = arith.constant 0 : index
    %c36 = arith.constant 36 : index
    %73 = vector.load %arg1[%c0_76, %c0_77, %c36] : memref<1x16x512xbf16, #tpu.memory_space<vmem>>, vector<1x16x384xbf16>
    %74 = vector.shape_cast %73 : vector<1x16x384xbf16> to vector<16x384xbf16>
    %cst_78 = arith.constant dense<0.000000e+00> : vector<8x384xf32>
    %75 = tpu.matmul %72, %74, %cst_78 {dimension_numbers = #tpu.dot_dimension_numbers<[1], [0], [0], [1], [0, 0, 1, 1], [], []>} : vector<8x16xbf16>, vector<16x384xbf16>, vector<8x384xf32> -> vector<8x384xf32>
    %c6_79 = arith.constant 6 : index
    %c0_80 = arith.constant 0 : index
    %c0_81 = arith.constant 0 : index
    %76 = vector.load %arg4[%c6_79, %c0_80, %c0_81] : memref<9x8x16xbf16, #tpu.memory_space<vmem>>, vector<1x8x16xbf16>
    %77 = vector.shape_cast %76 : vector<1x8x16xbf16> to vector<8x16xbf16>
    %c0_82 = arith.constant 0 : index
    %c0_83 = arith.constant 0 : index
    %c36_84 = arith.constant 36 : index
    %78 = vector.load %arg2[%c0_82, %c0_83, %c36_84] : memref<1x16x512xbf16, #tpu.memory_space<vmem>>, vector<1x16x384xbf16>
    %79 = vector.shape_cast %78 : vector<1x16x384xbf16> to vector<16x384xbf16>
    %cst_85 = arith.constant dense<0.000000e+00> : vector<8x384xf32>
    %80 = tpu.matmul %77, %79, %cst_85 {dimension_numbers = #tpu.dot_dimension_numbers<[1], [0], [0], [1], [0, 0, 1, 1], [], []>} : vector<8x16xbf16>, vector<16x384xbf16>, vector<8x384xf32> -> vector<8x384xf32>
    %81 = arith.addf %75, %80 : vector<8x384xf32>
    %82 = arith.addf %70, %81 : vector<8x384xf32>
    %c7 = arith.constant 7 : index
    %c0_86 = arith.constant 0 : index
    %c0_87 = arith.constant 0 : index
    %83 = vector.load %arg3[%c7, %c0_86, %c0_87] : memref<9x8x16xbf16, #tpu.memory_space<vmem>>, vector<1x8x16xbf16>
    %84 = vector.shape_cast %83 : vector<1x8x16xbf16> to vector<8x16xbf16>
    %c0_88 = arith.constant 0 : index
    %c0_89 = arith.constant 0 : index
    %c37 = arith.constant 37 : index
    %85 = vector.load %arg1[%c0_88, %c0_89, %c37] : memref<1x16x512xbf16, #tpu.memory_space<vmem>>, vector<1x16x384xbf16>
    %86 = vector.shape_cast %85 : vector<1x16x384xbf16> to vector<16x384xbf16>
    %cst_90 = arith.constant dense<0.000000e+00> : vector<8x384xf32>
    %87 = tpu.matmul %84, %86, %cst_90 {dimension_numbers = #tpu.dot_dimension_numbers<[1], [0], [0], [1], [0, 0, 1, 1], [], []>} : vector<8x16xbf16>, vector<16x384xbf16>, vector<8x384xf32> -> vector<8x384xf32>
    %c7_91 = arith.constant 7 : index
    %c0_92 = arith.constant 0 : index
    %c0_93 = arith.constant 0 : index
    %88 = vector.load %arg4[%c7_91, %c0_92, %c0_93] : memref<9x8x16xbf16, #tpu.memory_space<vmem>>, vector<1x8x16xbf16>
    %89 = vector.shape_cast %88 : vector<1x8x16xbf16> to vector<8x16xbf16>
    %c0_94 = arith.constant 0 : index
    %c0_95 = arith.constant 0 : index
    %c37_96 = arith.constant 37 : index
    %90 = vector.load %arg2[%c0_94, %c0_95, %c37_96] : memref<1x16x512xbf16, #tpu.memory_space<vmem>>, vector<1x16x384xbf16>
    %91 = vector.shape_cast %90 : vector<1x16x384xbf16> to vector<16x384xbf16>
    %cst_97 = arith.constant dense<0.000000e+00> : vector<8x384xf32>
    %92 = tpu.matmul %89, %91, %cst_97 {dimension_numbers = #tpu.dot_dimension_numbers<[1], [0], [0], [1], [0, 0, 1, 1], [], []>} : vector<8x16xbf16>, vector<16x384xbf16>, vector<8x384xf32> -> vector<8x384xf32>
    %93 = arith.addf %87, %92 : vector<8x384xf32>
    %94 = arith.addf %82, %93 : vector<8x384xf32>
    %c8 = arith.constant 8 : index
    %c0_98 = arith.constant 0 : index
    %c0_99 = arith.constant 0 : index
    %95 = vector.load %arg3[%c8, %c0_98, %c0_99] : memref<9x8x16xbf16, #tpu.memory_space<vmem>>, vector<1x8x16xbf16>
    %96 = vector.shape_cast %95 : vector<1x8x16xbf16> to vector<8x16xbf16>
    %c0_100 = arith.constant 0 : index
    %c0_101 = arith.constant 0 : index
    %c38 = arith.constant 38 : index
    %97 = vector.load %arg1[%c0_100, %c0_101, %c38] : memref<1x16x512xbf16, #tpu.memory_space<vmem>>, vector<1x16x384xbf16>
    %98 = vector.shape_cast %97 : vector<1x16x384xbf16> to vector<16x384xbf16>
    %cst_102 = arith.constant dense<0.000000e+00> : vector<8x384xf32>
    %99 = tpu.matmul %96, %98, %cst_102 {dimension_numbers = #tpu.dot_dimension_numbers<[1], [0], [0], [1], [0, 0, 1, 1], [], []>} : vector<8x16xbf16>, vector<16x384xbf16>, vector<8x384xf32> -> vector<8x384xf32>
    %c8_103 = arith.constant 8 : index
    %c0_104 = arith.constant 0 : index
    %c0_105 = arith.constant 0 : index
    %100 = vector.load %arg4[%c8_103, %c0_104, %c0_105] : memref<9x8x16xbf16, #tpu.memory_space<vmem>>, vector<1x8x16xbf16>
    %101 = vector.shape_cast %100 : vector<1x8x16xbf16> to vector<8x16xbf16>
    %c0_106 = arith.constant 0 : index
    %c0_107 = arith.constant 0 : index
    %c38_108 = arith.constant 38 : index
    %102 = vector.load %arg2[%c0_106, %c0_107, %c38_108] : memref<1x16x512xbf16, #tpu.memory_space<vmem>>, vector<1x16x384xbf16>
    %103 = vector.shape_cast %102 : vector<1x16x384xbf16> to vector<16x384xbf16>
    %cst_109 = arith.constant dense<0.000000e+00> : vector<8x384xf32>
    %104 = tpu.matmul %101, %103, %cst_109 {dimension_numbers = #tpu.dot_dimension_numbers<[1], [0], [0], [1], [0, 0, 1, 1], [], []>} : vector<8x16xbf16>, vector<16x384xbf16>, vector<8x384xf32> -> vector<8x384xf32>
    %105 = arith.addf %99, %104 : vector<8x384xf32>
    %106 = arith.addf %94, %105 : vector<8x384xf32>
    %c0_110 = arith.constant 0 : index
    %c0_111 = arith.constant 0 : index
    %107 = vector.load %arg5[%c0_110, %c0_111] : memref<8x1xf32, #tpu.memory_space<vmem>>, vector<8x1xf32>
    %108 = vector.broadcast %107 : vector<8x1xf32> to vector<8x384xf32>
    %109 = arith.addf %106, %108 : vector<8x384xf32>
    %c0_112 = arith.constant 0 : index
    %c0_113 = arith.constant 0 : index
    %c0_114 = arith.constant 0 : index
    %110 = vector.load %arg6[%c0_112, %c0_113, %c0_114] : memref<1x1x384xf32, #tpu.memory_space<vmem>>, vector<1x1x384xf32>
    %111 = vector.shape_cast %110 : vector<1x1x384xf32> to vector<1x384xf32>
    %112 = vector.broadcast %111 : vector<1x384xf32> to vector<8x384xf32>
    %113 = arith.addf %109, %112 : vector<8x384xf32>
    %c0_115 = arith.constant 0 : index
    %c0_116 = arith.constant 0 : index
    %c0_117 = arith.constant 0 : index
    %114 = vector.load %arg7[%c0_115, %c0_116, %c0_117] : memref<1x8x384xf32, #tpu.memory_space<vmem>>, vector<1x8x384xf32>
    %115 = vector.shape_cast %114 : vector<1x8x384xf32> to vector<8x384xf32>
    %116 = vector.shape_cast %113 : vector<8x384xf32> to vector<1x8x384xf32>
    tpu.vector_store %arg7[%c0_115, %c0_116, %c0_117], %116 {strides = array<i32>} : memref<1x8x384xf32, #tpu.memory_space<vmem>>, vector<1x8x384xf32>,
    return
  }
  func.func @transform_0(%arg0: i32) -> (i32, i32, i32) {
    %c0_i32 = arith.constant 0 : i32
    %c0_i32_0 = arith.constant 0 : i32
    %c0_i32_1 = arith.constant 0 : i32
    return %arg0, %c0_i32, %c0_i32_0 : i32, i32, i32
  }
  func.func @transform_1(%arg0: i32) -> (i32, i32, i32) {
    %c0_i32 = arith.constant 0 : i32
    %c0_i32_0 = arith.constant 0 : i32
    %c0_i32_1 = arith.constant 0 : i32
    return %arg0, %c0_i32, %c0_i32_0 : i32, i32, i32
  }
  func.func @transform_2(%arg0: i32) -> (i32, i32, i32) {
    %c0_i32 = arith.constant 0 : i32
    %c0_i32_0 = arith.constant 0 : i32
    %c0_i32_1 = arith.constant 0 : i32
    %c0_i32_2 = arith.constant 0 : i32
    return %c0_i32, %c0_i32_0, %c0_i32_1 : i32, i32, i32
  }
  func.func @transform_3(%arg0: i32) -> (i32, i32, i32) {
    %c0_i32 = arith.constant 0 : i32
    %c0_i32_0 = arith.constant 0 : i32
    %c0_i32_1 = arith.constant 0 : i32
    %c0_i32_2 = arith.constant 0 : i32
    return %c0_i32, %c0_i32_0, %c0_i32_1 : i32, i32, i32
  }
  func.func @transform_4(%arg0: i32) -> (i32, i32) {
    %c0_i32 = arith.constant 0 : i32
    %c0_i32_0 = arith.constant 0 : i32
    %c0_i32_1 = arith.constant 0 : i32
    return %c0_i32, %c0_i32_0 : i32, i32
  }
  func.func @transform_5(%arg0: i32) -> (i32, i32, i32) {
    %c0_i32 = arith.constant 0 : i32
    %c0_i32_0 = arith.constant 0 : i32
    %c0_i32_1 = arith.constant 0 : i32
    return %arg0, %c0_i32, %c0_i32_0 : i32, i32, i32
  }
  func.func @transform_6(%arg0: i32) -> (i32, i32, i32) {
    %c0_i32 = arith.constant 0 : i32
    %c0_i32_0 = arith.constant 0 : i32
    %c0_i32_1 = arith.constant 0 : i32
    return %arg0, %c0_i32, %c0_i32_0 : i32, i32, i32
  }
}

</mosaic_0001>

<llo_original>
// kernel: eudncnn_forward.14
$region0: #{eudncnn_forward.14}
  #allocation0 [shape = 'u32[]', space=smem, size = 0x4, offset = 0x4, fixed_abs, tag = 'smem constant byte address 0x4 - core index']
  #allocation1 [shape = 'u32[144,128]{1,0:T(1,128)}', space=vmem, size = 0x12000, scoped, tag = 'internal scratch']
  %s0 = inlined_call_operand.vmem [shape: f32[2,1,640], index: 0, kind: input, shape index: {}]
  %s1 = inlined_call_operand.vmem [shape: f32[1,512], index: 1, kind: input, shape index: {}]
  %s2 = inlined_call_operand.vmem [shape: bf16[2,16,512], index: 2, kind: output, shape index: {}]
  %s3 = sld [smem:[#allocation0]]
  $region41: #{eudncnn_forward.14} parent=0
    _
  %s5 = ssub.s32 1, %s3
  %s6 = scalar_select 0, %s5, %s3
  loop: start=0, step=1, limit=4
  $region2: #{eudncnn_forward.14} parent=0 // loop_pre_header
    _
  $region3: #{eudncnn_forward.14} parent=0 // loop_header
    %s8 = sphi 0, %s12
    %p9 = scmp.ge.s32.totalorder %s8, 4
    %s18 = sphi 0, %s20
    %s21 = sphi 0, %s18
    %s22 = sphi 0, %s21
    %s38 = sphi 0, %s22
    %s42 = sphi 0, %s42
    %s44 = sphi 0, %s42
    %s45 = sphi 0, %s44
    %s59 = sphi 0, %s45
    %s65 = sphi 0, %s67
    %s68 = sphi 0, %s65
    %s69 = sphi 0, %s68
    %s85 = sphi 0, %s69
  $region4: #{eudncnn_forward.14} parent=0 // loop_header_branch
    %11 = sbr.rel (%p9) target = $region8
  $region5: #{eudncnn_forward.14} parent=0 // loop_body
    %s13 = ssub.s32 %s8, 1
    %s14 = ssub.s32 %s8, 2
    %s15 = sadd.s32 %s8, 1
    %s16 = ssub.s32 %s8, %s15
    %p17 = scmp.eq.s32.totalorder %s16, 0
    %s19 = sadd.s32 %s18, 1
    %s20 = scalar_select %p17, %s18, %s19
    %p23 = pneg %p17
    %p24 = scmp.eq.s32.totalorder %s8, 1
    %p25 = por %p23, %p24
    %p26 = scmp.ne.s32.totalorder %s18, %s21
    %p27 = scmp.eq.s32.totalorder %s8, 0
    %p28 = por %p26, %p27
    %p29 = scmp.ne.s32.totalorder %s18, %s21
    %p30 = scmp.eq.s32.totalorder %s13, 1
    %p31 = por %p29, %p30
    %p32 = scmp.ne.s32.totalorder %s21, %s22
    %p33 = scmp.eq.s32.totalorder %s13, 0
    %p34 = por %p32, %p33
    %p35 = scmp.ne.s32.totalorder %s21, %s22
    %p36 = scmp.eq.s32.totalorder %s14, 1
    %p37 = por %p35, %p36
    %p39 = scmp.ne.s32.totalorder %s22, %s38
    %p40 = scmp.eq.s32.totalorder %s14, 0
    %p41 = por %p39, %p40
    %s43 = sadd.s32 %s42, 1
    %p46 = scmp.eq.s32.totalorder %s8, 1
    %p47 = scmp.ne.s32.totalorder %s42, %s44
    %p48 = scmp.eq.s32.totalorder %s8, 0
    %p49 = por %p47, %p48
    %p50 = scmp.ne.s32.totalorder %s42, %s44
    %p51 = scmp.eq.s32.totalorder %s13, 1
    %p52 = por %p50, %p51
    %p53 = scmp.ne.s32.totalorder %s44, %s45
    %p54 = scmp.eq.s32.totalorder %s13, 0
    %p55 = por %p53, %p54
    %p56 = scmp.ne.s32.totalorder %s44, %s45
    %p57 = scmp.eq.s32.totalorder %s14, 1
    %p58 = por %p56, %p57
    %p60 = scmp.ne.s32.totalorder %s45, %s59
    %p61 = scmp.eq.s32.totalorder %s14, 0
    %p62 = por %p60, %p61
    %s63 = ssub.s32 %s8, %s15
    %p64 = scmp.eq.s32.totalorder %s63, 0
    %s66 = sadd.s32 %s65, 1
    %s67 = scalar_select %p64, %s65, %s66
    %p70 = pneg %p64
    %p71 = scmp.eq.s32.totalorder %s8, 1
    %p72 = por %p70, %p71
    %p73 = scmp.ne.s32.totalorder %s65, %s68
    %p74 = scmp.eq.s32.totalorder %s8, 0
    %p75 = por %p73, %p74
    %p76 = scmp.ne.s32.totalorder %s65, %s68
    %p77 = scmp.eq.s32.totalorder %s13, 1
    %p78 = por %p76, %p77
    %p79 = scmp.ne.s32.totalorder %s68, %s69
    %p80 = scmp.eq.s32.totalorder %s13, 0
    %p81 = por %p79, %p80
    %p82 = scmp.ne.s32.totalorder %s68, %s69
    %p83 = scmp.eq.s32.totalorder %s14, 1
    %p84 = por %p82, %p83
    %p86 = scmp.ne.s32.totalorder %s69, %s85
    %p87 = scmp.eq.s32.totalorder %s14, 0
    %p88 = por %p86, %p87
    %p89 = scmp.le.s32.totalorder 1, %s8
    %p90 = scmp.lt.s32.totalorder %s8, 3
    %p91 = pnand %p89, %p90
    %p92 = pneg %p91
    // Predicated region
    $region9: #{eudncnn_forward.14} parent=5 // pred_check
      _
    $region10: #{eudncnn_forward.14} parent=5 // pred_check_branch
      %94 = sbr.rel (%p91) target = $region12
    $region11: #{eudncnn_forward.14} parent=5 // pred_region
      %s95 = ssub.s32 %s8, 1
      // Predicated region
      $region13: #{eudncnn_forward.14} parent=11 // pred_check
        %p96 = pneg %p55
      $region14: #{eudncnn_forward.14} parent=11 // pred_check_branch
        %98 = sbr.rel (%p96) target = $region16
      $region15: #{eudncnn_forward.14} parent=11 // pred_region
        _
      $region16: #{eudncnn_forward.14} parent=11 // pred_fallthru
        _
    $region12: #{eudncnn_forward.14} parent=5 // pred_fallthru
      _
    %p99 = scmp.lt.s32.totalorder %s8, 2
    // Predicated region
    $region17: #{eudncnn_forward.14} parent=5 // pred_check
      %p100 = pneg %p99
    $region18: #{eudncnn_forward.14} parent=5 // pred_check_branch
      %102 = sbr.rel (%p100) target = $region20
    $region19: #{eudncnn_forward.14} parent=5 // pred_region
      // Predicated region
      $region21: #{eudncnn_forward.14} parent=19 // pred_check
        %p103 = pneg %p28
      $region22: #{eudncnn_forward.14} parent=19 // pred_check_branch
        %105 = sbr.rel (%p103) target = $region24
      $region23: #{eudncnn_forward.14} parent=19 // pred_region
        %p106 = scmp.lt.s32.totalorder %s8, 1
        %s107 = scalar_select %p106, %s8, 1
        %s108 = smul.addr %s107, 5
        %s109 = scalar_lea.vmem %s0, %s108
      $region24: #{eudncnn_forward.14} parent=19 // pred_fallthru
        _
    $region20: #{eudncnn_forward.14} parent=5 // pred_fallthru
      _
    %p110 = scmp.le.s32.totalorder 1, %s8
    %p111 = scmp.lt.s32.totalorder %s8, 3
    %p112 = pnand %p110, %p111
    %p113 = pneg %p112
    // Predicated region
    $region25: #{eudncnn_forward.14} parent=5 // pred_check
      _
    $region26: #{eudncnn_forward.14} parent=5 // pred_check_branch
      %115 = sbr.rel (%p112) target = $region28
    $region27: #{eudncnn_forward.14} parent=5 // pred_region
      %s116 = ssub.s32 %s8, 1
      %p117 = scmp.lt.s32.totalorder %s13, 1
      %s118 = scalar_select %p117, %s13, 1
      %s119 = smul.addr %s118, 5
      %s120 = scalar_lea.vmem %s0, %s119
      %p121 = pneg %p34
      %p122 = pneg %p31
      %p123 = pneg %p55
      %p124 = pneg %p52
      %p125 = pneg %p81
      %p126 = pneg %p78
      %p127 = scmp.lt.s32.totalorder %s13, 1
      %s128 = scalar_select %p127, %s13, 1
      %s129 = smul.addr %s128, 8
      %s130 = smul.addr %s129, 4
      %s131 = scalar_lea.vmem %s2, %s130
      %p132 = scmp.lt.s32.totalorder %s13, 1
      %s133 = scalar_select %p132, %s13, 1
      %s134 = smul.addr %s133, 5
      %s135 = scalar_lea.vmem %s0, %s134
      %p136 = scmp.lt.s32.totalorder %s13, 1
      %s137 = scalar_select %p136, %s13, 1
      %s138 = smul.addr %s137, 8
      %s139 = smul.addr %s138, 4
      %s140 = scalar_lea.vmem %s2, %s139
      %v141 = vld [vmem:[%s135] sm:$0x1f]
      %v142 = vld [vmem:[%s135] sm:$0xf]
      %v143 = vmul.f32 %v142, -1.0
      %v144 = vmul.f32 %v141, -2.0
      %146 = vrot.lane.b32.xlu0 %v144, 127
      %v147 = vpop.permute.xlu0 %146
      %v148 = vrot.slane %v147, 1
      %vm149 = vcmask 1039360
      %v150 = vsel %vm149, %v147, %v148
      %v152 = vadd.f32 %v143, %v150
      %154 = vrot.lane.b32.xlu0 %v141, 126
      %v155 = vpop.permute.xlu0 %154
      %v156 = vrot.slane %v155, 1
      %vm157 = vcmask 1031168
      %v158 = vsel %vm157, %v155, %v156
      %v160 = vadd.f32 %v143, %v158
      %v161 = vmul.f32 %v141, -1.0
      %163 = vrot.lane.b32.xlu0 %v161, 126
      %v164 = vpop.permute.xlu0 %163
      %v165 = vrot.slane %v164, 1
      %v166 = vsel %vm157, %v164, %v165
      %v168 = vadd.f32 %v152, %v166
      %169 = vrot.lane.b32.xlu0 %v144, 110
      %v170 = vpop.permute.xlu0 %169
      %v171 = vrot.slane %v170, 1
      %vm172 = vcmask 900096
      %v173 = vsel %vm172, %v170, %v171
      %v175 = vadd.f32 %v160, %v173
      %v176 = vmul.f32 %v141, 2.0
      %178 = vrot.lane.b32.xlu0 %v176, 108
      %v179 = vpop.permute.xlu0 %178
      %v180 = vrot.slane %v179, 1
      %vm181 = vcmask 883712
      %v182 = vsel %vm181, %v179, %v180
      %v184 = vadd.f32 %v175, %v182
      %185 = vrot.lane.b32.xlu0 %v161, 92
      %v186 = vpop.permute.xlu0 %185
      %v187 = vrot.slane %v186, 1
      %vm188 = vcmask 752640
      %v189 = vsel %vm188, %v186, %v187
      %v191 = vadd.f32 %v184, %v189
      %192 = vrot.lane.b32.xlu0 %v141, 92
      %v193 = vpop.permute.xlu0 %192
      %v194 = vrot.slane %v193, 1
      %v195 = vsel %vm188, %v193, %v194
      %v197 = vadd.f32 %v168, %v195
      %198 = vrot.lane.b32.xlu0 %v176, 91
      %v199 = vpop.permute.xlu0 %198
      %v200 = vrot.slane %v199, 1
      %vm201 = vcmask 744448
      %v202 = vsel %vm201, %v199, %v200
      %v204 = vadd.f32 %v197, %v202
      %205 = vrot.lane.b32.xlu0 %v141, 90
      %v206 = vpop.permute.xlu0 %205
      %v207 = vrot.slane %v206, 1
      %vm208 = vcmask 736256
      %v209 = vsel %vm208, %v206, %v207
      %v211 = vadd.f32 %v191, %v209
      %v212 = vadd.f32 %v204, %v209
      %v213 = vld [vmem:[%s1] sm:$0xf]
      %v214 = vmul.f32 %v211, %v213
      %v215 = vmul.f32 %v212, %v213
      %v216 = vlaneseq
      %v217 = vshrl.u32 %v216, 7
      %v218 = vsub.s32 0, %v217
      %v219 = vrot.slane %v141, %v218
      %v220 = vlaneseq
      %v221 = vshrl.u32 %v220, 7
      %v222 = vsub.s32 1, %v221
      %v223 = vrot.slane %v141, %v222
      %v224 = vlaneseq
      %v225 = vshrl.u32 %v224, 7
      %v226 = vsub.s32 2, %v225
      %v227 = vrot.slane %v141, %v226
      %v228 = vlaneseq
      %v229 = vshrl.u32 %v228, 7
      %v230 = vsub.s32 3, %v229
      %v231 = vrot.slane %v141, %v230
      %v232 = vlaneseq
      %v233 = vshrl.u32 %v232, 7
      %v234 = vsub.s32 4, %v233
      %v235 = vrot.slane %v141, %v234
      %v242 = vlaneseq
      %v243 = vshrl.u32 %v242, 7
      %v244 = vsub.s32 0, %v243
      %v245 = vrot.slane %v214, %v244
      %v246 = vlaneseq
      %v247 = vshrl.u32 %v246, 7
      %v248 = vsub.s32 1, %v247
      %v249 = vrot.slane %v214, %v248
      %v250 = vlaneseq
      %v251 = vshrl.u32 %v250, 7
      %v252 = vsub.s32 2, %v251
      %v253 = vrot.slane %v214, %v252
      %v254 = vlaneseq
      %v255 = vshrl.u32 %v254, 7
      %v256 = vsub.s32 3, %v255
      %v257 = vrot.slane %v214, %v256
      %258 = vrot.lane.b32.xlu0 %v245, 19
      %v259 = vpop.permute.xlu0 %258
      %260 = vrot.lane.b32.xlu0 %v249, 19
      %v261 = vpop.permute.xlu0 %260
      %262 = vrot.lane.b32.xlu0 %v253, 19
      %v263 = vpop.permute.xlu0 %262
      %264 = vrot.lane.b32.xlu0 %v257, 19
      %v265 = vpop.permute.xlu0 %264
      %vm266 = vcmask 154624
      %v267 = vsel %vm266, %v259, %v261
      %v268 = vsel %vm266, %v261, %v263
      %v269 = vsel %vm266, %v263, %v265
      %v276 = vlaneseq
      %v277 = vshrl.u32 %v276, 7
      %v278 = vsub.s32 0, %v277
      %v279 = vrot.slane %v215, %v278
      %v280 = vlaneseq
      %v281 = vshrl.u32 %v280, 7
      %v282 = vsub.s32 1, %v281
      %v283 = vrot.slane %v215, %v282
      %v284 = vlaneseq
      %v285 = vshrl.u32 %v284, 7
      %v286 = vsub.s32 2, %v285
      %v287 = vrot.slane %v215, %v286
      %v288 = vlaneseq
      %v289 = vshrl.u32 %v288, 7
      %v290 = vsub.s32 3, %v289
      %v291 = vrot.slane %v215, %v290
      %292 = vrot.lane.b32.xlu0 %v279, 19
      %v293 = vpop.permute.xlu0 %292
      %294 = vrot.lane.b32.xlu0 %v283, 19
      %v295 = vpop.permute.xlu0 %294
      %296 = vrot.lane.b32.xlu0 %v287, 19
      %v297 = vpop.permute.xlu0 %296
      %298 = vrot.lane.b32.xlu0 %v291, 19
      %v299 = vpop.permute.xlu0 %298
      %v300 = vsel %vm266, %v293, %v295
      %v301 = vsel %vm266, %v295, %v297
      %v302 = vsel %vm266, %v297, %v299
      %vm308 = vcmask 1040384
      %v309 = vsel %vm308, %v219, %v259
      %v310 = vsel %vm308, %v223, %v267
      %v311 = vsel %vm308, %v227, %v268
      %v312 = vsel %vm308, %v231, %v269
      %v313 = vsel %vm308, %v235, %v265
      %vm314 = vcmask 1041408
      %v315 = vsel %vm314, %v309, %v293
      %v316 = vsel %vm314, %v310, %v300
      %v317 = vsel %vm314, %v311, %v301
      %v318 = vsel %vm314, %v312, %v302
      %v319 = vsel %vm314, %v313, %v299
      %vm320 = vcmask 1042432
      %v321 = vsel %vm320, %v315, %v259
      %v322 = vsel %vm320, %v316, %v267
      %v323 = vsel %vm320, %v317, %v268
      %v324 = vsel %vm320, %v318, %v269
      %v325 = vsel %vm320, %v319, %v265
      %vm326 = vcmask 1043456
      %v327 = vsel %vm326, %v321, %v293
      %v328 = vsel %vm326, %v322, %v300
      %v329 = vsel %vm326, %v323, %v301
      %v330 = vsel %vm326, %v324, %v302
      %v331 = vsel %vm326, %v325, %v299
      %vm332 = vcmask 1044480
      %v333 = vsel %vm332, %v327, %v259
      %v334 = vsel %vm332, %v328, %v267
      %v335 = vsel %vm332, %v329, %v268
      %v336 = vsel %vm332, %v330, %v269
      %v337 = vsel %vm332, %v331, %v265
      %vm338 = vcmask 1045504
      %v339 = vsel %vm338, %v333, %v293
      %v340 = vsel %vm338, %v334, %v300
      %v341 = vsel %vm338, %v335, %v301
      %v342 = vsel %vm338, %v336, %v302
      %v343 = vsel %vm338, %v337, %v299
      %vm344 = vcmask 1046528
      %v345 = vsel %vm344, %v339, %v259
      %v346 = vsel %vm344, %v340, %v267
      %v347 = vsel %vm344, %v341, %v268
      %v348 = vsel %vm344, %v342, %v269
      %v349 = vsel %vm344, %v343, %v265
      %v350 = vsel %vm308, %v293, 0.0
      %v351 = vsel %vm308, %v300, 0.0
      %v352 = vsel %vm308, %v301, 0.0
      %v353 = vsel %vm308, %v302, 0.0
      %v354 = vsel %vm308, %v299, 0.0
      %v355 = vpack.c.bf16 %v350, %v345
      %v356 = vpack.c.bf16 %v351, %v346
      %v357 = vpack.c.bf16 %v352, %v347
      %v358 = vpack.c.bf16 %v353, %v348
      %v359 = vpack.c.bf16 %v354, %v349
      %v365 = vunpack.c.l.b16 %v355
      %v366 = vunpack.c.l.b16 %v356
      %v367 = vunpack.c.l.b16 %v357
      %v368 = vunpack.c.l.b16 %v358
      %v369 = vunpack.c.l.b16 %v359
      %v370 = vunpack.c.h.b16 %v355
      %v371 = vunpack.c.h.b16 %v356
      %v372 = vunpack.c.h.b16 %v357
      %v373 = vunpack.c.h.b16 %v358
      %v374 = vunpack.c.h.b16 %v359
      %v375 = vpack.c.b16 %v366, %v365
      %v376 = vpack.c.b16 %v368, %v367
      %v377 = vpack.c.b16 %v369, %v369
      %v378 = vpack.c.b16 %v371, %v370
      %v379 = vpack.c.b16 %v373, %v372
      %v380 = vpack.c.b16 %v374, %v374
      %381 = vrot.lane.b32.xlu0 %v375, 109
      %v382 = vpop.permute.xlu0 %381
      %383 = vrot.lane.b32.xlu0 %v376, 109
      %v384 = vpop.permute.xlu0 %383
      %385 = vrot.lane.b32.xlu0 %v377, 109
      %v386 = vpop.permute.xlu0 %385
      %387 = vrot.lane.b32.xlu0 %v378, 109
      %v388 = vpop.permute.xlu0 %387
      %389 = vrot.lane.b32.xlu0 %v379, 109
      %v390 = vpop.permute.xlu0 %389
      %391 = vrot.lane.b32.xlu0 %v380, 109
      %v392 = vpop.permute.xlu0 %391
      %v393 = vrot.slane %v382, 4
      %v394 = vrot.slane %v384, 4
      %v395 = vrot.slane %v386, 4
      %v396 = vrot.slane %v388, 4
      %v397 = vrot.slane %v390, 4
      %v398 = vrot.slane %v392, 4
      %vm399 = vcmask 1043456
      %v400 = vsel %vm399, %v393, %v394
      %vm401 = vcmask 891904
      %v402 = vsel %vm401, %v382, %v400
      %v403 = vsel %vm399, %v394, %v395
      %v404 = vsel %vm401, %v384, %v403
      %v405 = vsel %vm399, %v396, %v397
      %v406 = vsel %vm401, %v388, %v405
      %v407 = vsel %vm399, %v397, %v398
      %v408 = vsel %vm401, %v390, %v407
      %413 = vst [vmem:[%s140] sm:$0xff] %v402
      %414 = vst [vmem:[%s140 + $0x8] sm:$0xff] %v404
      %415 = vst [vmem:[%s140 + $0x10] sm:$0xff] %v406
      %416 = vst [vmem:[%s140 + $0x18] sm:$0xff] %v408
      %p417 = scmp.lt.s32.totalorder %s13, 1
      %s418 = scalar_select %p417, %s13, 1
      %s419 = smul.addr %s418, 8
      %s420 = smul.addr %s419, 4
      %s421 = scalar_lea.vmem %s2, %s420
      // Predicated region
      $region29: #{eudncnn_forward.14} parent=27 // pred_check
        %p422 = pneg %p78
      $region30: #{eudncnn_forward.14} parent=27 // pred_check_branch
        %424 = sbr.rel (%p422) target = $region32
      $region31: #{eudncnn_forward.14} parent=27 // pred_region
        _
      $region32: #{eudncnn_forward.14} parent=27 // pred_fallthru
        _
    $region28: #{eudncnn_forward.14} parent=5 // pred_fallthru
      _
    %p425 = scmp.le.s32.totalorder 2, %s8
    // Predicated region
    $region33: #{eudncnn_forward.14} parent=5 // pred_check
      %p426 = pneg %p425
    $region34: #{eudncnn_forward.14} parent=5 // pred_check_branch
      %428 = sbr.rel (%p426) target = $region36
    $region35: #{eudncnn_forward.14} parent=5 // pred_region
      %s429 = ssub.s32 %s8, 2
      // Predicated region
      $region37: #{eudncnn_forward.14} parent=35 // pred_check
        %p430 = pneg %p84
      $region38: #{eudncnn_forward.14} parent=35 // pred_check_branch
        %432 = sbr.rel (%p430) target = $region40
      $region39: #{eudncnn_forward.14} parent=35 // pred_region
        %p433 = scmp.lt.s32.totalorder %s14, 1
        %s434 = scalar_select %p433, %s14, 1
        %s435 = smul.addr %s434, 8
        %s436 = smul.addr %s435, 4
        %s437 = scalar_lea.vmem %s2, %s436
      $region40: #{eudncnn_forward.14} parent=35 // pred_fallthru
        _
    $region36: #{eudncnn_forward.14} parent=5 // pred_fallthru
      _
  $region6: #{eudncnn_forward.14} parent=0 // loop_footer
    %s12 = sadd.s32 1, %s8
  $region7: #{eudncnn_forward.14} parent=0 // loop_footer_branch
    %7 = sbr.rel target = $region3
  $region8: #{eudncnn_forward.14} parent=0 // loop_exit
    _

// kernel: eudncnn_forward.8
$region0: #{eudncnn_forward.8}
  #allocation0 [shape = 'u32[]', space=smem, size = 0x4, offset = 0x4, fixed_abs, tag = 'smem constant byte address 0x4 - core index']
  #allocation1 [shape = 'u32[144,128]{1,0:T(1,128)}', space=vmem, size = 0x12000, scoped, tag = 'internal scratch']
  %s0 = inlined_call_operand.vmem [shape: f32[2,1,640], index: 0, kind: input, shape index: {}]
  %s1 = inlined_call_operand.vmem [shape: f32[1,512], index: 1, kind: input, shape index: {}]
  %s2 = inlined_call_operand.vmem [shape: bf16[2,32,512], index: 2, kind: output, shape index: {}]
  %s3 = sld [smem:[#allocation0]]
  $region41: #{eudncnn_forward.8} parent=0
    _
  %s5 = ssub.s32 1, %s3
  %s6 = scalar_select 0, %s5, %s3
  loop: start=0, step=1, limit=4
  $region2: #{eudncnn_forward.8} parent=0 // loop_pre_header
    _
  $region3: #{eudncnn_forward.8} parent=0 // loop_header
    %s8 = sphi 0, %s12
    %p9 = scmp.ge.s32.totalorder %s8, 4
    %s18 = sphi 0, %s20
    %s21 = sphi 0, %s18
    %s22 = sphi 0, %s21
    %s38 = sphi 0, %s22
    %s42 = sphi 0, %s42
    %s44 = sphi 0, %s42
    %s45 = sphi 0, %s44
    %s59 = sphi 0, %s45
    %s65 = sphi 0, %s67
    %s68 = sphi 0, %s65
    %s69 = sphi 0, %s68
    %s85 = sphi 0, %s69
  $region4: #{eudncnn_forward.8} parent=0 // loop_header_branch
    %11 = sbr.rel (%p9) target = $region8
  $region5: #{eudncnn_forward.8} parent=0 // loop_body
    %s13 = ssub.s32 %s8, 1
    %s14 = ssub.s32 %s8, 2
    %s15 = sadd.s32 %s8, 1
    %s16 = ssub.s32 %s8, %s15
    %p17 = scmp.eq.s32.totalorder %s16, 0
    %s19 = sadd.s32 %s18, 1
    %s20 = scalar_select %p17, %s18, %s19
    %p23 = pneg %p17
    %p24 = scmp.eq.s32.totalorder %s8, 1
    %p25 = por %p23, %p24
    %p26 = scmp.ne.s32.totalorder %s18, %s21
    %p27 = scmp.eq.s32.totalorder %s8, 0
    %p28 = por %p26, %p27
    %p29 = scmp.ne.s32.totalorder %s18, %s21
    %p30 = scmp.eq.s32.totalorder %s13, 1
    %p31 = por %p29, %p30
    %p32 = scmp.ne.s32.totalorder %s21, %s22
    %p33 = scmp.eq.s32.totalorder %s13, 0
    %p34 = por %p32, %p33
    %p35 = scmp.ne.s32.totalorder %s21, %s22
    %p36 = scmp.eq.s32.totalorder %s14, 1
    %p37 = por %p35, %p36
    %p39 = scmp.ne.s32.totalorder %s22, %s38
    %p40 = scmp.eq.s32.totalorder %s14, 0
    %p41 = por %p39, %p40
    %s43 = sadd.s32 %s42, 1
    %p46 = scmp.eq.s32.totalorder %s8, 1
    %p47 = scmp.ne.s32.totalorder %s42, %s44
    %p48 = scmp.eq.s32.totalorder %s8, 0
    %p49 = por %p47, %p48
    %p50 = scmp.ne.s32.totalorder %s42, %s44
    %p51 = scmp.eq.s32.totalorder %s13, 1
    %p52 = por %p50, %p51
    %p53 = scmp.ne.s32.totalorder %s44, %s45
    %p54 = scmp.eq.s32.totalorder %s13, 0
    %p55 = por %p53, %p54
    %p56 = scmp.ne.s32.totalorder %s44, %s45
    %p57 = scmp.eq.s32.totalorder %s14, 1
    %p58 = por %p56, %p57
    %p60 = scmp.ne.s32.totalorder %s45, %s59
    %p61 = scmp.eq.s32.totalorder %s14, 0
    %p62 = por %p60, %p61
    %s63 = ssub.s32 %s8, %s15
    %p64 = scmp.eq.s32.totalorder %s63, 0
    %s66 = sadd.s32 %s65, 1
    %s67 = scalar_select %p64, %s65, %s66
    %p70 = pneg %p64
    %p71 = scmp.eq.s32.totalorder %s8, 1
    %p72 = por %p70, %p71
    %p73 = scmp.ne.s32.totalorder %s65, %s68
    %p74 = scmp.eq.s32.totalorder %s8, 0
    %p75 = por %p73, %p74
    %p76 = scmp.ne.s32.totalorder %s65, %s68
    %p77 = scmp.eq.s32.totalorder %s13, 1
    %p78 = por %p76, %p77
    %p79 = scmp.ne.s32.totalorder %s68, %s69
    %p80 = scmp.eq.s32.totalorder %s13, 0
    %p81 = por %p79, %p80
    %p82 = scmp.ne.s32.totalorder %s68, %s69
    %p83 = scmp.eq.s32.totalorder %s14, 1
    %p84 = por %p82, %p83
    %p86 = scmp.ne.s32.totalorder %s69, %s85
    %p87 = scmp.eq.s32.totalorder %s14, 0
    %p88 = por %p86, %p87
    %p89 = scmp.le.s32.totalorder 1, %s8
    %p90 = scmp.lt.s32.totalorder %s8, 3
    %p91 = pnand %p89, %p90
    %p92 = pneg %p91
    // Predicated region
    $region9: #{eudncnn_forward.8} parent=5 // pred_check
      _
    $region10: #{eudncnn_forward.8} parent=5 // pred_check_branch
      %94 = sbr.rel (%p91) target = $region12
    $region11: #{eudncnn_forward.8} parent=5 // pred_region
      %s95 = ssub.s32 %s8, 1
      // Predicated region
      $region13: #{eudncnn_forward.8} parent=11 // pred_check
        %p96 = pneg %p55
      $region14: #{eudncnn_forward.8} parent=11 // pred_check_branch
        %98 = sbr.rel (%p96) target = $region16
      $region15: #{eudncnn_forward.8} parent=11 // pred_region
        _
      $region16: #{eudncnn_forward.8} parent=11 // pred_fallthru
        _
    $region12: #{eudncnn_forward.8} parent=5 // pred_fallthru
      _
    %p99 = scmp.lt.s32.totalorder %s8, 2
    // Predicated region
    $region17: #{eudncnn_forward.8} parent=5 // pred_check
      %p100 = pneg %p99
    $region18: #{eudncnn_forward.8} parent=5 // pred_check_branch
      %102 = sbr.rel (%p100) target = $region20
    $region19: #{eudncnn_forward.8} parent=5 // pred_region
      // Predicated region
      $region21: #{eudncnn_forward.8} parent=19 // pred_check
        %p103 = pneg %p28
      $region22: #{eudncnn_forward.8} parent=19 // pred_check_branch
        %105 = sbr.rel (%p103) target = $region24
      $region23: #{eudncnn_forward.8} parent=19 // pred_region
        %p106 = scmp.lt.s32.totalorder %s8, 1
        %s107 = scalar_select %p106, %s8, 1
        %s108 = smul.addr %s107, 5
        %s109 = scalar_lea.vmem %s0, %s108
      $region24: #{eudncnn_forward.8} parent=19 // pred_fallthru
        _
    $region20: #{eudncnn_forward.8} parent=5 // pred_fallthru
      _
    %p110 = scmp.le.s32.totalorder 1, %s8
    %p111 = scmp.lt.s32.totalorder %s8, 3
    %p112 = pnand %p110, %p111
    %p113 = pneg %p112
    // Predicated region
    $region25: #{eudncnn_forward.8} parent=5 // pred_check
      _
    $region26: #{eudncnn_forward.8} parent=5 // pred_check_branch
      %115 = sbr.rel (%p112) target = $region28
    $region27: #{eudncnn_forward.8} parent=5 // pred_region
      %s116 = ssub.s32 %s8, 1
      %p117 = scmp.lt.s32.totalorder %s13, 1
      %s118 = scalar_select %p117, %s13, 1
      %s119 = smul.addr %s118, 5
      %s120 = scalar_lea.vmem %s0, %s119
      %p121 = pneg %p34
      %p122 = pneg %p31
      %p123 = pneg %p55
      %p124 = pneg %p52
      %p125 = pneg %p81
      %p126 = pneg %p78
      %p127 = scmp.lt.s32.totalorder %s13, 1
      %s128 = scalar_select %p127, %s13, 1
      %s129 = smul.addr %s128, 16
      %s130 = smul.addr %s129, 4
      %s131 = scalar_lea.vmem %s2, %s130
      %p132 = scmp.lt.s32.totalorder %s13, 1
      %s133 = scalar_select %p132, %s13, 1
      %s134 = smul.addr %s133, 5
      %s135 = scalar_lea.vmem %s0, %s134
      %p136 = scmp.lt.s32.totalorder %s13, 1
      %s137 = scalar_select %p136, %s13, 1
      %s138 = smul.addr %s137, 16
      %s139 = smul.addr %s138, 4
      %s140 = scalar_lea.vmem %s2, %s139
      %v141 = vld [vmem:[%s135] sm:$0x1f]
      %v142 = vld [vmem:[%s135] sm:$0xf]
      %v143 = vmul.f32 %v142, -1.0
      %v144 = vmul.f32 %v141, -2.0
      %146 = vrot.lane.b32.xlu0 %v144, 127
      %v147 = vpop.permute.xlu0 %146
      %v148 = vrot.slane %v147, 1
      %vm149 = vcmask 1039360
      %v150 = vsel %vm149, %v147, %v148
      %v152 = vadd.f32 %v143, %v150
      %154 = vrot.lane.b32.xlu0 %v141, 126
      %v155 = vpop.permute.xlu0 %154
      %v156 = vrot.slane %v155, 1
      %vm157 = vcmask 1031168
      %v158 = vsel %vm157, %v155, %v156
      %v160 = vadd.f32 %v143, %v158
      %v161 = vmul.f32 %v141, -1.0
      %163 = vrot.lane.b32.xlu0 %v161, 126
      %v164 = vpop.permute.xlu0 %163
      %v165 = vrot.slane %v164, 1
      %v166 = vsel %vm157, %v164, %v165
      %v168 = vadd.f32 %v152, %v166
      %169 = vrot.lane.b32.xlu0 %v144, 110
      %v170 = vpop.permute.xlu0 %169
      %v171 = vrot.slane %v170, 1
      %vm172 = vcmask 900096
      %v173 = vsel %vm172, %v170, %v171
      %v175 = vadd.f32 %v160, %v173
      %v176 = vmul.f32 %v141, 2.0
      %178 = vrot.lane.b32.xlu0 %v176, 108
      %v179 = vpop.permute.xlu0 %178
      %v180 = vrot.slane %v179, 1
      %vm181 = vcmask 883712
      %v182 = vsel %vm181, %v179, %v180
      %v184 = vadd.f32 %v175, %v182
      %185 = vrot.lane.b32.xlu0 %v161, 92
      %v186 = vpop.permute.xlu0 %185
      %v187 = vrot.slane %v186, 1
      %vm188 = vcmask 752640
      %v189 = vsel %vm188, %v186, %v187
      %v191 = vadd.f32 %v184, %v189
      %192 = vrot.lane.b32.xlu0 %v141, 92
      %v193 = vpop.permute.xlu0 %192
      %v194 = vrot.slane %v193, 1
      %v195 = vsel %vm188, %v193, %v194
      %v197 = vadd.f32 %v168, %v195
      %198 = vrot.lane.b32.xlu0 %v176, 91
      %v199 = vpop.permute.xlu0 %198
      %v200 = vrot.slane %v199, 1
      %vm201 = vcmask 744448
      %v202 = vsel %vm201, %v199, %v200
      %v204 = vadd.f32 %v197, %v202
      %205 = vrot.lane.b32.xlu0 %v141, 90
      %v206 = vpop.permute.xlu0 %205
      %v207 = vrot.slane %v206, 1
      %vm208 = vcmask 736256
      %v209 = vsel %vm208, %v206, %v207
      %v211 = vadd.f32 %v191, %v209
      %v212 = vadd.f32 %v204, %v209
      %v213 = vld [vmem:[%s1] sm:$0xf]
      %v214 = vmul.f32 %v211, %v213
      %v215 = vmul.f32 %v212, %v213
      %v216 = vlaneseq
      %v217 = vshrl.u32 %v216, 7
      %v218 = vsub.s32 0, %v217
      %v219 = vrot.slane %v141, %v218
      %v220 = vlaneseq
      %v221 = vshrl.u32 %v220, 7
      %v222 = vsub.s32 1, %v221
      %v223 = vrot.slane %v141, %v222
      %v224 = vlaneseq
      %v225 = vshrl.u32 %v224, 7
      %v226 = vsub.s32 2, %v225
      %v227 = vrot.slane %v141, %v226
      %v228 = vlaneseq
      %v229 = vshrl.u32 %v228, 7
      %v230 = vsub.s32 3, %v229
      %v231 = vrot.slane %v141, %v230
      %v232 = vlaneseq
      %v233 = vshrl.u32 %v232, 7
      %v234 = vsub.s32 4, %v233
      %v235 = vrot.slane %v141, %v234
      %v242 = vlaneseq
      %v243 = vshrl.u32 %v242, 7
      %v244 = vsub.s32 0, %v243
      %v245 = vrot.slane %v214, %v244
      %v246 = vlaneseq
      %v247 = vshrl.u32 %v246, 7
      %v248 = vsub.s32 1, %v247
      %v249 = vrot.slane %v214, %v248
      %v250 = vlaneseq
      %v251 = vshrl.u32 %v250, 7
      %v252 = vsub.s32 2, %v251
      %v253 = vrot.slane %v214, %v252
      %v254 = vlaneseq
      %v255 = vshrl.u32 %v254, 7
      %v256 = vsub.s32 3, %v255
      %v257 = vrot.slane %v214, %v256
      %258 = vrot.lane.b32.xlu0 %v245, 19
      %v259 = vpop.permute.xlu0 %258
      %260 = vrot.lane.b32.xlu0 %v249, 19
      %v261 = vpop.permute.xlu0 %260
      %262 = vrot.lane.b32.xlu0 %v253, 19
      %v263 = vpop.permute.xlu0 %262
      %264 = vrot.lane.b32.xlu0 %v257, 19
      %v265 = vpop.permute.xlu0 %264
      %vm266 = vcmask 154624
      %v267 = vsel %vm266, %v259, %v261
      %v268 = vsel %vm266, %v261, %v263
      %v269 = vsel %vm266, %v263, %v265
      %v276 = vlaneseq
      %v277 = vshrl.u32 %v276, 7
      %v278 = vsub.s32 0, %v277
      %v279 = vrot.slane %v215, %v278
      %v280 = vlaneseq
      %v281 = vshrl.u32 %v280, 7
      %v282 = vsub.s32 1, %v281
      %v283 = vrot.slane %v215, %v282
      %v284 = vlaneseq
      %v285 = vshrl.u32 %v284, 7
      %v286 = vsub.s32 2, %v285
      %v287 = vrot.slane %v215, %v286
      %v288 = vlaneseq
      %v289 = vshrl.u32 %v288, 7
      %v290 = vsub.s32 3, %v289
      %v291 = vrot.slane %v215, %v290
      %292 = vrot.lane.b32.xlu0 %v279, 19
      %v293 = vpop.permute.xlu0 %292
      %294 = vrot.lane.b32.xlu0 %v283, 19
      %v295 = vpop.permute.xlu0 %294
      %296 = vrot.lane.b32.xlu0 %v287, 19
      %v297 = vpop.permute.xlu0 %296
      %298 = vrot.lane.b32.xlu0 %v291, 19
      %v299 = vpop.permute.xlu0 %298
      %v300 = vsel %vm266, %v293, %v295
      %v301 = vsel %vm266, %v295, %v297
      %v302 = vsel %vm266, %v297, %v299
      %vm308 = vcmask 1040384
      %v309 = vsel %vm308, %v219, %v259
      %v310 = vsel %vm308, %v223, %v267
      %v311 = vsel %vm308, %v227, %v268
      %v312 = vsel %vm308, %v231, %v269
      %v313 = vsel %vm308, %v235, %v265
      %vm314 = vcmask 1041408
      %v315 = vsel %vm314, %v309, %v293
      %v316 = vsel %vm314, %v310, %v300
      %v317 = vsel %vm314, %v311, %v301
      %v318 = vsel %vm314, %v312, %v302
      %v319 = vsel %vm314, %v313, %v299
      %vm320 = vcmask 1042432
      %v321 = vsel %vm320, %v315, %v259
      %v322 = vsel %vm320, %v316, %v267
      %v323 = vsel %vm320, %v317, %v268
      %v324 = vsel %vm320, %v318, %v269
      %v325 = vsel %vm320, %v319, %v265
      %vm326 = vcmask 1043456
      %v327 = vsel %vm326, %v321, %v293
      %v328 = vsel %vm326, %v322, %v300
      %v329 = vsel %vm326, %v323, %v301
      %v330 = vsel %vm326, %v324, %v302
      %v331 = vsel %vm326, %v325, %v299
      %vm332 = vcmask 1044480
      %v333 = vsel %vm332, %v327, %v259
      %v334 = vsel %vm332, %v328, %v267
      %v335 = vsel %vm332, %v329, %v268
      %v336 = vsel %vm332, %v330, %v269
      %v337 = vsel %vm332, %v331, %v265
      %vm338 = vcmask 1045504
      %v339 = vsel %vm338, %v333, %v293
      %v340 = vsel %vm338, %v334, %v300
      %v341 = vsel %vm338, %v335, %v301
      %v342 = vsel %vm338, %v336, %v302
      %v343 = vsel %vm338, %v337, %v299
      %vm344 = vcmask 1046528
      %v345 = vsel %vm344, %v339, %v259
      %v346 = vsel %vm344, %v340, %v267
      %v347 = vsel %vm344, %v341, %v268
      %v348 = vsel %vm344, %v342, %v269
      %v349 = vsel %vm344, %v343, %v265
      %v350 = vsel %vm308, %v293, %v259
      %v351 = vsel %vm308, %v300, %v267
      %v352 = vsel %vm308, %v301, %v268
      %v353 = vsel %vm308, %v302, %v269
      %v354 = vsel %vm308, %v299, %v265
      %v355 = vsel %vm314, %v350, %v293
      %v356 = vsel %vm314, %v351, %v300
      %v357 = vsel %vm314, %v352, %v301
      %v358 = vsel %vm314, %v353, %v302
      %v359 = vsel %vm314, %v354, %v299
      %v360 = vsel %vm320, %v355, %v259
      %v361 = vsel %vm320, %v356, %v267
      %v362 = vsel %vm320, %v357, %v268
      %v363 = vsel %vm320, %v358, %v269
      %v364 = vsel %vm320, %v359, %v265
      %v365 = vsel %vm326, %v360, %v293
      %v366 = vsel %vm326, %v361, %v300
      %v367 = vsel %vm326, %v362, %v301
      %v368 = vsel %vm326, %v363, %v302
      %v369 = vsel %vm326, %v364, %v299
      %v370 = vsel %vm332, %v365, %v259
      %v371 = vsel %vm332, %v366, %v267
      %v372 = vsel %vm332, %v367, %v268
      %v373 = vsel %vm332, %v368, %v269
      %v374 = vsel %vm332, %v369, %v265
      %v375 = vsel %vm338, %v370, %v293
      %v376 = vsel %vm338, %v371, %v300
      %v377 = vsel %vm338, %v372, %v301
      %v378 = vsel %vm338, %v373, %v302
      %v379 = vsel %vm338, %v374, %v299
      %v380 = vsel %vm344, %v375, %v259
      %v381 = vsel %vm344, %v376, %v267
      %v382 = vsel %vm344, %v377, %v268
      %v383 = vsel %vm344, %v378, %v269
      %v384 = vsel %vm344, %v379, %v265
      %v389 = vsel %vm308, %v279, 0.0
      %v390 = vsel %vm308, %v283, 0.0
      %v391 = vsel %vm308, %v287, 0.0
      %v392 = vsel %vm308, %v291, 0.0
      %398 = vrot.lane.b32.xlu0 %v389, 19
      %v399 = vpop.permute.xlu0 %398
      %400 = vrot.lane.b32.xlu0 %v390, 19
      %v401 = vpop.permute.xlu0 %400
      %402 = vrot.lane.b32.xlu0 %v391, 19
      %v403 = vpop.permute.xlu0 %402
      %404 = vrot.lane.b32.xlu0 %v392, 19
      %v405 = vpop.permute.xlu0 %404
      %406 = vrot.lane.b32.xlu0 0.0, 19
      %v407 = vpop.permute.xlu0 %406
      %v408 = vsel %vm266, %v399, %v401
      %v409 = vsel %vm266, %v401, %v403
      %v410 = vsel %vm266, %v403, %v405
      %v417 = vpack.c.bf16 %v380, %v345
      %v418 = vpack.c.bf16 %v381, %v346
      %v419 = vpack.c.bf16 %v382, %v347
      %v420 = vpack.c.bf16 %v383, %v348
      %v421 = vpack.c.bf16 %v384, %v349
      %v422 = vpack.c.bf16 %v407, %v399
      %v423 = vpack.c.bf16 %v407, %v408
      %v424 = vpack.c.bf16 %v407, %v409
      %v425 = vpack.c.bf16 %v407, %v410
      %v426 = vpack.c.bf16 %v407, %v405
      %v437 = vunpack.c.l.b16 %v417
      %v438 = vunpack.c.l.b16 %v418
      %v439 = vunpack.c.l.b16 %v419
      %v440 = vunpack.c.l.b16 %v420
      %v441 = vunpack.c.l.b16 %v421
      %v442 = vunpack.c.h.b16 %v417
      %v443 = vunpack.c.h.b16 %v418
      %v444 = vunpack.c.h.b16 %v419
      %v445 = vunpack.c.h.b16 %v420
      %v446 = vunpack.c.h.b16 %v421
      %v447 = vunpack.c.l.b16 %v422
      %v448 = vunpack.c.l.b16 %v423
      %v449 = vunpack.c.l.b16 %v424
      %v450 = vunpack.c.l.b16 %v425
      %v451 = vunpack.c.l.b16 %v426
      %v452 = vunpack.c.h.b16 %v422
      %v453 = vunpack.c.h.b16 %v423
      %v454 = vunpack.c.h.b16 %v424
      %v455 = vunpack.c.h.b16 %v425
      %v456 = vunpack.c.h.b16 %v426
      %v457 = vpack.c.b16 %v438, %v437
      %v458 = vpack.c.b16 %v440, %v439
      %v459 = vpack.c.b16 %v441, %v441
      %v460 = vpack.c.b16 %v443, %v442
      %v461 = vpack.c.b16 %v445, %v444
      %v462 = vpack.c.b16 %v446, %v446
      %v463 = vpack.c.b16 %v448, %v447
      %v464 = vpack.c.b16 %v450, %v449
      %v465 = vpack.c.b16 %v451, %v451
      %v466 = vpack.c.b16 %v453, %v452
      %v467 = vpack.c.b16 %v455, %v454
      %v468 = vpack.c.b16 %v456, %v456
      %469 = vrot.lane.b32.xlu0 %v457, 109
      %v470 = vpop.permute.xlu0 %469
      %471 = vrot.lane.b32.xlu0 %v458, 109
      %v472 = vpop.permute.xlu0 %471
      %473 = vrot.lane.b32.xlu0 %v459, 109
      %v474 = vpop.permute.xlu0 %473
      %475 = vrot.lane.b32.xlu0 %v460, 109
      %v476 = vpop.permute.xlu0 %475
      %477 = vrot.lane.b32.xlu0 %v461, 109
      %v478 = vpop.permute.xlu0 %477
      %479 = vrot.lane.b32.xlu0 %v462, 109
      %v480 = vpop.permute.xlu0 %479
      %481 = vrot.lane.b32.xlu0 %v463, 109
      %v482 = vpop.permute.xlu0 %481
      %483 = vrot.lane.b32.xlu0 %v464, 109
      %v484 = vpop.permute.xlu0 %483
      %485 = vrot.lane.b32.xlu0 %v465, 109
      %v486 = vpop.permute.xlu0 %485
      %487 = vrot.lane.b32.xlu0 %v466, 109
      %v488 = vpop.permute.xlu0 %487
      %489 = vrot.lane.b32.xlu0 %v467, 109
      %v490 = vpop.permute.xlu0 %489
      %491 = vrot.lane.b32.xlu0 %v468, 109
      %v492 = vpop.permute.xlu0 %491
      %v493 = vrot.slane %v470, 4
      %v494 = vrot.slane %v472, 4
      %v495 = vrot.slane %v474, 4
      %v496 = vrot.slane %v476, 4
      %v497 = vrot.slane %v478, 4
      %v498 = vrot.slane %v480, 4
      %v499 = vrot.slane %v482, 4
      %v500 = vrot.slane %v484, 4
      %v501 = vrot.slane %v486, 4
      %v502 = vrot.slane %v488, 4
      %v503 = vrot.slane %v490, 4
      %v504 = vrot.slane %v492, 4
      %vm505 = vcmask 1043456
      %v506 = vsel %vm505, %v493, %v494
      %vm507 = vcmask 891904
      %v508 = vsel %vm507, %v470, %v506
      %v509 = vsel %vm505, %v494, %v495
      %v510 = vsel %vm507, %v472, %v509
      %v511 = vsel %vm505, %v496, %v497
      %v512 = vsel %vm507, %v476, %v511
      %v513 = vsel %vm505, %v497, %v498
      %v514 = vsel %vm507, %v478, %v513
      %v515 = vsel %vm505, %v499, %v500
      %v516 = vsel %vm507, %v482, %v515
      %v517 = vsel %vm505, %v500, %v501
      %v518 = vsel %vm507, %v484, %v517
      %v519 = vsel %vm505, %v502, %v503
      %v520 = vsel %vm507, %v488, %v519
      %v521 = vsel %vm505, %v503, %v504
      %v522 = vsel %vm507, %v490, %v521
      %531 = vst [vmem:[%s140] sm:$0xff] %v508
      %532 = vst [vmem:[%s140 + $0x8] sm:$0xff] %v510
      %533 = vst [vmem:[%s140 + $0x10] sm:$0xff] %v512
      %534 = vst [vmem:[%s140 + $0x18] sm:$0xff] %v514
      %535 = vst [vmem:[%s140 + $0x20] sm:$0xff] %v516
      %536 = vst [vmem:[%s140 + $0x28] sm:$0xff] %v518
      %537 = vst [vmem:[%s140 + $0x30] sm:$0xff] %v520
      %538 = vst [vmem:[%s140 + $0x38] sm:$0xff] %v522
      %p539 = scmp.lt.s32.totalorder %s13, 1
      %s540 = scalar_select %p539, %s13, 1
      %s541 = smul.addr %s540, 16
      %s542 = smul.addr %s541, 4
      %s543 = scalar_lea.vmem %s2, %s542
      // Predicated region
      $region29: #{eudncnn_forward.8} parent=27 // pred_check
        %p544 = pneg %p78
      $region30: #{eudncnn_forward.8} parent=27 // pred_check_branch
        %546 = sbr.rel (%p544) target = $region32
      $region31: #{eudncnn_forward.8} parent=27 // pred_region
        _
      $region32: #{eudncnn_forward.8} parent=27 // pred_fallthru
        _
    $region28: #{eudncnn_forward.8} parent=5 // pred_fallthru
      _
    %p547 = scmp.le.s32.totalorder 2, %s8
    // Predicated region
    $region33: #{eudncnn_forward.8} parent=5 // pred_check
      %p548 = pneg %p547
    $region34: #{eudncnn_forward.8} parent=5 // pred_check_branch
      %550 = sbr.rel (%p548) target = $region36
    $region35: #{eudncnn_forward.8} parent=5 // pred_region
      %s551 = ssub.s32 %s8, 2
      // Predicated region
      $region37: #{eudncnn_forward.8} parent=35 // pred_check
        %p552 = pneg %p84
      $region38: #{eudncnn_forward.8} parent=35 // pred_check_branch
        %554 = sbr.rel (%p552) target = $region40
      $region39: #{eudncnn_forward.8} parent=35 // pred_region
        %p555 = scmp.lt.s32.totalorder %s14, 1
        %s556 = scalar_select %p555, %s14, 1
        %s557 = smul.addr %s556, 16
        %s558 = smul.addr %s557, 4
        %s559 = scalar_lea.vmem %s2, %s558
      $region40: #{eudncnn_forward.8} parent=35 // pred_fallthru
        _
    $region36: #{eudncnn_forward.8} parent=5 // pred_fallthru
      _
  $region6: #{eudncnn_forward.8} parent=0 // loop_footer
    %s12 = sadd.s32 1, %s8
  $region7: #{eudncnn_forward.8} parent=0 // loop_footer_branch
    %7 = sbr.rel target = $region3
  $region8: #{eudncnn_forward.8} parent=0 // loop_exit
    _

// kernel: eudncnn_forward.9
$region0: #{eudncnn_forward.9}
  #allocation0 [shape = 'u32[]', space=smem, size = 0x4, offset = 0x4, fixed_abs, tag = 'smem constant byte address 0x4 - core index']
  #allocation1 [shape = 'u32[144,128]{1,0:T(1,128)}', space=vmem, size = 0x12000, scoped, tag = 'internal scratch']
  %s0 = inlined_call_operand.vmem [shape: bf16[2,32,512], index: 0, kind: input, shape index: {}]
  %s1 = inlined_call_operand.vmem [shape: bf16[9,8,32], index: 1, kind: input, shape index: {}]
  %s2 = inlined_call_operand.vmem [shape: f32[8,1], index: 2, kind: input, shape index: {}]
  %s3 = inlined_call_operand.vmem [shape: bf16[2,8,384], index: 3, kind: output, shape index: {}]
  %s4 = sld [smem:[#allocation0]]
  $region45: #{eudncnn_forward.9} parent=0
    _
  %s6 = ssub.s32 1, %s4
  %s7 = scalar_select 0, %s6, %s4
  loop: start=0, step=1, limit=4
  $region2: #{eudncnn_forward.9} parent=0 // loop_pre_header
    _
  $region3: #{eudncnn_forward.9} parent=0 // loop_header
    %s9 = sphi 0, %s13
    %p10 = scmp.ge.s32.totalorder %s9, 4
    %s19 = sphi 0, %s21
    %s22 = sphi 0, %s19
    %s23 = sphi 0, %s22
    %s39 = sphi 0, %s23
    %s43 = sphi 0, %s43
    %s45 = sphi 0, %s43
    %s46 = sphi 0, %s45
    %s60 = sphi 0, %s46
    %s64 = sphi 0, %s64
    %s66 = sphi 0, %s64
    %s67 = sphi 0, %s66
    %s81 = sphi 0, %s67
    %s87 = sphi 0, %s89
    %s90 = sphi 0, %s87
    %s91 = sphi 0, %s90
    %s107 = sphi 0, %s91
  $region4: #{eudncnn_forward.9} parent=0 // loop_header_branch
    %12 = sbr.rel (%p10) target = $region8
  $region5: #{eudncnn_forward.9} parent=0 // loop_body
    %s14 = ssub.s32 %s9, 1
    %s15 = ssub.s32 %s9, 2
    %s16 = sadd.s32 %s9, 1
    %s17 = ssub.s32 %s9, %s16
    %p18 = scmp.eq.s32.totalorder %s17, 0
    %s20 = sadd.s32 %s19, 1
    %s21 = scalar_select %p18, %s19, %s20
    %p24 = pneg %p18
    %p25 = scmp.eq.s32.totalorder %s9, 1
    %p26 = por %p24, %p25
    %p27 = scmp.ne.s32.totalorder %s19, %s22
    %p28 = scmp.eq.s32.totalorder %s9, 0
    %p29 = por %p27, %p28
    %p30 = scmp.ne.s32.totalorder %s19, %s22
    %p31 = scmp.eq.s32.totalorder %s14, 1
    %p32 = por %p30, %p31
    %p33 = scmp.ne.s32.totalorder %s22, %s23
    %p34 = scmp.eq.s32.totalorder %s14, 0
    %p35 = por %p33, %p34
    %p36 = scmp.ne.s32.totalorder %s22, %s23
    %p37 = scmp.eq.s32.totalorder %s15, 1
    %p38 = por %p36, %p37
    %p40 = scmp.ne.s32.totalorder %s23, %s39
    %p41 = scmp.eq.s32.totalorder %s15, 0
    %p42 = por %p40, %p41
    %s44 = sadd.s32 %s43, 1
    %p47 = scmp.eq.s32.totalorder %s9, 1
    %p48 = scmp.ne.s32.totalorder %s43, %s45
    %p49 = scmp.eq.s32.totalorder %s9, 0
    %p50 = por %p48, %p49
    %p51 = scmp.ne.s32.totalorder %s43, %s45
    %p52 = scmp.eq.s32.totalorder %s14, 1
    %p53 = por %p51, %p52
    %p54 = scmp.ne.s32.totalorder %s45, %s46
    %p55 = scmp.eq.s32.totalorder %s14, 0
    %p56 = por %p54, %p55
    %p57 = scmp.ne.s32.totalorder %s45, %s46
    %p58 = scmp.eq.s32.totalorder %s15, 1
    %p59 = por %p57, %p58
    %p61 = scmp.ne.s32.totalorder %s46, %s60
    %p62 = scmp.eq.s32.totalorder %s15, 0
    %p63 = por %p61, %p62
    %s65 = sadd.s32 %s64, 1
    %p68 = scmp.eq.s32.totalorder %s9, 1
    %p69 = scmp.ne.s32.totalorder %s64, %s66
    %p70 = scmp.eq.s32.totalorder %s9, 0
    %p71 = por %p69, %p70
    %p72 = scmp.ne.s32.totalorder %s64, %s66
    %p73 = scmp.eq.s32.totalorder %s14, 1
    %p74 = por %p72, %p73
    %p75 = scmp.ne.s32.totalorder %s66, %s67
    %p76 = scmp.eq.s32.totalorder %s14, 0
    %p77 = por %p75, %p76
    %p78 = scmp.ne.s32.totalorder %s66, %s67
    %p79 = scmp.eq.s32.totalorder %s15, 1
    %p80 = por %p78, %p79
    %p82 = scmp.ne.s32.totalorder %s67, %s81
    %p83 = scmp.eq.s32.totalorder %s15, 0
    %p84 = por %p82, %p83
    %s85 = ssub.s32 %s9, %s16
    %p86 = scmp.eq.s32.totalorder %s85, 0
    %s88 = sadd.s32 %s87, 1
    %s89 = scalar_select %p86, %s87, %s88
    %p92 = pneg %p86
    %p93 = scmp.eq.s32.totalorder %s9, 1
    %p94 = por %p92, %p93
    %p95 = scmp.ne.s32.totalorder %s87, %s90
    %p96 = scmp.eq.s32.totalorder %s9, 0
    %p97 = por %p95, %p96
    %p98 = scmp.ne.s32.totalorder %s87, %s90
    %p99 = scmp.eq.s32.totalorder %s14, 1
    %p100 = por %p98, %p99
    %p101 = scmp.ne.s32.totalorder %s90, %s91
    %p102 = scmp.eq.s32.totalorder %s14, 0
    %p103 = por %p101, %p102
    %p104 = scmp.ne.s32.totalorder %s90, %s91
    %p105 = scmp.eq.s32.totalorder %s15, 1
    %p106 = por %p104, %p105
    %p108 = scmp.ne.s32.totalorder %s91, %s107
    %p109 = scmp.eq.s32.totalorder %s15, 0
    %p110 = por %p108, %p109
    %p111 = scmp.le.s32.totalorder 1, %s9
    %p112 = scmp.lt.s32.totalorder %s9, 3
    %p113 = pnand %p111, %p112
    %p114 = pneg %p113
    // Predicated region
    $region9: #{eudncnn_forward.9} parent=5 // pred_check
      _
    $region10: #{eudncnn_forward.9} parent=5 // pred_check_branch
      %116 = sbr.rel (%p113) target = $region12
    $region11: #{eudncnn_forward.9} parent=5 // pred_region
      %s117 = ssub.s32 %s9, 1
      // Predicated region
      $region13: #{eudncnn_forward.9} parent=11 // pred_check
        %p118 = pneg %p56
      $region14: #{eudncnn_forward.9} parent=11 // pred_check_branch
        %120 = sbr.rel (%p118) target = $region16
      $region15: #{eudncnn_forward.9} parent=11 // pred_region
        _
      $region16: #{eudncnn_forward.9} parent=11 // pred_fallthru
        _
      // Predicated region
      $region17: #{eudncnn_forward.9} parent=11 // pred_check
        %p121 = pneg %p77
      $region18: #{eudncnn_forward.9} parent=11 // pred_check_branch
        %123 = sbr.rel (%p121) target = $region20
      $region19: #{eudncnn_forward.9} parent=11 // pred_region
        _
      $region20: #{eudncnn_forward.9} parent=11 // pred_fallthru
        _
    $region12: #{eudncnn_forward.9} parent=5 // pred_fallthru
      _
    %p124 = scmp.lt.s32.totalorder %s9, 2
    // Predicated region
    $region21: #{eudncnn_forward.9} parent=5 // pred_check
      %p125 = pneg %p124
    $region22: #{eudncnn_forward.9} parent=5 // pred_check_branch
      %127 = sbr.rel (%p125) target = $region24
    $region23: #{eudncnn_forward.9} parent=5 // pred_region
      // Predicated region
      $region25: #{eudncnn_forward.9} parent=23 // pred_check
        %p128 = pneg %p29
      $region26: #{eudncnn_forward.9} parent=23 // pred_check_branch
        %130 = sbr.rel (%p128) target = $region28
      $region27: #{eudncnn_forward.9} parent=23 // pred_region
        %p131 = scmp.lt.s32.totalorder %s9, 1
        %s132 = scalar_select %p131, %s9, 1
        %s133 = smul.addr %s132, 16
        %s134 = smul.addr %s133, 4
        %s135 = scalar_lea.vmem %s0, %s134
      $region28: #{eudncnn_forward.9} parent=23 // pred_fallthru
        _
    $region24: #{eudncnn_forward.9} parent=5 // pred_fallthru
      _
    %p136 = scmp.le.s32.totalorder 1, %s9
    %p137 = scmp.lt.s32.totalorder %s9, 3
    %p138 = pnand %p136, %p137
    %p139 = pneg %p138
    // Predicated region
    $region29: #{eudncnn_forward.9} parent=5 // pred_check
      _
    $region30: #{eudncnn_forward.9} parent=5 // pred_check_branch
      %141 = sbr.rel (%p138) target = $region32
    $region31: #{eudncnn_forward.9} parent=5 // pred_region
      %s142 = ssub.s32 %s9, 1
      %p143 = scmp.lt.s32.totalorder %s14, 1
      %s144 = scalar_select %p143, %s14, 1
      %s145 = smul.addr %s144, 16
      %s146 = smul.addr %s145, 4
      %s147 = scalar_lea.vmem %s0, %s146
      %p148 = pneg %p35
      %p149 = pneg %p32
      %p150 = pneg %p56
      %p151 = pneg %p53
      %p152 = pneg %p77
      %p153 = pneg %p74
      %p154 = pneg %p103
      %p155 = pneg %p100
      %p156 = scmp.lt.s32.totalorder %s14, 1
      %s157 = scalar_select %p156, %s14, 1
      %s158 = smul.addr %s157, 3
      %s159 = smul.addr %s158, 4
      %s160 = scalar_lea.vmem %s3, %s159
      %p161 = scmp.lt.s32.totalorder %s14, 1
      %s162 = scalar_select %p161, %s14, 1
      %s163 = smul.addr %s162, 16
      %s164 = smul.addr %s163, 4
      %s165 = scalar_lea.vmem %s0, %s164
      %p166 = scmp.lt.s32.totalorder %s14, 1
      %s167 = scalar_select %p166, %s14, 1
      %s168 = smul.addr %s167, 3
      %s169 = smul.addr %s168, 4
      %s170 = scalar_lea.vmem %s3, %s169
      %v172 = vld [vmem:[%s1] sm:$0xf]
      %v173 = vld [vmem:[%s165] sm:$0xff]
      %v174 = vld [vmem:[%s165 + $0x8] sm:$0xf]
      %v175 = vld [vmem:[%s165 + $0x10] sm:$0xff]
      %v176 = vld [vmem:[%s165 + $0x18] sm:$0xf]
      %v177 = vld [vmem:[%s165 + $0x20] sm:$0xff]
      %v178 = vld [vmem:[%s165 + $0x28] sm:$0xf]
      %v179 = vld [vmem:[%s165 + $0x30] sm:$0xff]
      %v180 = vld [vmem:[%s165 + $0x38] sm:$0xf]
      %s181 = scalar_lea.vmem %s1, 4
      %v182 = vld [vmem:[%s181] sm:$0xf]
      %v183 = vld [vmem:[%s165] sm:$0xff]
      %v184 = vld [vmem:[%s165 + $0x8] sm:$0xff]
      %v185 = vld [vmem:[%s165 + $0x10] sm:$0xff]
      %v186 = vld [vmem:[%s165 + $0x18] sm:$0xff]
      %v187 = vld [vmem:[%s165 + $0x20] sm:$0xff]
      %v188 = vld [vmem:[%s165 + $0x28] sm:$0xff]
      %v189 = vld [vmem:[%s165 + $0x30] sm:$0xff]
      %v190 = vld [vmem:[%s165 + $0x38] sm:$0xff]
      %v199 = vunpack.c.l.b16 %v183
      %v200 = vunpack.c.h.b16 %v183
      %v201 = vunpack.c.l.b16 %v184
      %v202 = vunpack.c.h.b16 %v184
      %v203 = vunpack.c.l.b16 %v185
      %v204 = vunpack.c.h.b16 %v185
      %v205 = vunpack.c.l.b16 %v186
      %v206 = vunpack.c.h.b16 %v186
      %v207 = vunpack.c.l.b16 %v187
      %v208 = vunpack.c.h.b16 %v187
      %v209 = vunpack.c.l.b16 %v188
      %v210 = vunpack.c.h.b16 %v188
      %v211 = vunpack.c.l.b16 %v189
      %v212 = vunpack.c.h.b16 %v189
      %v213 = vunpack.c.l.b16 %v190
      %v214 = vunpack.c.h.b16 %v190
      %v215 = vpack.c.b16 %v203, %v199
      %v216 = vpack.c.b16 %v204, %v200
      %v217 = vpack.c.b16 %v205, %v201
      %v218 = vpack.c.b16 %v206, %v202
      %v219 = vpack.c.b16 %v211, %v207
      %v220 = vpack.c.b16 %v212, %v208
      %v221 = vpack.c.b16 %v213, %v209
      %v222 = vpack.c.b16 %v214, %v210
      %223 = vrot.lane.b32.xlu0 %v215, 127
      %v224 = vpop.permute.xlu0 %223
      %225 = vrot.lane.b32.xlu0 %v216, 127
      %v226 = vpop.permute.xlu0 %225
      %227 = vrot.lane.b32.xlu0 %v217, 127
      %v228 = vpop.permute.xlu0 %227
      %229 = vrot.lane.b32.xlu0 %v218, 127
      %v230 = vpop.permute.xlu0 %229
      %231 = vrot.lane.b32.xlu0 %v219, 127
      %v232 = vpop.permute.xlu0 %231
      %233 = vrot.lane.b32.xlu0 %v220, 127
      %v234 = vpop.permute.xlu0 %233
      %235 = vrot.lane.b32.xlu0 %v221, 127
      %v236 = vpop.permute.xlu0 %235
      %237 = vrot.lane.b32.xlu0 %v222, 127
      %v238 = vpop.permute.xlu0 %237
      %vm239 = vcmask 1039360
      %v240 = vsel %vm239, %v224, %v226
      %v241 = vsel %vm239, %v226, %v228
      %v242 = vsel %vm239, %v228, %v230
      %v243 = vsel %vm239, %v232, %v234
      %v244 = vsel %vm239, %v234, %v236
      %v245 = vsel %vm239, %v236, %v238
      %vm252 = vcmask 261120
      %v254 = vsel %vm252, %v182, 0
      %256 = vmatprep.subr.bf16.mxu0 0
      %257 = vmatpush1.bf16.msra.mxu0 0
      %258 = vmatprep.subr.bf16.mxu0 0
      %259 = vmatpush1.bf16.msra.mxu0 0
      %260 = vmatprep.subr.bf16.mxu0 0
      %261 = vmatpush1.bf16.msra.mxu0 0
      %262 = vmatprep.subr.bf16.mxu0 0
      %263 = vmatpush1.bf16.msra.mxu0 0
      %264 = vmatprep.subr.bf16.mxu0 0
      %265 = vmatpush1.bf16.msra.mxu0 0
      %266 = vmatprep.subr.bf16.mxu0 0
      %267 = vmatpush1.bf16.msra.mxu0 0
      %268 = vmatprep.subr.bf16.mxu0 %v244
      %269 = vmatpush1.bf16.msra.mxu0 %v243
      %270 = vmatprep.subr.bf16.mxu0 %v241
      %271 = vmatpush1.bf16.msra.mxu0 %v240
      %272 = vmatprep.subr.bf16.mxu0 0
      %273 = vmatpush2.bf16.msra.mxu0 0
      %274 = vmatprep.subr.bf16.mxu0 0
      %275 = vmatpush2.bf16.msra.mxu0 0
      %276 = vmatprep.subr.bf16.mxu0 0
      %277 = vmatpush2.bf16.msra.mxu0 0
      %278 = vmatprep.subr.bf16.mxu0 0
      %279 = vmatpush2.bf16.msra.mxu0 0
      %280 = vmatprep.subr.bf16.mxu0 0
      %281 = vmatpush2.bf16.msra.mxu0 0
      %282 = vmatprep.subr.bf16.mxu0 0
      %283 = vmatpush2.bf16.msra.mxu0 0
      %284 = vmatprep.subr.bf16.mxu0 0
      %285 = vmatpush2.bf16.msra.mxu0 0
      %286 = vmatprep.subr.bf16.mxu0 0
      %287 = vmatpush2.bf16.msra.mxu0 0
      %288 = vmatprep.mubr.bf16.mxu0 0
      %289 = vmatmul.mubr.bf16.gmra.mxu0 %v254
      %v290 = vpop.f32.mrf.mxu0
      %v291 = vadd.f32 0.0, %v290
      %v292 = vpop.f32.mrf.mxu0
      %v293 = vadd.f32 0.0, %v292
      %v294 = vpop.f32.mrf.mxu0
      %v295 = vpop.f32.mrf.mxu0
      %296 = vdwg.mxu0
      %297 = vmatprep.subr.bf16.mxu0 0
      %298 = vmatpush1.bf16.msra.mxu0 0
      %299 = vmatprep.subr.bf16.mxu0 0
      %300 = vmatpush1.bf16.msra.mxu0 0
      %301 = vmatprep.subr.bf16.mxu0 0
      %302 = vmatpush1.bf16.msra.mxu0 0
      %303 = vmatprep.subr.bf16.mxu0 0
      %304 = vmatpush1.bf16.msra.mxu0 0
      %305 = vmatprep.subr.bf16.mxu0 0
      %306 = vmatpush1.bf16.msra.mxu0 0
      %307 = vmatprep.subr.bf16.mxu0 0
      %308 = vmatpush1.bf16.msra.mxu0 0
      %309 = vmatprep.subr.bf16.mxu0 0
      %310 = vmatpush1.bf16.msra.mxu0 %v245
      %311 = vmatprep.subr.bf16.mxu0 0
      %312 = vmatpush1.bf16.msra.mxu0 %v242
      %313 = vmatprep.subr.bf16.mxu0 0
      %314 = vmatpush2.bf16.msra.mxu0 0
      %315 = vmatprep.subr.bf16.mxu0 0
      %316 = vmatpush2.bf16.msra.mxu0 0
      %317 = vmatprep.subr.bf16.mxu0 0
      %318 = vmatpush2.bf16.msra.mxu0 0
      %319 = vmatprep.subr.bf16.mxu0 0
      %320 = vmatpush2.bf16.msra.mxu0 0
      %321 = vmatprep.subr.bf16.mxu0 0
      %322 = vmatpush2.bf16.msra.mxu0 0
      %323 = vmatprep.subr.bf16.mxu0 0
      %324 = vmatpush2.bf16.msra.mxu0 0
      %325 = vmatprep.subr.bf16.mxu0 0
      %326 = vmatpush2.bf16.msra.mxu0 0
      %327 = vmatprep.subr.bf16.mxu0 0
      %328 = vmatpush2.bf16.msra.mxu0 0
      %329 = vmatprep.mubr.bf16.mxu0 0
      %330 = vmatmul.mubr.bf16.gmra.mxu0 %v254
      %v331 = vpop.f32.mrf.mxu0
      %v332 = vadd.f32 0.0, %v331
      %v333 = vpop.f32.mrf.mxu0
      %v334 = vpop.f32.mrf.mxu0
      %v335 = vpop.f32.mrf.mxu0
      %336 = vdwg.mxu0
      %v345 = vunpack.c.l.b16 %v173
      %v346 = vunpack.c.h.b16 %v173
      %v347 = vunpack.c.l.b16 %v174
      %v348 = vunpack.c.l.b16 %v175
      %v349 = vunpack.c.h.b16 %v175
      %v350 = vunpack.c.l.b16 %v176
      %v351 = vunpack.c.l.b16 %v177
      %v352 = vunpack.c.h.b16 %v177
      %v353 = vunpack.c.l.b16 %v178
      %v354 = vunpack.c.l.b16 %v179
      %v355 = vunpack.c.h.b16 %v179
      %v356 = vunpack.c.l.b16 %v180
      %v357 = vpack.c.b16 %v348, %v345
      %v358 = vpack.c.b16 %v349, %v346
      %v359 = vpack.c.b16 %v350, %v347
      %v360 = vpack.c.b16 %v354, %v351
      %v361 = vpack.c.b16 %v355, %v352
      %v362 = vpack.c.b16 %v356, %v353
      %v370 = vsel %vm252, %v172, 0
      %372 = vmatprep.subr.bf16.mxu0 0
      %373 = vmatpush1.bf16.msra.mxu0 0
      %374 = vmatprep.subr.bf16.mxu0 0
      %375 = vmatpush1.bf16.msra.mxu0 0
      %376 = vmatprep.subr.bf16.mxu0 0
      %377 = vmatpush1.bf16.msra.mxu0 0
      %378 = vmatprep.subr.bf16.mxu0 0
      %379 = vmatpush1.bf16.msra.mxu0 0
      %380 = vmatprep.subr.bf16.mxu0 0
      %381 = vmatpush1.bf16.msra.mxu0 0
      %382 = vmatprep.subr.bf16.mxu0 0
      %383 = vmatpush1.bf16.msra.mxu0 0
      %384 = vmatprep.subr.bf16.mxu0 %v361
      %385 = vmatpush1.bf16.msra.mxu0 %v360
      %386 = vmatprep.subr.bf16.mxu0 %v358
      %387 = vmatpush1.bf16.msra.mxu0 %v357
      %388 = vmatprep.subr.bf16.mxu0 0
      %389 = vmatpush2.bf16.msra.mxu0 0
      %390 = vmatprep.subr.bf16.mxu0 0
      %391 = vmatpush2.bf16.msra.mxu0 0
      %392 = vmatprep.subr.bf16.mxu0 0
      %393 = vmatpush2.bf16.msra.mxu0 0
      %394 = vmatprep.subr.bf16.mxu0 0
      %395 = vmatpush2.bf16.msra.mxu0 0
      %396 = vmatprep.subr.bf16.mxu0 0
      %397 = vmatpush2.bf16.msra.mxu0 0
      %398 = vmatprep.subr.bf16.mxu0 0
      %399 = vmatpush2.bf16.msra.mxu0 0
      %400 = vmatprep.subr.bf16.mxu0 0
      %401 = vmatpush2.bf16.msra.mxu0 0
      %402 = vmatprep.subr.bf16.mxu0 0
      %403 = vmatpush2.bf16.msra.mxu0 0
      %404 = vmatprep.mubr.bf16.mxu0 0
      %405 = vmatmul.mubr.bf16.gmra.mxu0 %v370
      %v406 = vpop.f32.mrf.mxu0
      %v407 = vadd.f32 %v291, %v406
      %v408 = vpop.f32.mrf.mxu0
      %v409 = vadd.f32 %v293, %v408
      %v410 = vpop.f32.mrf.mxu0
      %v411 = vpop.f32.mrf.mxu0
      %412 = vdwg.mxu0
      %413 = vmatprep.subr.bf16.mxu0 0
      %414 = vmatpush1.bf16.msra.mxu0 0
      %415 = vmatprep.subr.bf16.mxu0 0
      %416 = vmatpush1.bf16.msra.mxu0 0
      %417 = vmatprep.subr.bf16.mxu0 0
      %418 = vmatpush1.bf16.msra.mxu0 0
      %419 = vmatprep.subr.bf16.mxu0 0
      %420 = vmatpush1.bf16.msra.mxu0 0
      %421 = vmatprep.subr.bf16.mxu0 0
      %422 = vmatpush1.bf16.msra.mxu0 0
      %423 = vmatprep.subr.bf16.mxu0 0
      %424 = vmatpush1.bf16.msra.mxu0 0
      %425 = vmatprep.subr.bf16.mxu0 0
      %426 = vmatpush1.bf16.msra.mxu0 %v362
      %427 = vmatprep.subr.bf16.mxu0 0
      %428 = vmatpush1.bf16.msra.mxu0 %v359
      %429 = vmatprep.subr.bf16.mxu0 0
      %430 = vmatpush2.bf16.msra.mxu0 0
      %431 = vmatprep.subr.bf16.mxu0 0
      %432 = vmatpush2.bf16.msra.mxu0 0
      %433 = vmatprep.subr.bf16.mxu0 0
      %434 = vmatpush2.bf16.msra.mxu0 0
      %435 = vmatprep.subr.bf16.mxu0 0
      %436 = vmatpush2.bf16.msra.mxu0 0
      %437 = vmatprep.subr.bf16.mxu0 0
      %438 = vmatpush2.bf16.msra.mxu0 0
      %439 = vmatprep.subr.bf16.mxu0 0
      %440 = vmatpush2.bf16.msra.mxu0 0
      %441 = vmatprep.subr.bf16.mxu0 0
      %442 = vmatpush2.bf16.msra.mxu0 0
      %443 = vmatprep.subr.bf16.mxu0 0
      %444 = vmatpush2.bf16.msra.mxu0 0
      %445 = vmatprep.mubr.bf16.mxu0 0
      %446 = vmatmul.mubr.bf16.gmra.mxu0 %v370
      %v447 = vpop.f32.mrf.mxu0
      %v448 = vadd.f32 %v332, %v447
      %v449 = vpop.f32.mrf.mxu0
      %v450 = vpop.f32.mrf.mxu0
      %v451 = vpop.f32.mrf.mxu0
      %452 = vdwg.mxu0
      %s453 = scalar_lea.vmem %s1, 8
      %v454 = vld [vmem:[%s453] sm:$0xf]
      %455 = vrot.lane.b32.xlu0 %v215, 126
      %v456 = vpop.permute.xlu0 %455
      %457 = vrot.lane.b32.xlu0 %v216, 126
      %v458 = vpop.permute.xlu0 %457
      %459 = vrot.lane.b32.xlu0 %v217, 126
      %v460 = vpop.permute.xlu0 %459
      %461 = vrot.lane.b32.xlu0 %v218, 126
      %v462 = vpop.permute.xlu0 %461
      %463 = vrot.lane.b32.xlu0 %v219, 126
      %v464 = vpop.permute.xlu0 %463
      %465 = vrot.lane.b32.xlu0 %v220, 126
      %v466 = vpop.permute.xlu0 %465
      %467 = vrot.lane.b32.xlu0 %v221, 126
      %v468 = vpop.permute.xlu0 %467
      %469 = vrot.lane.b32.xlu0 %v222, 126
      %v470 = vpop.permute.xlu0 %469
      %vm471 = vcmask 1031168
      %v472 = vsel %vm471, %v456, %v458
      %v473 = vsel %vm471, %v458, %v460
      %v474 = vsel %vm471, %v460, %v462
      %v475 = vsel %vm471, %v464, %v466
      %v476 = vsel %vm471, %v466, %v468
      %v477 = vsel %vm471, %v468, %v470
      %v485 = vsel %vm252, %v454, 0
      %487 = vmatprep.subr.bf16.mxu0 0
      %488 = vmatpush1.bf16.msra.mxu0 0
      %489 = vmatprep.subr.bf16.mxu0 0
      %490 = vmatpush1.bf16.msra.mxu0 0
      %491 = vmatprep.subr.bf16.mxu0 0
      %492 = vmatpush1.bf16.msra.mxu0 0
      %493 = vmatprep.subr.bf16.mxu0 0
      %494 = vmatpush1.bf16.msra.mxu0 0
      %495 = vmatprep.subr.bf16.mxu0 0
      %496 = vmatpush1.bf16.msra.mxu0 0
      %497 = vmatprep.subr.bf16.mxu0 0
      %498 = vmatpush1.bf16.msra.mxu0 0
      %499 = vmatprep.subr.bf16.mxu0 %v476
      %500 = vmatpush1.bf16.msra.mxu0 %v475
      %501 = vmatprep.subr.bf16.mxu0 %v473
      %502 = vmatpush1.bf16.msra.mxu0 %v472
      %503 = vmatprep.subr.bf16.mxu0 0
      %504 = vmatpush2.bf16.msra.mxu0 0
      %505 = vmatprep.subr.bf16.mxu0 0
      %506 = vmatpush2.bf16.msra.mxu0 0
      %507 = vmatprep.subr.bf16.mxu0 0
      %508 = vmatpush2.bf16.msra.mxu0 0
      %509 = vmatprep.subr.bf16.mxu0 0
      %510 = vmatpush2.bf16.msra.mxu0 0
      %511 = vmatprep.subr.bf16.mxu0 0
      %512 = vmatpush2.bf16.msra.mxu0 0
      %513 = vmatprep.subr.bf16.mxu0 0
      %514 = vmatpush2.bf16.msra.mxu0 0
      %515 = vmatprep.subr.bf16.mxu0 0
      %516 = vmatpush2.bf16.msra.mxu0 0
      %517 = vmatprep.subr.bf16.mxu0 0
      %518 = vmatpush2.bf16.msra.mxu0 0
      %519 = vmatprep.mubr.bf16.mxu0 0
      %520 = vmatmul.mubr.bf16.gmra.mxu0 %v485
      %v521 = vpop.f32.mrf.mxu0
      %v522 = vadd.f32 0.0, %v521
      %v523 = vpop.f32.mrf.mxu0
      %v524 = vadd.f32 0.0, %v523
      %v525 = vpop.f32.mrf.mxu0
      %v526 = vpop.f32.mrf.mxu0
      %527 = vdwg.mxu0
      %528 = vmatprep.subr.bf16.mxu0 0
      %529 = vmatpush1.bf16.msra.mxu0 0
      %530 = vmatprep.subr.bf16.mxu0 0
      %531 = vmatpush1.bf16.msra.mxu0 0
      %532 = vmatprep.subr.bf16.mxu0 0
      %533 = vmatpush1.bf16.msra.mxu0 0
      %534 = vmatprep.subr.bf16.mxu0 0
      %535 = vmatpush1.bf16.msra.mxu0 0
      %536 = vmatprep.subr.bf16.mxu0 0
      %537 = vmatpush1.bf16.msra.mxu0 0
      %538 = vmatprep.subr.bf16.mxu0 0
      %539 = vmatpush1.bf16.msra.mxu0 0
      %540 = vmatprep.subr.bf16.mxu0 0
      %541 = vmatpush1.bf16.msra.mxu0 %v477
      %542 = vmatprep.subr.bf16.mxu0 0
      %543 = vmatpush1.bf16.msra.mxu0 %v474
      %544 = vmatprep.subr.bf16.mxu0 0
      %545 = vmatpush2.bf16.msra.mxu0 0
      %546 = vmatprep.subr.bf16.mxu0 0
      %547 = vmatpush2.bf16.msra.mxu0 0
      %548 = vmatprep.subr.bf16.mxu0 0
      %549 = vmatpush2.bf16.msra.mxu0 0
      %550 = vmatprep.subr.bf16.mxu0 0
      %551 = vmatpush2.bf16.msra.mxu0 0
      %552 = vmatprep.subr.bf16.mxu0 0
      %553 = vmatpush2.bf16.msra.mxu0 0
      %554 = vmatprep.subr.bf16.mxu0 0
      %555 = vmatpush2.bf16.msra.mxu0 0
      %556 = vmatprep.subr.bf16.mxu0 0
      %557 = vmatpush2.bf16.msra.mxu0 0
      %558 = vmatprep.subr.bf16.mxu0 0
      %559 = vmatpush2.bf16.msra.mxu0 0
      %560 = vmatprep.mubr.bf16.mxu0 0
      %561 = vmatmul.mubr.bf16.gmra.mxu0 %v485
      %v562 = vpop.f32.mrf.mxu0
      %v563 = vadd.f32 0.0, %v562
      %v564 = vpop.f32.mrf.mxu0
      %v565 = vpop.f32.mrf.mxu0
      %v566 = vpop.f32.mrf.mxu0
      %567 = vdwg.mxu0
      %v568 = vadd.f32 %v407, %v522
      %v569 = vadd.f32 %v409, %v524
      %v570 = vadd.f32 %v448, %v563
      %s571 = scalar_lea.vmem %s1, 12
      %v572 = vld [vmem:[%s571] sm:$0xf]
      %573 = vrot.lane.b32.xlu0 %v215, 110
      %v574 = vpop.permute.xlu0 %573
      %575 = vrot.lane.b32.xlu0 %v216, 110
      %v576 = vpop.permute.xlu0 %575
      %577 = vrot.lane.b32.xlu0 %v217, 110
      %v578 = vpop.permute.xlu0 %577
      %579 = vrot.lane.b32.xlu0 %v218, 110
      %v580 = vpop.permute.xlu0 %579
      %581 = vrot.lane.b32.xlu0 %v219, 110
      %v582 = vpop.permute.xlu0 %581
      %583 = vrot.lane.b32.xlu0 %v220, 110
      %v584 = vpop.permute.xlu0 %583
      %585 = vrot.lane.b32.xlu0 %v221, 110
      %v586 = vpop.permute.xlu0 %585
      %587 = vrot.lane.b32.xlu0 %v222, 110
      %v588 = vpop.permute.xlu0 %587
      %vm589 = vcmask 900096
      %v590 = vsel %vm589, %v574, %v576
      %v591 = vsel %vm589, %v576, %v578
      %v592 = vsel %vm589, %v578, %v580
      %v593 = vsel %vm589, %v582, %v584
      %v594 = vsel %vm589, %v584, %v586
      %v595 = vsel %vm589, %v586, %v588
      %v603 = vsel %vm252, %v572, 0
      %605 = vmatprep.subr.bf16.mxu0 0
      %606 = vmatpush1.bf16.msra.mxu0 0
      %607 = vmatprep.subr.bf16.mxu0 0
      %608 = vmatpush1.bf16.msra.mxu0 0
      %609 = vmatprep.subr.bf16.mxu0 0
      %610 = vmatpush1.bf16.msra.mxu0 0
      %611 = vmatprep.subr.bf16.mxu0 0
      %612 = vmatpush1.bf16.msra.mxu0 0
      %613 = vmatprep.subr.bf16.mxu0 0
      %614 = vmatpush1.bf16.msra.mxu0 0
      %615 = vmatprep.subr.bf16.mxu0 0
      %616 = vmatpush1.bf16.msra.mxu0 0
      %617 = vmatprep.subr.bf16.mxu0 %v594
      %618 = vmatpush1.bf16.msra.mxu0 %v593
      %619 = vmatprep.subr.bf16.mxu0 %v591
      %620 = vmatpush1.bf16.msra.mxu0 %v590
      %621 = vmatprep.subr.bf16.mxu0 0
      %622 = vmatpush2.bf16.msra.mxu0 0
      %623 = vmatprep.subr.bf16.mxu0 0
      %624 = vmatpush2.bf16.msra.mxu0 0
      %625 = vmatprep.subr.bf16.mxu0 0
      %626 = vmatpush2.bf16.msra.mxu0 0
      %627 = vmatprep.subr.bf16.mxu0 0
      %628 = vmatpush2.bf16.msra.mxu0 0
      %629 = vmatprep.subr.bf16.mxu0 0
      %630 = vmatpush2.bf16.msra.mxu0 0
      %631 = vmatprep.subr.bf16.mxu0 0
      %632 = vmatpush2.bf16.msra.mxu0 0
      %633 = vmatprep.subr.bf16.mxu0 0
      %634 = vmatpush2.bf16.msra.mxu0 0
      %635 = vmatprep.subr.bf16.mxu0 0
      %636 = vmatpush2.bf16.msra.mxu0 0
      %637 = vmatprep.mubr.bf16.mxu0 0
      %638 = vmatmul.mubr.bf16.gmra.mxu0 %v603
      %v639 = vpop.f32.mrf.mxu0
      %v640 = vadd.f32 0.0, %v639
      %v641 = vpop.f32.mrf.mxu0
      %v642 = vadd.f32 0.0, %v641
      %v643 = vpop.f32.mrf.mxu0
      %v644 = vpop.f32.mrf.mxu0
      %645 = vdwg.mxu0
      %646 = vmatprep.subr.bf16.mxu0 0
      %647 = vmatpush1.bf16.msra.mxu0 0
      %648 = vmatprep.subr.bf16.mxu0 0
      %649 = vmatpush1.bf16.msra.mxu0 0
      %650 = vmatprep.subr.bf16.mxu0 0
      %651 = vmatpush1.bf16.msra.mxu0 0
      %652 = vmatprep.subr.bf16.mxu0 0
      %653 = vmatpush1.bf16.msra.mxu0 0
      %654 = vmatprep.subr.bf16.mxu0 0
      %655 = vmatpush1.bf16.msra.mxu0 0
      %656 = vmatprep.subr.bf16.mxu0 0
      %657 = vmatpush1.bf16.msra.mxu0 0
      %658 = vmatprep.subr.bf16.mxu0 0
      %659 = vmatpush1.bf16.msra.mxu0 %v595
      %660 = vmatprep.subr.bf16.mxu0 0
      %661 = vmatpush1.bf16.msra.mxu0 %v592
      %662 = vmatprep.subr.bf16.mxu0 0
      %663 = vmatpush2.bf16.msra.mxu0 0
      %664 = vmatprep.subr.bf16.mxu0 0
      %665 = vmatpush2.bf16.msra.mxu0 0
      %666 = vmatprep.subr.bf16.mxu0 0
      %667 = vmatpush2.bf16.msra.mxu0 0
      %668 = vmatprep.subr.bf16.mxu0 0
      %669 = vmatpush2.bf16.msra.mxu0 0
      %670 = vmatprep.subr.bf16.mxu0 0
      %671 = vmatpush2.bf16.msra.mxu0 0
      %672 = vmatprep.subr.bf16.mxu0 0
      %673 = vmatpush2.bf16.msra.mxu0 0
      %674 = vmatprep.subr.bf16.mxu0 0
      %675 = vmatpush2.bf16.msra.mxu0 0
      %676 = vmatprep.subr.bf16.mxu0 0
      %677 = vmatpush2.bf16.msra.mxu0 0
      %678 = vmatprep.mubr.bf16.mxu0 0
      %679 = vmatmul.mubr.bf16.gmra.mxu0 %v603
      %v680 = vpop.f32.mrf.mxu0
      %v681 = vadd.f32 0.0, %v680
      %v682 = vpop.f32.mrf.mxu0
      %v683 = vpop.f32.mrf.mxu0
      %v684 = vpop.f32.mrf.mxu0
      %685 = vdwg.mxu0
      %v686 = vadd.f32 %v568, %v640
      %v687 = vadd.f32 %v569, %v642
      %v688 = vadd.f32 %v570, %v681
      %s689 = scalar_lea.vmem %s1, 16
      %v690 = vld [vmem:[%s689] sm:$0xf]
      %691 = vrot.lane.b32.xlu0 %v215, 109
      %v692 = vpop.permute.xlu0 %691
      %693 = vrot.lane.b32.xlu0 %v216, 109
      %v694 = vpop.permute.xlu0 %693
      %695 = vrot.lane.b32.xlu0 %v217, 109
      %v696 = vpop.permute.xlu0 %695
      %697 = vrot.lane.b32.xlu0 %v218, 109
      %v698 = vpop.permute.xlu0 %697
      %699 = vrot.lane.b32.xlu0 %v219, 109
      %v700 = vpop.permute.xlu0 %699
      %701 = vrot.lane.b32.xlu0 %v220, 109
      %v702 = vpop.permute.xlu0 %701
      %703 = vrot.lane.b32.xlu0 %v221, 109
      %v704 = vpop.permute.xlu0 %703
      %705 = vrot.lane.b32.xlu0 %v222, 109
      %v706 = vpop.permute.xlu0 %705
      %vm707 = vcmask 891904
      %v708 = vsel %vm707, %v692, %v694
      %v709 = vsel %vm707, %v694, %v696
      %v710 = vsel %vm707, %v696, %v698
      %v711 = vsel %vm707, %v700, %v702
      %v712 = vsel %vm707, %v702, %v704
      %v713 = vsel %vm707, %v704, %v706
      %v721 = vsel %vm252, %v690, 0
      %723 = vmatprep.subr.bf16.mxu0 0
      %724 = vmatpush1.bf16.msra.mxu0 0
      %725 = vmatprep.subr.bf16.mxu0 0
      %726 = vmatpush1.bf16.msra.mxu0 0
      %727 = vmatprep.subr.bf16.mxu0 0
      %728 = vmatpush1.bf16.msra.mxu0 0
      %729 = vmatprep.subr.bf16.mxu0 0
      %730 = vmatpush1.bf16.msra.mxu0 0
      %731 = vmatprep.subr.bf16.mxu0 0
      %732 = vmatpush1.bf16.msra.mxu0 0
      %733 = vmatprep.subr.bf16.mxu0 0
      %734 = vmatpush1.bf16.msra.mxu0 0
      %735 = vmatprep.subr.bf16.mxu0 %v712
      %736 = vmatpush1.bf16.msra.mxu0 %v711
      %737 = vmatprep.subr.bf16.mxu0 %v709
      %738 = vmatpush1.bf16.msra.mxu0 %v708
      %739 = vmatprep.subr.bf16.mxu0 0
      %740 = vmatpush2.bf16.msra.mxu0 0
      %741 = vmatprep.subr.bf16.mxu0 0
      %742 = vmatpush2.bf16.msra.mxu0 0
      %743 = vmatprep.subr.bf16.mxu0 0
      %744 = vmatpush2.bf16.msra.mxu0 0
      %745 = vmatprep.subr.bf16.mxu0 0
      %746 = vmatpush2.bf16.msra.mxu0 0
      %747 = vmatprep.subr.bf16.mxu0 0
      %748 = vmatpush2.bf16.msra.mxu0 0
      %749 = vmatprep.subr.bf16.mxu0 0
      %750 = vmatpush2.bf16.msra.mxu0 0
      %751 = vmatprep.subr.bf16.mxu0 0
      %752 = vmatpush2.bf16.msra.mxu0 0
      %753 = vmatprep.subr.bf16.mxu0 0
      %754 = vmatpush2.bf16.msra.mxu0 0
      %755 = vmatprep.mubr.bf16.mxu0 0
      %756 = vmatmul.mubr.bf16.gmra.mxu0 %v721
      %v757 = vpop.f32.mrf.mxu0
      %v758 = vadd.f32 0.0, %v757
      %v759 = vpop.f32.mrf.mxu0
      %v760 = vadd.f32 0.0, %v759
      %v761 = vpop.f32.mrf.mxu0
      %v762 = vpop.f32.mrf.mxu0
      %763 = vdwg.mxu0
      %764 = vmatprep.subr.bf16.mxu0 0
      %765 = vmatpush1.bf16.msra.mxu0 0
      %766 = vmatprep.subr.bf16.mxu0 0
      %767 = vmatpush1.bf16.msra.mxu0 0
      %768 = vmatprep.subr.bf16.mxu0 0
      %769 = vmatpush1.bf16.msra.mxu0 0
      %770 = vmatprep.subr.bf16.mxu0 0
      %771 = vmatpush1.bf16.msra.mxu0 0
      %772 = vmatprep.subr.bf16.mxu0 0
      %773 = vmatpush1.bf16.msra.mxu0 0
      %774 = vmatprep.subr.bf16.mxu0 0
      %775 = vmatpush1.bf16.msra.mxu0 0
      %776 = vmatprep.subr.bf16.mxu0 0
      %777 = vmatpush1.bf16.msra.mxu0 %v713
      %778 = vmatprep.subr.bf16.mxu0 0
      %779 = vmatpush1.bf16.msra.mxu0 %v710
      %780 = vmatprep.subr.bf16.mxu0 0
      %781 = vmatpush2.bf16.msra.mxu0 0
      %782 = vmatprep.subr.bf16.mxu0 0
      %783 = vmatpush2.bf16.msra.mxu0 0
      %784 = vmatprep.subr.bf16.mxu0 0
      %785 = vmatpush2.bf16.msra.mxu0 0
      %786 = vmatprep.subr.bf16.mxu0 0
      %787 = vmatpush2.bf16.msra.mxu0 0
      %788 = vmatprep.subr.bf16.mxu0 0
      %789 = vmatpush2.bf16.msra.mxu0 0
      %790 = vmatprep.subr.bf16.mxu0 0
      %791 = vmatpush2.bf16.msra.mxu0 0
      %792 = vmatprep.subr.bf16.mxu0 0
      %793 = vmatpush2.bf16.msra.mxu0 0
      %794 = vmatprep.subr.bf16.mxu0 0
      %795 = vmatpush2.bf16.msra.mxu0 0
      %796 = vmatprep.mubr.bf16.mxu0 0
      %797 = vmatmul.mubr.bf16.gmra.mxu0 %v721
      %v798 = vpop.f32.mrf.mxu0
      %v799 = vadd.f32 0.0, %v798
      %v800 = vpop.f32.mrf.mxu0
      %v801 = vpop.f32.mrf.mxu0
      %v802 = vpop.f32.mrf.mxu0
      %803 = vdwg.mxu0
      %v804 = vadd.f32 %v686, %v758
      %v805 = vadd.f32 %v687, %v760
      %v806 = vadd.f32 %v688, %v799
      %s807 = scalar_lea.vmem %s1, 20
      %v808 = vld [vmem:[%s807] sm:$0xf]
      %809 = vrot.lane.b32.xlu0 %v215, 108
      %v810 = vpop.permute.xlu0 %809
      %811 = vrot.lane.b32.xlu0 %v216, 108
      %v812 = vpop.permute.xlu0 %811
      %813 = vrot.lane.b32.xlu0 %v217, 108
      %v814 = vpop.permute.xlu0 %813
      %815 = vrot.lane.b32.xlu0 %v218, 108
      %v816 = vpop.permute.xlu0 %815
      %817 = vrot.lane.b32.xlu0 %v219, 108
      %v818 = vpop.permute.xlu0 %817
      %819 = vrot.lane.b32.xlu0 %v220, 108
      %v820 = vpop.permute.xlu0 %819
      %821 = vrot.lane.b32.xlu0 %v221, 108
      %v822 = vpop.permute.xlu0 %821
      %823 = vrot.lane.b32.xlu0 %v222, 108
      %v824 = vpop.permute.xlu0 %823
      %vm825 = vcmask 883712
      %v826 = vsel %vm825, %v810, %v812
      %v827 = vsel %vm825, %v812, %v814
      %v828 = vsel %vm825, %v814, %v816
      %v829 = vsel %vm825, %v818, %v820
      %v830 = vsel %vm825, %v820, %v822
      %v831 = vsel %vm825, %v822, %v824
      %v839 = vsel %vm252, %v808, 0
      %841 = vmatprep.subr.bf16.mxu0 0
      %842 = vmatpush1.bf16.msra.mxu0 0
      %843 = vmatprep.subr.bf16.mxu0 0
      %844 = vmatpush1.bf16.msra.mxu0 0
      %845 = vmatprep.subr.bf16.mxu0 0
      %846 = vmatpush1.bf16.msra.mxu0 0
      %847 = vmatprep.subr.bf16.mxu0 0
      %848 = vmatpush1.bf16.msra.mxu0 0
      %849 = vmatprep.subr.bf16.mxu0 0
      %850 = vmatpush1.bf16.msra.mxu0 0
      %851 = vmatprep.subr.bf16.mxu0 0
      %852 = vmatpush1.bf16.msra.mxu0 0
      %853 = vmatprep.subr.bf16.mxu0 %v830
      %854 = vmatpush1.bf16.msra.mxu0 %v829
      %855 = vmatprep.subr.bf16.mxu0 %v827
      %856 = vmatpush1.bf16.msra.mxu0 %v826
      %857 = vmatprep.subr.bf16.mxu0 0
      %858 = vmatpush2.bf16.msra.mxu0 0
      %859 = vmatprep.subr.bf16.mxu0 0
      %860 = vmatpush2.bf16.msra.mxu0 0
      %861 = vmatprep.subr.bf16.mxu0 0
      %862 = vmatpush2.bf16.msra.mxu0 0
      %863 = vmatprep.subr.bf16.mxu0 0
      %864 = vmatpush2.bf16.msra.mxu0 0
      %865 = vmatprep.subr.bf16.mxu0 0
      %866 = vmatpush2.bf16.msra.mxu0 0
      %867 = vmatprep.subr.bf16.mxu0 0
      %868 = vmatpush2.bf16.msra.mxu0 0
      %869 = vmatprep.subr.bf16.mxu0 0
      %870 = vmatpush2.bf16.msra.mxu0 0
      %871 = vmatprep.subr.bf16.mxu0 0
      %872 = vmatpush2.bf16.msra.mxu0 0
      %873 = vmatprep.mubr.bf16.mxu0 0
      %874 = vmatmul.mubr.bf16.gmra.mxu0 %v839
      %v875 = vpop.f32.mrf.mxu0
      %v876 = vadd.f32 0.0, %v875
      %v877 = vpop.f32.mrf.mxu0
      %v878 = vadd.f32 0.0, %v877
      %v879 = vpop.f32.mrf.mxu0
      %v880 = vpop.f32.mrf.mxu0
      %881 = vdwg.mxu0
      %882 = vmatprep.subr.bf16.mxu0 0
      %883 = vmatpush1.bf16.msra.mxu0 0
      %884 = vmatprep.subr.bf16.mxu0 0
      %885 = vmatpush1.bf16.msra.mxu0 0
      %886 = vmatprep.subr.bf16.mxu0 0
      %887 = vmatpush1.bf16.msra.mxu0 0
      %888 = vmatprep.subr.bf16.mxu0 0
      %889 = vmatpush1.bf16.msra.mxu0 0
      %890 = vmatprep.subr.bf16.mxu0 0
      %891 = vmatpush1.bf16.msra.mxu0 0
      %892 = vmatprep.subr.bf16.mxu0 0
      %893 = vmatpush1.bf16.msra.mxu0 0
      %894 = vmatprep.subr.bf16.mxu0 0
      %895 = vmatpush1.bf16.msra.mxu0 %v831
      %896 = vmatprep.subr.bf16.mxu0 0
      %897 = vmatpush1.bf16.msra.mxu0 %v828
      %898 = vmatprep.subr.bf16.mxu0 0
      %899 = vmatpush2.bf16.msra.mxu0 0
      %900 = vmatprep.subr.bf16.mxu0 0
      %901 = vmatpush2.bf16.msra.mxu0 0
      %902 = vmatprep.subr.bf16.mxu0 0
      %903 = vmatpush2.bf16.msra.mxu0 0
      %904 = vmatprep.subr.bf16.mxu0 0
      %905 = vmatpush2.bf16.msra.mxu0 0
      %906 = vmatprep.subr.bf16.mxu0 0
      %907 = vmatpush2.bf16.msra.mxu0 0
      %908 = vmatprep.subr.bf16.mxu0 0
      %909 = vmatpush2.bf16.msra.mxu0 0
      %910 = vmatprep.subr.bf16.mxu0 0
      %911 = vmatpush2.bf16.msra.mxu0 0
      %912 = vmatprep.subr.bf16.mxu0 0
      %913 = vmatpush2.bf16.msra.mxu0 0
      %914 = vmatprep.mubr.bf16.mxu0 0
      %915 = vmatmul.mubr.bf16.gmra.mxu0 %v839
      %v916 = vpop.f32.mrf.mxu0
      %v917 = vadd.f32 0.0, %v916
      %v918 = vpop.f32.mrf.mxu0
      %v919 = vpop.f32.mrf.mxu0
      %v920 = vpop.f32.mrf.mxu0
      %921 = vdwg.mxu0
      %v922 = vadd.f32 %v804, %v876
      %v923 = vadd.f32 %v805, %v878
      %v924 = vadd.f32 %v806, %v917
      %s925 = scalar_lea.vmem %s1, 24
      %v926 = vld [vmem:[%s925] sm:$0xf]
      %927 = vrot.lane.b32.xlu0 %v215, 92
      %v928 = vpop.permute.xlu0 %927
      %929 = vrot.lane.b32.xlu0 %v216, 92
      %v930 = vpop.permute.xlu0 %929
      %931 = vrot.lane.b32.xlu0 %v217, 92
      %v932 = vpop.permute.xlu0 %931
      %933 = vrot.lane.b32.xlu0 %v218, 92
      %v934 = vpop.permute.xlu0 %933
      %935 = vrot.lane.b32.xlu0 %v219, 92
      %v936 = vpop.permute.xlu0 %935
      %937 = vrot.lane.b32.xlu0 %v220, 92
      %v938 = vpop.permute.xlu0 %937
      %939 = vrot.lane.b32.xlu0 %v221, 92
      %v940 = vpop.permute.xlu0 %939
      %941 = vrot.lane.b32.xlu0 %v222, 92
      %v942 = vpop.permute.xlu0 %941
      %vm943 = vcmask 752640
      %v944 = vsel %vm943, %v928, %v930
      %v945 = vsel %vm943, %v930, %v932
      %v946 = vsel %vm943, %v932, %v934
      %v947 = vsel %vm943, %v936, %v938
      %v948 = vsel %vm943, %v938, %v940
      %v949 = vsel %vm943, %v940, %v942
      %v957 = vsel %vm252, %v926, 0
      %959 = vmatprep.subr.bf16.mxu0 0
      %960 = vmatpush1.bf16.msra.mxu0 0
      %961 = vmatprep.subr.bf16.mxu0 0
      %962 = vmatpush1.bf16.msra.mxu0 0
      %963 = vmatprep.subr.bf16.mxu0 0
      %964 = vmatpush1.bf16.msra.mxu0 0
      %965 = vmatprep.subr.bf16.mxu0 0
      %966 = vmatpush1.bf16.msra.mxu0 0
      %967 = vmatprep.subr.bf16.mxu0 0
      %968 = vmatpush1.bf16.msra.mxu0 0
      %969 = vmatprep.subr.bf16.mxu0 0
      %970 = vmatpush1.bf16.msra.mxu0 0
      %971 = vmatprep.subr.bf16.mxu0 %v948
      %972 = vmatpush1.bf16.msra.mxu0 %v947
      %973 = vmatprep.subr.bf16.mxu0 %v945
      %974 = vmatpush1.bf16.msra.mxu0 %v944
      %975 = vmatprep.subr.bf16.mxu0 0
      %976 = vmatpush2.bf16.msra.mxu0 0
      %977 = vmatprep.subr.bf16.mxu0 0
      %978 = vmatpush2.bf16.msra.mxu0 0
      %979 = vmatprep.subr.bf16.mxu0 0
      %980 = vmatpush2.bf16.msra.mxu0 0
      %981 = vmatprep.subr.bf16.mxu0 0
      %982 = vmatpush2.bf16.msra.mxu0 0
      %983 = vmatprep.subr.bf16.mxu0 0
      %984 = vmatpush2.bf16.msra.mxu0 0
      %985 = vmatprep.subr.bf16.mxu0 0
      %986 = vmatpush2.bf16.msra.mxu0 0
      %987 = vmatprep.subr.bf16.mxu0 0
      %988 = vmatpush2.bf16.msra.mxu0 0
      %989 = vmatprep.subr.bf16.mxu0 0
      %990 = vmatpush2.bf16.msra.mxu0 0
      %991 = vmatprep.mubr.bf16.mxu0 0
      %992 = vmatmul.mubr.bf16.gmra.mxu0 %v957
      %v993 = vpop.f32.mrf.mxu0
      %v994 = vadd.f32 0.0, %v993
      %v995 = vpop.f32.mrf.mxu0
      %v996 = vadd.f32 0.0, %v995
      %v997 = vpop.f32.mrf.mxu0
      %v998 = vpop.f32.mrf.mxu0
      %999 = vdwg.mxu0
      %1000 = vmatprep.subr.bf16.mxu0 0
      %1001 = vmatpush1.bf16.msra.mxu0 0
      %1002 = vmatprep.subr.bf16.mxu0 0
      %1003 = vmatpush1.bf16.msra.mxu0 0
      %1004 = vmatprep.subr.bf16.mxu0 0
      %1005 = vmatpush1.bf16.msra.mxu0 0
      %1006 = vmatprep.subr.bf16.mxu0 0
      %1007 = vmatpush1.bf16.msra.mxu0 0
      %1008 = vmatprep.subr.bf16.mxu0 0
      %1009 = vmatpush1.bf16.msra.mxu0 0
      %1010 = vmatprep.subr.bf16.mxu0 0
      %1011 = vmatpush1.bf16.msra.mxu0 0
      %1012 = vmatprep.subr.bf16.mxu0 0
      %1013 = vmatpush1.bf16.msra.mxu0 %v949
      %1014 = vmatprep.subr.bf16.mxu0 0
      %1015 = vmatpush1.bf16.msra.mxu0 %v946
      %1016 = vmatprep.subr.bf16.mxu0 0
      %1017 = vmatpush2.bf16.msra.mxu0 0
      %1018 = vmatprep.subr.bf16.mxu0 0
      %1019 = vmatpush2.bf16.msra.mxu0 0
      %1020 = vmatprep.subr.bf16.mxu0 0
      %1021 = vmatpush2.bf16.msra.mxu0 0
      %1022 = vmatprep.subr.bf16.mxu0 0
      %1023 = vmatpush2.bf16.msra.mxu0 0
      %1024 = vmatprep.subr.bf16.mxu0 0
      %1025 = vmatpush2.bf16.msra.mxu0 0
      %1026 = vmatprep.subr.bf16.mxu0 0
      %1027 = vmatpush2.bf16.msra.mxu0 0
      %1028 = vmatprep.subr.bf16.mxu0 0
      %1029 = vmatpush2.bf16.msra.mxu0 0
      %1030 = vmatprep.subr.bf16.mxu0 0
      %1031 = vmatpush2.bf16.msra.mxu0 0
      %1032 = vmatprep.mubr.bf16.mxu0 0
      %1033 = vmatmul.mubr.bf16.gmra.mxu0 %v957
      %v1034 = vpop.f32.mrf.mxu0
      %v1035 = vadd.f32 0.0, %v1034
      %v1036 = vpop.f32.mrf.mxu0
      %v1037 = vpop.f32.mrf.mxu0
      %v1038 = vpop.f32.mrf.mxu0
      %1039 = vdwg.mxu0
      %v1040 = vadd.f32 %v922, %v994
      %v1041 = vadd.f32 %v923, %v996
      %v1042 = vadd.f32 %v924, %v1035
      %s1043 = scalar_lea.vmem %s1, 28
      %v1044 = vld [vmem:[%s1043] sm:$0xf]
      %1045 = vrot.lane.b32.xlu0 %v215, 91
      %v1046 = vpop.permute.xlu0 %1045
      %1047 = vrot.lane.b32.xlu0 %v216, 91
      %v1048 = vpop.permute.xlu0 %1047
      %1049 = vrot.lane.b32.xlu0 %v217, 91
      %v1050 = vpop.permute.xlu0 %1049
      %1051 = vrot.lane.b32.xlu0 %v218, 91
      %v1052 = vpop.permute.xlu0 %1051
      %1053 = vrot.lane.b32.xlu0 %v219, 91
      %v1054 = vpop.permute.xlu0 %1053
      %1055 = vrot.lane.b32.xlu0 %v220, 91
      %v1056 = vpop.permute.xlu0 %1055
      %1057 = vrot.lane.b32.xlu0 %v221, 91
      %v1058 = vpop.permute.xlu0 %1057
      %1059 = vrot.lane.b32.xlu0 %v222, 91
      %v1060 = vpop.permute.xlu0 %1059
      %vm1061 = vcmask 744448
      %v1062 = vsel %vm1061, %v1046, %v1048
      %v1063 = vsel %vm1061, %v1048, %v1050
      %v1064 = vsel %vm1061, %v1050, %v1052
      %v1065 = vsel %vm1061, %v1054, %v1056
      %v1066 = vsel %vm1061, %v1056, %v1058
      %v1067 = vsel %vm1061, %v1058, %v1060
      %v1075 = vsel %vm252, %v1044, 0
      %1077 = vmatprep.subr.bf16.mxu0 0
      %1078 = vmatpush1.bf16.msra.mxu0 0
      %1079 = vmatprep.subr.bf16.mxu0 0
      %1080 = vmatpush1.bf16.msra.mxu0 0
      %1081 = vmatprep.subr.bf16.mxu0 0
      %1082 = vmatpush1.bf16.msra.mxu0 0
      %1083 = vmatprep.subr.bf16.mxu0 0
      %1084 = vmatpush1.bf16.msra.mxu0 0
      %1085 = vmatprep.subr.bf16.mxu0 0
      %1086 = vmatpush1.bf16.msra.mxu0 0
      %1087 = vmatprep.subr.bf16.mxu0 0
      %1088 = vmatpush1.bf16.msra.mxu0 0
      %1089 = vmatprep.subr.bf16.mxu0 %v1066
      %1090 = vmatpush1.bf16.msra.mxu0 %v1065
      %1091 = vmatprep.subr.bf16.mxu0 %v1063
      %1092 = vmatpush1.bf16.msra.mxu0 %v1062
      %1093 = vmatprep.subr.bf16.mxu0 0
      %1094 = vmatpush2.bf16.msra.mxu0 0
      %1095 = vmatprep.subr.bf16.mxu0 0
      %1096 = vmatpush2.bf16.msra.mxu0 0
      %1097 = vmatprep.subr.bf16.mxu0 0
      %1098 = vmatpush2.bf16.msra.mxu0 0
      %1099 = vmatprep.subr.bf16.mxu0 0
      %1100 = vmatpush2.bf16.msra.mxu0 0
      %1101 = vmatprep.subr.bf16.mxu0 0
      %1102 = vmatpush2.bf16.msra.mxu0 0
      %1103 = vmatprep.subr.bf16.mxu0 0
      %1104 = vmatpush2.bf16.msra.mxu0 0
      %1105 = vmatprep.subr.bf16.mxu0 0
      %1106 = vmatpush2.bf16.msra.mxu0 0
      %1107 = vmatprep.subr.bf16.mxu0 0
      %1108 = vmatpush2.bf16.msra.mxu0 0
      %1109 = vmatprep.mubr.bf16.mxu0 0
      %1110 = vmatmul.mubr.bf16.gmra.mxu0 %v1075
      %v1111 = vpop.f32.mrf.mxu0
      %v1112 = vadd.f32 0.0, %v1111
      %v1113 = vpop.f32.mrf.mxu0
      %v1114 = vadd.f32 0.0, %v1113
      %v1115 = vpop.f32.mrf.mxu0
      %v1116 = vpop.f32.mrf.mxu0
      %1117 = vdwg.mxu0
      %1118 = vmatprep.subr.bf16.mxu0 0
      %1119 = vmatpush1.bf16.msra.mxu0 0
      %1120 = vmatprep.subr.bf16.mxu0 0
      %1121 = vmatpush1.bf16.msra.mxu0 0
      %1122 = vmatprep.subr.bf16.mxu0 0
      %1123 = vmatpush1.bf16.msra.mxu0 0
      %1124 = vmatprep.subr.bf16.mxu0 0
      %1125 = vmatpush1.bf16.msra.mxu0 0
      %1126 = vmatprep.subr.bf16.mxu0 0
      %1127 = vmatpush1.bf16.msra.mxu0 0
      %1128 = vmatprep.subr.bf16.mxu0 0
      %1129 = vmatpush1.bf16.msra.mxu0 0
      %1130 = vmatprep.subr.bf16.mxu0 0
      %1131 = vmatpush1.bf16.msra.mxu0 %v1067
      %1132 = vmatprep.subr.bf16.mxu0 0
      %1133 = vmatpush1.bf16.msra.mxu0 %v1064
      %1134 = vmatprep.subr.bf16.mxu0 0
      %1135 = vmatpush2.bf16.msra.mxu0 0
      %1136 = vmatprep.subr.bf16.mxu0 0
      %1137 = vmatpush2.bf16.msra.mxu0 0
      %1138 = vmatprep.subr.bf16.mxu0 0
      %1139 = vmatpush2.bf16.msra.mxu0 0
      %1140 = vmatprep.subr.bf16.mxu0 0
      %1141 = vmatpush2.bf16.msra.mxu0 0
      %1142 = vmatprep.subr.bf16.mxu0 0
      %1143 = vmatpush2.bf16.msra.mxu0 0
      %1144 = vmatprep.subr.bf16.mxu0 0
      %1145 = vmatpush2.bf16.msra.mxu0 0
      %1146 = vmatprep.subr.bf16.mxu0 0
      %1147 = vmatpush2.bf16.msra.mxu0 0
      %1148 = vmatprep.subr.bf16.mxu0 0
      %1149 = vmatpush2.bf16.msra.mxu0 0
      %1150 = vmatprep.mubr.bf16.mxu0 0
      %1151 = vmatmul.mubr.bf16.gmra.mxu0 %v1075
      %v1152 = vpop.f32.mrf.mxu0
      %v1153 = vadd.f32 0.0, %v1152
      %v1154 = vpop.f32.mrf.mxu0
      %v1155 = vpop.f32.mrf.mxu0
      %v1156 = vpop.f32.mrf.mxu0
      %1157 = vdwg.mxu0
      %v1158 = vadd.f32 %v1040, %v1112
      %v1159 = vadd.f32 %v1041, %v1114
      %v1160 = vadd.f32 %v1042, %v1153
      %s1161 = scalar_lea.vmem %s1, 32
      %v1162 = vld [vmem:[%s1161] sm:$0xf]
      %1163 = vrot.lane.b32.xlu0 %v215, 90
      %v1164 = vpop.permute.xlu0 %1163
      %1165 = vrot.lane.b32.xlu0 %v216, 90
      %v1166 = vpop.permute.xlu0 %1165
      %1167 = vrot.lane.b32.xlu0 %v217, 90
      %v1168 = vpop.permute.xlu0 %1167
      %1169 = vrot.lane.b32.xlu0 %v218, 90
      %v1170 = vpop.permute.xlu0 %1169
      %1171 = vrot.lane.b32.xlu0 %v219, 90
      %v1172 = vpop.permute.xlu0 %1171
      %1173 = vrot.lane.b32.xlu0 %v220, 90
      %v1174 = vpop.permute.xlu0 %1173
      %1175 = vrot.lane.b32.xlu0 %v221, 90
      %v1176 = vpop.permute.xlu0 %1175
      %1177 = vrot.lane.b32.xlu0 %v222, 90
      %v1178 = vpop.permute.xlu0 %1177
      %vm1179 = vcmask 736256
      %v1180 = vsel %vm1179, %v1164, %v1166
      %v1181 = vsel %vm1179, %v1166, %v1168
      %v1182 = vsel %vm1179, %v1168, %v1170
      %v1183 = vsel %vm1179, %v1172, %v1174
      %v1184 = vsel %vm1179, %v1174, %v1176
      %v1185 = vsel %vm1179, %v1176, %v1178
      %v1193 = vsel %vm252, %v1162, 0
      %1195 = vmatprep.subr.bf16.mxu0 0
      %1196 = vmatpush1.bf16.msra.mxu0 0
      %1197 = vmatprep.subr.bf16.mxu0 0
      %1198 = vmatpush1.bf16.msra.mxu0 0
      %1199 = vmatprep.subr.bf16.mxu0 0
      %1200 = vmatpush1.bf16.msra.mxu0 0
      %1201 = vmatprep.subr.bf16.mxu0 0
      %1202 = vmatpush1.bf16.msra.mxu0 0
      %1203 = vmatprep.subr.bf16.mxu0 0
      %1204 = vmatpush1.bf16.msra.mxu0 0
      %1205 = vmatprep.subr.bf16.mxu0 0
      %1206 = vmatpush1.bf16.msra.mxu0 0
      %1207 = vmatprep.subr.bf16.mxu0 %v1184
      %1208 = vmatpush1.bf16.msra.mxu0 %v1183
      %1209 = vmatprep.subr.bf16.mxu0 %v1181
      %1210 = vmatpush1.bf16.msra.mxu0 %v1180
      %1211 = vmatprep.subr.bf16.mxu0 0
      %1212 = vmatpush2.bf16.msra.mxu0 0
      %1213 = vmatprep.subr.bf16.mxu0 0
      %1214 = vmatpush2.bf16.msra.mxu0 0
      %1215 = vmatprep.subr.bf16.mxu0 0
      %1216 = vmatpush2.bf16.msra.mxu0 0
      %1217 = vmatprep.subr.bf16.mxu0 0
      %1218 = vmatpush2.bf16.msra.mxu0 0
      %1219 = vmatprep.subr.bf16.mxu0 0
      %1220 = vmatpush2.bf16.msra.mxu0 0
      %1221 = vmatprep.subr.bf16.mxu0 0
      %1222 = vmatpush2.bf16.msra.mxu0 0
      %1223 = vmatprep.subr.bf16.mxu0 0
      %1224 = vmatpush2.bf16.msra.mxu0 0
      %1225 = vmatprep.subr.bf16.mxu0 0
      %1226 = vmatpush2.bf16.msra.mxu0 0
      %1227 = vmatprep.mubr.bf16.mxu0 0
      %1228 = vmatmul.mubr.bf16.gmra.mxu0 %v1193
      %v1229 = vpop.f32.mrf.mxu0
      %v1230 = vadd.f32 0.0, %v1229
      %v1231 = vpop.f32.mrf.mxu0
      %v1232 = vadd.f32 0.0, %v1231
      %v1233 = vpop.f32.mrf.mxu0
      %v1234 = vpop.f32.mrf.mxu0
      %1235 = vdwg.mxu0
      %1236 = vmatprep.subr.bf16.mxu0 0
      %1237 = vmatpush1.bf16.msra.mxu0 0
      %1238 = vmatprep.subr.bf16.mxu0 0
      %1239 = vmatpush1.bf16.msra.mxu0 0
      %1240 = vmatprep.subr.bf16.mxu0 0
      %1241 = vmatpush1.bf16.msra.mxu0 0
      %1242 = vmatprep.subr.bf16.mxu0 0
      %1243 = vmatpush1.bf16.msra.mxu0 0
      %1244 = vmatprep.subr.bf16.mxu0 0
      %1245 = vmatpush1.bf16.msra.mxu0 0
      %1246 = vmatprep.subr.bf16.mxu0 0
      %1247 = vmatpush1.bf16.msra.mxu0 0
      %1248 = vmatprep.subr.bf16.mxu0 0
      %1249 = vmatpush1.bf16.msra.mxu0 %v1185
      %1250 = vmatprep.subr.bf16.mxu0 0
      %1251 = vmatpush1.bf16.msra.mxu0 %v1182
      %1252 = vmatprep.subr.bf16.mxu0 0
      %1253 = vmatpush2.bf16.msra.mxu0 0
      %1254 = vmatprep.subr.bf16.mxu0 0
      %1255 = vmatpush2.bf16.msra.mxu0 0
      %1256 = vmatprep.subr.bf16.mxu0 0
      %1257 = vmatpush2.bf16.msra.mxu0 0
      %1258 = vmatprep.subr.bf16.mxu0 0
      %1259 = vmatpush2.bf16.msra.mxu0 0
      %1260 = vmatprep.subr.bf16.mxu0 0
      %1261 = vmatpush2.bf16.msra.mxu0 0
      %1262 = vmatprep.subr.bf16.mxu0 0
      %1263 = vmatpush2.bf16.msra.mxu0 0
      %1264 = vmatprep.subr.bf16.mxu0 0
      %1265 = vmatpush2.bf16.msra.mxu0 0
      %1266 = vmatprep.subr.bf16.mxu0 0
      %1267 = vmatpush2.bf16.msra.mxu0 0
      %1268 = vmatprep.mubr.bf16.mxu0 0
      %1269 = vmatmul.mubr.bf16.gmra.mxu0 %v1193
      %v1270 = vpop.f32.mrf.mxu0
      %v1271 = vadd.f32 0.0, %v1270
      %v1272 = vpop.f32.mrf.mxu0
      %v1273 = vpop.f32.mrf.mxu0
      %v1274 = vpop.f32.mrf.mxu0
      %1275 = vdwg.mxu0
      %v1276 = vadd.f32 %v1158, %v1230
      %v1277 = vadd.f32 %v1159, %v1232
      %v1278 = vadd.f32 %v1160, %v1271
      %v1279 = vld [vmem:[%s2] sm:$0xff]
      %1281 = vset.pattern.permute.xlu0 0
      %1282 = vperm.xlu0 %1281, %v1279
      %v1283 = vpop.permute.xlu0 %1282
      %v1285 = vadd.f32 %v1276, %v1283
      %v1286 = vadd.f32 %v1277, %v1283
      %v1287 = vadd.f32 %v1278, %v1283
      %v1288 = vmax.f32 %v1285, 0.0
      %v1289 = vmax.f32 %v1286, 0.0
      %v1290 = vmax.f32 %v1287, 0.0
      %v1291 = vpack.c.bf16 %v1288, %v1288
      %v1292 = vpack.c.bf16 %v1289, %v1289
      %v1293 = vpack.c.bf16 %v1290, %v1290
      %v1297 = vunpack.c.l.b16 %v1291
      %v1298 = vunpack.c.l.b16 %v1292
      %v1299 = vunpack.c.l.b16 %v1293
      %v1300 = vpack.c.b16 %v1298, %v1297
      %v1301 = vpack.c.b16 %v1299, %v1299
      %1304 = vst [vmem:[%s170] sm:$0xff] %v1300
      %1305 = vst [vmem:[%s170 + $0x8] sm:$0xf] %v1301
      %p1306 = scmp.lt.s32.totalorder %s14, 1
      %s1307 = scalar_select %p1306, %s14, 1
      %s1308 = smul.addr %s1307, 3
      %s1309 = smul.addr %s1308, 4
      %s1310 = scalar_lea.vmem %s3, %s1309
      // Predicated region
      $region33: #{eudncnn_forward.9} parent=31 // pred_check
        %p1311 = pneg %p100
      $region34: #{eudncnn_forward.9} parent=31 // pred_check_branch
        %1313 = sbr.rel (%p1311) target = $region36
      $region35: #{eudncnn_forward.9} parent=31 // pred_region
        _
      $region36: #{eudncnn_forward.9} parent=31 // pred_fallthru
        _
    $region32: #{eudncnn_forward.9} parent=5 // pred_fallthru
      _
    %p1314 = scmp.le.s32.totalorder 2, %s9
    // Predicated region
    $region37: #{eudncnn_forward.9} parent=5 // pred_check
      %p1315 = pneg %p1314
    $region38: #{eudncnn_forward.9} parent=5 // pred_check_branch
      %1317 = sbr.rel (%p1315) target = $region40
    $region39: #{eudncnn_forward.9} parent=5 // pred_region
      %s1318 = ssub.s32 %s9, 2
      // Predicated region
      $region41: #{eudncnn_forward.9} parent=39 // pred_check
        %p1319 = pneg %p106
      $region42: #{eudncnn_forward.9} parent=39 // pred_check_branch
        %1321 = sbr.rel (%p1319) target = $region44
      $region43: #{eudncnn_forward.9} parent=39 // pred_region
        %p1322 = scmp.lt.s32.totalorder %s15, 1
        %s1323 = scalar_select %p1322, %s15, 1
        %s1324 = smul.addr %s1323, 3
        %s1325 = smul.addr %s1324, 4
        %s1326 = scalar_lea.vmem %s3, %s1325
      $region44: #{eudncnn_forward.9} parent=39 // pred_fallthru
        _
    $region40: #{eudncnn_forward.9} parent=5 // pred_fallthru
      _
  $region6: #{eudncnn_forward.9} parent=0 // loop_footer
    %s13 = sadd.s32 1, %s9
  $region7: #{eudncnn_forward.9} parent=0 // loop_footer_branch
    %8 = sbr.rel target = $region3
  $region8: #{eudncnn_forward.9} parent=0 // loop_exit
    _

// kernel: eudncnn_forward.10
$region0: #{eudncnn_forward.10}
  #allocation0 [shape = 'u32[]', space=smem, size = 0x4, offset = 0x4, fixed_abs, tag = 'smem constant byte address 0x4 - core index']
  #allocation1 [shape = 'u32[144,128]{1,0:T(1,128)}', space=vmem, size = 0x12000, scoped, tag = 'internal scratch']
  %s0 = inlined_call_operand.vmem [shape: f32[2,1,384], index: 0, kind: input, shape index: {}]
  %s1 = inlined_call_operand.vmem [shape: f32[1,256], index: 1, kind: input, shape index: {}]
  %s2 = inlined_call_operand.vmem [shape: bf16[2,16,256], index: 2, kind: output, shape index: {}]
  %s3 = sld [smem:[#allocation0]]
  $region41: #{eudncnn_forward.10} parent=0
    _
  %s5 = ssub.s32 1, %s3
  %s6 = scalar_select 0, %s5, %s3
  loop: start=0, step=1, limit=4
  $region2: #{eudncnn_forward.10} parent=0 // loop_pre_header
    _
  $region3: #{eudncnn_forward.10} parent=0 // loop_header
    %s8 = sphi 0, %s12
    %p9 = scmp.ge.s32.totalorder %s8, 4
    %s18 = sphi 0, %s20
    %s21 = sphi 0, %s18
    %s22 = sphi 0, %s21
    %s38 = sphi 0, %s22
    %s42 = sphi 0, %s42
    %s44 = sphi 0, %s42
    %s45 = sphi 0, %s44
    %s59 = sphi 0, %s45
    %s65 = sphi 0, %s67
    %s68 = sphi 0, %s65
    %s69 = sphi 0, %s68
    %s85 = sphi 0, %s69
  $region4: #{eudncnn_forward.10} parent=0 // loop_header_branch
    %11 = sbr.rel (%p9) target = $region8
  $region5: #{eudncnn_forward.10} parent=0 // loop_body
    %s13 = ssub.s32 %s8, 1
    %s14 = ssub.s32 %s8, 2
    %s15 = sadd.s32 %s8, 1
    %s16 = ssub.s32 %s8, %s15
    %p17 = scmp.eq.s32.totalorder %s16, 0
    %s19 = sadd.s32 %s18, 1
    %s20 = scalar_select %p17, %s18, %s19
    %p23 = pneg %p17
    %p24 = scmp.eq.s32.totalorder %s8, 1
    %p25 = por %p23, %p24
    %p26 = scmp.ne.s32.totalorder %s18, %s21
    %p27 = scmp.eq.s32.totalorder %s8, 0
    %p28 = por %p26, %p27
    %p29 = scmp.ne.s32.totalorder %s18, %s21
    %p30 = scmp.eq.s32.totalorder %s13, 1
    %p31 = por %p29, %p30
    %p32 = scmp.ne.s32.totalorder %s21, %s22
    %p33 = scmp.eq.s32.totalorder %s13, 0
    %p34 = por %p32, %p33
    %p35 = scmp.ne.s32.totalorder %s21, %s22
    %p36 = scmp.eq.s32.totalorder %s14, 1
    %p37 = por %p35, %p36
    %p39 = scmp.ne.s32.totalorder %s22, %s38
    %p40 = scmp.eq.s32.totalorder %s14, 0
    %p41 = por %p39, %p40
    %s43 = sadd.s32 %s42, 1
    %p46 = scmp.eq.s32.totalorder %s8, 1
    %p47 = scmp.ne.s32.totalorder %s42, %s44
    %p48 = scmp.eq.s32.totalorder %s8, 0
    %p49 = por %p47, %p48
    %p50 = scmp.ne.s32.totalorder %s42, %s44
    %p51 = scmp.eq.s32.totalorder %s13, 1
    %p52 = por %p50, %p51
    %p53 = scmp.ne.s32.totalorder %s44, %s45
    %p54 = scmp.eq.s32.totalorder %s13, 0
    %p55 = por %p53, %p54
    %p56 = scmp.ne.s32.totalorder %s44, %s45
    %p57 = scmp.eq.s32.totalorder %s14, 1
    %p58 = por %p56, %p57
    %p60 = scmp.ne.s32.totalorder %s45, %s59
    %p61 = scmp.eq.s32.totalorder %s14, 0
    %p62 = por %p60, %p61
    %s63 = ssub.s32 %s8, %s15
    %p64 = scmp.eq.s32.totalorder %s63, 0
    %s66 = sadd.s32 %s65, 1
    %s67 = scalar_select %p64, %s65, %s66
    %p70 = pneg %p64
    %p71 = scmp.eq.s32.totalorder %s8, 1
    %p72 = por %p70, %p71
    %p73 = scmp.ne.s32.totalorder %s65, %s68
    %p74 = scmp.eq.s32.totalorder %s8, 0
    %p75 = por %p73, %p74
    %p76 = scmp.ne.s32.totalorder %s65, %s68
    %p77 = scmp.eq.s32.totalorder %s13, 1
    %p78 = por %p76, %p77
    %p79 = scmp.ne.s32.totalorder %s68, %s69
    %p80 = scmp.eq.s32.totalorder %s13, 0
    %p81 = por %p79, %p80
    %p82 = scmp.ne.s32.totalorder %s68, %s69
    %p83 = scmp.eq.s32.totalorder %s14, 1
    %p84 = por %p82, %p83
    %p86 = scmp.ne.s32.totalorder %s69, %s85
    %p87 = scmp.eq.s32.totalorder %s14, 0
    %p88 = por %p86, %p87
    %p89 = scmp.le.s32.totalorder 1, %s8
    %p90 = scmp.lt.s32.totalorder %s8, 3
    %p91 = pnand %p89, %p90
    %p92 = pneg %p91
    // Predicated region
    $region9: #{eudncnn_forward.10} parent=5 // pred_check
      _
    $region10: #{eudncnn_forward.10} parent=5 // pred_check_branch
      %94 = sbr.rel (%p91) target = $region12
    $region11: #{eudncnn_forward.10} parent=5 // pred_region
      %s95 = ssub.s32 %s8, 1
      // Predicated region
      $region13: #{eudncnn_forward.10} parent=11 // pred_check
        %p96 = pneg %p55
      $region14: #{eudncnn_forward.10} parent=11 // pred_check_branch
        %98 = sbr.rel (%p96) target = $region16
      $region15: #{eudncnn_forward.10} parent=11 // pred_region
        _
      $region16: #{eudncnn_forward.10} parent=11 // pred_fallthru
        _
    $region12: #{eudncnn_forward.10} parent=5 // pred_fallthru
      _
    %p99 = scmp.lt.s32.totalorder %s8, 2
    // Predicated region
    $region17: #{eudncnn_forward.10} parent=5 // pred_check
      %p100 = pneg %p99
    $region18: #{eudncnn_forward.10} parent=5 // pred_check_branch
      %102 = sbr.rel (%p100) target = $region20
    $region19: #{eudncnn_forward.10} parent=5 // pred_region
      // Predicated region
      $region21: #{eudncnn_forward.10} parent=19 // pred_check
        %p103 = pneg %p28
      $region22: #{eudncnn_forward.10} parent=19 // pred_check_branch
        %105 = sbr.rel (%p103) target = $region24
      $region23: #{eudncnn_forward.10} parent=19 // pred_region
        %p106 = scmp.lt.s32.totalorder %s8, 1
        %s107 = scalar_select %p106, %s8, 1
        %s108 = smul.addr %s107, 3
        %s109 = scalar_lea.vmem %s0, %s108
      $region24: #{eudncnn_forward.10} parent=19 // pred_fallthru
        _
    $region20: #{eudncnn_forward.10} parent=5 // pred_fallthru
      _
    %p110 = scmp.le.s32.totalorder 1, %s8
    %p111 = scmp.lt.s32.totalorder %s8, 3
    %p112 = pnand %p110, %p111
    %p113 = pneg %p112
    // Predicated region
    $region25: #{eudncnn_forward.10} parent=5 // pred_check
      _
    $region26: #{eudncnn_forward.10} parent=5 // pred_check_branch
      %115 = sbr.rel (%p112) target = $region28
    $region27: #{eudncnn_forward.10} parent=5 // pred_region
      %s116 = ssub.s32 %s8, 1
      %p117 = scmp.lt.s32.totalorder %s13, 1
      %s118 = scalar_select %p117, %s13, 1
      %s119 = smul.addr %s118, 3
      %s120 = scalar_lea.vmem %s0, %s119
      %p121 = pneg %p34
      %p122 = pneg %p31
      %p123 = pneg %p55
      %p124 = pneg %p52
      %p125 = pneg %p81
      %p126 = pneg %p78
      %p127 = scmp.lt.s32.totalorder %s13, 1
      %s128 = scalar_select %p127, %s13, 1
      %s129 = smul.addr %s128, 4
      %s130 = smul.addr %s129, 4
      %s131 = scalar_lea.vmem %s2, %s130
      %p132 = scmp.lt.s32.totalorder %s13, 1
      %s133 = scalar_select %p132, %s13, 1
      %s134 = smul.addr %s133, 3
      %s135 = scalar_lea.vmem %s0, %s134
      %p136 = scmp.lt.s32.totalorder %s13, 1
      %s137 = scalar_select %p136, %s13, 1
      %s138 = smul.addr %s137, 4
      %s139 = smul.addr %s138, 4
      %s140 = scalar_lea.vmem %s2, %s139
      %v141 = vld [vmem:[%s135] sm:$0x7]
      %v142 = vld [vmem:[%s135] sm:$0x3]
      %v143 = vmul.f32 %v142, -1.0
      %v144 = vmul.f32 %v141, -2.0
      %146 = vrot.lane.b32.xlu0 %v144, 127
      %v147 = vpop.permute.xlu0 %146
      %v148 = vrot.slane %v147, 1
      %vm149 = vcmask 1039360
      %v150 = vsel %vm149, %v147, %v148
      %v152 = vadd.f32 %v143, %v150
      %154 = vrot.lane.b32.xlu0 %v141, 126
      %v155 = vpop.permute.xlu0 %154
      %v156 = vrot.slane %v155, 1
      %vm157 = vcmask 1031168
      %v158 = vsel %vm157, %v155, %v156
      %v160 = vadd.f32 %v143, %v158
      %v161 = vmul.f32 %v141, -1.0
      %163 = vrot.lane.b32.xlu0 %v161, 126
      %v164 = vpop.permute.xlu0 %163
      %v165 = vrot.slane %v164, 1
      %v166 = vsel %vm157, %v164, %v165
      %v168 = vadd.f32 %v152, %v166
      %169 = vrot.lane.b32.xlu0 %v144, 118
      %v170 = vpop.permute.xlu0 %169
      %v171 = vrot.slane %v170, 1
      %vm172 = vcmask 965632
      %v173 = vsel %vm172, %v170, %v171
      %v175 = vadd.f32 %v160, %v173
      %v176 = vmul.f32 %v141, 2.0
      %178 = vrot.lane.b32.xlu0 %v176, 116
      %v179 = vpop.permute.xlu0 %178
      %v180 = vrot.slane %v179, 1
      %vm181 = vcmask 949248
      %v182 = vsel %vm181, %v179, %v180
      %v184 = vadd.f32 %v175, %v182
      %185 = vrot.lane.b32.xlu0 %v161, 108
      %v186 = vpop.permute.xlu0 %185
      %v187 = vrot.slane %v186, 1
      %vm188 = vcmask 883712
      %v189 = vsel %vm188, %v186, %v187
      %v191 = vadd.f32 %v184, %v189
      %192 = vrot.lane.b32.xlu0 %v141, 108
      %v193 = vpop.permute.xlu0 %192
      %v194 = vrot.slane %v193, 1
      %v195 = vsel %vm188, %v193, %v194
      %v197 = vadd.f32 %v168, %v195
      %198 = vrot.lane.b32.xlu0 %v176, 107
      %v199 = vpop.permute.xlu0 %198
      %v200 = vrot.slane %v199, 1
      %vm201 = vcmask 875520
      %v202 = vsel %vm201, %v199, %v200
      %v204 = vadd.f32 %v197, %v202
      %205 = vrot.lane.b32.xlu0 %v141, 106
      %v206 = vpop.permute.xlu0 %205
      %v207 = vrot.slane %v206, 1
      %vm208 = vcmask 867328
      %v209 = vsel %vm208, %v206, %v207
      %v211 = vadd.f32 %v191, %v209
      %v212 = vadd.f32 %v204, %v209
      %v213 = vld [vmem:[%s1] sm:$0x3]
      %v214 = vmul.f32 %v211, %v213
      %v215 = vmul.f32 %v212, %v213
      %v216 = vlaneseq
      %v217 = vshrl.u32 %v216, 7
      %v218 = vsub.s32 0, %v217
      %v219 = vrot.slane %v141, %v218
      %v220 = vlaneseq
      %v221 = vshrl.u32 %v220, 7
      %v222 = vsub.s32 1, %v221
      %v223 = vrot.slane %v141, %v222
      %v224 = vlaneseq
      %v225 = vshrl.u32 %v224, 7
      %v226 = vsub.s32 2, %v225
      %v227 = vrot.slane %v141, %v226
      %v232 = vlaneseq
      %v233 = vshrl.u32 %v232, 7
      %v234 = vsub.s32 0, %v233
      %v235 = vrot.slane %v214, %v234
      %v236 = vlaneseq
      %v237 = vshrl.u32 %v236, 7
      %v238 = vsub.s32 1, %v237
      %v239 = vrot.slane %v214, %v238
      %240 = vrot.lane.b32.xlu0 %v235, 11
      %v241 = vpop.permute.xlu0 %240
      %242 = vrot.lane.b32.xlu0 %v239, 11
      %v243 = vpop.permute.xlu0 %242
      %vm244 = vcmask 89088
      %v245 = vsel %vm244, %v241, %v243
      %v250 = vlaneseq
      %v251 = vshrl.u32 %v250, 7
      %v252 = vsub.s32 0, %v251
      %v253 = vrot.slane %v215, %v252
      %v254 = vlaneseq
      %v255 = vshrl.u32 %v254, 7
      %v256 = vsub.s32 1, %v255
      %v257 = vrot.slane %v215, %v256
      %258 = vrot.lane.b32.xlu0 %v253, 11
      %v259 = vpop.permute.xlu0 %258
      %260 = vrot.lane.b32.xlu0 %v257, 11
      %v261 = vpop.permute.xlu0 %260
      %v262 = vsel %vm244, %v259, %v261
      %vm266 = vcmask 1040384
      %v267 = vsel %vm266, %v219, %v241
      %v268 = vsel %vm266, %v223, %v245
      %v269 = vsel %vm266, %v227, %v243
      %vm270 = vcmask 1041408
      %v271 = vsel %vm270, %v267, %v259
      %v272 = vsel %vm270, %v268, %v262
      %v273 = vsel %vm270, %v269, %v261
      %vm274 = vcmask 1042432
      %v275 = vsel %vm274, %v271, %v241
      %v276 = vsel %vm274, %v272, %v245
      %v277 = vsel %vm274, %v273, %v243
      %vm278 = vcmask 1043456
      %v279 = vsel %vm278, %v275, %v259
      %v280 = vsel %vm278, %v276, %v262
      %v281 = vsel %vm278, %v277, %v261
      %vm282 = vcmask 1044480
      %v283 = vsel %vm282, %v279, %v241
      %v284 = vsel %vm282, %v280, %v245
      %v285 = vsel %vm282, %v281, %v243
      %vm286 = vcmask 1045504
      %v287 = vsel %vm286, %v283, %v259
      %v288 = vsel %vm286, %v284, %v262
      %v289 = vsel %vm286, %v285, %v261
      %vm290 = vcmask 1046528
      %v291 = vsel %vm290, %v287, %v241
      %v292 = vsel %vm290, %v288, %v245
      %v293 = vsel %vm290, %v289, %v243
      %v294 = vsel %vm266, %v259, 0.0
      %v295 = vsel %vm266, %v262, 0.0
      %v296 = vsel %vm266, %v261, 0.0
      %v297 = vpack.c.bf16 %v294, %v291
      %v298 = vpack.c.bf16 %v295, %v292
      %v299 = vpack.c.bf16 %v296, %v293
      %v303 = vunpack.c.l.b16 %v297
      %v304 = vunpack.c.l.b16 %v298
      %v305 = vunpack.c.l.b16 %v299
      %v306 = vunpack.c.h.b16 %v297
      %v307 = vunpack.c.h.b16 %v298
      %v308 = vunpack.c.h.b16 %v299
      %v309 = vpack.c.b16 %v304, %v303
      %v310 = vpack.c.b16 %v305, %v305
      %v311 = vpack.c.b16 %v307, %v306
      %v312 = vpack.c.b16 %v308, %v308
      %313 = vrot.lane.b32.xlu0 %v309, 117
      %v314 = vpop.permute.xlu0 %313
      %315 = vrot.lane.b32.xlu0 %v310, 117
      %v316 = vpop.permute.xlu0 %315
      %317 = vrot.lane.b32.xlu0 %v311, 117
      %v318 = vpop.permute.xlu0 %317
      %319 = vrot.lane.b32.xlu0 %v312, 117
      %v320 = vpop.permute.xlu0 %319
      %v321 = vrot.slane %v314, 4
      %v322 = vrot.slane %v316, 4
      %v323 = vrot.slane %v318, 4
      %v324 = vrot.slane %v320, 4
      %vm325 = vcmask 1043456
      %v326 = vsel %vm325, %v321, %v322
      %vm327 = vcmask 957440
      %v328 = vsel %vm327, %v314, %v326
      %v329 = vsel %vm325, %v323, %v324
      %v330 = vsel %vm327, %v318, %v329
      %333 = vst [vmem:[%s140] sm:$0xff] %v328
      %334 = vst [vmem:[%s140 + $0x8] sm:$0xff] %v330
      %p335 = scmp.lt.s32.totalorder %s13, 1
      %s336 = scalar_select %p335, %s13, 1
      %s337 = smul.addr %s336, 4
      %s338 = smul.addr %s337, 4
      %s339 = scalar_lea.vmem %s2, %s338
      // Predicated region
      $region29: #{eudncnn_forward.10} parent=27 // pred_check
        %p340 = pneg %p78
      $region30: #{eudncnn_forward.10} parent=27 // pred_check_branch
        %342 = sbr.rel (%p340) target = $region32
      $region31: #{eudncnn_forward.10} parent=27 // pred_region
        _
      $region32: #{eudncnn_forward.10} parent=27 // pred_fallthru
        _
    $region28: #{eudncnn_forward.10} parent=5 // pred_fallthru
      _
    %p343 = scmp.le.s32.totalorder 2, %s8
    // Predicated region
    $region33: #{eudncnn_forward.10} parent=5 // pred_check
      %p344 = pneg %p343
    $region34: #{eudncnn_forward.10} parent=5 // pred_check_branch
      %346 = sbr.rel (%p344) target = $region36
    $region35: #{eudncnn_forward.10} parent=5 // pred_region
      %s347 = ssub.s32 %s8, 2
      // Predicated region
      $region37: #{eudncnn_forward.10} parent=35 // pred_check
        %p348 = pneg %p84
      $region38: #{eudncnn_forward.10} parent=35 // pred_check_branch
        %350 = sbr.rel (%p348) target = $region40
      $region39: #{eudncnn_forward.10} parent=35 // pred_region
        %p351 = scmp.lt.s32.totalorder %s14, 1
        %s352 = scalar_select %p351, %s14, 1
        %s353 = smul.addr %s352, 4
        %s354 = smul.addr %s353, 4
        %s355 = scalar_lea.vmem %s2, %s354
      $region40: #{eudncnn_forward.10} parent=35 // pred_fallthru
        _
    $region36: #{eudncnn_forward.10} parent=5 // pred_fallthru
      _
  $region6: #{eudncnn_forward.10} parent=0 // loop_footer
    %s12 = sadd.s32 1, %s8
  $region7: #{eudncnn_forward.10} parent=0 // loop_footer_branch
    %7 = sbr.rel target = $region3
  $region8: #{eudncnn_forward.10} parent=0 // loop_exit
    _

// kernel: eudncnn_forward.11
$region0: #{eudncnn_forward.11}
  #allocation0 [shape = 'u32[]', space=smem, size = 0x4, offset = 0x4, fixed_abs, tag = 'smem constant byte address 0x4 - core index']
  #allocation1 [shape = 'u32[144,128]{1,0:T(1,128)}', space=vmem, size = 0x12000, scoped, tag = 'internal scratch']
  %s0 = inlined_call_operand.vmem [shape: bf16[2,16,256], index: 0, kind: input, shape index: {}]
  %s1 = inlined_call_operand.vmem [shape: bf16[2,16,256], index: 1, kind: input, shape index: {}]
  %s2 = inlined_call_operand.vmem [shape: bf16[9,8,16], index: 2, kind: input, shape index: {}]
  %s3 = inlined_call_operand.vmem [shape: bf16[9,8,16], index: 3, kind: input, shape index: {}]
  %s4 = inlined_call_operand.vmem [shape: f32[8,1], index: 4, kind: input, shape index: {}]
  %s5 = inlined_call_operand.vmem [shape: bf16[2,8,128], index: 5, kind: output, shape index: {}]
  %s6 = sld [smem:[#allocation0]]
  $region53: #{eudncnn_forward.11} parent=0
    _
  %s8 = ssub.s32 1, %s6
  %s9 = scalar_select 0, %s8, %s6
  loop: start=0, step=1, limit=4
  $region2: #{eudncnn_forward.11} parent=0 // loop_pre_header
    _
  $region3: #{eudncnn_forward.11} parent=0 // loop_header
    %s11 = sphi 0, %s15
    %p12 = scmp.ge.s32.totalorder %s11, 4
    %s21 = sphi 0, %s23
    %s24 = sphi 0, %s21
    %s25 = sphi 0, %s24
    %s41 = sphi 0, %s25
    %s47 = sphi 0, %s49
    %s50 = sphi 0, %s47
    %s51 = sphi 0, %s50
    %s67 = sphi 0, %s51
    %s71 = sphi 0, %s71
    %s73 = sphi 0, %s71
    %s74 = sphi 0, %s73
    %s88 = sphi 0, %s74
    %s92 = sphi 0, %s92
    %s94 = sphi 0, %s92
    %s95 = sphi 0, %s94
    %s109 = sphi 0, %s95
    %s113 = sphi 0, %s113
    %s115 = sphi 0, %s113
    %s116 = sphi 0, %s115
    %s130 = sphi 0, %s116
    %s136 = sphi 0, %s138
    %s139 = sphi 0, %s136
    %s140 = sphi 0, %s139
    %s156 = sphi 0, %s140
  $region4: #{eudncnn_forward.11} parent=0 // loop_header_branch
    %14 = sbr.rel (%p12) target = $region8
  $region5: #{eudncnn_forward.11} parent=0 // loop_body
    %s16 = ssub.s32 %s11, 1
    %s17 = ssub.s32 %s11, 2
    %s18 = sadd.s32 %s11, 1
    %s19 = ssub.s32 %s11, %s18
    %p20 = scmp.eq.s32.totalorder %s19, 0
    %s22 = sadd.s32 %s21, 1
    %s23 = scalar_select %p20, %s21, %s22
    %p26 = pneg %p20
    %p27 = scmp.eq.s32.totalorder %s11, 1
    %p28 = por %p26, %p27
    %p29 = scmp.ne.s32.totalorder %s21, %s24
    %p30 = scmp.eq.s32.totalorder %s11, 0
    %p31 = por %p29, %p30
    %p32 = scmp.ne.s32.totalorder %s21, %s24
    %p33 = scmp.eq.s32.totalorder %s16, 1
    %p34 = por %p32, %p33
    %p35 = scmp.ne.s32.totalorder %s24, %s25
    %p36 = scmp.eq.s32.totalorder %s16, 0
    %p37 = por %p35, %p36
    %p38 = scmp.ne.s32.totalorder %s24, %s25
    %p39 = scmp.eq.s32.totalorder %s17, 1
    %p40 = por %p38, %p39
    %p42 = scmp.ne.s32.totalorder %s25, %s41
    %p43 = scmp.eq.s32.totalorder %s17, 0
    %p44 = por %p42, %p43
    %s45 = ssub.s32 %s11, %s18
    %p46 = scmp.eq.s32.totalorder %s45, 0
    %s48 = sadd.s32 %s47, 1
    %s49 = scalar_select %p46, %s47, %s48
    %p52 = pneg %p46
    %p53 = scmp.eq.s32.totalorder %s11, 1
    %p54 = por %p52, %p53
    %p55 = scmp.ne.s32.totalorder %s47, %s50
    %p56 = scmp.eq.s32.totalorder %s11, 0
    %p57 = por %p55, %p56
    %p58 = scmp.ne.s32.totalorder %s47, %s50
    %p59 = scmp.eq.s32.totalorder %s16, 1
    %p60 = por %p58, %p59
    %p61 = scmp.ne.s32.totalorder %s50, %s51
    %p62 = scmp.eq.s32.totalorder %s16, 0
    %p63 = por %p61, %p62
    %p64 = scmp.ne.s32.totalorder %s50, %s51
    %p65 = scmp.eq.s32.totalorder %s17, 1
    %p66 = por %p64, %p65
    %p68 = scmp.ne.s32.totalorder %s51, %s67
    %p69 = scmp.eq.s32.totalorder %s17, 0
    %p70 = por %p68, %p69
    %s72 = sadd.s32 %s71, 1
    %p75 = scmp.eq.s32.totalorder %s11, 1
    %p76 = scmp.ne.s32.totalorder %s71, %s73
    %p77 = scmp.eq.s32.totalorder %s11, 0
    %p78 = por %p76, %p77
    %p79 = scmp.ne.s32.totalorder %s71, %s73
    %p80 = scmp.eq.s32.totalorder %s16, 1
    %p81 = por %p79, %p80
    %p82 = scmp.ne.s32.totalorder %s73, %s74
    %p83 = scmp.eq.s32.totalorder %s16, 0
    %p84 = por %p82, %p83
    %p85 = scmp.ne.s32.totalorder %s73, %s74
    %p86 = scmp.eq.s32.totalorder %s17, 1
    %p87 = por %p85, %p86
    %p89 = scmp.ne.s32.totalorder %s74, %s88
    %p90 = scmp.eq.s32.totalorder %s17, 0
    %p91 = por %p89, %p90
    %s93 = sadd.s32 %s92, 1
    %p96 = scmp.eq.s32.totalorder %s11, 1
    %p97 = scmp.ne.s32.totalorder %s92, %s94
    %p98 = scmp.eq.s32.totalorder %s11, 0
    %p99 = por %p97, %p98
    %p100 = scmp.ne.s32.totalorder %s92, %s94
    %p101 = scmp.eq.s32.totalorder %s16, 1
    %p102 = por %p100, %p101
    %p103 = scmp.ne.s32.totalorder %s94, %s95
    %p104 = scmp.eq.s32.totalorder %s16, 0
    %p105 = por %p103, %p104
    %p106 = scmp.ne.s32.totalorder %s94, %s95
    %p107 = scmp.eq.s32.totalorder %s17, 1
    %p108 = por %p106, %p107
    %p110 = scmp.ne.s32.totalorder %s95, %s109
    %p111 = scmp.eq.s32.totalorder %s17, 0
    %p112 = por %p110, %p111
    %s114 = sadd.s32 %s113, 1
    %p117 = scmp.eq.s32.totalorder %s11, 1
    %p118 = scmp.ne.s32.totalorder %s113, %s115
    %p119 = scmp.eq.s32.totalorder %s11, 0
    %p120 = por %p118, %p119
    %p121 = scmp.ne.s32.totalorder %s113, %s115
    %p122 = scmp.eq.s32.totalorder %s16, 1
    %p123 = por %p121, %p122
    %p124 = scmp.ne.s32.totalorder %s115, %s116
    %p125 = scmp.eq.s32.totalorder %s16, 0
    %p126 = por %p124, %p125
    %p127 = scmp.ne.s32.totalorder %s115, %s116
    %p128 = scmp.eq.s32.totalorder %s17, 1
    %p129 = por %p127, %p128
    %p131 = scmp.ne.s32.totalorder %s116, %s130
    %p132 = scmp.eq.s32.totalorder %s17, 0
    %p133 = por %p131, %p132
    %s134 = ssub.s32 %s11, %s18
    %p135 = scmp.eq.s32.totalorder %s134, 0
    %s137 = sadd.s32 %s136, 1
    %s138 = scalar_select %p135, %s136, %s137
    %p141 = pneg %p135
    %p142 = scmp.eq.s32.totalorder %s11, 1
    %p143 = por %p141, %p142
    %p144 = scmp.ne.s32.totalorder %s136, %s139
    %p145 = scmp.eq.s32.totalorder %s11, 0
    %p146 = por %p144, %p145
    %p147 = scmp.ne.s32.totalorder %s136, %s139
    %p148 = scmp.eq.s32.totalorder %s16, 1
    %p149 = por %p147, %p148
    %p150 = scmp.ne.s32.totalorder %s139, %s140
    %p151 = scmp.eq.s32.totalorder %s16, 0
    %p152 = por %p150, %p151
    %p153 = scmp.ne.s32.totalorder %s139, %s140
    %p154 = scmp.eq.s32.totalorder %s17, 1
    %p155 = por %p153, %p154
    %p157 = scmp.ne.s32.totalorder %s140, %s156
    %p158 = scmp.eq.s32.totalorder %s17, 0
    %p159 = por %p157, %p158
    %p160 = scmp.le.s32.totalorder 1, %s11
    %p161 = scmp.lt.s32.totalorder %s11, 3
    %p162 = pnand %p160, %p161
    %p163 = pneg %p162
    // Predicated region
    $region9: #{eudncnn_forward.11} parent=5 // pred_check
      _
    $region10: #{eudncnn_forward.11} parent=5 // pred_check_branch
      %165 = sbr.rel (%p162) target = $region12
    $region11: #{eudncnn_forward.11} parent=5 // pred_region
      %s166 = ssub.s32 %s11, 1
      // Predicated region
      $region13: #{eudncnn_forward.11} parent=11 // pred_check
        %p167 = pneg %p84
      $region14: #{eudncnn_forward.11} parent=11 // pred_check_branch
        %169 = sbr.rel (%p167) target = $region16
      $region15: #{eudncnn_forward.11} parent=11 // pred_region
        _
      $region16: #{eudncnn_forward.11} parent=11 // pred_fallthru
        _
      // Predicated region
      $region17: #{eudncnn_forward.11} parent=11 // pred_check
        %p170 = pneg %p105
      $region18: #{eudncnn_forward.11} parent=11 // pred_check_branch
        %172 = sbr.rel (%p170) target = $region20
      $region19: #{eudncnn_forward.11} parent=11 // pred_region
        _
      $region20: #{eudncnn_forward.11} parent=11 // pred_fallthru
        _
      // Predicated region
      $region21: #{eudncnn_forward.11} parent=11 // pred_check
        %p173 = pneg %p126
      $region22: #{eudncnn_forward.11} parent=11 // pred_check_branch
        %175 = sbr.rel (%p173) target = $region24
      $region23: #{eudncnn_forward.11} parent=11 // pred_region
        _
      $region24: #{eudncnn_forward.11} parent=11 // pred_fallthru
        _
    $region12: #{eudncnn_forward.11} parent=5 // pred_fallthru
      _
    %p176 = scmp.lt.s32.totalorder %s11, 2
    // Predicated region
    $region25: #{eudncnn_forward.11} parent=5 // pred_check
      %p177 = pneg %p176
    $region26: #{eudncnn_forward.11} parent=5 // pred_check_branch
      %179 = sbr.rel (%p177) target = $region28
    $region27: #{eudncnn_forward.11} parent=5 // pred_region
      // Predicated region
      $region29: #{eudncnn_forward.11} parent=27 // pred_check
        %p180 = pneg %p31
      $region30: #{eudncnn_forward.11} parent=27 // pred_check_branch
        %182 = sbr.rel (%p180) target = $region32
      $region31: #{eudncnn_forward.11} parent=27 // pred_region
        %p183 = scmp.lt.s32.totalorder %s11, 1
        %s184 = scalar_select %p183, %s11, 1
        %s185 = smul.addr %s184, 4
        %s186 = smul.addr %s185, 4
        %s187 = scalar_lea.vmem %s0, %s186
      $region32: #{eudncnn_forward.11} parent=27 // pred_fallthru
        _
      // Predicated region
      $region33: #{eudncnn_forward.11} parent=27 // pred_check
        %p188 = pneg %p57
      $region34: #{eudncnn_forward.11} parent=27 // pred_check_branch
        %190 = sbr.rel (%p188) target = $region36
      $region35: #{eudncnn_forward.11} parent=27 // pred_region
        %p191 = scmp.lt.s32.totalorder %s11, 1
        %s192 = scalar_select %p191, %s11, 1
        %s193 = smul.addr %s192, 4
        %s194 = smul.addr %s193, 4
        %s195 = scalar_lea.vmem %s1, %s194
      $region36: #{eudncnn_forward.11} parent=27 // pred_fallthru
        _
    $region28: #{eudncnn_forward.11} parent=5 // pred_fallthru
      _
    %p196 = scmp.le.s32.totalorder 1, %s11
    %p197 = scmp.lt.s32.totalorder %s11, 3
    %p198 = pnand %p196, %p197
    %p199 = pneg %p198
    // Predicated region
    $region37: #{eudncnn_forward.11} parent=5 // pred_check
      _
    $region38: #{eudncnn_forward.11} parent=5 // pred_check_branch
      %201 = sbr.rel (%p198) target = $region40
    $region39: #{eudncnn_forward.11} parent=5 // pred_region
      %s202 = ssub.s32 %s11, 1
      %p203 = scmp.lt.s32.totalorder %s16, 1
      %s204 = scalar_select %p203, %s16, 1
      %s205 = smul.addr %s204, 4
      %s206 = smul.addr %s205, 4
      %s207 = scalar_lea.vmem %s0, %s206
      %p208 = pneg %p37
      %p209 = pneg %p34
      %p210 = scmp.lt.s32.totalorder %s16, 1
      %s211 = scalar_select %p210, %s16, 1
      %s212 = smul.addr %s211, 4
      %s213 = smul.addr %s212, 4
      %s214 = scalar_lea.vmem %s1, %s213
      %p215 = pneg %p63
      %p216 = pneg %p60
      %p217 = pneg %p84
      %p218 = pneg %p81
      %p219 = pneg %p105
      %p220 = pneg %p102
      %p221 = pneg %p126
      %p222 = pneg %p123
      %p223 = pneg %p152
      %p224 = pneg %p149
      %p225 = scmp.lt.s32.totalorder %s16, 1
      %s226 = scalar_select %p225, %s16, 1
      %s227 = smul.addr %s226, 4
      %s228 = scalar_lea.vmem %s5, %s227
      %p229 = scmp.lt.s32.totalorder %s16, 1
      %s230 = scalar_select %p229, %s16, 1
      %s231 = smul.addr %s230, 4
      %s232 = smul.addr %s231, 4
      %s233 = scalar_lea.vmem %s0, %s232
      %p234 = scmp.lt.s32.totalorder %s16, 1
      %s235 = scalar_select %p234, %s16, 1
      %s236 = smul.addr %s235, 4
      %s237 = smul.addr %s236, 4
      %s238 = scalar_lea.vmem %s1, %s237
      %p239 = scmp.lt.s32.totalorder %s16, 1
      %s240 = scalar_select %p239, %s16, 1
      %s241 = smul.addr %s240, 4
      %s242 = scalar_lea.vmem %s5, %s241
      %v244 = vld [vmem:[%s2] sm:$0xf]
      %v245 = vld [vmem:[%s233] sm:$0xf]
      %v246 = vld [vmem:[%s233 + $0x8] sm:$0xf]
      %v247 = vld [vmem:[%s3] sm:$0xf]
      %v248 = vld [vmem:[%s238] sm:$0xf]
      %v249 = vld [vmem:[%s238 + $0x8] sm:$0xf]
      %v252 = vunpack.c.l.b16 %v248
      %v253 = vunpack.c.l.b16 %v249
      %v254 = vpack.c.b16 %v253, %v252
      %vm256 = vcmask 130048
      %v258 = vsel %vm256, %v247, 0
      %260 = vmatprep.subr.bf16.mxu0 0
      %261 = vmatpush1.bf16.msra.mxu0 0
      %262 = vmatprep.subr.bf16.mxu0 0
      %263 = vmatpush1.bf16.msra.mxu0 0
      %264 = vmatprep.subr.bf16.mxu0 0
      %265 = vmatpush1.bf16.msra.mxu0 0
      %266 = vmatprep.subr.bf16.mxu0 0
      %267 = vmatpush1.bf16.msra.mxu0 0
      %268 = vmatprep.subr.bf16.mxu0 0
      %269 = vmatpush1.bf16.msra.mxu0 0
      %270 = vmatprep.subr.bf16.mxu0 0
      %271 = vmatpush1.bf16.msra.mxu0 0
      %272 = vmatprep.subr.bf16.mxu0 0
      %273 = vmatpush1.bf16.msra.mxu0 0
      %274 = vmatprep.subr.bf16.mxu0 0
      %275 = vmatpush1.bf16.msra.mxu0 %v254
      %276 = vmatprep.subr.bf16.mxu0 0
      %277 = vmatpush2.bf16.msra.mxu0 0
      %278 = vmatprep.subr.bf16.mxu0 0
      %279 = vmatpush2.bf16.msra.mxu0 0
      %280 = vmatprep.subr.bf16.mxu0 0
      %281 = vmatpush2.bf16.msra.mxu0 0
      %282 = vmatprep.subr.bf16.mxu0 0
      %283 = vmatpush2.bf16.msra.mxu0 0
      %284 = vmatprep.subr.bf16.mxu0 0
      %285 = vmatpush2.bf16.msra.mxu0 0
      %286 = vmatprep.subr.bf16.mxu0 0
      %287 = vmatpush2.bf16.msra.mxu0 0
      %288 = vmatprep.subr.bf16.mxu0 0
      %289 = vmatpush2.bf16.msra.mxu0 0
      %290 = vmatprep.subr.bf16.mxu0 0
      %291 = vmatpush2.bf16.msra.mxu0 0
      %292 = vmatprep.mubr.bf16.mxu0 0
      %293 = vmatmul.mubr.bf16.gmra.mxu0 %v258
      %v294 = vpop.f32.mrf.mxu0
      %v295 = vadd.f32 0.0, %v294
      %v296 = vpop.f32.mrf.mxu0
      %v297 = vpop.f32.mrf.mxu0
      %v298 = vpop.f32.mrf.mxu0
      %299 = vdwg.mxu0
      %v302 = vunpack.c.l.b16 %v245
      %v303 = vunpack.c.l.b16 %v246
      %v304 = vpack.c.b16 %v303, %v302
      %v307 = vsel %vm256, %v244, 0
      %309 = vmatprep.subr.bf16.mxu0 0
      %310 = vmatpush1.bf16.msra.mxu0 0
      %311 = vmatprep.subr.bf16.mxu0 0
      %312 = vmatpush1.bf16.msra.mxu0 0
      %313 = vmatprep.subr.bf16.mxu0 0
      %314 = vmatpush1.bf16.msra.mxu0 0
      %315 = vmatprep.subr.bf16.mxu0 0
      %316 = vmatpush1.bf16.msra.mxu0 0
      %317 = vmatprep.subr.bf16.mxu0 0
      %318 = vmatpush1.bf16.msra.mxu0 0
      %319 = vmatprep.subr.bf16.mxu0 0
      %320 = vmatpush1.bf16.msra.mxu0 0
      %321 = vmatprep.subr.bf16.mxu0 0
      %322 = vmatpush1.bf16.msra.mxu0 0
      %323 = vmatprep.subr.bf16.mxu0 0
      %324 = vmatpush1.bf16.msra.mxu0 %v304
      %325 = vmatprep.subr.bf16.mxu0 0
      %326 = vmatpush2.bf16.msra.mxu0 0
      %327 = vmatprep.subr.bf16.mxu0 0
      %328 = vmatpush2.bf16.msra.mxu0 0
      %329 = vmatprep.subr.bf16.mxu0 0
      %330 = vmatpush2.bf16.msra.mxu0 0
      %331 = vmatprep.subr.bf16.mxu0 0
      %332 = vmatpush2.bf16.msra.mxu0 0
      %333 = vmatprep.subr.bf16.mxu0 0
      %334 = vmatpush2.bf16.msra.mxu0 0
      %335 = vmatprep.subr.bf16.mxu0 0
      %336 = vmatpush2.bf16.msra.mxu0 0
      %337 = vmatprep.subr.bf16.mxu0 0
      %338 = vmatpush2.bf16.msra.mxu0 0
      %339 = vmatprep.subr.bf16.mxu0 0
      %340 = vmatpush2.bf16.msra.mxu0 0
      %341 = vmatprep.mubr.bf16.mxu0 0
      %342 = vmatmul.mubr.bf16.gmra.mxu0 %v307
      %v343 = vpop.f32.mrf.mxu0
      %v344 = vadd.f32 %v295, %v343
      %v345 = vpop.f32.mrf.mxu0
      %v346 = vpop.f32.mrf.mxu0
      %v347 = vpop.f32.mrf.mxu0
      %348 = vdwg.mxu0
      %s349 = scalar_lea.vmem %s2, 4
      %v350 = vld [vmem:[%s349] sm:$0xf]
      %v351 = vld [vmem:[%s233] sm:$0xff]
      %v352 = vld [vmem:[%s233 + $0x8] sm:$0xff]
      %s353 = scalar_lea.vmem %s3, 4
      %v354 = vld [vmem:[%s353] sm:$0xf]
      %v355 = vld [vmem:[%s238] sm:$0xff]
      %v356 = vld [vmem:[%s238 + $0x8] sm:$0xff]
      %v359 = vunpack.c.l.b16 %v355
      %v360 = vunpack.c.h.b16 %v355
      %v361 = vunpack.c.l.b16 %v356
      %v362 = vunpack.c.h.b16 %v356
      %v363 = vpack.c.b16 %v361, %v359
      %v364 = vpack.c.b16 %v362, %v360
      %365 = vrot.lane.b32.xlu0 %v363, 127
      %v366 = vpop.permute.xlu0 %365
      %367 = vrot.lane.b32.xlu0 %v364, 127
      %v368 = vpop.permute.xlu0 %367
      %vm369 = vcmask 1039360
      %v370 = vsel %vm369, %v366, %v368
      %v373 = vsel %vm256, %v354, 0
      %375 = vmatprep.subr.bf16.mxu0 0
      %376 = vmatpush1.bf16.msra.mxu0 0
      %377 = vmatprep.subr.bf16.mxu0 0
      %378 = vmatpush1.bf16.msra.mxu0 0
      %379 = vmatprep.subr.bf16.mxu0 0
      %380 = vmatpush1.bf16.msra.mxu0 0
      %381 = vmatprep.subr.bf16.mxu0 0
      %382 = vmatpush1.bf16.msra.mxu0 0
      %383 = vmatprep.subr.bf16.mxu0 0
      %384 = vmatpush1.bf16.msra.mxu0 0
      %385 = vmatprep.subr.bf16.mxu0 0
      %386 = vmatpush1.bf16.msra.mxu0 0
      %387 = vmatprep.subr.bf16.mxu0 0
      %388 = vmatpush1.bf16.msra.mxu0 0
      %389 = vmatprep.subr.bf16.mxu0 0
      %390 = vmatpush1.bf16.msra.mxu0 %v370
      %391 = vmatprep.subr.bf16.mxu0 0
      %392 = vmatpush2.bf16.msra.mxu0 0
      %393 = vmatprep.subr.bf16.mxu0 0
      %394 = vmatpush2.bf16.msra.mxu0 0
      %395 = vmatprep.subr.bf16.mxu0 0
      %396 = vmatpush2.bf16.msra.mxu0 0
      %397 = vmatprep.subr.bf16.mxu0 0
      %398 = vmatpush2.bf16.msra.mxu0 0
      %399 = vmatprep.subr.bf16.mxu0 0
      %400 = vmatpush2.bf16.msra.mxu0 0
      %401 = vmatprep.subr.bf16.mxu0 0
      %402 = vmatpush2.bf16.msra.mxu0 0
      %403 = vmatprep.subr.bf16.mxu0 0
      %404 = vmatpush2.bf16.msra.mxu0 0
      %405 = vmatprep.subr.bf16.mxu0 0
      %406 = vmatpush2.bf16.msra.mxu0 0
      %407 = vmatprep.mubr.bf16.mxu0 0
      %408 = vmatmul.mubr.bf16.gmra.mxu0 %v373
      %v409 = vpop.f32.mrf.mxu0
      %v410 = vadd.f32 0.0, %v409
      %v411 = vpop.f32.mrf.mxu0
      %v412 = vpop.f32.mrf.mxu0
      %v413 = vpop.f32.mrf.mxu0
      %414 = vdwg.mxu0
      %v417 = vunpack.c.l.b16 %v351
      %v418 = vunpack.c.h.b16 %v351
      %v419 = vunpack.c.l.b16 %v352
      %v420 = vunpack.c.h.b16 %v352
      %v421 = vpack.c.b16 %v419, %v417
      %v422 = vpack.c.b16 %v420, %v418
      %423 = vrot.lane.b32.xlu0 %v421, 127
      %v424 = vpop.permute.xlu0 %423
      %425 = vrot.lane.b32.xlu0 %v422, 127
      %v426 = vpop.permute.xlu0 %425
      %v427 = vsel %vm369, %v424, %v426
      %v430 = vsel %vm256, %v350, 0
      %432 = vmatprep.subr.bf16.mxu0 0
      %433 = vmatpush1.bf16.msra.mxu0 0
      %434 = vmatprep.subr.bf16.mxu0 0
      %435 = vmatpush1.bf16.msra.mxu0 0
      %436 = vmatprep.subr.bf16.mxu0 0
      %437 = vmatpush1.bf16.msra.mxu0 0
      %438 = vmatprep.subr.bf16.mxu0 0
      %439 = vmatpush1.bf16.msra.mxu0 0
      %440 = vmatprep.subr.bf16.mxu0 0
      %441 = vmatpush1.bf16.msra.mxu0 0
      %442 = vmatprep.subr.bf16.mxu0 0
      %443 = vmatpush1.bf16.msra.mxu0 0
      %444 = vmatprep.subr.bf16.mxu0 0
      %445 = vmatpush1.bf16.msra.mxu0 0
      %446 = vmatprep.subr.bf16.mxu0 0
      %447 = vmatpush1.bf16.msra.mxu0 %v427
      %448 = vmatprep.subr.bf16.mxu0 0
      %449 = vmatpush2.bf16.msra.mxu0 0
      %450 = vmatprep.subr.bf16.mxu0 0
      %451 = vmatpush2.bf16.msra.mxu0 0
      %452 = vmatprep.subr.bf16.mxu0 0
      %453 = vmatpush2.bf16.msra.mxu0 0
      %454 = vmatprep.subr.bf16.mxu0 0
      %455 = vmatpush2.bf16.msra.mxu0 0
      %456 = vmatprep.subr.bf16.mxu0 0
      %457 = vmatpush2.bf16.msra.mxu0 0
      %458 = vmatprep.subr.bf16.mxu0 0
      %459 = vmatpush2.bf16.msra.mxu0 0
      %460 = vmatprep.subr.bf16.mxu0 0
      %461 = vmatpush2.bf16.msra.mxu0 0
      %462 = vmatprep.subr.bf16.mxu0 0
      %463 = vmatpush2.bf16.msra.mxu0 0
      %464 = vmatprep.mubr.bf16.mxu0 0
      %465 = vmatmul.mubr.bf16.gmra.mxu0 %v430
      %v466 = vpop.f32.mrf.mxu0
      %v467 = vadd.f32 %v410, %v466
      %v468 = vpop.f32.mrf.mxu0
      %v469 = vpop.f32.mrf.mxu0
      %v470 = vpop.f32.mrf.mxu0
      %471 = vdwg.mxu0
      %v472 = vadd.f32 %v344, %v467
      %s473 = scalar_lea.vmem %s2, 8
      %v474 = vld [vmem:[%s473] sm:$0xf]
      %s475 = scalar_lea.vmem %s3, 8
      %v476 = vld [vmem:[%s475] sm:$0xf]
      %477 = vrot.lane.b32.xlu0 %v363, 126
      %v478 = vpop.permute.xlu0 %477
      %479 = vrot.lane.b32.xlu0 %v364, 126
      %v480 = vpop.permute.xlu0 %479
      %vm481 = vcmask 1031168
      %v482 = vsel %vm481, %v478, %v480
      %v485 = vsel %vm256, %v476, 0
      %487 = vmatprep.subr.bf16.mxu0 0
      %488 = vmatpush1.bf16.msra.mxu0 0
      %489 = vmatprep.subr.bf16.mxu0 0
      %490 = vmatpush1.bf16.msra.mxu0 0
      %491 = vmatprep.subr.bf16.mxu0 0
      %492 = vmatpush1.bf16.msra.mxu0 0
      %493 = vmatprep.subr.bf16.mxu0 0
      %494 = vmatpush1.bf16.msra.mxu0 0
      %495 = vmatprep.subr.bf16.mxu0 0
      %496 = vmatpush1.bf16.msra.mxu0 0
      %497 = vmatprep.subr.bf16.mxu0 0
      %498 = vmatpush1.bf16.msra.mxu0 0
      %499 = vmatprep.subr.bf16.mxu0 0
      %500 = vmatpush1.bf16.msra.mxu0 0
      %501 = vmatprep.subr.bf16.mxu0 0
      %502 = vmatpush1.bf16.msra.mxu0 %v482
      %503 = vmatprep.subr.bf16.mxu0 0
      %504 = vmatpush2.bf16.msra.mxu0 0
      %505 = vmatprep.subr.bf16.mxu0 0
      %506 = vmatpush2.bf16.msra.mxu0 0
      %507 = vmatprep.subr.bf16.mxu0 0
      %508 = vmatpush2.bf16.msra.mxu0 0
      %509 = vmatprep.subr.bf16.mxu0 0
      %510 = vmatpush2.bf16.msra.mxu0 0
      %511 = vmatprep.subr.bf16.mxu0 0
      %512 = vmatpush2.bf16.msra.mxu0 0
      %513 = vmatprep.subr.bf16.mxu0 0
      %514 = vmatpush2.bf16.msra.mxu0 0
      %515 = vmatprep.subr.bf16.mxu0 0
      %516 = vmatpush2.bf16.msra.mxu0 0
      %517 = vmatprep.subr.bf16.mxu0 0
      %518 = vmatpush2.bf16.msra.mxu0 0
      %519 = vmatprep.mubr.bf16.mxu0 0
      %520 = vmatmul.mubr.bf16.gmra.mxu0 %v485
      %v521 = vpop.f32.mrf.mxu0
      %v522 = vadd.f32 0.0, %v521
      %v523 = vpop.f32.mrf.mxu0
      %v524 = vpop.f32.mrf.mxu0
      %v525 = vpop.f32.mrf.mxu0
      %526 = vdwg.mxu0
      %527 = vrot.lane.b32.xlu0 %v421, 126
      %v528 = vpop.permute.xlu0 %527
      %529 = vrot.lane.b32.xlu0 %v422, 126
      %v530 = vpop.permute.xlu0 %529
      %v531 = vsel %vm481, %v528, %v530
      %v534 = vsel %vm256, %v474, 0
      %536 = vmatprep.subr.bf16.mxu0 0
      %537 = vmatpush1.bf16.msra.mxu0 0
      %538 = vmatprep.subr.bf16.mxu0 0
      %539 = vmatpush1.bf16.msra.mxu0 0
      %540 = vmatprep.subr.bf16.mxu0 0
      %541 = vmatpush1.bf16.msra.mxu0 0
      %542 = vmatprep.subr.bf16.mxu0 0
      %543 = vmatpush1.bf16.msra.mxu0 0
      %544 = vmatprep.subr.bf16.mxu0 0
      %545 = vmatpush1.bf16.msra.mxu0 0
      %546 = vmatprep.subr.bf16.mxu0 0
      %547 = vmatpush1.bf16.msra.mxu0 0
      %548 = vmatprep.subr.bf16.mxu0 0
      %549 = vmatpush1.bf16.msra.mxu0 0
      %550 = vmatprep.subr.bf16.mxu0 0
      %551 = vmatpush1.bf16.msra.mxu0 %v531
      %552 = vmatprep.subr.bf16.mxu0 0
      %553 = vmatpush2.bf16.msra.mxu0 0
      %554 = vmatprep.subr.bf16.mxu0 0
      %555 = vmatpush2.bf16.msra.mxu0 0
      %556 = vmatprep.subr.bf16.mxu0 0
      %557 = vmatpush2.bf16.msra.mxu0 0
      %558 = vmatprep.subr.bf16.mxu0 0
      %559 = vmatpush2.bf16.msra.mxu0 0
      %560 = vmatprep.subr.bf16.mxu0 0
      %561 = vmatpush2.bf16.msra.mxu0 0
      %562 = vmatprep.subr.bf16.mxu0 0
      %563 = vmatpush2.bf16.msra.mxu0 0
      %564 = vmatprep.subr.bf16.mxu0 0
      %565 = vmatpush2.bf16.msra.mxu0 0
      %566 = vmatprep.subr.bf16.mxu0 0
      %567 = vmatpush2.bf16.msra.mxu0 0
      %568 = vmatprep.mubr.bf16.mxu0 0
      %569 = vmatmul.mubr.bf16.gmra.mxu0 %v534
      %v570 = vpop.f32.mrf.mxu0
      %v571 = vadd.f32 %v522, %v570
      %v572 = vpop.f32.mrf.mxu0
      %v573 = vpop.f32.mrf.mxu0
      %v574 = vpop.f32.mrf.mxu0
      %575 = vdwg.mxu0
      %v576 = vadd.f32 %v472, %v571
      %s577 = scalar_lea.vmem %s2, 12
      %v578 = vld [vmem:[%s577] sm:$0xf]
      %s579 = scalar_lea.vmem %s3, 12
      %v580 = vld [vmem:[%s579] sm:$0xf]
      %581 = vrot.lane.b32.xlu0 %v363, 118
      %v582 = vpop.permute.xlu0 %581
      %583 = vrot.lane.b32.xlu0 %v364, 118
      %v584 = vpop.permute.xlu0 %583
      %vm585 = vcmask 965632
      %v586 = vsel %vm585, %v582, %v584
      %v589 = vsel %vm256, %v580, 0
      %591 = vmatprep.subr.bf16.mxu0 0
      %592 = vmatpush1.bf16.msra.mxu0 0
      %593 = vmatprep.subr.bf16.mxu0 0
      %594 = vmatpush1.bf16.msra.mxu0 0
      %595 = vmatprep.subr.bf16.mxu0 0
      %596 = vmatpush1.bf16.msra.mxu0 0
      %597 = vmatprep.subr.bf16.mxu0 0
      %598 = vmatpush1.bf16.msra.mxu0 0
      %599 = vmatprep.subr.bf16.mxu0 0
      %600 = vmatpush1.bf16.msra.mxu0 0
      %601 = vmatprep.subr.bf16.mxu0 0
      %602 = vmatpush1.bf16.msra.mxu0 0
      %603 = vmatprep.subr.bf16.mxu0 0
      %604 = vmatpush1.bf16.msra.mxu0 0
      %605 = vmatprep.subr.bf16.mxu0 0
      %606 = vmatpush1.bf16.msra.mxu0 %v586
      %607 = vmatprep.subr.bf16.mxu0 0
      %608 = vmatpush2.bf16.msra.mxu0 0
      %609 = vmatprep.subr.bf16.mxu0 0
      %610 = vmatpush2.bf16.msra.mxu0 0
      %611 = vmatprep.subr.bf16.mxu0 0
      %612 = vmatpush2.bf16.msra.mxu0 0
      %613 = vmatprep.subr.bf16.mxu0 0
      %614 = vmatpush2.bf16.msra.mxu0 0
      %615 = vmatprep.subr.bf16.mxu0 0
      %616 = vmatpush2.bf16.msra.mxu0 0
      %617 = vmatprep.subr.bf16.mxu0 0
      %618 = vmatpush2.bf16.msra.mxu0 0
      %619 = vmatprep.subr.bf16.mxu0 0
      %620 = vmatpush2.bf16.msra.mxu0 0
      %621 = vmatprep.subr.bf16.mxu0 0
      %622 = vmatpush2.bf16.msra.mxu0 0
      %623 = vmatprep.mubr.bf16.mxu0 0
      %624 = vmatmul.mubr.bf16.gmra.mxu0 %v589
      %v625 = vpop.f32.mrf.mxu0
      %v626 = vadd.f32 0.0, %v625
      %v627 = vpop.f32.mrf.mxu0
      %v628 = vpop.f32.mrf.mxu0
      %v629 = vpop.f32.mrf.mxu0
      %630 = vdwg.mxu0
      %631 = vrot.lane.b32.xlu0 %v421, 118
      %v632 = vpop.permute.xlu0 %631
      %633 = vrot.lane.b32.xlu0 %v422, 118
      %v634 = vpop.permute.xlu0 %633
      %v635 = vsel %vm585, %v632, %v634
      %v638 = vsel %vm256, %v578, 0
      %640 = vmatprep.subr.bf16.mxu0 0
      %641 = vmatpush1.bf16.msra.mxu0 0
      %642 = vmatprep.subr.bf16.mxu0 0
      %643 = vmatpush1.bf16.msra.mxu0 0
      %644 = vmatprep.subr.bf16.mxu0 0
      %645 = vmatpush1.bf16.msra.mxu0 0
      %646 = vmatprep.subr.bf16.mxu0 0
      %647 = vmatpush1.bf16.msra.mxu0 0
      %648 = vmatprep.subr.bf16.mxu0 0
      %649 = vmatpush1.bf16.msra.mxu0 0
      %650 = vmatprep.subr.bf16.mxu0 0
      %651 = vmatpush1.bf16.msra.mxu0 0
      %652 = vmatprep.subr.bf16.mxu0 0
      %653 = vmatpush1.bf16.msra.mxu0 0
      %654 = vmatprep.subr.bf16.mxu0 0
      %655 = vmatpush1.bf16.msra.mxu0 %v635
      %656 = vmatprep.subr.bf16.mxu0 0
      %657 = vmatpush2.bf16.msra.mxu0 0
      %658 = vmatprep.subr.bf16.mxu0 0
      %659 = vmatpush2.bf16.msra.mxu0 0
      %660 = vmatprep.subr.bf16.mxu0 0
      %661 = vmatpush2.bf16.msra.mxu0 0
      %662 = vmatprep.subr.bf16.mxu0 0
      %663 = vmatpush2.bf16.msra.mxu0 0
      %664 = vmatprep.subr.bf16.mxu0 0
      %665 = vmatpush2.bf16.msra.mxu0 0
      %666 = vmatprep.subr.bf16.mxu0 0
      %667 = vmatpush2.bf16.msra.mxu0 0
      %668 = vmatprep.subr.bf16.mxu0 0
      %669 = vmatpush2.bf16.msra.mxu0 0
      %670 = vmatprep.subr.bf16.mxu0 0
      %671 = vmatpush2.bf16.msra.mxu0 0
      %672 = vmatprep.mubr.bf16.mxu0 0
      %673 = vmatmul.mubr.bf16.gmra.mxu0 %v638
      %v674 = vpop.f32.mrf.mxu0
      %v675 = vadd.f32 %v626, %v674
      %v676 = vpop.f32.mrf.mxu0
      %v677 = vpop.f32.mrf.mxu0
      %v678 = vpop.f32.mrf.mxu0
      %679 = vdwg.mxu0
      %v680 = vadd.f32 %v576, %v675
      %s681 = scalar_lea.vmem %s2, 16
      %v682 = vld [vmem:[%s681] sm:$0xf]
      %s683 = scalar_lea.vmem %s3, 16
      %v684 = vld [vmem:[%s683] sm:$0xf]
      %685 = vrot.lane.b32.xlu0 %v363, 117
      %v686 = vpop.permute.xlu0 %685
      %687 = vrot.lane.b32.xlu0 %v364, 117
      %v688 = vpop.permute.xlu0 %687
      %vm689 = vcmask 957440
      %v690 = vsel %vm689, %v686, %v688
      %v693 = vsel %vm256, %v684, 0
      %695 = vmatprep.subr.bf16.mxu0 0
      %696 = vmatpush1.bf16.msra.mxu0 0
      %697 = vmatprep.subr.bf16.mxu0 0
      %698 = vmatpush1.bf16.msra.mxu0 0
      %699 = vmatprep.subr.bf16.mxu0 0
      %700 = vmatpush1.bf16.msra.mxu0 0
      %701 = vmatprep.subr.bf16.mxu0 0
      %702 = vmatpush1.bf16.msra.mxu0 0
      %703 = vmatprep.subr.bf16.mxu0 0
      %704 = vmatpush1.bf16.msra.mxu0 0
      %705 = vmatprep.subr.bf16.mxu0 0
      %706 = vmatpush1.bf16.msra.mxu0 0
      %707 = vmatprep.subr.bf16.mxu0 0
      %708 = vmatpush1.bf16.msra.mxu0 0
      %709 = vmatprep.subr.bf16.mxu0 0
      %710 = vmatpush1.bf16.msra.mxu0 %v690
      %711 = vmatprep.subr.bf16.mxu0 0
      %712 = vmatpush2.bf16.msra.mxu0 0
      %713 = vmatprep.subr.bf16.mxu0 0
      %714 = vmatpush2.bf16.msra.mxu0 0
      %715 = vmatprep.subr.bf16.mxu0 0
      %716 = vmatpush2.bf16.msra.mxu0 0
      %717 = vmatprep.subr.bf16.mxu0 0
      %718 = vmatpush2.bf16.msra.mxu0 0
      %719 = vmatprep.subr.bf16.mxu0 0
      %720 = vmatpush2.bf16.msra.mxu0 0
      %721 = vmatprep.subr.bf16.mxu0 0
      %722 = vmatpush2.bf16.msra.mxu0 0
      %723 = vmatprep.subr.bf16.mxu0 0
      %724 = vmatpush2.bf16.msra.mxu0 0
      %725 = vmatprep.subr.bf16.mxu0 0
      %726 = vmatpush2.bf16.msra.mxu0 0
      %727 = vmatprep.mubr.bf16.mxu0 0
      %728 = vmatmul.mubr.bf16.gmra.mxu0 %v693
      %v729 = vpop.f32.mrf.mxu0
      %v730 = vadd.f32 0.0, %v729
      %v731 = vpop.f32.mrf.mxu0
      %v732 = vpop.f32.mrf.mxu0
      %v733 = vpop.f32.mrf.mxu0
      %734 = vdwg.mxu0
      %735 = vrot.lane.b32.xlu0 %v421, 117
      %v736 = vpop.permute.xlu0 %735
      %737 = vrot.lane.b32.xlu0 %v422, 117
      %v738 = vpop.permute.xlu0 %737
      %v739 = vsel %vm689, %v736, %v738
      %v742 = vsel %vm256, %v682, 0
      %744 = vmatprep.subr.bf16.mxu0 0
      %745 = vmatpush1.bf16.msra.mxu0 0
      %746 = vmatprep.subr.bf16.mxu0 0
      %747 = vmatpush1.bf16.msra.mxu0 0
      %748 = vmatprep.subr.bf16.mxu0 0
      %749 = vmatpush1.bf16.msra.mxu0 0
      %750 = vmatprep.subr.bf16.mxu0 0
      %751 = vmatpush1.bf16.msra.mxu0 0
      %752 = vmatprep.subr.bf16.mxu0 0
      %753 = vmatpush1.bf16.msra.mxu0 0
      %754 = vmatprep.subr.bf16.mxu0 0
      %755 = vmatpush1.bf16.msra.mxu0 0
      %756 = vmatprep.subr.bf16.mxu0 0
      %757 = vmatpush1.bf16.msra.mxu0 0
      %758 = vmatprep.subr.bf16.mxu0 0
      %759 = vmatpush1.bf16.msra.mxu0 %v739
      %760 = vmatprep.subr.bf16.mxu0 0
      %761 = vmatpush2.bf16.msra.mxu0 0
      %762 = vmatprep.subr.bf16.mxu0 0
      %763 = vmatpush2.bf16.msra.mxu0 0
      %764 = vmatprep.subr.bf16.mxu0 0
      %765 = vmatpush2.bf16.msra.mxu0 0
      %766 = vmatprep.subr.bf16.mxu0 0
      %767 = vmatpush2.bf16.msra.mxu0 0
      %768 = vmatprep.subr.bf16.mxu0 0
      %769 = vmatpush2.bf16.msra.mxu0 0
      %770 = vmatprep.subr.bf16.mxu0 0
      %771 = vmatpush2.bf16.msra.mxu0 0
      %772 = vmatprep.subr.bf16.mxu0 0
      %773 = vmatpush2.bf16.msra.mxu0 0
      %774 = vmatprep.subr.bf16.mxu0 0
      %775 = vmatpush2.bf16.msra.mxu0 0
      %776 = vmatprep.mubr.bf16.mxu0 0
      %777 = vmatmul.mubr.bf16.gmra.mxu0 %v742
      %v778 = vpop.f32.mrf.mxu0
      %v779 = vadd.f32 %v730, %v778
      %v780 = vpop.f32.mrf.mxu0
      %v781 = vpop.f32.mrf.mxu0
      %v782 = vpop.f32.mrf.mxu0
      %783 = vdwg.mxu0
      %v784 = vadd.f32 %v680, %v779
      %s785 = scalar_lea.vmem %s2, 20
      %v786 = vld [vmem:[%s785] sm:$0xf]
      %s787 = scalar_lea.vmem %s3, 20
      %v788 = vld [vmem:[%s787] sm:$0xf]
      %789 = vrot.lane.b32.xlu0 %v363, 116
      %v790 = vpop.permute.xlu0 %789
      %791 = vrot.lane.b32.xlu0 %v364, 116
      %v792 = vpop.permute.xlu0 %791
      %vm793 = vcmask 949248
      %v794 = vsel %vm793, %v790, %v792
      %v797 = vsel %vm256, %v788, 0
      %799 = vmatprep.subr.bf16.mxu0 0
      %800 = vmatpush1.bf16.msra.mxu0 0
      %801 = vmatprep.subr.bf16.mxu0 0
      %802 = vmatpush1.bf16.msra.mxu0 0
      %803 = vmatprep.subr.bf16.mxu0 0
      %804 = vmatpush1.bf16.msra.mxu0 0
      %805 = vmatprep.subr.bf16.mxu0 0
      %806 = vmatpush1.bf16.msra.mxu0 0
      %807 = vmatprep.subr.bf16.mxu0 0
      %808 = vmatpush1.bf16.msra.mxu0 0
      %809 = vmatprep.subr.bf16.mxu0 0
      %810 = vmatpush1.bf16.msra.mxu0 0
      %811 = vmatprep.subr.bf16.mxu0 0
      %812 = vmatpush1.bf16.msra.mxu0 0
      %813 = vmatprep.subr.bf16.mxu0 0
      %814 = vmatpush1.bf16.msra.mxu0 %v794
      %815 = vmatprep.subr.bf16.mxu0 0
      %816 = vmatpush2.bf16.msra.mxu0 0
      %817 = vmatprep.subr.bf16.mxu0 0
      %818 = vmatpush2.bf16.msra.mxu0 0
      %819 = vmatprep.subr.bf16.mxu0 0
      %820 = vmatpush2.bf16.msra.mxu0 0
      %821 = vmatprep.subr.bf16.mxu0 0
      %822 = vmatpush2.bf16.msra.mxu0 0
      %823 = vmatprep.subr.bf16.mxu0 0
      %824 = vmatpush2.bf16.msra.mxu0 0
      %825 = vmatprep.subr.bf16.mxu0 0
      %826 = vmatpush2.bf16.msra.mxu0 0
      %827 = vmatprep.subr.bf16.mxu0 0
      %828 = vmatpush2.bf16.msra.mxu0 0
      %829 = vmatprep.subr.bf16.mxu0 0
      %830 = vmatpush2.bf16.msra.mxu0 0
      %831 = vmatprep.mubr.bf16.mxu0 0
      %832 = vmatmul.mubr.bf16.gmra.mxu0 %v797
      %v833 = vpop.f32.mrf.mxu0
      %v834 = vadd.f32 0.0, %v833
      %v835 = vpop.f32.mrf.mxu0
      %v836 = vpop.f32.mrf.mxu0
      %v837 = vpop.f32.mrf.mxu0
      %838 = vdwg.mxu0
      %839 = vrot.lane.b32.xlu0 %v421, 116
      %v840 = vpop.permute.xlu0 %839
      %841 = vrot.lane.b32.xlu0 %v422, 116
      %v842 = vpop.permute.xlu0 %841
      %v843 = vsel %vm793, %v840, %v842
      %v846 = vsel %vm256, %v786, 0
      %848 = vmatprep.subr.bf16.mxu0 0
      %849 = vmatpush1.bf16.msra.mxu0 0
      %850 = vmatprep.subr.bf16.mxu0 0
      %851 = vmatpush1.bf16.msra.mxu0 0
      %852 = vmatprep.subr.bf16.mxu0 0
      %853 = vmatpush1.bf16.msra.mxu0 0
      %854 = vmatprep.subr.bf16.mxu0 0
      %855 = vmatpush1.bf16.msra.mxu0 0
      %856 = vmatprep.subr.bf16.mxu0 0
      %857 = vmatpush1.bf16.msra.mxu0 0
      %858 = vmatprep.subr.bf16.mxu0 0
      %859 = vmatpush1.bf16.msra.mxu0 0
      %860 = vmatprep.subr.bf16.mxu0 0
      %861 = vmatpush1.bf16.msra.mxu0 0
      %862 = vmatprep.subr.bf16.mxu0 0
      %863 = vmatpush1.bf16.msra.mxu0 %v843
      %864 = vmatprep.subr.bf16.mxu0 0
      %865 = vmatpush2.bf16.msra.mxu0 0
      %866 = vmatprep.subr.bf16.mxu0 0
      %867 = vmatpush2.bf16.msra.mxu0 0
      %868 = vmatprep.subr.bf16.mxu0 0
      %869 = vmatpush2.bf16.msra.mxu0 0
      %870 = vmatprep.subr.bf16.mxu0 0
      %871 = vmatpush2.bf16.msra.mxu0 0
      %872 = vmatprep.subr.bf16.mxu0 0
      %873 = vmatpush2.bf16.msra.mxu0 0
      %874 = vmatprep.subr.bf16.mxu0 0
      %875 = vmatpush2.bf16.msra.mxu0 0
      %876 = vmatprep.subr.bf16.mxu0 0
      %877 = vmatpush2.bf16.msra.mxu0 0
      %878 = vmatprep.subr.bf16.mxu0 0
      %879 = vmatpush2.bf16.msra.mxu0 0
      %880 = vmatprep.mubr.bf16.mxu0 0
      %881 = vmatmul.mubr.bf16.gmra.mxu0 %v846
      %v882 = vpop.f32.mrf.mxu0
      %v883 = vadd.f32 %v834, %v882
      %v884 = vpop.f32.mrf.mxu0
      %v885 = vpop.f32.mrf.mxu0
      %v886 = vpop.f32.mrf.mxu0
      %887 = vdwg.mxu0
      %v888 = vadd.f32 %v784, %v883
      %s889 = scalar_lea.vmem %s2, 24
      %v890 = vld [vmem:[%s889] sm:$0xf]
      %s891 = scalar_lea.vmem %s3, 24
      %v892 = vld [vmem:[%s891] sm:$0xf]
      %893 = vrot.lane.b32.xlu0 %v363, 108
      %v894 = vpop.permute.xlu0 %893
      %895 = vrot.lane.b32.xlu0 %v364, 108
      %v896 = vpop.permute.xlu0 %895
      %vm897 = vcmask 883712
      %v898 = vsel %vm897, %v894, %v896
      %v901 = vsel %vm256, %v892, 0
      %903 = vmatprep.subr.bf16.mxu0 0
      %904 = vmatpush1.bf16.msra.mxu0 0
      %905 = vmatprep.subr.bf16.mxu0 0
      %906 = vmatpush1.bf16.msra.mxu0 0
      %907 = vmatprep.subr.bf16.mxu0 0
      %908 = vmatpush1.bf16.msra.mxu0 0
      %909 = vmatprep.subr.bf16.mxu0 0
      %910 = vmatpush1.bf16.msra.mxu0 0
      %911 = vmatprep.subr.bf16.mxu0 0
      %912 = vmatpush1.bf16.msra.mxu0 0
      %913 = vmatprep.subr.bf16.mxu0 0
      %914 = vmatpush1.bf16.msra.mxu0 0
      %915 = vmatprep.subr.bf16.mxu0 0
      %916 = vmatpush1.bf16.msra.mxu0 0
      %917 = vmatprep.subr.bf16.mxu0 0
      %918 = vmatpush1.bf16.msra.mxu0 %v898
      %919 = vmatprep.subr.bf16.mxu0 0
      %920 = vmatpush2.bf16.msra.mxu0 0
      %921 = vmatprep.subr.bf16.mxu0 0
      %922 = vmatpush2.bf16.msra.mxu0 0
      %923 = vmatprep.subr.bf16.mxu0 0
      %924 = vmatpush2.bf16.msra.mxu0 0
      %925 = vmatprep.subr.bf16.mxu0 0
      %926 = vmatpush2.bf16.msra.mxu0 0
      %927 = vmatprep.subr.bf16.mxu0 0
      %928 = vmatpush2.bf16.msra.mxu0 0
      %929 = vmatprep.subr.bf16.mxu0 0
      %930 = vmatpush2.bf16.msra.mxu0 0
      %931 = vmatprep.subr.bf16.mxu0 0
      %932 = vmatpush2.bf16.msra.mxu0 0
      %933 = vmatprep.subr.bf16.mxu0 0
      %934 = vmatpush2.bf16.msra.mxu0 0
      %935 = vmatprep.mubr.bf16.mxu0 0
      %936 = vmatmul.mubr.bf16.gmra.mxu0 %v901
      %v937 = vpop.f32.mrf.mxu0
      %v938 = vadd.f32 0.0, %v937
      %v939 = vpop.f32.mrf.mxu0
      %v940 = vpop.f32.mrf.mxu0
      %v941 = vpop.f32.mrf.mxu0
      %942 = vdwg.mxu0
      %943 = vrot.lane.b32.xlu0 %v421, 108
      %v944 = vpop.permute.xlu0 %943
      %945 = vrot.lane.b32.xlu0 %v422, 108
      %v946 = vpop.permute.xlu0 %945
      %v947 = vsel %vm897, %v944, %v946
      %v950 = vsel %vm256, %v890, 0
      %952 = vmatprep.subr.bf16.mxu0 0
      %953 = vmatpush1.bf16.msra.mxu0 0
      %954 = vmatprep.subr.bf16.mxu0 0
      %955 = vmatpush1.bf16.msra.mxu0 0
      %956 = vmatprep.subr.bf16.mxu0 0
      %957 = vmatpush1.bf16.msra.mxu0 0
      %958 = vmatprep.subr.bf16.mxu0 0
      %959 = vmatpush1.bf16.msra.mxu0 0
      %960 = vmatprep.subr.bf16.mxu0 0
      %961 = vmatpush1.bf16.msra.mxu0 0
      %962 = vmatprep.subr.bf16.mxu0 0
      %963 = vmatpush1.bf16.msra.mxu0 0
      %964 = vmatprep.subr.bf16.mxu0 0
      %965 = vmatpush1.bf16.msra.mxu0 0
      %966 = vmatprep.subr.bf16.mxu0 0
      %967 = vmatpush1.bf16.msra.mxu0 %v947
      %968 = vmatprep.subr.bf16.mxu0 0
      %969 = vmatpush2.bf16.msra.mxu0 0
      %970 = vmatprep.subr.bf16.mxu0 0
      %971 = vmatpush2.bf16.msra.mxu0 0
      %972 = vmatprep.subr.bf16.mxu0 0
      %973 = vmatpush2.bf16.msra.mxu0 0
      %974 = vmatprep.subr.bf16.mxu0 0
      %975 = vmatpush2.bf16.msra.mxu0 0
      %976 = vmatprep.subr.bf16.mxu0 0
      %977 = vmatpush2.bf16.msra.mxu0 0
      %978 = vmatprep.subr.bf16.mxu0 0
      %979 = vmatpush2.bf16.msra.mxu0 0
      %980 = vmatprep.subr.bf16.mxu0 0
      %981 = vmatpush2.bf16.msra.mxu0 0
      %982 = vmatprep.subr.bf16.mxu0 0
      %983 = vmatpush2.bf16.msra.mxu0 0
      %984 = vmatprep.mubr.bf16.mxu0 0
      %985 = vmatmul.mubr.bf16.gmra.mxu0 %v950
      %v986 = vpop.f32.mrf.mxu0
      %v987 = vadd.f32 %v938, %v986
      %v988 = vpop.f32.mrf.mxu0
      %v989 = vpop.f32.mrf.mxu0
      %v990 = vpop.f32.mrf.mxu0
      %991 = vdwg.mxu0
      %v992 = vadd.f32 %v888, %v987
      %s993 = scalar_lea.vmem %s2, 28
      %v994 = vld [vmem:[%s993] sm:$0xf]
      %s995 = scalar_lea.vmem %s3, 28
      %v996 = vld [vmem:[%s995] sm:$0xf]
      %997 = vrot.lane.b32.xlu0 %v363, 107
      %v998 = vpop.permute.xlu0 %997
      %999 = vrot.lane.b32.xlu0 %v364, 107
      %v1000 = vpop.permute.xlu0 %999
      %vm1001 = vcmask 875520
      %v1002 = vsel %vm1001, %v998, %v1000
      %v1005 = vsel %vm256, %v996, 0
      %1007 = vmatprep.subr.bf16.mxu0 0
      %1008 = vmatpush1.bf16.msra.mxu0 0
      %1009 = vmatprep.subr.bf16.mxu0 0
      %1010 = vmatpush1.bf16.msra.mxu0 0
      %1011 = vmatprep.subr.bf16.mxu0 0
      %1012 = vmatpush1.bf16.msra.mxu0 0
      %1013 = vmatprep.subr.bf16.mxu0 0
      %1014 = vmatpush1.bf16.msra.mxu0 0
      %1015 = vmatprep.subr.bf16.mxu0 0
      %1016 = vmatpush1.bf16.msra.mxu0 0
      %1017 = vmatprep.subr.bf16.mxu0 0
      %1018 = vmatpush1.bf16.msra.mxu0 0
      %1019 = vmatprep.subr.bf16.mxu0 0
      %1020 = vmatpush1.bf16.msra.mxu0 0
      %1021 = vmatprep.subr.bf16.mxu0 0
      %1022 = vmatpush1.bf16.msra.mxu0 %v1002
      %1023 = vmatprep.subr.bf16.mxu0 0
      %1024 = vmatpush2.bf16.msra.mxu0 0
      %1025 = vmatprep.subr.bf16.mxu0 0
      %1026 = vmatpush2.bf16.msra.mxu0 0
      %1027 = vmatprep.subr.bf16.mxu0 0
      %1028 = vmatpush2.bf16.msra.mxu0 0
      %1029 = vmatprep.subr.bf16.mxu0 0
      %1030 = vmatpush2.bf16.msra.mxu0 0
      %1031 = vmatprep.subr.bf16.mxu0 0
      %1032 = vmatpush2.bf16.msra.mxu0 0
      %1033 = vmatprep.subr.bf16.mxu0 0
      %1034 = vmatpush2.bf16.msra.mxu0 0
      %1035 = vmatprep.subr.bf16.mxu0 0
      %1036 = vmatpush2.bf16.msra.mxu0 0
      %1037 = vmatprep.subr.bf16.mxu0 0
      %1038 = vmatpush2.bf16.msra.mxu0 0
      %1039 = vmatprep.mubr.bf16.mxu0 0
      %1040 = vmatmul.mubr.bf16.gmra.mxu0 %v1005
      %v1041 = vpop.f32.mrf.mxu0
      %v1042 = vadd.f32 0.0, %v1041
      %v1043 = vpop.f32.mrf.mxu0
      %v1044 = vpop.f32.mrf.mxu0
      %v1045 = vpop.f32.mrf.mxu0
      %1046 = vdwg.mxu0
      %1047 = vrot.lane.b32.xlu0 %v421, 107
      %v1048 = vpop.permute.xlu0 %1047
      %1049 = vrot.lane.b32.xlu0 %v422, 107
      %v1050 = vpop.permute.xlu0 %1049
      %v1051 = vsel %vm1001, %v1048, %v1050
      %v1054 = vsel %vm256, %v994, 0
      %1056 = vmatprep.subr.bf16.mxu0 0
      %1057 = vmatpush1.bf16.msra.mxu0 0
      %1058 = vmatprep.subr.bf16.mxu0 0
      %1059 = vmatpush1.bf16.msra.mxu0 0
      %1060 = vmatprep.subr.bf16.mxu0 0
      %1061 = vmatpush1.bf16.msra.mxu0 0
      %1062 = vmatprep.subr.bf16.mxu0 0
      %1063 = vmatpush1.bf16.msra.mxu0 0
      %1064 = vmatprep.subr.bf16.mxu0 0
      %1065 = vmatpush1.bf16.msra.mxu0 0
      %1066 = vmatprep.subr.bf16.mxu0 0
      %1067 = vmatpush1.bf16.msra.mxu0 0
      %1068 = vmatprep.subr.bf16.mxu0 0
      %1069 = vmatpush1.bf16.msra.mxu0 0
      %1070 = vmatprep.subr.bf16.mxu0 0
      %1071 = vmatpush1.bf16.msra.mxu0 %v1051
      %1072 = vmatprep.subr.bf16.mxu0 0
      %1073 = vmatpush2.bf16.msra.mxu0 0
      %1074 = vmatprep.subr.bf16.mxu0 0
      %1075 = vmatpush2.bf16.msra.mxu0 0
      %1076 = vmatprep.subr.bf16.mxu0 0
      %1077 = vmatpush2.bf16.msra.mxu0 0
      %1078 = vmatprep.subr.bf16.mxu0 0
      %1079 = vmatpush2.bf16.msra.mxu0 0
      %1080 = vmatprep.subr.bf16.mxu0 0
      %1081 = vmatpush2.bf16.msra.mxu0 0
      %1082 = vmatprep.subr.bf16.mxu0 0
      %1083 = vmatpush2.bf16.msra.mxu0 0
      %1084 = vmatprep.subr.bf16.mxu0 0
      %1085 = vmatpush2.bf16.msra.mxu0 0
      %1086 = vmatprep.subr.bf16.mxu0 0
      %1087 = vmatpush2.bf16.msra.mxu0 0
      %1088 = vmatprep.mubr.bf16.mxu0 0
      %1089 = vmatmul.mubr.bf16.gmra.mxu0 %v1054
      %v1090 = vpop.f32.mrf.mxu0
      %v1091 = vadd.f32 %v1042, %v1090
      %v1092 = vpop.f32.mrf.mxu0
      %v1093 = vpop.f32.mrf.mxu0
      %v1094 = vpop.f32.mrf.mxu0
      %1095 = vdwg.mxu0
      %v1096 = vadd.f32 %v992, %v1091
      %s1097 = scalar_lea.vmem %s2, 32
      %v1098 = vld [vmem:[%s1097] sm:$0xf]
      %s1099 = scalar_lea.vmem %s3, 32
      %v1100 = vld [vmem:[%s1099] sm:$0xf]
      %1101 = vrot.lane.b32.xlu0 %v363, 106
      %v1102 = vpop.permute.xlu0 %1101
      %1103 = vrot.lane.b32.xlu0 %v364, 106
      %v1104 = vpop.permute.xlu0 %1103
      %vm1105 = vcmask 867328
      %v1106 = vsel %vm1105, %v1102, %v1104
      %v1109 = vsel %vm256, %v1100, 0
      %1111 = vmatprep.subr.bf16.mxu0 0
      %1112 = vmatpush1.bf16.msra.mxu0 0
      %1113 = vmatprep.subr.bf16.mxu0 0
      %1114 = vmatpush1.bf16.msra.mxu0 0
      %1115 = vmatprep.subr.bf16.mxu0 0
      %1116 = vmatpush1.bf16.msra.mxu0 0
      %1117 = vmatprep.subr.bf16.mxu0 0
      %1118 = vmatpush1.bf16.msra.mxu0 0
      %1119 = vmatprep.subr.bf16.mxu0 0
      %1120 = vmatpush1.bf16.msra.mxu0 0
      %1121 = vmatprep.subr.bf16.mxu0 0
      %1122 = vmatpush1.bf16.msra.mxu0 0
      %1123 = vmatprep.subr.bf16.mxu0 0
      %1124 = vmatpush1.bf16.msra.mxu0 0
      %1125 = vmatprep.subr.bf16.mxu0 0
      %1126 = vmatpush1.bf16.msra.mxu0 %v1106
      %1127 = vmatprep.subr.bf16.mxu0 0
      %1128 = vmatpush2.bf16.msra.mxu0 0
      %1129 = vmatprep.subr.bf16.mxu0 0
      %1130 = vmatpush2.bf16.msra.mxu0 0
      %1131 = vmatprep.subr.bf16.mxu0 0
      %1132 = vmatpush2.bf16.msra.mxu0 0
      %1133 = vmatprep.subr.bf16.mxu0 0
      %1134 = vmatpush2.bf16.msra.mxu0 0
      %1135 = vmatprep.subr.bf16.mxu0 0
      %1136 = vmatpush2.bf16.msra.mxu0 0
      %1137 = vmatprep.subr.bf16.mxu0 0
      %1138 = vmatpush2.bf16.msra.mxu0 0
      %1139 = vmatprep.subr.bf16.mxu0 0
      %1140 = vmatpush2.bf16.msra.mxu0 0
      %1141 = vmatprep.subr.bf16.mxu0 0
      %1142 = vmatpush2.bf16.msra.mxu0 0
      %1143 = vmatprep.mubr.bf16.mxu0 0
      %1144 = vmatmul.mubr.bf16.gmra.mxu0 %v1109
      %v1145 = vpop.f32.mrf.mxu0
      %v1146 = vadd.f32 0.0, %v1145
      %v1147 = vpop.f32.mrf.mxu0
      %v1148 = vpop.f32.mrf.mxu0
      %v1149 = vpop.f32.mrf.mxu0
      %1150 = vdwg.mxu0
      %1151 = vrot.lane.b32.xlu0 %v421, 106
      %v1152 = vpop.permute.xlu0 %1151
      %1153 = vrot.lane.b32.xlu0 %v422, 106
      %v1154 = vpop.permute.xlu0 %1153
      %v1155 = vsel %vm1105, %v1152, %v1154
      %v1158 = vsel %vm256, %v1098, 0
      %1160 = vmatprep.subr.bf16.mxu0 0
      %1161 = vmatpush1.bf16.msra.mxu0 0
      %1162 = vmatprep.subr.bf16.mxu0 0
      %1163 = vmatpush1.bf16.msra.mxu0 0
      %1164 = vmatprep.subr.bf16.mxu0 0
      %1165 = vmatpush1.bf16.msra.mxu0 0
      %1166 = vmatprep.subr.bf16.mxu0 0
      %1167 = vmatpush1.bf16.msra.mxu0 0
      %1168 = vmatprep.subr.bf16.mxu0 0
      %1169 = vmatpush1.bf16.msra.mxu0 0
      %1170 = vmatprep.subr.bf16.mxu0 0
      %1171 = vmatpush1.bf16.msra.mxu0 0
      %1172 = vmatprep.subr.bf16.mxu0 0
      %1173 = vmatpush1.bf16.msra.mxu0 0
      %1174 = vmatprep.subr.bf16.mxu0 0
      %1175 = vmatpush1.bf16.msra.mxu0 %v1155
      %1176 = vmatprep.subr.bf16.mxu0 0
      %1177 = vmatpush2.bf16.msra.mxu0 0
      %1178 = vmatprep.subr.bf16.mxu0 0
      %1179 = vmatpush2.bf16.msra.mxu0 0
      %1180 = vmatprep.subr.bf16.mxu0 0
      %1181 = vmatpush2.bf16.msra.mxu0 0
      %1182 = vmatprep.subr.bf16.mxu0 0
      %1183 = vmatpush2.bf16.msra.mxu0 0
      %1184 = vmatprep.subr.bf16.mxu0 0
      %1185 = vmatpush2.bf16.msra.mxu0 0
      %1186 = vmatprep.subr.bf16.mxu0 0
      %1187 = vmatpush2.bf16.msra.mxu0 0
      %1188 = vmatprep.subr.bf16.mxu0 0
      %1189 = vmatpush2.bf16.msra.mxu0 0
      %1190 = vmatprep.subr.bf16.mxu0 0
      %1191 = vmatpush2.bf16.msra.mxu0 0
      %1192 = vmatprep.mubr.bf16.mxu0 0
      %1193 = vmatmul.mubr.bf16.gmra.mxu0 %v1158
      %v1194 = vpop.f32.mrf.mxu0
      %v1195 = vadd.f32 %v1146, %v1194
      %v1196 = vpop.f32.mrf.mxu0
      %v1197 = vpop.f32.mrf.mxu0
      %v1198 = vpop.f32.mrf.mxu0
      %1199 = vdwg.mxu0
      %v1200 = vadd.f32 %v1096, %v1195
      %v1201 = vld [vmem:[%s4] sm:$0xff]
      %1203 = vset.pattern.permute.xlu0 0
      %1204 = vperm.xlu0 %1203, %v1201
      %v1205 = vpop.permute.xlu0 %1204
      %v1207 = vadd.f32 %v1200, %v1205
      %v1208 = vmax.f32 %v1207, 0.0
      %v1209 = vpack.c.bf16 %v1208, %v1208
      %1210 = vst [vmem:[%s242] sm:$0xf] %v1209
      %p1211 = scmp.lt.s32.totalorder %s16, 1
      %s1212 = scalar_select %p1211, %s16, 1
      %s1213 = smul.addr %s1212, 4
      %s1214 = scalar_lea.vmem %s5, %s1213
      // Predicated region
      $region41: #{eudncnn_forward.11} parent=39 // pred_check
        %p1215 = pneg %p149
      $region42: #{eudncnn_forward.11} parent=39 // pred_check_branch
        %1217 = sbr.rel (%p1215) target = $region44
      $region43: #{eudncnn_forward.11} parent=39 // pred_region
        _
      $region44: #{eudncnn_forward.11} parent=39 // pred_fallthru
        _
    $region40: #{eudncnn_forward.11} parent=5 // pred_fallthru
      _
    %p1218 = scmp.le.s32.totalorder 2, %s11
    // Predicated region
    $region45: #{eudncnn_forward.11} parent=5 // pred_check
      %p1219 = pneg %p1218
    $region46: #{eudncnn_forward.11} parent=5 // pred_check_branch
      %1221 = sbr.rel (%p1219) target = $region48
    $region47: #{eudncnn_forward.11} parent=5 // pred_region
      %s1222 = ssub.s32 %s11, 2
      // Predicated region
      $region49: #{eudncnn_forward.11} parent=47 // pred_check
        %p1223 = pneg %p155
      $region50: #{eudncnn_forward.11} parent=47 // pred_check_branch
        %1225 = sbr.rel (%p1223) target = $region52
      $region51: #{eudncnn_forward.11} parent=47 // pred_region
        %p1226 = scmp.lt.s32.totalorder %s17, 1
        %s1227 = scalar_select %p1226, %s17, 1
        %s1228 = smul.addr %s1227, 4
        %s1229 = scalar_lea.vmem %s5, %s1228
      $region52: #{eudncnn_forward.11} parent=47 // pred_fallthru
        _
    $region48: #{eudncnn_forward.11} parent=5 // pred_fallthru
      _
  $region6: #{eudncnn_forward.11} parent=0 // loop_footer
    %s15 = sadd.s32 1, %s11
  $region7: #{eudncnn_forward.11} parent=0 // loop_footer_branch
    %10 = sbr.rel target = $region3
  $region8: #{eudncnn_forward.11} parent=0 // loop_exit
    _

// kernel: eudncnn_forward.15
$region0: #{eudncnn_forward.15}
  #allocation0 [shape = 'u32[]', space=smem, size = 0x4, offset = 0x4, fixed_abs, tag = 'smem constant byte address 0x4 - core index']
  #allocation1 [shape = 'u32[144,128]{1,0:T(1,128)}', space=vmem, size = 0x12000, scoped, tag = 'internal scratch']
  %s0 = inlined_call_operand.vmem [shape: bf16[2,16,512], index: 0, kind: input, shape index: {}]
  %s1 = inlined_call_operand.vmem [shape: bf16[2,16,512], index: 1, kind: input, shape index: {}]
  %s2 = inlined_call_operand.vmem [shape: bf16[9,8,16], index: 2, kind: input, shape index: {}]
  %s3 = inlined_call_operand.vmem [shape: bf16[9,8,16], index: 3, kind: input, shape index: {}]
  %s4 = inlined_call_operand.vmem [shape: f32[8,1], index: 4, kind: input, shape index: {}]
  %s5 = inlined_call_operand.vmem [shape: f32[2,1,384], index: 5, kind: input, shape index: {}]
  %s6 = inlined_call_operand.vmem [shape: f32[2,8,384], index: 6, kind: output, shape index: {}]
  %s7 = sld [smem:[#allocation0]]
  $region57: #{eudncnn_forward.15} parent=0
    _
  %s9 = ssub.s32 1, %s7
  %s10 = scalar_select 0, %s9, %s7
  loop: start=0, step=1, limit=4
  $region2: #{eudncnn_forward.15} parent=0 // loop_pre_header
    _
  $region3: #{eudncnn_forward.15} parent=0 // loop_header
    %s12 = sphi 0, %s16
    %p13 = scmp.ge.s32.totalorder %s12, 4
    %s22 = sphi 0, %s24
    %s25 = sphi 0, %s22
    %s26 = sphi 0, %s25
    %s42 = sphi 0, %s26
    %s48 = sphi 0, %s50
    %s51 = sphi 0, %s48
    %s52 = sphi 0, %s51
    %s68 = sphi 0, %s52
    %s72 = sphi 0, %s72
    %s74 = sphi 0, %s72
    %s75 = sphi 0, %s74
    %s89 = sphi 0, %s75
    %s93 = sphi 0, %s93
    %s95 = sphi 0, %s93
    %s96 = sphi 0, %s95
    %s110 = sphi 0, %s96
    %s114 = sphi 0, %s114
    %s116 = sphi 0, %s114
    %s117 = sphi 0, %s116
    %s131 = sphi 0, %s117
    %s137 = sphi 0, %s139
    %s140 = sphi 0, %s137
    %s141 = sphi 0, %s140
    %s157 = sphi 0, %s141
    %s163 = sphi 0, %s165
    %s166 = sphi 0, %s163
    %s167 = sphi 0, %s166
    %s183 = sphi 0, %s167
  $region4: #{eudncnn_forward.15} parent=0 // loop_header_branch
    %15 = sbr.rel (%p13) target = $region8
  $region5: #{eudncnn_forward.15} parent=0 // loop_body
    %s17 = ssub.s32 %s12, 1
    %s18 = ssub.s32 %s12, 2
    %s19 = sadd.s32 %s12, 1
    %s20 = ssub.s32 %s12, %s19
    %p21 = scmp.eq.s32.totalorder %s20, 0
    %s23 = sadd.s32 %s22, 1
    %s24 = scalar_select %p21, %s22, %s23
    %p27 = pneg %p21
    %p28 = scmp.eq.s32.totalorder %s12, 1
    %p29 = por %p27, %p28
    %p30 = scmp.ne.s32.totalorder %s22, %s25
    %p31 = scmp.eq.s32.totalorder %s12, 0
    %p32 = por %p30, %p31
    %p33 = scmp.ne.s32.totalorder %s22, %s25
    %p34 = scmp.eq.s32.totalorder %s17, 1
    %p35 = por %p33, %p34
    %p36 = scmp.ne.s32.totalorder %s25, %s26
    %p37 = scmp.eq.s32.totalorder %s17, 0
    %p38 = por %p36, %p37
    %p39 = scmp.ne.s32.totalorder %s25, %s26
    %p40 = scmp.eq.s32.totalorder %s18, 1
    %p41 = por %p39, %p40
    %p43 = scmp.ne.s32.totalorder %s26, %s42
    %p44 = scmp.eq.s32.totalorder %s18, 0
    %p45 = por %p43, %p44
    %s46 = ssub.s32 %s12, %s19
    %p47 = scmp.eq.s32.totalorder %s46, 0
    %s49 = sadd.s32 %s48, 1
    %s50 = scalar_select %p47, %s48, %s49
    %p53 = pneg %p47
    %p54 = scmp.eq.s32.totalorder %s12, 1
    %p55 = por %p53, %p54
    %p56 = scmp.ne.s32.totalorder %s48, %s51
    %p57 = scmp.eq.s32.totalorder %s12, 0
    %p58 = por %p56, %p57
    %p59 = scmp.ne.s32.totalorder %s48, %s51
    %p60 = scmp.eq.s32.totalorder %s17, 1
    %p61 = por %p59, %p60
    %p62 = scmp.ne.s32.totalorder %s51, %s52
    %p63 = scmp.eq.s32.totalorder %s17, 0
    %p64 = por %p62, %p63
    %p65 = scmp.ne.s32.totalorder %s51, %s52
    %p66 = scmp.eq.s32.totalorder %s18, 1
    %p67 = por %p65, %p66
    %p69 = scmp.ne.s32.totalorder %s52, %s68
    %p70 = scmp.eq.s32.totalorder %s18, 0
    %p71 = por %p69, %p70
    %s73 = sadd.s32 %s72, 1
    %p76 = scmp.eq.s32.totalorder %s12, 1
    %p77 = scmp.ne.s32.totalorder %s72, %s74
    %p78 = scmp.eq.s32.totalorder %s12, 0
    %p79 = por %p77, %p78
    %p80 = scmp.ne.s32.totalorder %s72, %s74
    %p81 = scmp.eq.s32.totalorder %s17, 1
    %p82 = por %p80, %p81
    %p83 = scmp.ne.s32.totalorder %s74, %s75
    %p84 = scmp.eq.s32.totalorder %s17, 0
    %p85 = por %p83, %p84
    %p86 = scmp.ne.s32.totalorder %s74, %s75
    %p87 = scmp.eq.s32.totalorder %s18, 1
    %p88 = por %p86, %p87
    %p90 = scmp.ne.s32.totalorder %s75, %s89
    %p91 = scmp.eq.s32.totalorder %s18, 0
    %p92 = por %p90, %p91
    %s94 = sadd.s32 %s93, 1
    %p97 = scmp.eq.s32.totalorder %s12, 1
    %p98 = scmp.ne.s32.totalorder %s93, %s95
    %p99 = scmp.eq.s32.totalorder %s12, 0
    %p100 = por %p98, %p99
    %p101 = scmp.ne.s32.totalorder %s93, %s95
    %p102 = scmp.eq.s32.totalorder %s17, 1
    %p103 = por %p101, %p102
    %p104 = scmp.ne.s32.totalorder %s95, %s96
    %p105 = scmp.eq.s32.totalorder %s17, 0
    %p106 = por %p104, %p105
    %p107 = scmp.ne.s32.totalorder %s95, %s96
    %p108 = scmp.eq.s32.totalorder %s18, 1
    %p109 = por %p107, %p108
    %p111 = scmp.ne.s32.totalorder %s96, %s110
    %p112 = scmp.eq.s32.totalorder %s18, 0
    %p113 = por %p111, %p112
    %s115 = sadd.s32 %s114, 1
    %p118 = scmp.eq.s32.totalorder %s12, 1
    %p119 = scmp.ne.s32.totalorder %s114, %s116
    %p120 = scmp.eq.s32.totalorder %s12, 0
    %p121 = por %p119, %p120
    %p122 = scmp.ne.s32.totalorder %s114, %s116
    %p123 = scmp.eq.s32.totalorder %s17, 1
    %p124 = por %p122, %p123
    %p125 = scmp.ne.s32.totalorder %s116, %s117
    %p126 = scmp.eq.s32.totalorder %s17, 0
    %p127 = por %p125, %p126
    %p128 = scmp.ne.s32.totalorder %s116, %s117
    %p129 = scmp.eq.s32.totalorder %s18, 1
    %p130 = por %p128, %p129
    %p132 = scmp.ne.s32.totalorder %s117, %s131
    %p133 = scmp.eq.s32.totalorder %s18, 0
    %p134 = por %p132, %p133
    %s135 = ssub.s32 %s12, %s19
    %p136 = scmp.eq.s32.totalorder %s135, 0
    %s138 = sadd.s32 %s137, 1
    %s139 = scalar_select %p136, %s137, %s138
    %p142 = pneg %p136
    %p143 = scmp.eq.s32.totalorder %s12, 1
    %p144 = por %p142, %p143
    %p145 = scmp.ne.s32.totalorder %s137, %s140
    %p146 = scmp.eq.s32.totalorder %s12, 0
    %p147 = por %p145, %p146
    %p148 = scmp.ne.s32.totalorder %s137, %s140
    %p149 = scmp.eq.s32.totalorder %s17, 1
    %p150 = por %p148, %p149
    %p151 = scmp.ne.s32.totalorder %s140, %s141
    %p152 = scmp.eq.s32.totalorder %s17, 0
    %p153 = por %p151, %p152
    %p154 = scmp.ne.s32.totalorder %s140, %s141
    %p155 = scmp.eq.s32.totalorder %s18, 1
    %p156 = por %p154, %p155
    %p158 = scmp.ne.s32.totalorder %s141, %s157
    %p159 = scmp.eq.s32.totalorder %s18, 0
    %p160 = por %p158, %p159
    %s161 = ssub.s32 %s12, %s19
    %p162 = scmp.eq.s32.totalorder %s161, 0
    %s164 = sadd.s32 %s163, 1
    %s165 = scalar_select %p162, %s163, %s164
    %p168 = pneg %p162
    %p169 = scmp.eq.s32.totalorder %s12, 1
    %p170 = por %p168, %p169
    %p171 = scmp.ne.s32.totalorder %s163, %s166
    %p172 = scmp.eq.s32.totalorder %s12, 0
    %p173 = por %p171, %p172
    %p174 = scmp.ne.s32.totalorder %s163, %s166
    %p175 = scmp.eq.s32.totalorder %s17, 1
    %p176 = por %p174, %p175
    %p177 = scmp.ne.s32.totalorder %s166, %s167
    %p178 = scmp.eq.s32.totalorder %s17, 0
    %p179 = por %p177, %p178
    %p180 = scmp.ne.s32.totalorder %s166, %s167
    %p181 = scmp.eq.s32.totalorder %s18, 1
    %p182 = por %p180, %p181
    %p184 = scmp.ne.s32.totalorder %s167, %s183
    %p185 = scmp.eq.s32.totalorder %s18, 0
    %p186 = por %p184, %p185
    %p187 = scmp.le.s32.totalorder 1, %s12
    %p188 = scmp.lt.s32.totalorder %s12, 3
    %p189 = pnand %p187, %p188
    %p190 = pneg %p189
    // Predicated region
    $region9: #{eudncnn_forward.15} parent=5 // pred_check
      _
    $region10: #{eudncnn_forward.15} parent=5 // pred_check_branch
      %192 = sbr.rel (%p189) target = $region12
    $region11: #{eudncnn_forward.15} parent=5 // pred_region
      %s193 = ssub.s32 %s12, 1
      // Predicated region
      $region13: #{eudncnn_forward.15} parent=11 // pred_check
        %p194 = pneg %p85
      $region14: #{eudncnn_forward.15} parent=11 // pred_check_branch
        %196 = sbr.rel (%p194) target = $region16
      $region15: #{eudncnn_forward.15} parent=11 // pred_region
        _
      $region16: #{eudncnn_forward.15} parent=11 // pred_fallthru
        _
      // Predicated region
      $region17: #{eudncnn_forward.15} parent=11 // pred_check
        %p197 = pneg %p106
      $region18: #{eudncnn_forward.15} parent=11 // pred_check_branch
        %199 = sbr.rel (%p197) target = $region20
      $region19: #{eudncnn_forward.15} parent=11 // pred_region
        _
      $region20: #{eudncnn_forward.15} parent=11 // pred_fallthru
        _
      // Predicated region
      $region21: #{eudncnn_forward.15} parent=11 // pred_check
        %p200 = pneg %p127
      $region22: #{eudncnn_forward.15} parent=11 // pred_check_branch
        %202 = sbr.rel (%p200) target = $region24
      $region23: #{eudncnn_forward.15} parent=11 // pred_region
        _
      $region24: #{eudncnn_forward.15} parent=11 // pred_fallthru
        _
    $region12: #{eudncnn_forward.15} parent=5 // pred_fallthru
      _
    %p203 = scmp.lt.s32.totalorder %s12, 2
    // Predicated region
    $region25: #{eudncnn_forward.15} parent=5 // pred_check
      %p204 = pneg %p203
    $region26: #{eudncnn_forward.15} parent=5 // pred_check_branch
      %206 = sbr.rel (%p204) target = $region28
    $region27: #{eudncnn_forward.15} parent=5 // pred_region
      // Predicated region
      $region29: #{eudncnn_forward.15} parent=27 // pred_check
        %p207 = pneg %p32
      $region30: #{eudncnn_forward.15} parent=27 // pred_check_branch
        %209 = sbr.rel (%p207) target = $region32
      $region31: #{eudncnn_forward.15} parent=27 // pred_region
        %p210 = scmp.lt.s32.totalorder %s12, 1
        %s211 = scalar_select %p210, %s12, 1
        %s212 = smul.addr %s211, 8
        %s213 = smul.addr %s212, 4
        %s214 = scalar_lea.vmem %s0, %s213
      $region32: #{eudncnn_forward.15} parent=27 // pred_fallthru
        _
      // Predicated region
      $region33: #{eudncnn_forward.15} parent=27 // pred_check
        %p215 = pneg %p58
      $region34: #{eudncnn_forward.15} parent=27 // pred_check_branch
        %217 = sbr.rel (%p215) target = $region36
      $region35: #{eudncnn_forward.15} parent=27 // pred_region
        %p218 = scmp.lt.s32.totalorder %s12, 1
        %s219 = scalar_select %p218, %s12, 1
        %s220 = smul.addr %s219, 8
        %s221 = smul.addr %s220, 4
        %s222 = scalar_lea.vmem %s1, %s221
      $region36: #{eudncnn_forward.15} parent=27 // pred_fallthru
        _
      // Predicated region
      $region37: #{eudncnn_forward.15} parent=27 // pred_check
        %p223 = pneg %p147
      $region38: #{eudncnn_forward.15} parent=27 // pred_check_branch
        %225 = sbr.rel (%p223) target = $region40
      $region39: #{eudncnn_forward.15} parent=27 // pred_region
        %p226 = scmp.lt.s32.totalorder %s12, 1
        %s227 = scalar_select %p226, %s12, 1
        %s228 = smul.addr %s227, 3
        %s229 = scalar_lea.vmem %s5, %s228
      $region40: #{eudncnn_forward.15} parent=27 // pred_fallthru
        _
    $region28: #{eudncnn_forward.15} parent=5 // pred_fallthru
      _
    %p230 = scmp.le.s32.totalorder 1, %s12
    %p231 = scmp.lt.s32.totalorder %s12, 3
    %p232 = pnand %p230, %p231
    %p233 = pneg %p232
    // Predicated region
    $region41: #{eudncnn_forward.15} parent=5 // pred_check
      _
    $region42: #{eudncnn_forward.15} parent=5 // pred_check_branch
      %235 = sbr.rel (%p232) target = $region44
    $region43: #{eudncnn_forward.15} parent=5 // pred_region
      %s236 = ssub.s32 %s12, 1
      %p237 = scmp.lt.s32.totalorder %s17, 1
      %s238 = scalar_select %p237, %s17, 1
      %s239 = smul.addr %s238, 8
      %s240 = smul.addr %s239, 4
      %s241 = scalar_lea.vmem %s0, %s240
      %p242 = pneg %p38
      %p243 = pneg %p35
      %p244 = scmp.lt.s32.totalorder %s17, 1
      %s245 = scalar_select %p244, %s17, 1
      %s246 = smul.addr %s245, 8
      %s247 = smul.addr %s246, 4
      %s248 = scalar_lea.vmem %s1, %s247
      %p249 = pneg %p64
      %p250 = pneg %p61
      %p251 = pneg %p85
      %p252 = pneg %p82
      %p253 = pneg %p106
      %p254 = pneg %p103
      %p255 = pneg %p127
      %p256 = pneg %p124
      %p257 = scmp.lt.s32.totalorder %s17, 1
      %s258 = scalar_select %p257, %s17, 1
      %s259 = smul.addr %s258, 3
      %s260 = scalar_lea.vmem %s5, %s259
      %p261 = pneg %p153
      %p262 = pneg %p150
      %p263 = pneg %p179
      %p264 = pneg %p176
      %p265 = scmp.lt.s32.totalorder %s17, 1
      %s266 = scalar_select %p265, %s17, 1
      %s267 = smul.addr %s266, 3
      %s268 = smul.addr %s267, 8
      %s269 = scalar_lea.vmem %s6, %s268
      %p270 = scmp.lt.s32.totalorder %s17, 1
      %s271 = scalar_select %p270, %s17, 1
      %s272 = smul.addr %s271, 8
      %s273 = smul.addr %s272, 4
      %s274 = scalar_lea.vmem %s0, %s273
      %p275 = scmp.lt.s32.totalorder %s17, 1
      %s276 = scalar_select %p275, %s17, 1
      %s277 = smul.addr %s276, 8
      %s278 = smul.addr %s277, 4
      %s279 = scalar_lea.vmem %s1, %s278
      %p280 = scmp.lt.s32.totalorder %s17, 1
      %s281 = scalar_select %p280, %s17, 1
      %s282 = smul.addr %s281, 3
      %s283 = scalar_lea.vmem %s5, %s282
      %p284 = scmp.lt.s32.totalorder %s17, 1
      %s285 = scalar_select %p284, %s17, 1
      %s286 = smul.addr %s285, 3
      %s287 = smul.addr %s286, 8
      %s288 = scalar_lea.vmem %s6, %s287
      %v290 = vld [vmem:[%s2] sm:$0xf]
      %v291 = vld [vmem:[%s274] sm:$0xff]
      %v292 = vld [vmem:[%s274 + $0x8] sm:$0xf]
      %v293 = vld [vmem:[%s274 + $0x10] sm:$0xff]
      %v294 = vld [vmem:[%s274 + $0x18] sm:$0xf]
      %v295 = vld [vmem:[%s3] sm:$0xf]
      %v296 = vld [vmem:[%s279] sm:$0xff]
      %v297 = vld [vmem:[%s279 + $0x8] sm:$0xf]
      %v298 = vld [vmem:[%s279 + $0x10] sm:$0xff]
      %v299 = vld [vmem:[%s279 + $0x18] sm:$0xf]
      %v304 = vunpack.c.l.b16 %v296
      %v305 = vunpack.c.h.b16 %v296
      %v306 = vunpack.c.l.b16 %v297
      %v307 = vunpack.c.l.b16 %v298
      %v308 = vunpack.c.h.b16 %v298
      %v309 = vunpack.c.l.b16 %v299
      %v310 = vpack.c.b16 %v307, %v304
      %v311 = vpack.c.b16 %v308, %v305
      %v312 = vpack.c.b16 %v309, %v306
      %vm316 = vcmask 130048
      %v318 = vsel %vm316, %v295, 0
      %320 = vmatprep.subr.bf16.mxu0 0
      %321 = vmatpush1.bf16.msra.mxu0 0
      %322 = vmatprep.subr.bf16.mxu0 0
      %323 = vmatpush1.bf16.msra.mxu0 0
      %324 = vmatprep.subr.bf16.mxu0 0
      %325 = vmatpush1.bf16.msra.mxu0 0
      %326 = vmatprep.subr.bf16.mxu0 0
      %327 = vmatpush1.bf16.msra.mxu0 0
      %328 = vmatprep.subr.bf16.mxu0 0
      %329 = vmatpush1.bf16.msra.mxu0 0
      %330 = vmatprep.subr.bf16.mxu0 0
      %331 = vmatpush1.bf16.msra.mxu0 0
      %332 = vmatprep.subr.bf16.mxu0 0
      %333 = vmatpush1.bf16.msra.mxu0 0
      %334 = vmatprep.subr.bf16.mxu0 %v311
      %335 = vmatpush1.bf16.msra.mxu0 %v310
      %336 = vmatprep.subr.bf16.mxu0 0
      %337 = vmatpush2.bf16.msra.mxu0 0
      %338 = vmatprep.subr.bf16.mxu0 0
      %339 = vmatpush2.bf16.msra.mxu0 0
      %340 = vmatprep.subr.bf16.mxu0 0
      %341 = vmatpush2.bf16.msra.mxu0 0
      %342 = vmatprep.subr.bf16.mxu0 0
      %343 = vmatpush2.bf16.msra.mxu0 0
      %344 = vmatprep.subr.bf16.mxu0 0
      %345 = vmatpush2.bf16.msra.mxu0 0
      %346 = vmatprep.subr.bf16.mxu0 0
      %347 = vmatpush2.bf16.msra.mxu0 0
      %348 = vmatprep.subr.bf16.mxu0 0
      %349 = vmatpush2.bf16.msra.mxu0 0
      %350 = vmatprep.subr.bf16.mxu0 0
      %351 = vmatpush2.bf16.msra.mxu0 0
      %352 = vmatprep.mubr.bf16.mxu0 0
      %353 = vmatmul.mubr.bf16.gmra.mxu0 %v318
      %v354 = vpop.f32.mrf.mxu0
      %v355 = vadd.f32 0.0, %v354
      %v356 = vpop.f32.mrf.mxu0
      %v357 = vadd.f32 0.0, %v356
      %v358 = vpop.f32.mrf.mxu0
      %v359 = vpop.f32.mrf.mxu0
      %360 = vdwg.mxu0
      %361 = vmatprep.subr.bf16.mxu0 0
      %362 = vmatpush1.bf16.msra.mxu0 0
      %363 = vmatprep.subr.bf16.mxu0 0
      %364 = vmatpush1.bf16.msra.mxu0 0
      %365 = vmatprep.subr.bf16.mxu0 0
      %366 = vmatpush1.bf16.msra.mxu0 0
      %367 = vmatprep.subr.bf16.mxu0 0
      %368 = vmatpush1.bf16.msra.mxu0 0
      %369 = vmatprep.subr.bf16.mxu0 0
      %370 = vmatpush1.bf16.msra.mxu0 0
      %371 = vmatprep.subr.bf16.mxu0 0
      %372 = vmatpush1.bf16.msra.mxu0 0
      %373 = vmatprep.subr.bf16.mxu0 0
      %374 = vmatpush1.bf16.msra.mxu0 0
      %375 = vmatprep.subr.bf16.mxu0 0
      %376 = vmatpush1.bf16.msra.mxu0 %v312
      %377 = vmatprep.subr.bf16.mxu0 0
      %378 = vmatpush2.bf16.msra.mxu0 0
      %379 = vmatprep.subr.bf16.mxu0 0
      %380 = vmatpush2.bf16.msra.mxu0 0
      %381 = vmatprep.subr.bf16.mxu0 0
      %382 = vmatpush2.bf16.msra.mxu0 0
      %383 = vmatprep.subr.bf16.mxu0 0
      %384 = vmatpush2.bf16.msra.mxu0 0
      %385 = vmatprep.subr.bf16.mxu0 0
      %386 = vmatpush2.bf16.msra.mxu0 0
      %387 = vmatprep.subr.bf16.mxu0 0
      %388 = vmatpush2.bf16.msra.mxu0 0
      %389 = vmatprep.subr.bf16.mxu0 0
      %390 = vmatpush2.bf16.msra.mxu0 0
      %391 = vmatprep.subr.bf16.mxu0 0
      %392 = vmatpush2.bf16.msra.mxu0 0
      %393 = vmatprep.mubr.bf16.mxu0 0
      %394 = vmatmul.mubr.bf16.gmra.mxu0 %v318
      %v395 = vpop.f32.mrf.mxu0
      %v396 = vadd.f32 0.0, %v395
      %v397 = vpop.f32.mrf.mxu0
      %v398 = vpop.f32.mrf.mxu0
      %v399 = vpop.f32.mrf.mxu0
      %400 = vdwg.mxu0
      %v405 = vunpack.c.l.b16 %v291
      %v406 = vunpack.c.h.b16 %v291
      %v407 = vunpack.c.l.b16 %v292
      %v408 = vunpack.c.l.b16 %v293
      %v409 = vunpack.c.h.b16 %v293
      %v410 = vunpack.c.l.b16 %v294
      %v411 = vpack.c.b16 %v408, %v405
      %v412 = vpack.c.b16 %v409, %v406
      %v413 = vpack.c.b16 %v410, %v407
      %v418 = vsel %vm316, %v290, 0
      %420 = vmatprep.subr.bf16.mxu0 0
      %421 = vmatpush1.bf16.msra.mxu0 0
      %422 = vmatprep.subr.bf16.mxu0 0
      %423 = vmatpush1.bf16.msra.mxu0 0
      %424 = vmatprep.subr.bf16.mxu0 0
      %425 = vmatpush1.bf16.msra.mxu0 0
      %426 = vmatprep.subr.bf16.mxu0 0
      %427 = vmatpush1.bf16.msra.mxu0 0
      %428 = vmatprep.subr.bf16.mxu0 0
      %429 = vmatpush1.bf16.msra.mxu0 0
      %430 = vmatprep.subr.bf16.mxu0 0
      %431 = vmatpush1.bf16.msra.mxu0 0
      %432 = vmatprep.subr.bf16.mxu0 0
      %433 = vmatpush1.bf16.msra.mxu0 0
      %434 = vmatprep.subr.bf16.mxu0 %v412
      %435 = vmatpush1.bf16.msra.mxu0 %v411
      %436 = vmatprep.subr.bf16.mxu0 0
      %437 = vmatpush2.bf16.msra.mxu0 0
      %438 = vmatprep.subr.bf16.mxu0 0
      %439 = vmatpush2.bf16.msra.mxu0 0
      %440 = vmatprep.subr.bf16.mxu0 0
      %441 = vmatpush2.bf16.msra.mxu0 0
      %442 = vmatprep.subr.bf16.mxu0 0
      %443 = vmatpush2.bf16.msra.mxu0 0
      %444 = vmatprep.subr.bf16.mxu0 0
      %445 = vmatpush2.bf16.msra.mxu0 0
      %446 = vmatprep.subr.bf16.mxu0 0
      %447 = vmatpush2.bf16.msra.mxu0 0
      %448 = vmatprep.subr.bf16.mxu0 0
      %449 = vmatpush2.bf16.msra.mxu0 0
      %450 = vmatprep.subr.bf16.mxu0 0
      %451 = vmatpush2.bf16.msra.mxu0 0
      %452 = vmatprep.mubr.bf16.mxu0 0
      %453 = vmatmul.mubr.bf16.gmra.mxu0 %v418
      %v454 = vpop.f32.mrf.mxu0
      %v455 = vadd.f32 %v355, %v454
      %v456 = vpop.f32.mrf.mxu0
      %v457 = vadd.f32 %v357, %v456
      %v458 = vpop.f32.mrf.mxu0
      %v459 = vpop.f32.mrf.mxu0
      %460 = vdwg.mxu0
      %461 = vmatprep.subr.bf16.mxu0 0
      %462 = vmatpush1.bf16.msra.mxu0 0
      %463 = vmatprep.subr.bf16.mxu0 0
      %464 = vmatpush1.bf16.msra.mxu0 0
      %465 = vmatprep.subr.bf16.mxu0 0
      %466 = vmatpush1.bf16.msra.mxu0 0
      %467 = vmatprep.subr.bf16.mxu0 0
      %468 = vmatpush1.bf16.msra.mxu0 0
      %469 = vmatprep.subr.bf16.mxu0 0
      %470 = vmatpush1.bf16.msra.mxu0 0
      %471 = vmatprep.subr.bf16.mxu0 0
      %472 = vmatpush1.bf16.msra.mxu0 0
      %473 = vmatprep.subr.bf16.mxu0 0
      %474 = vmatpush1.bf16.msra.mxu0 0
      %475 = vmatprep.subr.bf16.mxu0 0
      %476 = vmatpush1.bf16.msra.mxu0 %v413
      %477 = vmatprep.subr.bf16.mxu0 0
      %478 = vmatpush2.bf16.msra.mxu0 0
      %479 = vmatprep.subr.bf16.mxu0 0
      %480 = vmatpush2.bf16.msra.mxu0 0
      %481 = vmatprep.subr.bf16.mxu0 0
      %482 = vmatpush2.bf16.msra.mxu0 0
      %483 = vmatprep.subr.bf16.mxu0 0
      %484 = vmatpush2.bf16.msra.mxu0 0
      %485 = vmatprep.subr.bf16.mxu0 0
      %486 = vmatpush2.bf16.msra.mxu0 0
      %487 = vmatprep.subr.bf16.mxu0 0
      %488 = vmatpush2.bf16.msra.mxu0 0
      %489 = vmatprep.subr.bf16.mxu0 0
      %490 = vmatpush2.bf16.msra.mxu0 0
      %491 = vmatprep.subr.bf16.mxu0 0
      %492 = vmatpush2.bf16.msra.mxu0 0
      %493 = vmatprep.mubr.bf16.mxu0 0
      %494 = vmatmul.mubr.bf16.gmra.mxu0 %v418
      %v495 = vpop.f32.mrf.mxu0
      %v496 = vadd.f32 %v396, %v495
      %v497 = vpop.f32.mrf.mxu0
      %v498 = vpop.f32.mrf.mxu0
      %v499 = vpop.f32.mrf.mxu0
      %500 = vdwg.mxu0
      %s501 = scalar_lea.vmem %s2, 4
      %v502 = vld [vmem:[%s501] sm:$0xf]
      %v503 = vld [vmem:[%s274] sm:$0xff]
      %v504 = vld [vmem:[%s274 + $0x8] sm:$0xff]
      %v505 = vld [vmem:[%s274 + $0x10] sm:$0xff]
      %v506 = vld [vmem:[%s274 + $0x18] sm:$0xff]
      %s507 = scalar_lea.vmem %s3, 4
      %v508 = vld [vmem:[%s507] sm:$0xf]
      %v509 = vld [vmem:[%s279] sm:$0xff]
      %v510 = vld [vmem:[%s279 + $0x8] sm:$0xff]
      %v511 = vld [vmem:[%s279 + $0x10] sm:$0xff]
      %v512 = vld [vmem:[%s279 + $0x18] sm:$0xff]
      %v517 = vunpack.c.l.b16 %v509
      %v518 = vunpack.c.h.b16 %v509
      %v519 = vunpack.c.l.b16 %v510
      %v520 = vunpack.c.h.b16 %v510
      %v521 = vunpack.c.l.b16 %v511
      %v522 = vunpack.c.h.b16 %v511
      %v523 = vunpack.c.l.b16 %v512
      %v524 = vunpack.c.h.b16 %v512
      %v525 = vpack.c.b16 %v521, %v517
      %v526 = vpack.c.b16 %v522, %v518
      %v527 = vpack.c.b16 %v523, %v519
      %v528 = vpack.c.b16 %v524, %v520
      %529 = vrot.lane.b32.xlu0 %v525, 127
      %v530 = vpop.permute.xlu0 %529
      %531 = vrot.lane.b32.xlu0 %v526, 127
      %v532 = vpop.permute.xlu0 %531
      %533 = vrot.lane.b32.xlu0 %v527, 127
      %v534 = vpop.permute.xlu0 %533
      %535 = vrot.lane.b32.xlu0 %v528, 127
      %v536 = vpop.permute.xlu0 %535
      %vm537 = vcmask 1039360
      %v538 = vsel %vm537, %v530, %v532
      %v539 = vsel %vm537, %v532, %v534
      %v540 = vsel %vm537, %v534, %v536
      %v545 = vsel %vm316, %v508, 0
      %547 = vmatprep.subr.bf16.mxu0 0
      %548 = vmatpush1.bf16.msra.mxu0 0
      %549 = vmatprep.subr.bf16.mxu0 0
      %550 = vmatpush1.bf16.msra.mxu0 0
      %551 = vmatprep.subr.bf16.mxu0 0
      %552 = vmatpush1.bf16.msra.mxu0 0
      %553 = vmatprep.subr.bf16.mxu0 0
      %554 = vmatpush1.bf16.msra.mxu0 0
      %555 = vmatprep.subr.bf16.mxu0 0
      %556 = vmatpush1.bf16.msra.mxu0 0
      %557 = vmatprep.subr.bf16.mxu0 0
      %558 = vmatpush1.bf16.msra.mxu0 0
      %559 = vmatprep.subr.bf16.mxu0 0
      %560 = vmatpush1.bf16.msra.mxu0 0
      %561 = vmatprep.subr.bf16.mxu0 %v539
      %562 = vmatpush1.bf16.msra.mxu0 %v538
      %563 = vmatprep.subr.bf16.mxu0 0
      %564 = vmatpush2.bf16.msra.mxu0 0
      %565 = vmatprep.subr.bf16.mxu0 0
      %566 = vmatpush2.bf16.msra.mxu0 0
      %567 = vmatprep.subr.bf16.mxu0 0
      %568 = vmatpush2.bf16.msra.mxu0 0
      %569 = vmatprep.subr.bf16.mxu0 0
      %570 = vmatpush2.bf16.msra.mxu0 0
      %571 = vmatprep.subr.bf16.mxu0 0
      %572 = vmatpush2.bf16.msra.mxu0 0
      %573 = vmatprep.subr.bf16.mxu0 0
      %574 = vmatpush2.bf16.msra.mxu0 0
      %575 = vmatprep.subr.bf16.mxu0 0
      %576 = vmatpush2.bf16.msra.mxu0 0
      %577 = vmatprep.subr.bf16.mxu0 0
      %578 = vmatpush2.bf16.msra.mxu0 0
      %579 = vmatprep.mubr.bf16.mxu0 0
      %580 = vmatmul.mubr.bf16.gmra.mxu0 %v545
      %v581 = vpop.f32.mrf.mxu0
      %v582 = vadd.f32 0.0, %v581
      %v583 = vpop.f32.mrf.mxu0
      %v584 = vadd.f32 0.0, %v583
      %v585 = vpop.f32.mrf.mxu0
      %v586 = vpop.f32.mrf.mxu0
      %587 = vdwg.mxu0
      %588 = vmatprep.subr.bf16.mxu0 0
      %589 = vmatpush1.bf16.msra.mxu0 0
      %590 = vmatprep.subr.bf16.mxu0 0
      %591 = vmatpush1.bf16.msra.mxu0 0
      %592 = vmatprep.subr.bf16.mxu0 0
      %593 = vmatpush1.bf16.msra.mxu0 0
      %594 = vmatprep.subr.bf16.mxu0 0
      %595 = vmatpush1.bf16.msra.mxu0 0
      %596 = vmatprep.subr.bf16.mxu0 0
      %597 = vmatpush1.bf16.msra.mxu0 0
      %598 = vmatprep.subr.bf16.mxu0 0
      %599 = vmatpush1.bf16.msra.mxu0 0
      %600 = vmatprep.subr.bf16.mxu0 0
      %601 = vmatpush1.bf16.msra.mxu0 0
      %602 = vmatprep.subr.bf16.mxu0 0
      %603 = vmatpush1.bf16.msra.mxu0 %v540
      %604 = vmatprep.subr.bf16.mxu0 0
      %605 = vmatpush2.bf16.msra.mxu0 0
      %606 = vmatprep.subr.bf16.mxu0 0
      %607 = vmatpush2.bf16.msra.mxu0 0
      %608 = vmatprep.subr.bf16.mxu0 0
      %609 = vmatpush2.bf16.msra.mxu0 0
      %610 = vmatprep.subr.bf16.mxu0 0
      %611 = vmatpush2.bf16.msra.mxu0 0
      %612 = vmatprep.subr.bf16.mxu0 0
      %613 = vmatpush2.bf16.msra.mxu0 0
      %614 = vmatprep.subr.bf16.mxu0 0
      %615 = vmatpush2.bf16.msra.mxu0 0
      %616 = vmatprep.subr.bf16.mxu0 0
      %617 = vmatpush2.bf16.msra.mxu0 0
      %618 = vmatprep.subr.bf16.mxu0 0
      %619 = vmatpush2.bf16.msra.mxu0 0
      %620 = vmatprep.mubr.bf16.mxu0 0
      %621 = vmatmul.mubr.bf16.gmra.mxu0 %v545
      %v622 = vpop.f32.mrf.mxu0
      %v623 = vadd.f32 0.0, %v622
      %v624 = vpop.f32.mrf.mxu0
      %v625 = vpop.f32.mrf.mxu0
      %v626 = vpop.f32.mrf.mxu0
      %627 = vdwg.mxu0
      %v632 = vunpack.c.l.b16 %v503
      %v633 = vunpack.c.h.b16 %v503
      %v634 = vunpack.c.l.b16 %v504
      %v635 = vunpack.c.h.b16 %v504
      %v636 = vunpack.c.l.b16 %v505
      %v637 = vunpack.c.h.b16 %v505
      %v638 = vunpack.c.l.b16 %v506
      %v639 = vunpack.c.h.b16 %v506
      %v640 = vpack.c.b16 %v636, %v632
      %v641 = vpack.c.b16 %v637, %v633
      %v642 = vpack.c.b16 %v638, %v634
      %v643 = vpack.c.b16 %v639, %v635
      %644 = vrot.lane.b32.xlu0 %v640, 127
      %v645 = vpop.permute.xlu0 %644
      %646 = vrot.lane.b32.xlu0 %v641, 127
      %v647 = vpop.permute.xlu0 %646
      %648 = vrot.lane.b32.xlu0 %v642, 127
      %v649 = vpop.permute.xlu0 %648
      %650 = vrot.lane.b32.xlu0 %v643, 127
      %v651 = vpop.permute.xlu0 %650
      %v652 = vsel %vm537, %v645, %v647
      %v653 = vsel %vm537, %v647, %v649
      %v654 = vsel %vm537, %v649, %v651
      %v659 = vsel %vm316, %v502, 0
      %661 = vmatprep.subr.bf16.mxu0 0
      %662 = vmatpush1.bf16.msra.mxu0 0
      %663 = vmatprep.subr.bf16.mxu0 0
      %664 = vmatpush1.bf16.msra.mxu0 0
      %665 = vmatprep.subr.bf16.mxu0 0
      %666 = vmatpush1.bf16.msra.mxu0 0
      %667 = vmatprep.subr.bf16.mxu0 0
      %668 = vmatpush1.bf16.msra.mxu0 0
      %669 = vmatprep.subr.bf16.mxu0 0
      %670 = vmatpush1.bf16.msra.mxu0 0
      %671 = vmatprep.subr.bf16.mxu0 0
      %672 = vmatpush1.bf16.msra.mxu0 0
      %673 = vmatprep.subr.bf16.mxu0 0
      %674 = vmatpush1.bf16.msra.mxu0 0
      %675 = vmatprep.subr.bf16.mxu0 %v653
      %676 = vmatpush1.bf16.msra.mxu0 %v652
      %677 = vmatprep.subr.bf16.mxu0 0
      %678 = vmatpush2.bf16.msra.mxu0 0
      %679 = vmatprep.subr.bf16.mxu0 0
      %680 = vmatpush2.bf16.msra.mxu0 0
      %681 = vmatprep.subr.bf16.mxu0 0
      %682 = vmatpush2.bf16.msra.mxu0 0
      %683 = vmatprep.subr.bf16.mxu0 0
      %684 = vmatpush2.bf16.msra.mxu0 0
      %685 = vmatprep.subr.bf16.mxu0 0
      %686 = vmatpush2.bf16.msra.mxu0 0
      %687 = vmatprep.subr.bf16.mxu0 0
      %688 = vmatpush2.bf16.msra.mxu0 0
      %689 = vmatprep.subr.bf16.mxu0 0
      %690 = vmatpush2.bf16.msra.mxu0 0
      %691 = vmatprep.subr.bf16.mxu0 0
      %692 = vmatpush2.bf16.msra.mxu0 0
      %693 = vmatprep.mubr.bf16.mxu0 0
      %694 = vmatmul.mubr.bf16.gmra.mxu0 %v659
      %v695 = vpop.f32.mrf.mxu0
      %v696 = vadd.f32 %v582, %v695
      %v697 = vpop.f32.mrf.mxu0
      %v698 = vadd.f32 %v584, %v697
      %v699 = vpop.f32.mrf.mxu0
      %v700 = vpop.f32.mrf.mxu0
      %701 = vdwg.mxu0
      %702 = vmatprep.subr.bf16.mxu0 0
      %703 = vmatpush1.bf16.msra.mxu0 0
      %704 = vmatprep.subr.bf16.mxu0 0
      %705 = vmatpush1.bf16.msra.mxu0 0
      %706 = vmatprep.subr.bf16.mxu0 0
      %707 = vmatpush1.bf16.msra.mxu0 0
      %708 = vmatprep.subr.bf16.mxu0 0
      %709 = vmatpush1.bf16.msra.mxu0 0
      %710 = vmatprep.subr.bf16.mxu0 0
      %711 = vmatpush1.bf16.msra.mxu0 0
      %712 = vmatprep.subr.bf16.mxu0 0
      %713 = vmatpush1.bf16.msra.mxu0 0
      %714 = vmatprep.subr.bf16.mxu0 0
      %715 = vmatpush1.bf16.msra.mxu0 0
      %716 = vmatprep.subr.bf16.mxu0 0
      %717 = vmatpush1.bf16.msra.mxu0 %v654
      %718 = vmatprep.subr.bf16.mxu0 0
      %719 = vmatpush2.bf16.msra.mxu0 0
      %720 = vmatprep.subr.bf16.mxu0 0
      %721 = vmatpush2.bf16.msra.mxu0 0
      %722 = vmatprep.subr.bf16.mxu0 0
      %723 = vmatpush2.bf16.msra.mxu0 0
      %724 = vmatprep.subr.bf16.mxu0 0
      %725 = vmatpush2.bf16.msra.mxu0 0
      %726 = vmatprep.subr.bf16.mxu0 0
      %727 = vmatpush2.bf16.msra.mxu0 0
      %728 = vmatprep.subr.bf16.mxu0 0
      %729 = vmatpush2.bf16.msra.mxu0 0
      %730 = vmatprep.subr.bf16.mxu0 0
      %731 = vmatpush2.bf16.msra.mxu0 0
      %732 = vmatprep.subr.bf16.mxu0 0
      %733 = vmatpush2.bf16.msra.mxu0 0
      %734 = vmatprep.mubr.bf16.mxu0 0
      %735 = vmatmul.mubr.bf16.gmra.mxu0 %v659
      %v736 = vpop.f32.mrf.mxu0
      %v737 = vadd.f32 %v623, %v736
      %v738 = vpop.f32.mrf.mxu0
      %v739 = vpop.f32.mrf.mxu0
      %v740 = vpop.f32.mrf.mxu0
      %741 = vdwg.mxu0
      %v742 = vadd.f32 %v455, %v696
      %v743 = vadd.f32 %v457, %v698
      %v744 = vadd.f32 %v496, %v737
      %s745 = scalar_lea.vmem %s2, 8
      %v746 = vld [vmem:[%s745] sm:$0xf]
      %s747 = scalar_lea.vmem %s3, 8
      %v748 = vld [vmem:[%s747] sm:$0xf]
      %749 = vrot.lane.b32.xlu0 %v525, 126
      %v750 = vpop.permute.xlu0 %749
      %751 = vrot.lane.b32.xlu0 %v526, 126
      %v752 = vpop.permute.xlu0 %751
      %753 = vrot.lane.b32.xlu0 %v527, 126
      %v754 = vpop.permute.xlu0 %753
      %755 = vrot.lane.b32.xlu0 %v528, 126
      %v756 = vpop.permute.xlu0 %755
      %vm757 = vcmask 1031168
      %v758 = vsel %vm757, %v750, %v752
      %v759 = vsel %vm757, %v752, %v754
      %v760 = vsel %vm757, %v754, %v756
      %v765 = vsel %vm316, %v748, 0
      %767 = vmatprep.subr.bf16.mxu0 0
      %768 = vmatpush1.bf16.msra.mxu0 0
      %769 = vmatprep.subr.bf16.mxu0 0
      %770 = vmatpush1.bf16.msra.mxu0 0
      %771 = vmatprep.subr.bf16.mxu0 0
      %772 = vmatpush1.bf16.msra.mxu0 0
      %773 = vmatprep.subr.bf16.mxu0 0
      %774 = vmatpush1.bf16.msra.mxu0 0
      %775 = vmatprep.subr.bf16.mxu0 0
      %776 = vmatpush1.bf16.msra.mxu0 0
      %777 = vmatprep.subr.bf16.mxu0 0
      %778 = vmatpush1.bf16.msra.mxu0 0
      %779 = vmatprep.subr.bf16.mxu0 0
      %780 = vmatpush1.bf16.msra.mxu0 0
      %781 = vmatprep.subr.bf16.mxu0 %v759
      %782 = vmatpush1.bf16.msra.mxu0 %v758
      %783 = vmatprep.subr.bf16.mxu0 0
      %784 = vmatpush2.bf16.msra.mxu0 0
      %785 = vmatprep.subr.bf16.mxu0 0
      %786 = vmatpush2.bf16.msra.mxu0 0
      %787 = vmatprep.subr.bf16.mxu0 0
      %788 = vmatpush2.bf16.msra.mxu0 0
      %789 = vmatprep.subr.bf16.mxu0 0
      %790 = vmatpush2.bf16.msra.mxu0 0
      %791 = vmatprep.subr.bf16.mxu0 0
      %792 = vmatpush2.bf16.msra.mxu0 0
      %793 = vmatprep.subr.bf16.mxu0 0
      %794 = vmatpush2.bf16.msra.mxu0 0
      %795 = vmatprep.subr.bf16.mxu0 0
      %796 = vmatpush2.bf16.msra.mxu0 0
      %797 = vmatprep.subr.bf16.mxu0 0
      %798 = vmatpush2.bf16.msra.mxu0 0
      %799 = vmatprep.mubr.bf16.mxu0 0
      %800 = vmatmul.mubr.bf16.gmra.mxu0 %v765
      %v801 = vpop.f32.mrf.mxu0
      %v802 = vadd.f32 0.0, %v801
      %v803 = vpop.f32.mrf.mxu0
      %v804 = vadd.f32 0.0, %v803
      %v805 = vpop.f32.mrf.mxu0
      %v806 = vpop.f32.mrf.mxu0
      %807 = vdwg.mxu0
      %808 = vmatprep.subr.bf16.mxu0 0
      %809 = vmatpush1.bf16.msra.mxu0 0
      %810 = vmatprep.subr.bf16.mxu0 0
      %811 = vmatpush1.bf16.msra.mxu0 0
      %812 = vmatprep.subr.bf16.mxu0 0
      %813 = vmatpush1.bf16.msra.mxu0 0
      %814 = vmatprep.subr.bf16.mxu0 0
      %815 = vmatpush1.bf16.msra.mxu0 0
      %816 = vmatprep.subr.bf16.mxu0 0
      %817 = vmatpush1.bf16.msra.mxu0 0
      %818 = vmatprep.subr.bf16.mxu0 0
      %819 = vmatpush1.bf16.msra.mxu0 0
      %820 = vmatprep.subr.bf16.mxu0 0
      %821 = vmatpush1.bf16.msra.mxu0 0
      %822 = vmatprep.subr.bf16.mxu0 0
      %823 = vmatpush1.bf16.msra.mxu0 %v760
      %824 = vmatprep.subr.bf16.mxu0 0
      %825 = vmatpush2.bf16.msra.mxu0 0
      %826 = vmatprep.subr.bf16.mxu0 0
      %827 = vmatpush2.bf16.msra.mxu0 0
      %828 = vmatprep.subr.bf16.mxu0 0
      %829 = vmatpush2.bf16.msra.mxu0 0
      %830 = vmatprep.subr.bf16.mxu0 0
      %831 = vmatpush2.bf16.msra.mxu0 0
      %832 = vmatprep.subr.bf16.mxu0 0
      %833 = vmatpush2.bf16.msra.mxu0 0
      %834 = vmatprep.subr.bf16.mxu0 0
      %835 = vmatpush2.bf16.msra.mxu0 0
      %836 = vmatprep.subr.bf16.mxu0 0
      %837 = vmatpush2.bf16.msra.mxu0 0
      %838 = vmatprep.subr.bf16.mxu0 0
      %839 = vmatpush2.bf16.msra.mxu0 0
      %840 = vmatprep.mubr.bf16.mxu0 0
      %841 = vmatmul.mubr.bf16.gmra.mxu0 %v765
      %v842 = vpop.f32.mrf.mxu0
      %v843 = vadd.f32 0.0, %v842
      %v844 = vpop.f32.mrf.mxu0
      %v845 = vpop.f32.mrf.mxu0
      %v846 = vpop.f32.mrf.mxu0
      %847 = vdwg.mxu0
      %848 = vrot.lane.b32.xlu0 %v640, 126
      %v849 = vpop.permute.xlu0 %848
      %850 = vrot.lane.b32.xlu0 %v641, 126
      %v851 = vpop.permute.xlu0 %850
      %852 = vrot.lane.b32.xlu0 %v642, 126
      %v853 = vpop.permute.xlu0 %852
      %854 = vrot.lane.b32.xlu0 %v643, 126
      %v855 = vpop.permute.xlu0 %854
      %v856 = vsel %vm757, %v849, %v851
      %v857 = vsel %vm757, %v851, %v853
      %v858 = vsel %vm757, %v853, %v855
      %v863 = vsel %vm316, %v746, 0
      %865 = vmatprep.subr.bf16.mxu0 0
      %866 = vmatpush1.bf16.msra.mxu0 0
      %867 = vmatprep.subr.bf16.mxu0 0
      %868 = vmatpush1.bf16.msra.mxu0 0
      %869 = vmatprep.subr.bf16.mxu0 0
      %870 = vmatpush1.bf16.msra.mxu0 0
      %871 = vmatprep.subr.bf16.mxu0 0
      %872 = vmatpush1.bf16.msra.mxu0 0
      %873 = vmatprep.subr.bf16.mxu0 0
      %874 = vmatpush1.bf16.msra.mxu0 0
      %875 = vmatprep.subr.bf16.mxu0 0
      %876 = vmatpush1.bf16.msra.mxu0 0
      %877 = vmatprep.subr.bf16.mxu0 0
      %878 = vmatpush1.bf16.msra.mxu0 0
      %879 = vmatprep.subr.bf16.mxu0 %v857
      %880 = vmatpush1.bf16.msra.mxu0 %v856
      %881 = vmatprep.subr.bf16.mxu0 0
      %882 = vmatpush2.bf16.msra.mxu0 0
      %883 = vmatprep.subr.bf16.mxu0 0
      %884 = vmatpush2.bf16.msra.mxu0 0
      %885 = vmatprep.subr.bf16.mxu0 0
      %886 = vmatpush2.bf16.msra.mxu0 0
      %887 = vmatprep.subr.bf16.mxu0 0
      %888 = vmatpush2.bf16.msra.mxu0 0
      %889 = vmatprep.subr.bf16.mxu0 0
      %890 = vmatpush2.bf16.msra.mxu0 0
      %891 = vmatprep.subr.bf16.mxu0 0
      %892 = vmatpush2.bf16.msra.mxu0 0
      %893 = vmatprep.subr.bf16.mxu0 0
      %894 = vmatpush2.bf16.msra.mxu0 0
      %895 = vmatprep.subr.bf16.mxu0 0
      %896 = vmatpush2.bf16.msra.mxu0 0
      %897 = vmatprep.mubr.bf16.mxu0 0
      %898 = vmatmul.mubr.bf16.gmra.mxu0 %v863
      %v899 = vpop.f32.mrf.mxu0
      %v900 = vadd.f32 %v802, %v899
      %v901 = vpop.f32.mrf.mxu0
      %v902 = vadd.f32 %v804, %v901
      %v903 = vpop.f32.mrf.mxu0
      %v904 = vpop.f32.mrf.mxu0
      %905 = vdwg.mxu0
      %906 = vmatprep.subr.bf16.mxu0 0
      %907 = vmatpush1.bf16.msra.mxu0 0
      %908 = vmatprep.subr.bf16.mxu0 0
      %909 = vmatpush1.bf16.msra.mxu0 0
      %910 = vmatprep.subr.bf16.mxu0 0
      %911 = vmatpush1.bf16.msra.mxu0 0
      %912 = vmatprep.subr.bf16.mxu0 0
      %913 = vmatpush1.bf16.msra.mxu0 0
      %914 = vmatprep.subr.bf16.mxu0 0
      %915 = vmatpush1.bf16.msra.mxu0 0
      %916 = vmatprep.subr.bf16.mxu0 0
      %917 = vmatpush1.bf16.msra.mxu0 0
      %918 = vmatprep.subr.bf16.mxu0 0
      %919 = vmatpush1.bf16.msra.mxu0 0
      %920 = vmatprep.subr.bf16.mxu0 0
      %921 = vmatpush1.bf16.msra.mxu0 %v858
      %922 = vmatprep.subr.bf16.mxu0 0
      %923 = vmatpush2.bf16.msra.mxu0 0
      %924 = vmatprep.subr.bf16.mxu0 0
      %925 = vmatpush2.bf16.msra.mxu0 0
      %926 = vmatprep.subr.bf16.mxu0 0
      %927 = vmatpush2.bf16.msra.mxu0 0
      %928 = vmatprep.subr.bf16.mxu0 0
      %929 = vmatpush2.bf16.msra.mxu0 0
      %930 = vmatprep.subr.bf16.mxu0 0
      %931 = vmatpush2.bf16.msra.mxu0 0
      %932 = vmatprep.subr.bf16.mxu0 0
      %933 = vmatpush2.bf16.msra.mxu0 0
      %934 = vmatprep.subr.bf16.mxu0 0
      %935 = vmatpush2.bf16.msra.mxu0 0
      %936 = vmatprep.subr.bf16.mxu0 0
      %937 = vmatpush2.bf16.msra.mxu0 0
      %938 = vmatprep.mubr.bf16.mxu0 0
      %939 = vmatmul.mubr.bf16.gmra.mxu0 %v863
      %v940 = vpop.f32.mrf.mxu0
      %v941 = vadd.f32 %v843, %v940
      %v942 = vpop.f32.mrf.mxu0
      %v943 = vpop.f32.mrf.mxu0
      %v944 = vpop.f32.mrf.mxu0
      %945 = vdwg.mxu0
      %v946 = vadd.f32 %v742, %v900
      %v947 = vadd.f32 %v743, %v902
      %v948 = vadd.f32 %v744, %v941
      %s949 = scalar_lea.vmem %s2, 12
      %v950 = vld [vmem:[%s949] sm:$0xf]
      %s951 = scalar_lea.vmem %s3, 12
      %v952 = vld [vmem:[%s951] sm:$0xf]
      %953 = vrot.lane.b32.xlu0 %v525, 110
      %v954 = vpop.permute.xlu0 %953
      %955 = vrot.lane.b32.xlu0 %v526, 110
      %v956 = vpop.permute.xlu0 %955
      %957 = vrot.lane.b32.xlu0 %v527, 110
      %v958 = vpop.permute.xlu0 %957
      %959 = vrot.lane.b32.xlu0 %v528, 110
      %v960 = vpop.permute.xlu0 %959
      %vm961 = vcmask 900096
      %v962 = vsel %vm961, %v954, %v956
      %v963 = vsel %vm961, %v956, %v958
      %v964 = vsel %vm961, %v958, %v960
      %v969 = vsel %vm316, %v952, 0
      %971 = vmatprep.subr.bf16.mxu0 0
      %972 = vmatpush1.bf16.msra.mxu0 0
      %973 = vmatprep.subr.bf16.mxu0 0
      %974 = vmatpush1.bf16.msra.mxu0 0
      %975 = vmatprep.subr.bf16.mxu0 0
      %976 = vmatpush1.bf16.msra.mxu0 0
      %977 = vmatprep.subr.bf16.mxu0 0
      %978 = vmatpush1.bf16.msra.mxu0 0
      %979 = vmatprep.subr.bf16.mxu0 0
      %980 = vmatpush1.bf16.msra.mxu0 0
      %981 = vmatprep.subr.bf16.mxu0 0
      %982 = vmatpush1.bf16.msra.mxu0 0
      %983 = vmatprep.subr.bf16.mxu0 0
      %984 = vmatpush1.bf16.msra.mxu0 0
      %985 = vmatprep.subr.bf16.mxu0 %v963
      %986 = vmatpush1.bf16.msra.mxu0 %v962
      %987 = vmatprep.subr.bf16.mxu0 0
      %988 = vmatpush2.bf16.msra.mxu0 0
      %989 = vmatprep.subr.bf16.mxu0 0
      %990 = vmatpush2.bf16.msra.mxu0 0
      %991 = vmatprep.subr.bf16.mxu0 0
      %992 = vmatpush2.bf16.msra.mxu0 0
      %993 = vmatprep.subr.bf16.mxu0 0
      %994 = vmatpush2.bf16.msra.mxu0 0
      %995 = vmatprep.subr.bf16.mxu0 0
      %996 = vmatpush2.bf16.msra.mxu0 0
      %997 = vmatprep.subr.bf16.mxu0 0
      %998 = vmatpush2.bf16.msra.mxu0 0
      %999 = vmatprep.subr.bf16.mxu0 0
      %1000 = vmatpush2.bf16.msra.mxu0 0
      %1001 = vmatprep.subr.bf16.mxu0 0
      %1002 = vmatpush2.bf16.msra.mxu0 0
      %1003 = vmatprep.mubr.bf16.mxu0 0
      %1004 = vmatmul.mubr.bf16.gmra.mxu0 %v969
      %v1005 = vpop.f32.mrf.mxu0
      %v1006 = vadd.f32 0.0, %v1005
      %v1007 = vpop.f32.mrf.mxu0
      %v1008 = vadd.f32 0.0, %v1007
      %v1009 = vpop.f32.mrf.mxu0
      %v1010 = vpop.f32.mrf.mxu0
      %1011 = vdwg.mxu0
      %1012 = vmatprep.subr.bf16.mxu0 0
      %1013 = vmatpush1.bf16.msra.mxu0 0
      %1014 = vmatprep.subr.bf16.mxu0 0
      %1015 = vmatpush1.bf16.msra.mxu0 0
      %1016 = vmatprep.subr.bf16.mxu0 0
      %1017 = vmatpush1.bf16.msra.mxu0 0
      %1018 = vmatprep.subr.bf16.mxu0 0
      %1019 = vmatpush1.bf16.msra.mxu0 0
      %1020 = vmatprep.subr.bf16.mxu0 0
      %1021 = vmatpush1.bf16.msra.mxu0 0
      %1022 = vmatprep.subr.bf16.mxu0 0
      %1023 = vmatpush1.bf16.msra.mxu0 0
      %1024 = vmatprep.subr.bf16.mxu0 0
      %1025 = vmatpush1.bf16.msra.mxu0 0
      %1026 = vmatprep.subr.bf16.mxu0 0
      %1027 = vmatpush1.bf16.msra.mxu0 %v964
      %1028 = vmatprep.subr.bf16.mxu0 0
      %1029 = vmatpush2.bf16.msra.mxu0 0
      %1030 = vmatprep.subr.bf16.mxu0 0
      %1031 = vmatpush2.bf16.msra.mxu0 0
      %1032 = vmatprep.subr.bf16.mxu0 0
      %1033 = vmatpush2.bf16.msra.mxu0 0
      %1034 = vmatprep.subr.bf16.mxu0 0
      %1035 = vmatpush2.bf16.msra.mxu0 0
      %1036 = vmatprep.subr.bf16.mxu0 0
      %1037 = vmatpush2.bf16.msra.mxu0 0
      %1038 = vmatprep.subr.bf16.mxu0 0
      %1039 = vmatpush2.bf16.msra.mxu0 0
      %1040 = vmatprep.subr.bf16.mxu0 0
      %1041 = vmatpush2.bf16.msra.mxu0 0
      %1042 = vmatprep.subr.bf16.mxu0 0
      %1043 = vmatpush2.bf16.msra.mxu0 0
      %1044 = vmatprep.mubr.bf16.mxu0 0
      %1045 = vmatmul.mubr.bf16.gmra.mxu0 %v969
      %v1046 = vpop.f32.mrf.mxu0
      %v1047 = vadd.f32 0.0, %v1046
      %v1048 = vpop.f32.mrf.mxu0
      %v1049 = vpop.f32.mrf.mxu0
      %v1050 = vpop.f32.mrf.mxu0
      %1051 = vdwg.mxu0
      %1052 = vrot.lane.b32.xlu0 %v640, 110
      %v1053 = vpop.permute.xlu0 %1052
      %1054 = vrot.lane.b32.xlu0 %v641, 110
      %v1055 = vpop.permute.xlu0 %1054
      %1056 = vrot.lane.b32.xlu0 %v642, 110
      %v1057 = vpop.permute.xlu0 %1056
      %1058 = vrot.lane.b32.xlu0 %v643, 110
      %v1059 = vpop.permute.xlu0 %1058
      %v1060 = vsel %vm961, %v1053, %v1055
      %v1061 = vsel %vm961, %v1055, %v1057
      %v1062 = vsel %vm961, %v1057, %v1059
      %v1067 = vsel %vm316, %v950, 0
      %1069 = vmatprep.subr.bf16.mxu0 0
      %1070 = vmatpush1.bf16.msra.mxu0 0
      %1071 = vmatprep.subr.bf16.mxu0 0
      %1072 = vmatpush1.bf16.msra.mxu0 0
      %1073 = vmatprep.subr.bf16.mxu0 0
      %1074 = vmatpush1.bf16.msra.mxu0 0
      %1075 = vmatprep.subr.bf16.mxu0 0
      %1076 = vmatpush1.bf16.msra.mxu0 0
      %1077 = vmatprep.subr.bf16.mxu0 0
      %1078 = vmatpush1.bf16.msra.mxu0 0
      %1079 = vmatprep.subr.bf16.mxu0 0
      %1080 = vmatpush1.bf16.msra.mxu0 0
      %1081 = vmatprep.subr.bf16.mxu0 0
      %1082 = vmatpush1.bf16.msra.mxu0 0
      %1083 = vmatprep.subr.bf16.mxu0 %v1061
      %1084 = vmatpush1.bf16.msra.mxu0 %v1060
      %1085 = vmatprep.subr.bf16.mxu0 0
      %1086 = vmatpush2.bf16.msra.mxu0 0
      %1087 = vmatprep.subr.bf16.mxu0 0
      %1088 = vmatpush2.bf16.msra.mxu0 0
      %1089 = vmatprep.subr.bf16.mxu0 0
      %1090 = vmatpush2.bf16.msra.mxu0 0
      %1091 = vmatprep.subr.bf16.mxu0 0
      %1092 = vmatpush2.bf16.msra.mxu0 0
      %1093 = vmatprep.subr.bf16.mxu0 0
      %1094 = vmatpush2.bf16.msra.mxu0 0
      %1095 = vmatprep.subr.bf16.mxu0 0
      %1096 = vmatpush2.bf16.msra.mxu0 0
      %1097 = vmatprep.subr.bf16.mxu0 0
      %1098 = vmatpush2.bf16.msra.mxu0 0
      %1099 = vmatprep.subr.bf16.mxu0 0
      %1100 = vmatpush2.bf16.msra.mxu0 0
      %1101 = vmatprep.mubr.bf16.mxu0 0
      %1102 = vmatmul.mubr.bf16.gmra.mxu0 %v1067
      %v1103 = vpop.f32.mrf.mxu0
      %v1104 = vadd.f32 %v1006, %v1103
      %v1105 = vpop.f32.mrf.mxu0
      %v1106 = vadd.f32 %v1008, %v1105
      %v1107 = vpop.f32.mrf.mxu0
      %v1108 = vpop.f32.mrf.mxu0
      %1109 = vdwg.mxu0
      %1110 = vmatprep.subr.bf16.mxu0 0
      %1111 = vmatpush1.bf16.msra.mxu0 0
      %1112 = vmatprep.subr.bf16.mxu0 0
      %1113 = vmatpush1.bf16.msra.mxu0 0
      %1114 = vmatprep.subr.bf16.mxu0 0
      %1115 = vmatpush1.bf16.msra.mxu0 0
      %1116 = vmatprep.subr.bf16.mxu0 0
      %1117 = vmatpush1.bf16.msra.mxu0 0
      %1118 = vmatprep.subr.bf16.mxu0 0
      %1119 = vmatpush1.bf16.msra.mxu0 0
      %1120 = vmatprep.subr.bf16.mxu0 0
      %1121 = vmatpush1.bf16.msra.mxu0 0
      %1122 = vmatprep.subr.bf16.mxu0 0
      %1123 = vmatpush1.bf16.msra.mxu0 0
      %1124 = vmatprep.subr.bf16.mxu0 0
      %1125 = vmatpush1.bf16.msra.mxu0 %v1062
      %1126 = vmatprep.subr.bf16.mxu0 0
      %1127 = vmatpush2.bf16.msra.mxu0 0
      %1128 = vmatprep.subr.bf16.mxu0 0
      %1129 = vmatpush2.bf16.msra.mxu0 0
      %1130 = vmatprep.subr.bf16.mxu0 0
      %1131 = vmatpush2.bf16.msra.mxu0 0
      %1132 = vmatprep.subr.bf16.mxu0 0
      %1133 = vmatpush2.bf16.msra.mxu0 0
      %1134 = vmatprep.subr.bf16.mxu0 0
      %1135 = vmatpush2.bf16.msra.mxu0 0
      %1136 = vmatprep.subr.bf16.mxu0 0
      %1137 = vmatpush2.bf16.msra.mxu0 0
      %1138 = vmatprep.subr.bf16.mxu0 0
      %1139 = vmatpush2.bf16.msra.mxu0 0
      %1140 = vmatprep.subr.bf16.mxu0 0
      %1141 = vmatpush2.bf16.msra.mxu0 0
      %1142 = vmatprep.mubr.bf16.mxu0 0
      %1143 = vmatmul.mubr.bf16.gmra.mxu0 %v1067
      %v1144 = vpop.f32.mrf.mxu0
      %v1145 = vadd.f32 %v1047, %v1144
      %v1146 = vpop.f32.mrf.mxu0
      %v1147 = vpop.f32.mrf.mxu0
      %v1148 = vpop.f32.mrf.mxu0
      %1149 = vdwg.mxu0
      %v1150 = vadd.f32 %v946, %v1104
      %v1151 = vadd.f32 %v947, %v1106
      %v1152 = vadd.f32 %v948, %v1145
      %s1153 = scalar_lea.vmem %s2, 16
      %v1154 = vld [vmem:[%s1153] sm:$0xf]
      %s1155 = scalar_lea.vmem %s3, 16
      %v1156 = vld [vmem:[%s1155] sm:$0xf]
      %1157 = vrot.lane.b32.xlu0 %v525, 109
      %v1158 = vpop.permute.xlu0 %1157
      %1159 = vrot.lane.b32.xlu0 %v526, 109
      %v1160 = vpop.permute.xlu0 %1159
      %1161 = vrot.lane.b32.xlu0 %v527, 109
      %v1162 = vpop.permute.xlu0 %1161
      %1163 = vrot.lane.b32.xlu0 %v528, 109
      %v1164 = vpop.permute.xlu0 %1163
      %vm1165 = vcmask 891904
      %v1166 = vsel %vm1165, %v1158, %v1160
      %v1167 = vsel %vm1165, %v1160, %v1162
      %v1168 = vsel %vm1165, %v1162, %v1164
      %v1173 = vsel %vm316, %v1156, 0
      %1175 = vmatprep.subr.bf16.mxu0 0
      %1176 = vmatpush1.bf16.msra.mxu0 0
      %1177 = vmatprep.subr.bf16.mxu0 0
      %1178 = vmatpush1.bf16.msra.mxu0 0
      %1179 = vmatprep.subr.bf16.mxu0 0
      %1180 = vmatpush1.bf16.msra.mxu0 0
      %1181 = vmatprep.subr.bf16.mxu0 0
      %1182 = vmatpush1.bf16.msra.mxu0 0
      %1183 = vmatprep.subr.bf16.mxu0 0
      %1184 = vmatpush1.bf16.msra.mxu0 0
      %1185 = vmatprep.subr.bf16.mxu0 0
      %1186 = vmatpush1.bf16.msra.mxu0 0
      %1187 = vmatprep.subr.bf16.mxu0 0
      %1188 = vmatpush1.bf16.msra.mxu0 0
      %1189 = vmatprep.subr.bf16.mxu0 %v1167
      %1190 = vmatpush1.bf16.msra.mxu0 %v1166
      %1191 = vmatprep.subr.bf16.mxu0 0
      %1192 = vmatpush2.bf16.msra.mxu0 0
      %1193 = vmatprep.subr.bf16.mxu0 0
      %1194 = vmatpush2.bf16.msra.mxu0 0
      %1195 = vmatprep.subr.bf16.mxu0 0
      %1196 = vmatpush2.bf16.msra.mxu0 0
      %1197 = vmatprep.subr.bf16.mxu0 0
      %1198 = vmatpush2.bf16.msra.mxu0 0
      %1199 = vmatprep.subr.bf16.mxu0 0
      %1200 = vmatpush2.bf16.msra.mxu0 0
      %1201 = vmatprep.subr.bf16.mxu0 0
      %1202 = vmatpush2.bf16.msra.mxu0 0
      %1203 = vmatprep.subr.bf16.mxu0 0
      %1204 = vmatpush2.bf16.msra.mxu0 0
      %1205 = vmatprep.subr.bf16.mxu0 0
      %1206 = vmatpush2.bf16.msra.mxu0 0
      %1207 = vmatprep.mubr.bf16.mxu0 0
      %1208 = vmatmul.mubr.bf16.gmra.mxu0 %v1173
      %v1209 = vpop.f32.mrf.mxu0
      %v1210 = vadd.f32 0.0, %v1209
      %v1211 = vpop.f32.mrf.mxu0
      %v1212 = vadd.f32 0.0, %v1211
      %v1213 = vpop.f32.mrf.mxu0
      %v1214 = vpop.f32.mrf.mxu0
      %1215 = vdwg.mxu0
      %1216 = vmatprep.subr.bf16.mxu0 0
      %1217 = vmatpush1.bf16.msra.mxu0 0
      %1218 = vmatprep.subr.bf16.mxu0 0
      %1219 = vmatpush1.bf16.msra.mxu0 0
      %1220 = vmatprep.subr.bf16.mxu0 0
      %1221 = vmatpush1.bf16.msra.mxu0 0
      %1222 = vmatprep.subr.bf16.mxu0 0
      %1223 = vmatpush1.bf16.msra.mxu0 0
      %1224 = vmatprep.subr.bf16.mxu0 0
      %1225 = vmatpush1.bf16.msra.mxu0 0
      %1226 = vmatprep.subr.bf16.mxu0 0
      %1227 = vmatpush1.bf16.msra.mxu0 0
      %1228 = vmatprep.subr.bf16.mxu0 0
      %1229 = vmatpush1.bf16.msra.mxu0 0
      %1230 = vmatprep.subr.bf16.mxu0 0
      %1231 = vmatpush1.bf16.msra.mxu0 %v1168
      %1232 = vmatprep.subr.bf16.mxu0 0
      %1233 = vmatpush2.bf16.msra.mxu0 0
      %1234 = vmatprep.subr.bf16.mxu0 0
      %1235 = vmatpush2.bf16.msra.mxu0 0
      %1236 = vmatprep.subr.bf16.mxu0 0
      %1237 = vmatpush2.bf16.msra.mxu0 0
      %1238 = vmatprep.subr.bf16.mxu0 0
      %1239 = vmatpush2.bf16.msra.mxu0 0
      %1240 = vmatprep.subr.bf16.mxu0 0
      %1241 = vmatpush2.bf16.msra.mxu0 0
      %1242 = vmatprep.subr.bf16.mxu0 0
      %1243 = vmatpush2.bf16.msra.mxu0 0
      %1244 = vmatprep.subr.bf16.mxu0 0
      %1245 = vmatpush2.bf16.msra.mxu0 0
      %1246 = vmatprep.subr.bf16.mxu0 0
      %1247 = vmatpush2.bf16.msra.mxu0 0
      %1248 = vmatprep.mubr.bf16.mxu0 0
      %1249 = vmatmul.mubr.bf16.gmra.mxu0 %v1173
      %v1250 = vpop.f32.mrf.mxu0
      %v1251 = vadd.f32 0.0, %v1250
      %v1252 = vpop.f32.mrf.mxu0
      %v1253 = vpop.f32.mrf.mxu0
      %v1254 = vpop.f32.mrf.mxu0
      %1255 = vdwg.mxu0
      %1256 = vrot.lane.b32.xlu0 %v640, 109
      %v1257 = vpop.permute.xlu0 %1256
      %1258 = vrot.lane.b32.xlu0 %v641, 109
      %v1259 = vpop.permute.xlu0 %1258
      %1260 = vrot.lane.b32.xlu0 %v642, 109
      %v1261 = vpop.permute.xlu0 %1260
      %1262 = vrot.lane.b32.xlu0 %v643, 109
      %v1263 = vpop.permute.xlu0 %1262
      %v1264 = vsel %vm1165, %v1257, %v1259
      %v1265 = vsel %vm1165, %v1259, %v1261
      %v1266 = vsel %vm1165, %v1261, %v1263
      %v1271 = vsel %vm316, %v1154, 0
      %1273 = vmatprep.subr.bf16.mxu0 0
      %1274 = vmatpush1.bf16.msra.mxu0 0
      %1275 = vmatprep.subr.bf16.mxu0 0
      %1276 = vmatpush1.bf16.msra.mxu0 0
      %1277 = vmatprep.subr.bf16.mxu0 0
      %1278 = vmatpush1.bf16.msra.mxu0 0
      %1279 = vmatprep.subr.bf16.mxu0 0
      %1280 = vmatpush1.bf16.msra.mxu0 0
      %1281 = vmatprep.subr.bf16.mxu0 0
      %1282 = vmatpush1.bf16.msra.mxu0 0
      %1283 = vmatprep.subr.bf16.mxu0 0
      %1284 = vmatpush1.bf16.msra.mxu0 0
      %1285 = vmatprep.subr.bf16.mxu0 0
      %1286 = vmatpush1.bf16.msra.mxu0 0
      %1287 = vmatprep.subr.bf16.mxu0 %v1265
      %1288 = vmatpush1.bf16.msra.mxu0 %v1264
      %1289 = vmatprep.subr.bf16.mxu0 0
      %1290 = vmatpush2.bf16.msra.mxu0 0
      %1291 = vmatprep.subr.bf16.mxu0 0
      %1292 = vmatpush2.bf16.msra.mxu0 0
      %1293 = vmatprep.subr.bf16.mxu0 0
      %1294 = vmatpush2.bf16.msra.mxu0 0
      %1295 = vmatprep.subr.bf16.mxu0 0
      %1296 = vmatpush2.bf16.msra.mxu0 0
      %1297 = vmatprep.subr.bf16.mxu0 0
      %1298 = vmatpush2.bf16.msra.mxu0 0
      %1299 = vmatprep.subr.bf16.mxu0 0
      %1300 = vmatpush2.bf16.msra.mxu0 0
      %1301 = vmatprep.subr.bf16.mxu0 0
      %1302 = vmatpush2.bf16.msra.mxu0 0
      %1303 = vmatprep.subr.bf16.mxu0 0
      %1304 = vmatpush2.bf16.msra.mxu0 0
      %1305 = vmatprep.mubr.bf16.mxu0 0
      %1306 = vmatmul.mubr.bf16.gmra.mxu0 %v1271
      %v1307 = vpop.f32.mrf.mxu0
      %v1308 = vadd.f32 %v1210, %v1307
      %v1309 = vpop.f32.mrf.mxu0
      %v1310 = vadd.f32 %v1212, %v1309
      %v1311 = vpop.f32.mrf.mxu0
      %v1312 = vpop.f32.mrf.mxu0
      %1313 = vdwg.mxu0
      %1314 = vmatprep.subr.bf16.mxu0 0
      %1315 = vmatpush1.bf16.msra.mxu0 0
      %1316 = vmatprep.subr.bf16.mxu0 0
      %1317 = vmatpush1.bf16.msra.mxu0 0
      %1318 = vmatprep.subr.bf16.mxu0 0
      %1319 = vmatpush1.bf16.msra.mxu0 0
      %1320 = vmatprep.subr.bf16.mxu0 0
      %1321 = vmatpush1.bf16.msra.mxu0 0
      %1322 = vmatprep.subr.bf16.mxu0 0
      %1323 = vmatpush1.bf16.msra.mxu0 0
      %1324 = vmatprep.subr.bf16.mxu0 0
      %1325 = vmatpush1.bf16.msra.mxu0 0
      %1326 = vmatprep.subr.bf16.mxu0 0
      %1327 = vmatpush1.bf16.msra.mxu0 0
      %1328 = vmatprep.subr.bf16.mxu0 0
      %1329 = vmatpush1.bf16.msra.mxu0 %v1266
      %1330 = vmatprep.subr.bf16.mxu0 0
      %1331 = vmatpush2.bf16.msra.mxu0 0
      %1332 = vmatprep.subr.bf16.mxu0 0
      %1333 = vmatpush2.bf16.msra.mxu0 0
      %1334 = vmatprep.subr.bf16.mxu0 0
      %1335 = vmatpush2.bf16.msra.mxu0 0
      %1336 = vmatprep.subr.bf16.mxu0 0
      %1337 = vmatpush2.bf16.msra.mxu0 0
      %1338 = vmatprep.subr.bf16.mxu0 0
      %1339 = vmatpush2.bf16.msra.mxu0 0
      %1340 = vmatprep.subr.bf16.mxu0 0
      %1341 = vmatpush2.bf16.msra.mxu0 0
      %1342 = vmatprep.subr.bf16.mxu0 0
      %1343 = vmatpush2.bf16.msra.mxu0 0
      %1344 = vmatprep.subr.bf16.mxu0 0
      %1345 = vmatpush2.bf16.msra.mxu0 0
      %1346 = vmatprep.mubr.bf16.mxu0 0
      %1347 = vmatmul.mubr.bf16.gmra.mxu0 %v1271
      %v1348 = vpop.f32.mrf.mxu0
      %v1349 = vadd.f32 %v1251, %v1348
      %v1350 = vpop.f32.mrf.mxu0
      %v1351 = vpop.f32.mrf.mxu0
      %v1352 = vpop.f32.mrf.mxu0
      %1353 = vdwg.mxu0
      %v1354 = vadd.f32 %v1150, %v1308
      %v1355 = vadd.f32 %v1151, %v1310
      %v1356 = vadd.f32 %v1152, %v1349
      %s1357 = scalar_lea.vmem %s2, 20
      %v1358 = vld [vmem:[%s1357] sm:$0xf]
      %s1359 = scalar_lea.vmem %s3, 20
      %v1360 = vld [vmem:[%s1359] sm:$0xf]
      %1361 = vrot.lane.b32.xlu0 %v525, 108
      %v1362 = vpop.permute.xlu0 %1361
      %1363 = vrot.lane.b32.xlu0 %v526, 108
      %v1364 = vpop.permute.xlu0 %1363
      %1365 = vrot.lane.b32.xlu0 %v527, 108
      %v1366 = vpop.permute.xlu0 %1365
      %1367 = vrot.lane.b32.xlu0 %v528, 108
      %v1368 = vpop.permute.xlu0 %1367
      %vm1369 = vcmask 883712
      %v1370 = vsel %vm1369, %v1362, %v1364
      %v1371 = vsel %vm1369, %v1364, %v1366
      %v1372 = vsel %vm1369, %v1366, %v1368
      %v1377 = vsel %vm316, %v1360, 0
      %1379 = vmatprep.subr.bf16.mxu0 0
      %1380 = vmatpush1.bf16.msra.mxu0 0
      %1381 = vmatprep.subr.bf16.mxu0 0
      %1382 = vmatpush1.bf16.msra.mxu0 0
      %1383 = vmatprep.subr.bf16.mxu0 0
      %1384 = vmatpush1.bf16.msra.mxu0 0
      %1385 = vmatprep.subr.bf16.mxu0 0
      %1386 = vmatpush1.bf16.msra.mxu0 0
      %1387 = vmatprep.subr.bf16.mxu0 0
      %1388 = vmatpush1.bf16.msra.mxu0 0
      %1389 = vmatprep.subr.bf16.mxu0 0
      %1390 = vmatpush1.bf16.msra.mxu0 0
      %1391 = vmatprep.subr.bf16.mxu0 0
      %1392 = vmatpush1.bf16.msra.mxu0 0
      %1393 = vmatprep.subr.bf16.mxu0 %v1371
      %1394 = vmatpush1.bf16.msra.mxu0 %v1370
      %1395 = vmatprep.subr.bf16.mxu0 0
      %1396 = vmatpush2.bf16.msra.mxu0 0
      %1397 = vmatprep.subr.bf16.mxu0 0
      %1398 = vmatpush2.bf16.msra.mxu0 0
      %1399 = vmatprep.subr.bf16.mxu0 0
      %1400 = vmatpush2.bf16.msra.mxu0 0
      %1401 = vmatprep.subr.bf16.mxu0 0
      %1402 = vmatpush2.bf16.msra.mxu0 0
      %1403 = vmatprep.subr.bf16.mxu0 0
      %1404 = vmatpush2.bf16.msra.mxu0 0
      %1405 = vmatprep.subr.bf16.mxu0 0
      %1406 = vmatpush2.bf16.msra.mxu0 0
      %1407 = vmatprep.subr.bf16.mxu0 0
      %1408 = vmatpush2.bf16.msra.mxu0 0
      %1409 = vmatprep.subr.bf16.mxu0 0
      %1410 = vmatpush2.bf16.msra.mxu0 0
      %1411 = vmatprep.mubr.bf16.mxu0 0
      %1412 = vmatmul.mubr.bf16.gmra.mxu0 %v1377
      %v1413 = vpop.f32.mrf.mxu0
      %v1414 = vadd.f32 0.0, %v1413
      %v1415 = vpop.f32.mrf.mxu0
      %v1416 = vadd.f32 0.0, %v1415
      %v1417 = vpop.f32.mrf.mxu0
      %v1418 = vpop.f32.mrf.mxu0
      %1419 = vdwg.mxu0
      %1420 = vmatprep.subr.bf16.mxu0 0
      %1421 = vmatpush1.bf16.msra.mxu0 0
      %1422 = vmatprep.subr.bf16.mxu0 0
      %1423 = vmatpush1.bf16.msra.mxu0 0
      %1424 = vmatprep.subr.bf16.mxu0 0
      %1425 = vmatpush1.bf16.msra.mxu0 0
      %1426 = vmatprep.subr.bf16.mxu0 0
      %1427 = vmatpush1.bf16.msra.mxu0 0
      %1428 = vmatprep.subr.bf16.mxu0 0
      %1429 = vmatpush1.bf16.msra.mxu0 0
      %1430 = vmatprep.subr.bf16.mxu0 0
      %1431 = vmatpush1.bf16.msra.mxu0 0
      %1432 = vmatprep.subr.bf16.mxu0 0
      %1433 = vmatpush1.bf16.msra.mxu0 0
      %1434 = vmatprep.subr.bf16.mxu0 0
      %1435 = vmatpush1.bf16.msra.mxu0 %v1372
      %1436 = vmatprep.subr.bf16.mxu0 0
      %1437 = vmatpush2.bf16.msra.mxu0 0
      %1438 = vmatprep.subr.bf16.mxu0 0
      %1439 = vmatpush2.bf16.msra.mxu0 0
      %1440 = vmatprep.subr.bf16.mxu0 0
      %1441 = vmatpush2.bf16.msra.mxu0 0
      %1442 = vmatprep.subr.bf16.mxu0 0
      %1443 = vmatpush2.bf16.msra.mxu0 0
      %1444 = vmatprep.subr.bf16.mxu0 0
      %1445 = vmatpush2.bf16.msra.mxu0 0
      %1446 = vmatprep.subr.bf16.mxu0 0
      %1447 = vmatpush2.bf16.msra.mxu0 0
      %1448 = vmatprep.subr.bf16.mxu0 0
      %1449 = vmatpush2.bf16.msra.mxu0 0
      %1450 = vmatprep.subr.bf16.mxu0 0
      %1451 = vmatpush2.bf16.msra.mxu0 0
      %1452 = vmatprep.mubr.bf16.mxu0 0
      %1453 = vmatmul.mubr.bf16.gmra.mxu0 %v1377
      %v1454 = vpop.f32.mrf.mxu0
      %v1455 = vadd.f32 0.0, %v1454
      %v1456 = vpop.f32.mrf.mxu0
      %v1457 = vpop.f32.mrf.mxu0
      %v1458 = vpop.f32.mrf.mxu0
      %1459 = vdwg.mxu0
      %1460 = vrot.lane.b32.xlu0 %v640, 108
      %v1461 = vpop.permute.xlu0 %1460
      %1462 = vrot.lane.b32.xlu0 %v641, 108
      %v1463 = vpop.permute.xlu0 %1462
      %1464 = vrot.lane.b32.xlu0 %v642, 108
      %v1465 = vpop.permute.xlu0 %1464
      %1466 = vrot.lane.b32.xlu0 %v643, 108
      %v1467 = vpop.permute.xlu0 %1466
      %v1468 = vsel %vm1369, %v1461, %v1463
      %v1469 = vsel %vm1369, %v1463, %v1465
      %v1470 = vsel %vm1369, %v1465, %v1467
      %v1475 = vsel %vm316, %v1358, 0
      %1477 = vmatprep.subr.bf16.mxu0 0
      %1478 = vmatpush1.bf16.msra.mxu0 0
      %1479 = vmatprep.subr.bf16.mxu0 0
      %1480 = vmatpush1.bf16.msra.mxu0 0
      %1481 = vmatprep.subr.bf16.mxu0 0
      %1482 = vmatpush1.bf16.msra.mxu0 0
      %1483 = vmatprep.subr.bf16.mxu0 0
      %1484 = vmatpush1.bf16.msra.mxu0 0
      %1485 = vmatprep.subr.bf16.mxu0 0
      %1486 = vmatpush1.bf16.msra.mxu0 0
      %1487 = vmatprep.subr.bf16.mxu0 0
      %1488 = vmatpush1.bf16.msra.mxu0 0
      %1489 = vmatprep.subr.bf16.mxu0 0
      %1490 = vmatpush1.bf16.msra.mxu0 0
      %1491 = vmatprep.subr.bf16.mxu0 %v1469
      %1492 = vmatpush1.bf16.msra.mxu0 %v1468
      %1493 = vmatprep.subr.bf16.mxu0 0
      %1494 = vmatpush2.bf16.msra.mxu0 0
      %1495 = vmatprep.subr.bf16.mxu0 0
      %1496 = vmatpush2.bf16.msra.mxu0 0
      %1497 = vmatprep.subr.bf16.mxu0 0
      %1498 = vmatpush2.bf16.msra.mxu0 0
      %1499 = vmatprep.subr.bf16.mxu0 0
      %1500 = vmatpush2.bf16.msra.mxu0 0
      %1501 = vmatprep.subr.bf16.mxu0 0
      %1502 = vmatpush2.bf16.msra.mxu0 0
      %1503 = vmatprep.subr.bf16.mxu0 0
      %1504 = vmatpush2.bf16.msra.mxu0 0
      %1505 = vmatprep.subr.bf16.mxu0 0
      %1506 = vmatpush2.bf16.msra.mxu0 0
      %1507 = vmatprep.subr.bf16.mxu0 0
      %1508 = vmatpush2.bf16.msra.mxu0 0
      %1509 = vmatprep.mubr.bf16.mxu0 0
      %1510 = vmatmul.mubr.bf16.gmra.mxu0 %v1475
      %v1511 = vpop.f32.mrf.mxu0
      %v1512 = vadd.f32 %v1414, %v1511
      %v1513 = vpop.f32.mrf.mxu0
      %v1514 = vadd.f32 %v1416, %v1513
      %v1515 = vpop.f32.mrf.mxu0
      %v1516 = vpop.f32.mrf.mxu0
      %1517 = vdwg.mxu0
      %1518 = vmatprep.subr.bf16.mxu0 0
      %1519 = vmatpush1.bf16.msra.mxu0 0
      %1520 = vmatprep.subr.bf16.mxu0 0
      %1521 = vmatpush1.bf16.msra.mxu0 0
      %1522 = vmatprep.subr.bf16.mxu0 0
      %1523 = vmatpush1.bf16.msra.mxu0 0
      %1524 = vmatprep.subr.bf16.mxu0 0
      %1525 = vmatpush1.bf16.msra.mxu0 0
      %1526 = vmatprep.subr.bf16.mxu0 0
      %1527 = vmatpush1.bf16.msra.mxu0 0
      %1528 = vmatprep.subr.bf16.mxu0 0
      %1529 = vmatpush1.bf16.msra.mxu0 0
      %1530 = vmatprep.subr.bf16.mxu0 0
      %1531 = vmatpush1.bf16.msra.mxu0 0
      %1532 = vmatprep.subr.bf16.mxu0 0
      %1533 = vmatpush1.bf16.msra.mxu0 %v1470
      %1534 = vmatprep.subr.bf16.mxu0 0
      %1535 = vmatpush2.bf16.msra.mxu0 0
      %1536 = vmatprep.subr.bf16.mxu0 0
      %1537 = vmatpush2.bf16.msra.mxu0 0
      %1538 = vmatprep.subr.bf16.mxu0 0
      %1539 = vmatpush2.bf16.msra.mxu0 0
      %1540 = vmatprep.subr.bf16.mxu0 0
      %1541 = vmatpush2.bf16.msra.mxu0 0
      %1542 = vmatprep.subr.bf16.mxu0 0
      %1543 = vmatpush2.bf16.msra.mxu0 0
      %1544 = vmatprep.subr.bf16.mxu0 0
      %1545 = vmatpush2.bf16.msra.mxu0 0
      %1546 = vmatprep.subr.bf16.mxu0 0
      %1547 = vmatpush2.bf16.msra.mxu0 0
      %1548 = vmatprep.subr.bf16.mxu0 0
      %1549 = vmatpush2.bf16.msra.mxu0 0
      %1550 = vmatprep.mubr.bf16.mxu0 0
      %1551 = vmatmul.mubr.bf16.gmra.mxu0 %v1475
      %v1552 = vpop.f32.mrf.mxu0
      %v1553 = vadd.f32 %v1455, %v1552
      %v1554 = vpop.f32.mrf.mxu0
      %v1555 = vpop.f32.mrf.mxu0
      %v1556 = vpop.f32.mrf.mxu0
      %1557 = vdwg.mxu0
      %v1558 = vadd.f32 %v1354, %v1512
      %v1559 = vadd.f32 %v1355, %v1514
      %v1560 = vadd.f32 %v1356, %v1553
      %s1561 = scalar_lea.vmem %s2, 24
      %v1562 = vld [vmem:[%s1561] sm:$0xf]
      %s1563 = scalar_lea.vmem %s3, 24
      %v1564 = vld [vmem:[%s1563] sm:$0xf]
      %1565 = vrot.lane.b32.xlu0 %v525, 92
      %v1566 = vpop.permute.xlu0 %1565
      %1567 = vrot.lane.b32.xlu0 %v526, 92
      %v1568 = vpop.permute.xlu0 %1567
      %1569 = vrot.lane.b32.xlu0 %v527, 92
      %v1570 = vpop.permute.xlu0 %1569
      %1571 = vrot.lane.b32.xlu0 %v528, 92
      %v1572 = vpop.permute.xlu0 %1571
      %vm1573 = vcmask 752640
      %v1574 = vsel %vm1573, %v1566, %v1568
      %v1575 = vsel %vm1573, %v1568, %v1570
      %v1576 = vsel %vm1573, %v1570, %v1572
      %v1581 = vsel %vm316, %v1564, 0
      %1583 = vmatprep.subr.bf16.mxu0 0
      %1584 = vmatpush1.bf16.msra.mxu0 0
      %1585 = vmatprep.subr.bf16.mxu0 0
      %1586 = vmatpush1.bf16.msra.mxu0 0
      %1587 = vmatprep.subr.bf16.mxu0 0
      %1588 = vmatpush1.bf16.msra.mxu0 0
      %1589 = vmatprep.subr.bf16.mxu0 0
      %1590 = vmatpush1.bf16.msra.mxu0 0
      %1591 = vmatprep.subr.bf16.mxu0 0
      %1592 = vmatpush1.bf16.msra.mxu0 0
      %1593 = vmatprep.subr.bf16.mxu0 0
      %1594 = vmatpush1.bf16.msra.mxu0 0
      %1595 = vmatprep.subr.bf16.mxu0 0
      %1596 = vmatpush1.bf16.msra.mxu0 0
      %1597 = vmatprep.subr.bf16.mxu0 %v1575
      %1598 = vmatpush1.bf16.msra.mxu0 %v1574
      %1599 = vmatprep.subr.bf16.mxu0 0
      %1600 = vmatpush2.bf16.msra.mxu0 0
      %1601 = vmatprep.subr.bf16.mxu0 0
      %1602 = vmatpush2.bf16.msra.mxu0 0
      %1603 = vmatprep.subr.bf16.mxu0 0
      %1604 = vmatpush2.bf16.msra.mxu0 0
      %1605 = vmatprep.subr.bf16.mxu0 0
      %1606 = vmatpush2.bf16.msra.mxu0 0
      %1607 = vmatprep.subr.bf16.mxu0 0
      %1608 = vmatpush2.bf16.msra.mxu0 0
      %1609 = vmatprep.subr.bf16.mxu0 0
      %1610 = vmatpush2.bf16.msra.mxu0 0
      %1611 = vmatprep.subr.bf16.mxu0 0
      %1612 = vmatpush2.bf16.msra.mxu0 0
      %1613 = vmatprep.subr.bf16.mxu0 0
      %1614 = vmatpush2.bf16.msra.mxu0 0
      %1615 = vmatprep.mubr.bf16.mxu0 0
      %1616 = vmatmul.mubr.bf16.gmra.mxu0 %v1581
      %v1617 = vpop.f32.mrf.mxu0
      %v1618 = vadd.f32 0.0, %v1617
      %v1619 = vpop.f32.mrf.mxu0
      %v1620 = vadd.f32 0.0, %v1619
      %v1621 = vpop.f32.mrf.mxu0
      %v1622 = vpop.f32.mrf.mxu0
      %1623 = vdwg.mxu0
      %1624 = vmatprep.subr.bf16.mxu0 0
      %1625 = vmatpush1.bf16.msra.mxu0 0
      %1626 = vmatprep.subr.bf16.mxu0 0
      %1627 = vmatpush1.bf16.msra.mxu0 0
      %1628 = vmatprep.subr.bf16.mxu0 0
      %1629 = vmatpush1.bf16.msra.mxu0 0
      %1630 = vmatprep.subr.bf16.mxu0 0
      %1631 = vmatpush1.bf16.msra.mxu0 0
      %1632 = vmatprep.subr.bf16.mxu0 0
      %1633 = vmatpush1.bf16.msra.mxu0 0
      %1634 = vmatprep.subr.bf16.mxu0 0
      %1635 = vmatpush1.bf16.msra.mxu0 0
      %1636 = vmatprep.subr.bf16.mxu0 0
      %1637 = vmatpush1.bf16.msra.mxu0 0
      %1638 = vmatprep.subr.bf16.mxu0 0
      %1639 = vmatpush1.bf16.msra.mxu0 %v1576
      %1640 = vmatprep.subr.bf16.mxu0 0
      %1641 = vmatpush2.bf16.msra.mxu0 0
      %1642 = vmatprep.subr.bf16.mxu0 0
      %1643 = vmatpush2.bf16.msra.mxu0 0
      %1644 = vmatprep.subr.bf16.mxu0 0
      %1645 = vmatpush2.bf16.msra.mxu0 0
      %1646 = vmatprep.subr.bf16.mxu0 0
      %1647 = vmatpush2.bf16.msra.mxu0 0
      %1648 = vmatprep.subr.bf16.mxu0 0
      %1649 = vmatpush2.bf16.msra.mxu0 0
      %1650 = vmatprep.subr.bf16.mxu0 0
      %1651 = vmatpush2.bf16.msra.mxu0 0
      %1652 = vmatprep.subr.bf16.mxu0 0
      %1653 = vmatpush2.bf16.msra.mxu0 0
      %1654 = vmatprep.subr.bf16.mxu0 0
      %1655 = vmatpush2.bf16.msra.mxu0 0
      %1656 = vmatprep.mubr.bf16.mxu0 0
      %1657 = vmatmul.mubr.bf16.gmra.mxu0 %v1581
      %v1658 = vpop.f32.mrf.mxu0
      %v1659 = vadd.f32 0.0, %v1658
      %v1660 = vpop.f32.mrf.mxu0
      %v1661 = vpop.f32.mrf.mxu0
      %v1662 = vpop.f32.mrf.mxu0
      %1663 = vdwg.mxu0
      %1664 = vrot.lane.b32.xlu0 %v640, 92
      %v1665 = vpop.permute.xlu0 %1664
      %1666 = vrot.lane.b32.xlu0 %v641, 92
      %v1667 = vpop.permute.xlu0 %1666
      %1668 = vrot.lane.b32.xlu0 %v642, 92
      %v1669 = vpop.permute.xlu0 %1668
      %1670 = vrot.lane.b32.xlu0 %v643, 92
      %v1671 = vpop.permute.xlu0 %1670
      %v1672 = vsel %vm1573, %v1665, %v1667
      %v1673 = vsel %vm1573, %v1667, %v1669
      %v1674 = vsel %vm1573, %v1669, %v1671
      %v1679 = vsel %vm316, %v1562, 0
      %1681 = vmatprep.subr.bf16.mxu0 0
      %1682 = vmatpush1.bf16.msra.mxu0 0
      %1683 = vmatprep.subr.bf16.mxu0 0
      %1684 = vmatpush1.bf16.msra.mxu0 0
      %1685 = vmatprep.subr.bf16.mxu0 0
      %1686 = vmatpush1.bf16.msra.mxu0 0
      %1687 = vmatprep.subr.bf16.mxu0 0
      %1688 = vmatpush1.bf16.msra.mxu0 0
      %1689 = vmatprep.subr.bf16.mxu0 0
      %1690 = vmatpush1.bf16.msra.mxu0 0
      %1691 = vmatprep.subr.bf16.mxu0 0
      %1692 = vmatpush1.bf16.msra.mxu0 0
      %1693 = vmatprep.subr.bf16.mxu0 0
      %1694 = vmatpush1.bf16.msra.mxu0 0
      %1695 = vmatprep.subr.bf16.mxu0 %v1673
      %1696 = vmatpush1.bf16.msra.mxu0 %v1672
      %1697 = vmatprep.subr.bf16.mxu0 0
      %1698 = vmatpush2.bf16.msra.mxu0 0
      %1699 = vmatprep.subr.bf16.mxu0 0
      %1700 = vmatpush2.bf16.msra.mxu0 0
      %1701 = vmatprep.subr.bf16.mxu0 0
      %1702 = vmatpush2.bf16.msra.mxu0 0
      %1703 = vmatprep.subr.bf16.mxu0 0
      %1704 = vmatpush2.bf16.msra.mxu0 0
      %1705 = vmatprep.subr.bf16.mxu0 0
      %1706 = vmatpush2.bf16.msra.mxu0 0
      %1707 = vmatprep.subr.bf16.mxu0 0
      %1708 = vmatpush2.bf16.msra.mxu0 0
      %1709 = vmatprep.subr.bf16.mxu0 0
      %1710 = vmatpush2.bf16.msra.mxu0 0
      %1711 = vmatprep.subr.bf16.mxu0 0
      %1712 = vmatpush2.bf16.msra.mxu0 0
      %1713 = vmatprep.mubr.bf16.mxu0 0
      %1714 = vmatmul.mubr.bf16.gmra.mxu0 %v1679
      %v1715 = vpop.f32.mrf.mxu0
      %v1716 = vadd.f32 %v1618, %v1715
      %v1717 = vpop.f32.mrf.mxu0
      %v1718 = vadd.f32 %v1620, %v1717
      %v1719 = vpop.f32.mrf.mxu0
      %v1720 = vpop.f32.mrf.mxu0
      %1721 = vdwg.mxu0
      %1722 = vmatprep.subr.bf16.mxu0 0
      %1723 = vmatpush1.bf16.msra.mxu0 0
      %1724 = vmatprep.subr.bf16.mxu0 0
      %1725 = vmatpush1.bf16.msra.mxu0 0
      %1726 = vmatprep.subr.bf16.mxu0 0
      %1727 = vmatpush1.bf16.msra.mxu0 0
      %1728 = vmatprep.subr.bf16.mxu0 0
      %1729 = vmatpush1.bf16.msra.mxu0 0
      %1730 = vmatprep.subr.bf16.mxu0 0
      %1731 = vmatpush1.bf16.msra.mxu0 0
      %1732 = vmatprep.subr.bf16.mxu0 0
      %1733 = vmatpush1.bf16.msra.mxu0 0
      %1734 = vmatprep.subr.bf16.mxu0 0
      %1735 = vmatpush1.bf16.msra.mxu0 0
      %1736 = vmatprep.subr.bf16.mxu0 0
      %1737 = vmatpush1.bf16.msra.mxu0 %v1674
      %1738 = vmatprep.subr.bf16.mxu0 0
      %1739 = vmatpush2.bf16.msra.mxu0 0
      %1740 = vmatprep.subr.bf16.mxu0 0
      %1741 = vmatpush2.bf16.msra.mxu0 0
      %1742 = vmatprep.subr.bf16.mxu0 0
      %1743 = vmatpush2.bf16.msra.mxu0 0
      %1744 = vmatprep.subr.bf16.mxu0 0
      %1745 = vmatpush2.bf16.msra.mxu0 0
      %1746 = vmatprep.subr.bf16.mxu0 0
      %1747 = vmatpush2.bf16.msra.mxu0 0
      %1748 = vmatprep.subr.bf16.mxu0 0
      %1749 = vmatpush2.bf16.msra.mxu0 0
      %1750 = vmatprep.subr.bf16.mxu0 0
      %1751 = vmatpush2.bf16.msra.mxu0 0
      %1752 = vmatprep.subr.bf16.mxu0 0
      %1753 = vmatpush2.bf16.msra.mxu0 0
      %1754 = vmatprep.mubr.bf16.mxu0 0
      %1755 = vmatmul.mubr.bf16.gmra.mxu0 %v1679
      %v1756 = vpop.f32.mrf.mxu0
      %v1757 = vadd.f32 %v1659, %v1756
      %v1758 = vpop.f32.mrf.mxu0
      %v1759 = vpop.f32.mrf.mxu0
      %v1760 = vpop.f32.mrf.mxu0
      %1761 = vdwg.mxu0
      %v1762 = vadd.f32 %v1558, %v1716
      %v1763 = vadd.f32 %v1559, %v1718
      %v1764 = vadd.f32 %v1560, %v1757
      %s1765 = scalar_lea.vmem %s2, 28
      %v1766 = vld [vmem:[%s1765] sm:$0xf]
      %s1767 = scalar_lea.vmem %s3, 28
      %v1768 = vld [vmem:[%s1767] sm:$0xf]
      %1769 = vrot.lane.b32.xlu0 %v525, 91
      %v1770 = vpop.permute.xlu0 %1769
      %1771 = vrot.lane.b32.xlu0 %v526, 91
      %v1772 = vpop.permute.xlu0 %1771
      %1773 = vrot.lane.b32.xlu0 %v527, 91
      %v1774 = vpop.permute.xlu0 %1773
      %1775 = vrot.lane.b32.xlu0 %v528, 91
      %v1776 = vpop.permute.xlu0 %1775
      %vm1777 = vcmask 744448
      %v1778 = vsel %vm1777, %v1770, %v1772
      %v1779 = vsel %vm1777, %v1772, %v1774
      %v1780 = vsel %vm1777, %v1774, %v1776
      %v1785 = vsel %vm316, %v1768, 0
      %1787 = vmatprep.subr.bf16.mxu0 0
      %1788 = vmatpush1.bf16.msra.mxu0 0
      %1789 = vmatprep.subr.bf16.mxu0 0
      %1790 = vmatpush1.bf16.msra.mxu0 0
      %1791 = vmatprep.subr.bf16.mxu0 0
      %1792 = vmatpush1.bf16.msra.mxu0 0
      %1793 = vmatprep.subr.bf16.mxu0 0
      %1794 = vmatpush1.bf16.msra.mxu0 0
      %1795 = vmatprep.subr.bf16.mxu0 0
      %1796 = vmatpush1.bf16.msra.mxu0 0
      %1797 = vmatprep.subr.bf16.mxu0 0
      %1798 = vmatpush1.bf16.msra.mxu0 0
      %1799 = vmatprep.subr.bf16.mxu0 0
      %1800 = vmatpush1.bf16.msra.mxu0 0
      %1801 = vmatprep.subr.bf16.mxu0 %v1779
      %1802 = vmatpush1.bf16.msra.mxu0 %v1778
      %1803 = vmatprep.subr.bf16.mxu0 0
      %1804 = vmatpush2.bf16.msra.mxu0 0
      %1805 = vmatprep.subr.bf16.mxu0 0
      %1806 = vmatpush2.bf16.msra.mxu0 0
      %1807 = vmatprep.subr.bf16.mxu0 0
      %1808 = vmatpush2.bf16.msra.mxu0 0
      %1809 = vmatprep.subr.bf16.mxu0 0
      %1810 = vmatpush2.bf16.msra.mxu0 0
      %1811 = vmatprep.subr.bf16.mxu0 0
      %1812 = vmatpush2.bf16.msra.mxu0 0
      %1813 = vmatprep.subr.bf16.mxu0 0
      %1814 = vmatpush2.bf16.msra.mxu0 0
      %1815 = vmatprep.subr.bf16.mxu0 0
      %1816 = vmatpush2.bf16.msra.mxu0 0
      %1817 = vmatprep.subr.bf16.mxu0 0
      %1818 = vmatpush2.bf16.msra.mxu0 0
      %1819 = vmatprep.mubr.bf16.mxu0 0
      %1820 = vmatmul.mubr.bf16.gmra.mxu0 %v1785
      %v1821 = vpop.f32.mrf.mxu0
      %v1822 = vadd.f32 0.0, %v1821
      %v1823 = vpop.f32.mrf.mxu0
      %v1824 = vadd.f32 0.0, %v1823
      %v1825 = vpop.f32.mrf.mxu0
      %v1826 = vpop.f32.mrf.mxu0
      %1827 = vdwg.mxu0
      %1828 = vmatprep.subr.bf16.mxu0 0
      %1829 = vmatpush1.bf16.msra.mxu0 0
      %1830 = vmatprep.subr.bf16.mxu0 0
      %1831 = vmatpush1.bf16.msra.mxu0 0
      %1832 = vmatprep.subr.bf16.mxu0 0
      %1833 = vmatpush1.bf16.msra.mxu0 0
      %1834 = vmatprep.subr.bf16.mxu0 0
      %1835 = vmatpush1.bf16.msra.mxu0 0
      %1836 = vmatprep.subr.bf16.mxu0 0
      %1837 = vmatpush1.bf16.msra.mxu0 0
      %1838 = vmatprep.subr.bf16.mxu0 0
      %1839 = vmatpush1.bf16.msra.mxu0 0
      %1840 = vmatprep.subr.bf16.mxu0 0
      %1841 = vmatpush1.bf16.msra.mxu0 0
      %1842 = vmatprep.subr.bf16.mxu0 0
      %1843 = vmatpush1.bf16.msra.mxu0 %v1780
      %1844 = vmatprep.subr.bf16.mxu0 0
      %1845 = vmatpush2.bf16.msra.mxu0 0
      %1846 = vmatprep.subr.bf16.mxu0 0
      %1847 = vmatpush2.bf16.msra.mxu0 0
      %1848 = vmatprep.subr.bf16.mxu0 0
      %1849 = vmatpush2.bf16.msra.mxu0 0
      %1850 = vmatprep.subr.bf16.mxu0 0
      %1851 = vmatpush2.bf16.msra.mxu0 0
      %1852 = vmatprep.subr.bf16.mxu0 0
      %1853 = vmatpush2.bf16.msra.mxu0 0
      %1854 = vmatprep.subr.bf16.mxu0 0
      %1855 = vmatpush2.bf16.msra.mxu0 0
      %1856 = vmatprep.subr.bf16.mxu0 0
      %1857 = vmatpush2.bf16.msra.mxu0 0
      %1858 = vmatprep.subr.bf16.mxu0 0
      %1859 = vmatpush2.bf16.msra.mxu0 0
      %1860 = vmatprep.mubr.bf16.mxu0 0
      %1861 = vmatmul.mubr.bf16.gmra.mxu0 %v1785
      %v1862 = vpop.f32.mrf.mxu0
      %v1863 = vadd.f32 0.0, %v1862
      %v1864 = vpop.f32.mrf.mxu0
      %v1865 = vpop.f32.mrf.mxu0
      %v1866 = vpop.f32.mrf.mxu0
      %1867 = vdwg.mxu0
      %1868 = vrot.lane.b32.xlu0 %v640, 91
      %v1869 = vpop.permute.xlu0 %1868
      %1870 = vrot.lane.b32.xlu0 %v641, 91
      %v1871 = vpop.permute.xlu0 %1870
      %1872 = vrot.lane.b32.xlu0 %v642, 91
      %v1873 = vpop.permute.xlu0 %1872
      %1874 = vrot.lane.b32.xlu0 %v643, 91
      %v1875 = vpop.permute.xlu0 %1874
      %v1876 = vsel %vm1777, %v1869, %v1871
      %v1877 = vsel %vm1777, %v1871, %v1873
      %v1878 = vsel %vm1777, %v1873, %v1875
      %v1883 = vsel %vm316, %v1766, 0
      %1885 = vmatprep.subr.bf16.mxu0 0
      %1886 = vmatpush1.bf16.msra.mxu0 0
      %1887 = vmatprep.subr.bf16.mxu0 0
      %1888 = vmatpush1.bf16.msra.mxu0 0
      %1889 = vmatprep.subr.bf16.mxu0 0
      %1890 = vmatpush1.bf16.msra.mxu0 0
      %1891 = vmatprep.subr.bf16.mxu0 0
      %1892 = vmatpush1.bf16.msra.mxu0 0
      %1893 = vmatprep.subr.bf16.mxu0 0
      %1894 = vmatpush1.bf16.msra.mxu0 0
      %1895 = vmatprep.subr.bf16.mxu0 0
      %1896 = vmatpush1.bf16.msra.mxu0 0
      %1897 = vmatprep.subr.bf16.mxu0 0
      %1898 = vmatpush1.bf16.msra.mxu0 0
      %1899 = vmatprep.subr.bf16.mxu0 %v1877
      %1900 = vmatpush1.bf16.msra.mxu0 %v1876
      %1901 = vmatprep.subr.bf16.mxu0 0
      %1902 = vmatpush2.bf16.msra.mxu0 0
      %1903 = vmatprep.subr.bf16.mxu0 0
      %1904 = vmatpush2.bf16.msra.mxu0 0
      %1905 = vmatprep.subr.bf16.mxu0 0
      %1906 = vmatpush2.bf16.msra.mxu0 0
      %1907 = vmatprep.subr.bf16.mxu0 0
      %1908 = vmatpush2.bf16.msra.mxu0 0
      %1909 = vmatprep.subr.bf16.mxu0 0
      %1910 = vmatpush2.bf16.msra.mxu0 0
      %1911 = vmatprep.subr.bf16.mxu0 0
      %1912 = vmatpush2.bf16.msra.mxu0 0
      %1913 = vmatprep.subr.bf16.mxu0 0
      %1914 = vmatpush2.bf16.msra.mxu0 0
      %1915 = vmatprep.subr.bf16.mxu0 0
      %1916 = vmatpush2.bf16.msra.mxu0 0
      %1917 = vmatprep.mubr.bf16.mxu0 0
      %1918 = vmatmul.mubr.bf16.gmra.mxu0 %v1883
      %v1919 = vpop.f32.mrf.mxu0
      %v1920 = vadd.f32 %v1822, %v1919
      %v1921 = vpop.f32.mrf.mxu0
      %v1922 = vadd.f32 %v1824, %v1921
      %v1923 = vpop.f32.mrf.mxu0
      %v1924 = vpop.f32.mrf.mxu0
      %1925 = vdwg.mxu0
      %1926 = vmatprep.subr.bf16.mxu0 0
      %1927 = vmatpush1.bf16.msra.mxu0 0
      %1928 = vmatprep.subr.bf16.mxu0 0
      %1929 = vmatpush1.bf16.msra.mxu0 0
      %1930 = vmatprep.subr.bf16.mxu0 0
      %1931 = vmatpush1.bf16.msra.mxu0 0
      %1932 = vmatprep.subr.bf16.mxu0 0
      %1933 = vmatpush1.bf16.msra.mxu0 0
      %1934 = vmatprep.subr.bf16.mxu0 0
      %1935 = vmatpush1.bf16.msra.mxu0 0
      %1936 = vmatprep.subr.bf16.mxu0 0
      %1937 = vmatpush1.bf16.msra.mxu0 0
      %1938 = vmatprep.subr.bf16.mxu0 0
      %1939 = vmatpush1.bf16.msra.mxu0 0
      %1940 = vmatprep.subr.bf16.mxu0 0
      %1941 = vmatpush1.bf16.msra.mxu0 %v1878
      %1942 = vmatprep.subr.bf16.mxu0 0
      %1943 = vmatpush2.bf16.msra.mxu0 0
      %1944 = vmatprep.subr.bf16.mxu0 0
      %1945 = vmatpush2.bf16.msra.mxu0 0
      %1946 = vmatprep.subr.bf16.mxu0 0
      %1947 = vmatpush2.bf16.msra.mxu0 0
      %1948 = vmatprep.subr.bf16.mxu0 0
      %1949 = vmatpush2.bf16.msra.mxu0 0
      %1950 = vmatprep.subr.bf16.mxu0 0
      %1951 = vmatpush2.bf16.msra.mxu0 0
      %1952 = vmatprep.subr.bf16.mxu0 0
      %1953 = vmatpush2.bf16.msra.mxu0 0
      %1954 = vmatprep.subr.bf16.mxu0 0
      %1955 = vmatpush2.bf16.msra.mxu0 0
      %1956 = vmatprep.subr.bf16.mxu0 0
      %1957 = vmatpush2.bf16.msra.mxu0 0
      %1958 = vmatprep.mubr.bf16.mxu0 0
      %1959 = vmatmul.mubr.bf16.gmra.mxu0 %v1883
      %v1960 = vpop.f32.mrf.mxu0
      %v1961 = vadd.f32 %v1863, %v1960
      %v1962 = vpop.f32.mrf.mxu0
      %v1963 = vpop.f32.mrf.mxu0
      %v1964 = vpop.f32.mrf.mxu0
      %1965 = vdwg.mxu0
      %v1966 = vadd.f32 %v1762, %v1920
      %v1967 = vadd.f32 %v1763, %v1922
      %v1968 = vadd.f32 %v1764, %v1961
      %s1969 = scalar_lea.vmem %s2, 32
      %v1970 = vld [vmem:[%s1969] sm:$0xf]
      %s1971 = scalar_lea.vmem %s3, 32
      %v1972 = vld [vmem:[%s1971] sm:$0xf]
      %1973 = vrot.lane.b32.xlu0 %v525, 90
      %v1974 = vpop.permute.xlu0 %1973
      %1975 = vrot.lane.b32.xlu0 %v526, 90
      %v1976 = vpop.permute.xlu0 %1975
      %1977 = vrot.lane.b32.xlu0 %v527, 90
      %v1978 = vpop.permute.xlu0 %1977
      %1979 = vrot.lane.b32.xlu0 %v528, 90
      %v1980 = vpop.permute.xlu0 %1979
      %vm1981 = vcmask 736256
      %v1982 = vsel %vm1981, %v1974, %v1976
      %v1983 = vsel %vm1981, %v1976, %v1978
      %v1984 = vsel %vm1981, %v1978, %v1980
      %v1989 = vsel %vm316, %v1972, 0
      %1991 = vmatprep.subr.bf16.mxu0 0
      %1992 = vmatpush1.bf16.msra.mxu0 0
      %1993 = vmatprep.subr.bf16.mxu0 0
      %1994 = vmatpush1.bf16.msra.mxu0 0
      %1995 = vmatprep.subr.bf16.mxu0 0
      %1996 = vmatpush1.bf16.msra.mxu0 0
      %1997 = vmatprep.subr.bf16.mxu0 0
      %1998 = vmatpush1.bf16.msra.mxu0 0
      %1999 = vmatprep.subr.bf16.mxu0 0
      %2000 = vmatpush1.bf16.msra.mxu0 0
      %2001 = vmatprep.subr.bf16.mxu0 0
      %2002 = vmatpush1.bf16.msra.mxu0 0
      %2003 = vmatprep.subr.bf16.mxu0 0
      %2004 = vmatpush1.bf16.msra.mxu0 0
      %2005 = vmatprep.subr.bf16.mxu0 %v1983
      %2006 = vmatpush1.bf16.msra.mxu0 %v1982
      %2007 = vmatprep.subr.bf16.mxu0 0
      %2008 = vmatpush2.bf16.msra.mxu0 0
      %2009 = vmatprep.subr.bf16.mxu0 0
      %2010 = vmatpush2.bf16.msra.mxu0 0
      %2011 = vmatprep.subr.bf16.mxu0 0
      %2012 = vmatpush2.bf16.msra.mxu0 0
      %2013 = vmatprep.subr.bf16.mxu0 0
      %2014 = vmatpush2.bf16.msra.mxu0 0
      %2015 = vmatprep.subr.bf16.mxu0 0
      %2016 = vmatpush2.bf16.msra.mxu0 0
      %2017 = vmatprep.subr.bf16.mxu0 0
      %2018 = vmatpush2.bf16.msra.mxu0 0
      %2019 = vmatprep.subr.bf16.mxu0 0
      %2020 = vmatpush2.bf16.msra.mxu0 0
      %2021 = vmatprep.subr.bf16.mxu0 0
      %2022 = vmatpush2.bf16.msra.mxu0 0
      %2023 = vmatprep.mubr.bf16.mxu0 0
      %2024 = vmatmul.mubr.bf16.gmra.mxu0 %v1989
      %v2025 = vpop.f32.mrf.mxu0
      %v2026 = vadd.f32 0.0, %v2025
      %v2027 = vpop.f32.mrf.mxu0
      %v2028 = vadd.f32 0.0, %v2027
      %v2029 = vpop.f32.mrf.mxu0
      %v2030 = vpop.f32.mrf.mxu0
      %2031 = vdwg.mxu0
      %2032 = vmatprep.subr.bf16.mxu0 0
      %2033 = vmatpush1.bf16.msra.mxu0 0
      %2034 = vmatprep.subr.bf16.mxu0 0
      %2035 = vmatpush1.bf16.msra.mxu0 0
      %2036 = vmatprep.subr.bf16.mxu0 0
      %2037 = vmatpush1.bf16.msra.mxu0 0
      %2038 = vmatprep.subr.bf16.mxu0 0
      %2039 = vmatpush1.bf16.msra.mxu0 0
      %2040 = vmatprep.subr.bf16.mxu0 0
      %2041 = vmatpush1.bf16.msra.mxu0 0
      %2042 = vmatprep.subr.bf16.mxu0 0
      %2043 = vmatpush1.bf16.msra.mxu0 0
      %2044 = vmatprep.subr.bf16.mxu0 0
      %2045 = vmatpush1.bf16.msra.mxu0 0
      %2046 = vmatprep.subr.bf16.mxu0 0
      %2047 = vmatpush1.bf16.msra.mxu0 %v1984
      %2048 = vmatprep.subr.bf16.mxu0 0
      %2049 = vmatpush2.bf16.msra.mxu0 0
      %2050 = vmatprep.subr.bf16.mxu0 0
      %2051 = vmatpush2.bf16.msra.mxu0 0
      %2052 = vmatprep.subr.bf16.mxu0 0
      %2053 = vmatpush2.bf16.msra.mxu0 0
      %2054 = vmatprep.subr.bf16.mxu0 0
      %2055 = vmatpush2.bf16.msra.mxu0 0
      %2056 = vmatprep.subr.bf16.mxu0 0
      %2057 = vmatpush2.bf16.msra.mxu0 0
      %2058 = vmatprep.subr.bf16.mxu0 0
      %2059 = vmatpush2.bf16.msra.mxu0 0
      %2060 = vmatprep.subr.bf16.mxu0 0
      %2061 = vmatpush2.bf16.msra.mxu0 0
      %2062 = vmatprep.subr.bf16.mxu0 0
      %2063 = vmatpush2.bf16.msra.mxu0 0
      %2064 = vmatprep.mubr.bf16.mxu0 0
      %2065 = vmatmul.mubr.bf16.gmra.mxu0 %v1989
      %v2066 = vpop.f32.mrf.mxu0
      %v2067 = vadd.f32 0.0, %v2066
      %v2068 = vpop.f32.mrf.mxu0
      %v2069 = vpop.f32.mrf.mxu0
      %v2070 = vpop.f32.mrf.mxu0
      %2071 = vdwg.mxu0
      %2072 = vrot.lane.b32.xlu0 %v640, 90
      %v2073 = vpop.permute.xlu0 %2072
      %2074 = vrot.lane.b32.xlu0 %v641, 90
      %v2075 = vpop.permute.xlu0 %2074
      %2076 = vrot.lane.b32.xlu0 %v642, 90
      %v2077 = vpop.permute.xlu0 %2076
      %2078 = vrot.lane.b32.xlu0 %v643, 90
      %v2079 = vpop.permute.xlu0 %2078
      %v2080 = vsel %vm1981, %v2073, %v2075
      %v2081 = vsel %vm1981, %v2075, %v2077
      %v2082 = vsel %vm1981, %v2077, %v2079
      %v2087 = vsel %vm316, %v1970, 0
      %2089 = vmatprep.subr.bf16.mxu0 0
      %2090 = vmatpush1.bf16.msra.mxu0 0
      %2091 = vmatprep.subr.bf16.mxu0 0
      %2092 = vmatpush1.bf16.msra.mxu0 0
      %2093 = vmatprep.subr.bf16.mxu0 0
      %2094 = vmatpush1.bf16.msra.mxu0 0
      %2095 = vmatprep.subr.bf16.mxu0 0
      %2096 = vmatpush1.bf16.msra.mxu0 0
      %2097 = vmatprep.subr.bf16.mxu0 0
      %2098 = vmatpush1.bf16.msra.mxu0 0
      %2099 = vmatprep.subr.bf16.mxu0 0
      %2100 = vmatpush1.bf16.msra.mxu0 0
      %2101 = vmatprep.subr.bf16.mxu0 0
      %2102 = vmatpush1.bf16.msra.mxu0 0
      %2103 = vmatprep.subr.bf16.mxu0 %v2081
      %2104 = vmatpush1.bf16.msra.mxu0 %v2080
      %2105 = vmatprep.subr.bf16.mxu0 0
      %2106 = vmatpush2.bf16.msra.mxu0 0
      %2107 = vmatprep.subr.bf16.mxu0 0
      %2108 = vmatpush2.bf16.msra.mxu0 0
      %2109 = vmatprep.subr.bf16.mxu0 0
      %2110 = vmatpush2.bf16.msra.mxu0 0
      %2111 = vmatprep.subr.bf16.mxu0 0
      %2112 = vmatpush2.bf16.msra.mxu0 0
      %2113 = vmatprep.subr.bf16.mxu0 0
      %2114 = vmatpush2.bf16.msra.mxu0 0
      %2115 = vmatprep.subr.bf16.mxu0 0
      %2116 = vmatpush2.bf16.msra.mxu0 0
      %2117 = vmatprep.subr.bf16.mxu0 0
      %2118 = vmatpush2.bf16.msra.mxu0 0
      %2119 = vmatprep.subr.bf16.mxu0 0
      %2120 = vmatpush2.bf16.msra.mxu0 0
      %2121 = vmatprep.mubr.bf16.mxu0 0
      %2122 = vmatmul.mubr.bf16.gmra.mxu0 %v2087
      %v2123 = vpop.f32.mrf.mxu0
      %v2124 = vadd.f32 %v2026, %v2123
      %v2125 = vpop.f32.mrf.mxu0
      %v2126 = vadd.f32 %v2028, %v2125
      %v2127 = vpop.f32.mrf.mxu0
      %v2128 = vpop.f32.mrf.mxu0
      %2129 = vdwg.mxu0
      %2130 = vmatprep.subr.bf16.mxu0 0
      %2131 = vmatpush1.bf16.msra.mxu0 0
      %2132 = vmatprep.subr.bf16.mxu0 0
      %2133 = vmatpush1.bf16.msra.mxu0 0
      %2134 = vmatprep.subr.bf16.mxu0 0
      %2135 = vmatpush1.bf16.msra.mxu0 0
      %2136 = vmatprep.subr.bf16.mxu0 0
      %2137 = vmatpush1.bf16.msra.mxu0 0
      %2138 = vmatprep.subr.bf16.mxu0 0
      %2139 = vmatpush1.bf16.msra.mxu0 0
      %2140 = vmatprep.subr.bf16.mxu0 0
      %2141 = vmatpush1.bf16.msra.mxu0 0
      %2142 = vmatprep.subr.bf16.mxu0 0
      %2143 = vmatpush1.bf16.msra.mxu0 0
      %2144 = vmatprep.subr.bf16.mxu0 0
      %2145 = vmatpush1.bf16.msra.mxu0 %v2082
      %2146 = vmatprep.subr.bf16.mxu0 0
      %2147 = vmatpush2.bf16.msra.mxu0 0
      %2148 = vmatprep.subr.bf16.mxu0 0
      %2149 = vmatpush2.bf16.msra.mxu0 0
      %2150 = vmatprep.subr.bf16.mxu0 0
      %2151 = vmatpush2.bf16.msra.mxu0 0
      %2152 = vmatprep.subr.bf16.mxu0 0
      %2153 = vmatpush2.bf16.msra.mxu0 0
      %2154 = vmatprep.subr.bf16.mxu0 0
      %2155 = vmatpush2.bf16.msra.mxu0 0
      %2156 = vmatprep.subr.bf16.mxu0 0
      %2157 = vmatpush2.bf16.msra.mxu0 0
      %2158 = vmatprep.subr.bf16.mxu0 0
      %2159 = vmatpush2.bf16.msra.mxu0 0
      %2160 = vmatprep.subr.bf16.mxu0 0
      %2161 = vmatpush2.bf16.msra.mxu0 0
      %2162 = vmatprep.mubr.bf16.mxu0 0
      %2163 = vmatmul.mubr.bf16.gmra.mxu0 %v2087
      %v2164 = vpop.f32.mrf.mxu0
      %v2165 = vadd.f32 %v2067, %v2164
      %v2166 = vpop.f32.mrf.mxu0
      %v2167 = vpop.f32.mrf.mxu0
      %v2168 = vpop.f32.mrf.mxu0
      %2169 = vdwg.mxu0
      %v2170 = vadd.f32 %v1966, %v2124
      %v2171 = vadd.f32 %v1967, %v2126
      %v2172 = vadd.f32 %v1968, %v2165
      %v2173 = vld [vmem:[%s4] sm:$0xff]
      %2175 = vset.pattern.permute.xlu0 0
      %2176 = vperm.xlu0 %2175, %v2173
      %v2177 = vpop.permute.xlu0 %2176
      %v2179 = vadd.f32 %v2170, %v2177
      %v2180 = vadd.f32 %v2171, %v2177
      %v2181 = vadd.f32 %v2172, %v2177
      %v2182 = vld [vmem:[%s283] sm:$0x7]
      %v2184 = vlaneseq
      %v2185 = vshrl.u32 %v2184, 7
      %v2186 = vsub.s32 0, %v2185
      %v2187 = vrot.slane %v2182, %v2186
      %v2188 = vlaneseq
      %v2189 = vshrl.u32 %v2188, 7
      %v2190 = vsub.s32 1, %v2189
      %v2191 = vrot.slane %v2182, %v2190
      %v2192 = vlaneseq
      %v2193 = vshrl.u32 %v2192, 7
      %v2194 = vsub.s32 2, %v2193
      %v2195 = vrot.slane %v2182, %v2194
      %v2199 = vadd.f32 %v2179, %v2187
      %v2200 = vadd.f32 %v2180, %v2191
      %v2201 = vadd.f32 %v2181, %v2195
      %2202 = vst [vmem:[%s288] sm:$0xff] %v2199
      %2203 = vst [vmem:[%s288 + $0x8] sm:$0xff] %v2200
      %2204 = vst [vmem:[%s288 + $0x10] sm:$0xff] %v2201
      %p2205 = scmp.lt.s32.totalorder %s17, 1
      %s2206 = scalar_select %p2205, %s17, 1
      %s2207 = smul.addr %s2206, 3
      %s2208 = smul.addr %s2207, 8
      %s2209 = scalar_lea.vmem %s6, %s2208
      // Predicated region
      $region45: #{eudncnn_forward.15} parent=43 // pred_check
        %p2210 = pneg %p176
      $region46: #{eudncnn_forward.15} parent=43 // pred_check_branch
        %2212 = sbr.rel (%p2210) target = $region48
      $region47: #{eudncnn_forward.15} parent=43 // pred_region
        _
      $region48: #{eudncnn_forward.15} parent=43 // pred_fallthru
        _
    $region44: #{eudncnn_forward.15} parent=5 // pred_fallthru
      _
    %p2213 = scmp.le.s32.totalorder 2, %s12
    // Predicated region
    $region49: #{eudncnn_forward.15} parent=5 // pred_check
      %p2214 = pneg %p2213
    $region50: #{eudncnn_forward.15} parent=5 // pred_check_branch
      %2216 = sbr.rel (%p2214) target = $region52
    $region51: #{eudncnn_forward.15} parent=5 // pred_region
      %s2217 = ssub.s32 %s12, 2
      // Predicated region
      $region53: #{eudncnn_forward.15} parent=51 // pred_check
        %p2218 = pneg %p182
      $region54: #{eudncnn_forward.15} parent=51 // pred_check_branch
        %2220 = sbr.rel (%p2218) target = $region56
      $region55: #{eudncnn_forward.15} parent=51 // pred_region
        %p2221 = scmp.lt.s32.totalorder %s18, 1
        %s2222 = scalar_select %p2221, %s18, 1
        %s2223 = smul.addr %s2222, 3
        %s2224 = smul.addr %s2223, 8
        %s2225 = scalar_lea.vmem %s6, %s2224
      $region56: #{eudncnn_forward.15} parent=51 // pred_fallthru
        _
    $region52: #{eudncnn_forward.15} parent=5 // pred_fallthru
      _
  $region6: #{eudncnn_forward.15} parent=0 // loop_footer
    %s16 = sadd.s32 1, %s12
  $region7: #{eudncnn_forward.15} parent=0 // loop_footer_branch
    %11 = sbr.rel target = $region3
  $region8: #{eudncnn_forward.15} parent=0 // loop_exit
    _

</llo_original>
